<compile_context>
chip_gen: v6e
topology: v6e:2x2x1
jax: 0.10.0
libtpu: 0.0.40
codegen_flags: <defaults>
</compile_context>

<pallas_src>
import functools

import jax
import jax.numpy as jnp
import numpy as np
from jax import lax
from jax.experimental import pallas as pl
from jax.experimental.pallas import tpu as pltpu

BN_EPSILON = 1e-5  # base_ops.BN_EPSILON in nasbench101


def _round_up(x, m):
    return ((x + m - 1) // m) * m


def _vmem_cap_bytes():
    try:
        info = pltpu.get_tpu_info()
        for attr in ("vmem_capacity_bytes", "vmem_size_bytes", "vmem_bytes"):
            v = getattr(info, attr, None)
            if v:
                return int(v)
    except Exception:
        pass
    return 64 << 20  # conservative default: v7x per-TensorCore VMEM


def _vmem_limit(need_bytes):
    cap = _vmem_cap_bytes()
    return int(min(max(int(need_bytes) + (8 << 20), 16 << 20), int(0.85 * cap)))


def _pick_block_n(n, per_sample_bytes, target_bytes):
    """Largest divisor of n whose per-step working set stays under target."""
    best = 1
    for nb in range(1, n + 1):
        if n % nb == 0 and nb * per_sample_bytes <= target_bytes:
            best = nb
    return best


# ---------------------------------------------------------------------------
# Shared conv block: in-VMEM im2col + one fused-K MXU matmul.
# Returns the f32 conv block in (Cout_pad, Nb*Ho*Wo) orientation (channels on
# sublanes == final NCHW layout, no output transpose needed).
# ---------------------------------------------------------------------------
def _conv_block(x_ref, w_ref, xpad_ref, patch_ref, *, KH, KW, padding,
                highest_precision):
    Nb, H, W, Cin = x_ref.shape
    _, Hp, Wp, _ = xpad_ref.shape
    Kdim = patch_ref.shape[-1]
    Ho, Wo = Hp - (KH - 1), Wp - (KW - 1)

    # Copy the unpadded sample block into the interior of the halo scratch
    # (borders were zeroed once at grid step 0 and stay zero across steps).
    xpad_ref[:, padding:padding + H, padding:padding + W, :] = x_ref[...]

    # In-VMEM im2col: contraction columns ordered (kh, kw, cin) to match the
    # (Cout_pad, KH*KW*Cin) weight slab.
    for kh in range(KH):
        for kw in range(KW):
            tap = kh * KW + kw
            patch_ref[:, :, :, tap * Cin:(tap + 1) * Cin] = \
                xpad_ref[:, kh:kh + Ho, kw:kw + Wo, :]

    # Collapsing the major dims only (lane dim unchanged); cheap when Wo % 8 == 0
    # which holds for the nasbench feature maps (32/16/8).
    patch = patch_ref[...].reshape(Nb * Ho * Wo, Kdim)

    kwargs = dict(preferred_element_type=jnp.float32)
    if highest_precision:
        kwargs["precision"] = lax.Precision.HIGHEST
    # (Cout_pad, K) x (M, K) contracted on K  ->  (Cout_pad, M).
    return lax.dot_general(w_ref[...], patch, (((1,), (1,)), ((), ())), **kwargs)


# ---------------------------------------------------------------------------
# Fully fused single-call path: conv + batch stats + BN + ReLU, intermediate
# kept entirely in VMEM, output written once in its final (N, Cout, H*W) layout.
# ---------------------------------------------------------------------------
def _fused_kernel(x_ref, w_ref, gamma_ref, beta_ref, out_ref,
                  xpad_ref, patch_ref, keep_ref, sum_ref, sumsq_ref,
                  *, KH, KW, padding, eps, highest_precision):
    b = pl.program_id(0)
    nblocks = pl.num_programs(0)
    Nb = x_ref.shape[0]
    N, Cout, HoWo = out_ref.shape

    @pl.when(b == 0)
    def _init():
        sum_ref[...] = jnp.zeros_like(sum_ref)
        sumsq_ref[...] = jnp.zeros_like(sumsq_ref)
        if padding > 0:
            xpad_ref[...] = jnp.zeros_like(xpad_ref)

    acc = _conv_block(x_ref, w_ref, xpad_ref, patch_ref, KH=KH, KW=KW,
                      padding=padding, highest_precision=highest_precision)

    # Per-channel partial sums from the f32 accumulator (before any downcast).
    sum_ref[...] += jnp.sum(acc, axis=1, keepdims=True)
    sumsq_ref[...] += jnp.sum(acc * acc, axis=1, keepdims=True)

    keep_ref[b] = acc.astype(keep_ref.dtype)       # VMEM-resident, never hits HBM

    @pl.when(b == nblocks - 1)
    def _finish():
        count = jnp.float32(N * HoWo)
        mean = sum_ref[...] / count                              # (Cout_pad, 1)
        var = jnp.maximum(sumsq_ref[...] / count - mean * mean, 0.0)
        inv = lax.rsqrt(var + eps)
        scale = gamma_ref[...] * inv                             # (Cout_pad, 1)
        shift = beta_ref[...] - mean * scale                     # (Cout_pad, 1)
        for i in range(keep_ref.shape[0]):         # static: small when fused path taken
            blk = keep_ref[i].astype(jnp.float32)                # (Cout_pad, Nb*HoWo)
            y = jnp.maximum(blk * scale + shift, 0.0)
            y = y[:Cout, :].astype(out_ref.dtype)  # drop padded channels in-kernel
            for j in range(Nb):
                out_ref[i * Nb + j] = y[:, j * HoWo:(j + 1) * HoWo]


# ---------------------------------------------------------------------------
# Two-phase fallback (conv intermediate too large for VMEM).
# ---------------------------------------------------------------------------
def _conv_stats_kernel(x_ref, w_ref, conv_ref, sum_ref, sumsq_ref,
                       xpad_ref, patch_ref,
                       *, KH, KW, padding, highest_precision):
    b = pl.program_id(0)
    Nb = x_ref.shape[0]
    _, Cout, HoWo = conv_ref.shape

    @pl.when(b == 0)
    def _init():
        sum_ref[...] = jnp.zeros_like(sum_ref)
        sumsq_ref[...] = jnp.zeros_like(sumsq_ref)
        if padding > 0:
            xpad_ref[...] = jnp.zeros_like(xpad_ref)

    acc = _conv_block(x_ref, w_ref, xpad_ref, patch_ref, KH=KH, KW=KW,
                      padding=padding, highest_precision=highest_precision)

    sum_ref[...] += jnp.sum(acc, axis=1, keepdims=True)
    sumsq_ref[...] += jnp.sum(acc * acc, axis=1, keepdims=True)

    # Store only the real channels (no Cout_pad inflation of HBM traffic).
    for j in range(Nb):
        conv_ref[j] = acc[:Cout, j * HoWo:(j + 1) * HoWo].astype(conv_ref.dtype)


def _bn_relu_kernel(conv_ref, scale_ref, shift_ref, o_ref):
    scale = scale_ref[...]                       # (Cout, 1) f32
    shift = shift_ref[...]
    for j in range(conv_ref.shape[0]):           # static Nb2
        y = conv_ref[j].astype(jnp.float32) * scale + shift
        o_ref[j] = jnp.maximum(y, 0.0).astype(o_ref.dtype)


# ---------------------------------------------------------------------------
# Wrapper
# ---------------------------------------------------------------------------
def dynamic_relu_conv_bn_v2(x_nchw, weight_oihw, gamma, beta, kernel_size,
                            compute_dtype=jnp.bfloat16, force_two_phase=False):
    """Forward of DynamicReLUConvBNv2 with dynamic_conv_method='fixed' and the
    current sizes equal to the full sizes. BatchNorm uses train-mode batch
    statistics (biased variance) with affine, matching the module's forward."""
    # TODO(synk): dynamic_conv_method in {'random_chunck','select_dropout',
    # 'interpolation','expand'} and Dropout2d on the weight are not implemented;
    # only the 'fixed' path at full channel sizes is covered.
    # TODO(synk): BN running-stat (momentum) buffer updates are not modelled;
    # only the forward output from batch statistics is produced.
    padding = 1 if kernel_size == 3 else 0
    N, Cin, H, W = x_nchw.shape
    Cout, Cin_w, KH, KW = weight_oihw.shape
    assert Cin_w == Cin and KH == kernel_size and KW == kernel_size

    Hp, Wp = H + 2 * padding, W + 2 * padding
    Ho, Wo = Hp - (KH - 1), Wp - (KW - 1)
    HoWo = Ho * Wo
    Kdim = KH * KW * Cin
    Cout_pad = _round_up(Cout, 128)      # full MXU output width; sliced in-kernel
    highest = (compute_dtype == jnp.float32)
    store_dtype = jnp.float32 if highest else jnp.bfloat16
    out_dtype = x_nchw.dtype

    # ---- XLA-side layout glue (no pad, no im2col materialization) ----------
    x = jnp.transpose(x_nchw, (0, 2, 3, 1)).astype(compute_dtype)         # NHWC
    # (Cout, Cin, KH, KW) -> (Cout_pad, KH*KW*Cin), columns ordered (kh, kw, cin)
    w2d = jnp.transpose(weight_oihw, (0, 2, 3, 1)).reshape(Cout, Kdim)
    w2d = jnp.pad(w2d, ((0, Cout_pad - Cout), (0, 0))).astype(compute_dtype)
    gamma32 = gamma.astype(jnp.float32)
    beta32 = beta.astype(jnp.float32)

    in_b = jnp.dtype(compute_dtype).itemsize
    st_b = jnp.dtype(store_dtype).itemsize
    o_b = jnp.dtype(out_dtype).itemsize
    cap = _vmem_cap_bytes()

    # Per-sample working-set bytes of the conv stage.
    per_sample = (H * W * Cin * in_b              # x input block
                  + Hp * Wp * Cin * in_b          # halo scratch
                  + HoWo * Kdim * in_b            # im2col patch
                  + HoWo * Cout_pad * 4)          # f32 matmul result
    w_bytes = Cout_pad * Kdim * in_b

    # Generation-aware sample-block targets (bigger blocks on 128 MiB parts).
    tgt_conv = (4 << 20) if cap <= (64 << 20) else (8 << 20)
    tgt_ew = (8 << 20) if cap <= (64 << 20) else (16 << 20)

    Nb = _pick_block_n(N, per_sample, tgt_conv)
    nblocks = N // Nb

    keep_bytes = N * HoWo * Cout_pad * st_b
    out_bytes = N * Cout * HoWo * o_b
    fused_need = (2 * Nb * H * W * Cin * in_b + w_bytes
                  + Nb * (Hp * Wp * Cin + HoWo * Kdim) * in_b
                  + 2 * Nb * HoWo * Cout_pad * 4
                  + keep_bytes + 2 * out_bytes)
    use_fused = (not force_two_phase) and (fused_need + (8 << 20)) <= int(0.6 * cap)

    if use_fused:
        gamma_col = jnp.pad(gamma32, (0, Cout_pad - Cout)).reshape(Cout_pad, 1)
        beta_col = jnp.pad(beta32, (0, Cout_pad - Cout)).reshape(Cout_pad, 1)
        out_flat = pl.pallas_call(
            functools.partial(_fused_kernel, KH=KH, KW=KW, padding=padding,
                              eps=BN_EPSILON, highest_precision=highest),
            grid=(nblocks,),
            in_specs=[
                pl.BlockSpec((Nb, H, W, Cin), lambda b: (b, 0, 0, 0)),
                pl.BlockSpec((Cout_pad, Kdim), lambda b: (0, 0)),     # resident
                pl.BlockSpec((Cout_pad, 1), lambda b: (0, 0)),        # gamma
                pl.BlockSpec((Cout_pad, 1), lambda b: (0, 0)),        # beta
            ],
            out_specs=pl.BlockSpec((N, Cout, HoWo), lambda b: (0, 0, 0)),
            out_shape=jax.ShapeDtypeStruct((N, Cout, HoWo), out_dtype),
            scratch_shapes=[
                pltpu.VMEM((Nb, Hp, Wp, Cin), compute_dtype),          # halo
                pltpu.VMEM((Nb, Ho, Wo, Kdim), compute_dtype),         # im2col
                pltpu.VMEM((nblocks, Cout_pad, Nb * HoWo), store_dtype),  # conv keep
                pltpu.VMEM((Cout_pad, 1), jnp.float32),                # sum
                pltpu.VMEM((Cout_pad, 1), jnp.float32),                # sumsq
            ],
            compiler_params=pltpu.CompilerParams(
                dimension_semantics=("arbitrary",),   # stats + epilogue need order
                vmem_limit_bytes=_vmem_limit(fused_need)),
        )(x, w2d, gamma_col, beta_col)
        return out_flat.reshape(N, Cout, Ho, Wo)

    # ---- two-phase fallback -------------------------------------------------
    p1_need = (2 * Nb * H * W * Cin * in_b + w_bytes
               + Nb * (Hp * Wp * Cin + HoWo * Kdim) * in_b
               + 2 * Nb * HoWo * Cout_pad * 4
               + 2 * Nb * Cout * HoWo * st_b)
    conv_flat, ch_sum, ch_sq = pl.pallas_call(
        functools.partial(_conv_stats_kernel, KH=KH, KW=KW, padding=padding,
                          highest_precision=highest),
        grid=(nblocks,),
        in_specs=[
            pl.BlockSpec((Nb, H, W, Cin), lambda b: (b, 0, 0, 0)),
            pl.BlockSpec((Cout_pad, Kdim), lambda b: (0, 0)),
        ],
        out_specs=(
            pl.BlockSpec((Nb, Cout, HoWo), lambda b: (b, 0, 0)),
            pl.BlockSpec((Cout_pad, 1), lambda b: (0, 0)),
            pl.BlockSpec((Cout_pad, 1), lambda b: (0, 0)),
        ),
        out_shape=(
            jax.ShapeDtypeStruct((N, Cout, HoWo), store_dtype),
            jax.ShapeDtypeStruct((Cout_pad, 1), jnp.float32),
            jax.ShapeDtypeStruct((Cout_pad, 1), jnp.float32),
        ),
        scratch_shapes=[
            pltpu.VMEM((Nb, Hp, Wp, Cin), compute_dtype),
            pltpu.VMEM((Nb, Ho, Wo, Kdim), compute_dtype),
        ],
        compiler_params=pltpu.CompilerParams(
            # TODO(synk): on v7x, shard this axis across both TensorCores with
            # per-core partial stats reduced in the XLA glue below.
            dimension_semantics=("arbitrary",),
            vmem_limit_bytes=_vmem_limit(p1_need)),
    )(x, w2d)

    # Tiny XLA glue: fold batch stats + affine into per-channel scale / shift.
    count = jnp.float32(N * HoWo)
    mean = ch_sum[:Cout, 0] / count
    var = jnp.maximum(ch_sq[:Cout, 0] / count - mean * mean, 0.0)
    inv = lax.rsqrt(var + BN_EPSILON)
    scale = (gamma32 * inv).reshape(Cout, 1)
    shift = (beta32 - mean * gamma32 * inv).reshape(Cout, 1)

    per_sample2 = Cout * HoWo * (st_b + o_b)
    Nb2 = _pick_block_n(N, per_sample2, tgt_ew)
    p2_need = 2 * Nb2 * per_sample2
    out_flat = pl.pallas_call(
        _bn_relu_kernel,
        grid=(N // Nb2,),
        in_specs=[
            pl.BlockSpec((Nb2, Cout, HoWo), lambda b: (b, 0, 0)),
            pl.BlockSpec((Cout, 1), lambda b: (0, 0)),
            pl.BlockSpec((Cout, 1), lambda b: (0, 0)),
        ],
        out_specs=pl.BlockSpec((Nb2, Cout, HoWo), lambda b: (b, 0, 0)),
        out_shape=jax.ShapeDtypeStruct((N, Cout, HoWo), out_dtype),
        compiler_params=pltpu.CompilerParams(
            dimension_semantics=("parallel",),
            vmem_limit_bytes=_vmem_limit(p2_need)),
    )(conv_flat, scale, shift)
    return out_flat.reshape(N, Cout, Ho, Wo)


# ---------------------------------------------------------------------------
# Reference & test
# ---------------------------------------------------------------------------
def _reference(x_nchw, weight_oihw, gamma, beta, kernel_size):
    padding = 1 if kernel_size == 3 else 0
    conv = lax.conv_general_dilated(
        x_nchw.astype(jnp.float32), weight_oihw.astype(jnp.float32),
        window_strides=(1, 1), padding=[(padding, padding), (padding, padding)],
        dimension_numbers=("NCHW", "OIHW", "NCHW"),
        precision=lax.Precision.HIGHEST)
    mean = jnp.mean(conv, axis=(0, 2, 3), keepdims=True)
    var = jnp.mean(jnp.square(conv - mean), axis=(0, 2, 3), keepdims=True)
    y = (conv - mean) * lax.rsqrt(var + BN_EPSILON)
    y = y * gamma.reshape(1, -1, 1, 1) + beta.reshape(1, -1, 1, 1)
    return jnp.maximum(y, 0.0)


if __name__ == "__main__":
    key = jax.random.PRNGKey(0)
    N, Cin, H, W, Cout = 2, 4, 16, 16, 8
    kx, kw3, kw1, kg, kb = jax.random.split(key, 5)

    x = jax.random.normal(kx, (N, Cin, H, W), dtype=jnp.float32)
    gamma = jax.random.uniform(kg, (Cout,), jnp.float32, 0.5, 1.5)
    beta = 0.1 * jax.random.normal(kb, (Cout,), jnp.float32)

    # --- 3x3 conv (padding=1) ------------------------------------------------
    ks = 3
    fan_in = Cin * ks * ks
    w3 = jax.random.uniform(kw3, (Cout, Cin, ks, ks), jnp.float32,
                            minval=-1.0 / np.sqrt(fan_in),
                            maxval=1.0 / np.sqrt(fan_in))
    ref3 = _reference(x, w3, gamma, beta, ks)

    # f32 compute, fully fused single kernel: tight numerical validation.
    out = jax.block_until_ready(
        dynamic_relu_conv_bn_v2(x, w3, gamma, beta, ks,
                                compute_dtype=jnp.float32))
    assert out.shape == (N, Cout, H, W), out.shape
    np.testing.assert_allclose(np.asarray(out), np.asarray(ref3),
                               rtol=1e-4, atol=1e-4)

    # bf16 matmul-input path (production config).
    out_bf16 = jax.block_until_ready(
        dynamic_relu_conv_bn_v2(x, w3, gamma, beta, ks,
                                compute_dtype=jnp.bfloat16))
    np.testing.assert_allclose(np.asarray(out_bf16), np.asarray(ref3),
                               rtol=5e-2, atol=5e-2)

    # Two-phase fallback path (used when the intermediate exceeds VMEM).
    out_2p = jax.block_until_ready(
        dynamic_relu_conv_bn_v2(x, w3, gamma, beta, ks,
                                compute_dtype=jnp.float32,
                                force_two_phase=True))
    np.testing.assert_allclose(np.asarray(out_2p), np.asarray(ref3),
                               rtol=1e-4, atol=1e-4)

    # --- 1x1 conv (padding=0) ------------------------------------------------
    w1 = jax.random.uniform(kw1, (Cout, Cin, 1, 1), jnp.float32,
                            minval=-1.0 / np.sqrt(Cin), maxval=1.0 / np.sqrt(Cin))
    ref1 = _reference(x, w1, gamma, beta, 1)
    out1 = jax.block_until_ready(
        dynamic_relu_conv_bn_v2(x, w1, gamma, beta, 1,
                                compute_dtype=jnp.float32))
    np.testing.assert_allclose(np.asarray(out1), np.asarray(ref1),
                               rtol=1e-4, atol=1e-4)

    print("KERNEL_OK")
</pallas_src>

<mosaic_0001>
module attributes {stable_mosaic.version = 11 : i64} {
  func.func @_fused_kernel(%arg0: i32, %arg1: memref<2x16x16x4xf32, #tpu.memory_space<vmem>>, %arg2: memref<128x36xf32, #tpu.memory_space<vmem>>, %arg3: memref<128x1xf32, #tpu.memory_space<vmem>>, %arg4: memref<128x1xf32, #tpu.memory_space<vmem>>, %arg5: memref<2x8x256xf32, #tpu.memory_space<vmem>>, %arg6: memref<2x18x18x4xf32, #tpu.memory_space<vmem>>, %arg7: memref<2x16x16x36xf32, #tpu.memory_space<vmem>>, %arg8: memref<1x128x512xf32, #tpu.memory_space<vmem>>, %arg9: memref<128x1xf32, #tpu.memory_space<vmem>>, %arg10: memref<128x1xf32, #tpu.memory_space<vmem>>) attributes {dimension_semantics = [#tpu.dimension_semantics<arbitrary>], iteration_bounds = array<i64: 1>, scalar_prefetch = 0 : i64, scratch_operands = 5 : i64, tpu.core_type = #tpu.core_type<tc>, window_params = [{transform_indices = @transform_0, window_bounds = array<i64: 2, 16, 16, 4>}, {pipeline_mode = #tpu.pipeline_mode<synchronous>, transform_indices = @transform_1, window_bounds = array<i64: 128, 36>}, {pipeline_mode = #tpu.pipeline_mode<synchronous>, transform_indices = @transform_2, window_bounds = array<i64: 128, 1>}, {pipeline_mode = #tpu.pipeline_mode<synchronous>, transform_indices = @transform_3, window_bounds = array<i64: 128, 1>}, {pipeline_mode = #tpu.pipeline_mode<synchronous>, transform_indices = @transform_4, window_bounds = array<i64: 2, 8, 256>}]} {
    %c0_i32 = arith.constant 0 : i32
    %0 = arith.cmpi eq, %arg0, %c0_i32 : i32
    %1 = arith.extui %0 : i1 to i32
    %c0_i32_0 = arith.constant 0 : i32
    %2 = arith.cmpi ne, %1, %c0_i32_0 : i32
    scf.if %2 {
      %cst_90 = arith.constant 0.000000e+00 : f32
      %45 = vector.broadcast %cst_90 : f32 to vector<128x1xf32>
      %c0_91 = arith.constant 0 : index
      %c0_92 = arith.constant 0 : index
      %46 = vector.load %arg9[%c0_91, %c0_92] : memref<128x1xf32, #tpu.memory_space<vmem>>, vector<128x1xf32>
      tpu.vector_store %arg9[%c0_91, %c0_92], %45 {strides = array<i32>} : memref<128x1xf32, #tpu.memory_space<vmem>>, vector<128x1xf32>,
      %cst_93 = arith.constant 0.000000e+00 : f32
      %47 = vector.broadcast %cst_93 : f32 to vector<128x1xf32>
      %c0_94 = arith.constant 0 : index
      %c0_95 = arith.constant 0 : index
      %48 = vector.load %arg10[%c0_94, %c0_95] : memref<128x1xf32, #tpu.memory_space<vmem>>, vector<128x1xf32>
      tpu.vector_store %arg10[%c0_94, %c0_95], %47 {strides = array<i32>} : memref<128x1xf32, #tpu.memory_space<vmem>>, vector<128x1xf32>,
      %cst_96 = arith.constant 0.000000e+00 : f32
      %49 = vector.broadcast %cst_96 : f32 to vector<2x18x18x4xf32>
      %c0_97 = arith.constant 0 : index
      %c0_98 = arith.constant 0 : index
      %c0_99 = arith.constant 0 : index
      %c0_100 = arith.constant 0 : index
      %50 = vector.load %arg6[%c0_97, %c0_98, %c0_99, %c0_100] : memref<2x18x18x4xf32, #tpu.memory_space<vmem>>, vector<2x18x18x4xf32>
      tpu.vector_store %arg6[%c0_97, %c0_98, %c0_99, %c0_100], %49 {strides = array<i32>} : memref<2x18x18x4xf32, #tpu.memory_space<vmem>>, vector<2x18x18x4xf32>,
    } else {
    }
    %c0 = arith.constant 0 : index
    %c0_1 = arith.constant 0 : index
    %c0_2 = arith.constant 0 : index
    %c0_3 = arith.constant 0 : index
    %3 = vector.load %arg1[%c0, %c0_1, %c0_2, %c0_3] : memref<2x16x16x4xf32, #tpu.memory_space<vmem>>, vector<2x16x16x4xf32>
    %c0_4 = arith.constant 0 : index
    %c1 = arith.constant 1 : index
    %c1_5 = arith.constant 1 : index
    %c0_6 = arith.constant 0 : index
    %4 = vector.load %arg6[%c0_4, %c1, %c1_5, %c0_6] : memref<2x18x18x4xf32, #tpu.memory_space<vmem>>, vector<2x16x16x4xf32>
    tpu.vector_store %arg6[%c0_4, %c1, %c1_5, %c0_6], %3 {strides = array<i32>} : memref<2x18x18x4xf32, #tpu.memory_space<vmem>>, vector<2x16x16x4xf32>,
    %c0_7 = arith.constant 0 : index
    %c0_8 = arith.constant 0 : index
    %c0_9 = arith.constant 0 : index
    %c0_10 = arith.constant 0 : index
    %5 = vector.load %arg6[%c0_7, %c0_8, %c0_9, %c0_10] : memref<2x18x18x4xf32, #tpu.memory_space<vmem>>, vector<2x16x16x4xf32>
    %c0_11 = arith.constant 0 : index
    %c0_12 = arith.constant 0 : index
    %c0_13 = arith.constant 0 : index
    %c0_14 = arith.constant 0 : index
    %6 = vector.load %arg7[%c0_11, %c0_12, %c0_13, %c0_14] : memref<2x16x16x36xf32, #tpu.memory_space<vmem>>, vector<2x16x16x4xf32>
    tpu.vector_store %arg7[%c0_11, %c0_12, %c0_13, %c0_14], %5 {strides = array<i32>} : memref<2x16x16x36xf32, #tpu.memory_space<vmem>>, vector<2x16x16x4xf32>,
    %c0_15 = arith.constant 0 : index
    %c0_16 = arith.constant 0 : index
    %c1_17 = arith.constant 1 : index
    %c0_18 = arith.constant 0 : index
    %7 = vector.load %arg6[%c0_15, %c0_16, %c1_17, %c0_18] : memref<2x18x18x4xf32, #tpu.memory_space<vmem>>, vector<2x16x16x4xf32>
    %c0_19 = arith.constant 0 : index
    %c0_20 = arith.constant 0 : index
    %c0_21 = arith.constant 0 : index
    %c4 = arith.constant 4 : index
    %8 = vector.load %arg7[%c0_19, %c0_20, %c0_21, %c4] : memref<2x16x16x36xf32, #tpu.memory_space<vmem>>, vector<2x16x16x4xf32>
    tpu.vector_store %arg7[%c0_19, %c0_20, %c0_21, %c4], %7 {strides = array<i32>} : memref<2x16x16x36xf32, #tpu.memory_space<vmem>>, vector<2x16x16x4xf32>,
    %c0_22 = arith.constant 0 : index
    %c0_23 = arith.constant 0 : index
    %c2 = arith.constant 2 : index
    %c0_24 = arith.constant 0 : index
    %9 = vector.load %arg6[%c0_22, %c0_23, %c2, %c0_24] : memref<2x18x18x4xf32, #tpu.memory_space<vmem>>, vector<2x16x16x4xf32>
    %c0_25 = arith.constant 0 : index
    %c0_26 = arith.constant 0 : index
    %c0_27 = arith.constant 0 : index
    %c8 = arith.constant 8 : index
    %10 = vector.load %arg7[%c0_25, %c0_26, %c0_27, %c8] : memref<2x16x16x36xf32, #tpu.memory_space<vmem>>, vector<2x16x16x4xf32>
    tpu.vector_store %arg7[%c0_25, %c0_26, %c0_27, %c8], %9 {strides = array<i32>} : memref<2x16x16x36xf32, #tpu.memory_space<vmem>>, vector<2x16x16x4xf32>,
    %c0_28 = arith.constant 0 : index
    %c1_29 = arith.constant 1 : index
    %c0_30 = arith.constant 0 : index
    %c0_31 = arith.constant 0 : index
    %11 = vector.load %arg6[%c0_28, %c1_29, %c0_30, %c0_31] : memref<2x18x18x4xf32, #tpu.memory_space<vmem>>, vector<2x16x16x4xf32>
    %c0_32 = arith.constant 0 : index
    %c0_33 = arith.constant 0 : index
    %c0_34 = arith.constant 0 : index
    %c12 = arith.constant 12 : index
    %12 = vector.load %arg7[%c0_32, %c0_33, %c0_34, %c12] : memref<2x16x16x36xf32, #tpu.memory_space<vmem>>, vector<2x16x16x4xf32>
    tpu.vector_store %arg7[%c0_32, %c0_33, %c0_34, %c12], %11 {strides = array<i32>} : memref<2x16x16x36xf32, #tpu.memory_space<vmem>>, vector<2x16x16x4xf32>,
    %c0_35 = arith.constant 0 : index
    %c1_36 = arith.constant 1 : index
    %c1_37 = arith.constant 1 : index
    %c0_38 = arith.constant 0 : index
    %13 = vector.load %arg6[%c0_35, %c1_36, %c1_37, %c0_38] : memref<2x18x18x4xf32, #tpu.memory_space<vmem>>, vector<2x16x16x4xf32>
    %c0_39 = arith.constant 0 : index
    %c0_40 = arith.constant 0 : index
    %c0_41 = arith.constant 0 : index
    %c16 = arith.constant 16 : index
    %14 = vector.load %arg7[%c0_39, %c0_40, %c0_41, %c16] : memref<2x16x16x36xf32, #tpu.memory_space<vmem>>, vector<2x16x16x4xf32>
    tpu.vector_store %arg7[%c0_39, %c0_40, %c0_41, %c16], %13 {strides = array<i32>} : memref<2x16x16x36xf32, #tpu.memory_space<vmem>>, vector<2x16x16x4xf32>,
    %c0_42 = arith.constant 0 : index
    %c1_43 = arith.constant 1 : index
    %c2_44 = arith.constant 2 : index
    %c0_45 = arith.constant 0 : index
    %15 = vector.load %arg6[%c0_42, %c1_43, %c2_44, %c0_45] : memref<2x18x18x4xf32, #tpu.memory_space<vmem>>, vector<2x16x16x4xf32>
    %c0_46 = arith.constant 0 : index
    %c0_47 = arith.constant 0 : index
    %c0_48 = arith.constant 0 : index
    %c20 = arith.constant 20 : index
    %16 = vector.load %arg7[%c0_46, %c0_47, %c0_48, %c20] : memref<2x16x16x36xf32, #tpu.memory_space<vmem>>, vector<2x16x16x4xf32>
    tpu.vector_store %arg7[%c0_46, %c0_47, %c0_48, %c20], %15 {strides = array<i32>} : memref<2x16x16x36xf32, #tpu.memory_space<vmem>>, vector<2x16x16x4xf32>,
    %c0_49 = arith.constant 0 : index
    %c2_50 = arith.constant 2 : index
    %c0_51 = arith.constant 0 : index
    %c0_52 = arith.constant 0 : index
    %17 = vector.load %arg6[%c0_49, %c2_50, %c0_51, %c0_52] : memref<2x18x18x4xf32, #tpu.memory_space<vmem>>, vector<2x16x16x4xf32>
    %c0_53 = arith.constant 0 : index
    %c0_54 = arith.constant 0 : index
    %c0_55 = arith.constant 0 : index
    %c24 = arith.constant 24 : index
    %18 = vector.load %arg7[%c0_53, %c0_54, %c0_55, %c24] : memref<2x16x16x36xf32, #tpu.memory_space<vmem>>, vector<2x16x16x4xf32>
    tpu.vector_store %arg7[%c0_53, %c0_54, %c0_55, %c24], %17 {strides = array<i32>} : memref<2x16x16x36xf32, #tpu.memory_space<vmem>>, vector<2x16x16x4xf32>,
    %c0_56 = arith.constant 0 : index
    %c2_57 = arith.constant 2 : index
    %c1_58 = arith.constant 1 : index
    %c0_59 = arith.constant 0 : index
    %19 = vector.load %arg6[%c0_56, %c2_57, %c1_58, %c0_59] : memref<2x18x18x4xf32, #tpu.memory_space<vmem>>, vector<2x16x16x4xf32>
    %c0_60 = arith.constant 0 : index
    %c0_61 = arith.constant 0 : index
    %c0_62 = arith.constant 0 : index
    %c28 = arith.constant 28 : index
    %20 = vector.load %arg7[%c0_60, %c0_61, %c0_62, %c28] : memref<2x16x16x36xf32, #tpu.memory_space<vmem>>, vector<2x16x16x4xf32>
    tpu.vector_store %arg7[%c0_60, %c0_61, %c0_62, %c28], %19 {strides = array<i32>} : memref<2x16x16x36xf32, #tpu.memory_space<vmem>>, vector<2x16x16x4xf32>,
    %c0_63 = arith.constant 0 : index
    %c2_64 = arith.constant 2 : index
    %c2_65 = arith.constant 2 : index
    %c0_66 = arith.constant 0 : index
    %21 = vector.load %arg6[%c0_63, %c2_64, %c2_65, %c0_66] : memref<2x18x18x4xf32, #tpu.memory_space<vmem>>, vector<2x16x16x4xf32>
    %c0_67 = arith.constant 0 : index
    %c0_68 = arith.constant 0 : index
    %c0_69 = arith.constant 0 : index
    %c32 = arith.constant 32 : index
    %22 = vector.load %arg7[%c0_67, %c0_68, %c0_69, %c32] : memref<2x16x16x36xf32, #tpu.memory_space<vmem>>, vector<2x16x16x4xf32>
    tpu.vector_store %arg7[%c0_67, %c0_68, %c0_69, %c32], %21 {strides = array<i32>} : memref<2x16x16x36xf32, #tpu.memory_space<vmem>>, vector<2x16x16x4xf32>,
    %c0_70 = arith.constant 0 : index
    %c0_71 = arith.constant 0 : index
    %c0_72 = arith.constant 0 : index
    %c0_73 = arith.constant 0 : index
    %23 = vector.load %arg7[%c0_70, %c0_71, %c0_72, %c0_73] : memref<2x16x16x36xf32, #tpu.memory_space<vmem>>, vector<2x16x16x36xf32>
    %24 = vector.shape_cast %23 : vector<2x16x16x36xf32> to vector<512x36xf32>
    %c0_74 = arith.constant 0 : index
    %c0_75 = arith.constant 0 : index
    %25 = vector.load %arg2[%c0_74, %c0_75] : memref<128x36xf32, #tpu.memory_space<vmem>>, vector<128x36xf32>
    %cst = arith.constant dense<0.000000e+00> : vector<128x512xf32>
    %26 = tpu.matmul %25, %24, %cst {dimension_numbers = #tpu.dot_dimension_numbers<[1], [1], [0], [0], [0, 0, 1, 0], [], []>, precision = #tpu.contract_precision<fp32>} : vector<128x36xf32>, vector<512x36xf32>, vector<128x512xf32> -> vector<128x512xf32>
    %c0_76 = arith.constant 0 : index
    %c0_77 = arith.constant 0 : index
    %27 = vector.load %arg9[%c0_76, %c0_77] : memref<128x1xf32, #tpu.memory_space<vmem>>, vector<128x1xf32>
    %cst_78 = arith.constant dense<0.000000e+00> : vector<128xf32>
    %28 = vector.multi_reduction <add>, %26, %cst_78 [1] : vector<128x512xf32> to vector<128xf32>
    %29 = vector.shape_cast %28 : vector<128xf32> to vector<128x1xf32>
    %30 = arith.addf %27, %29 : vector<128x1xf32>
    %c0_79 = arith.constant 0 : index
    %c0_80 = arith.constant 0 : index
    %31 = vector.load %arg9[%c0_79, %c0_80] : memref<128x1xf32, #tpu.memory_space<vmem>>, vector<128x1xf32>
    tpu.vector_store %arg9[%c0_79, %c0_80], %30 {strides = array<i32>} : memref<128x1xf32, #tpu.memory_space<vmem>>, vector<128x1xf32>,
    %c0_81 = arith.constant 0 : index
    %c0_82 = arith.constant 0 : index
    %32 = vector.load %arg10[%c0_81, %c0_82] : memref<128x1xf32, #tpu.memory_space<vmem>>, vector<128x1xf32>
    %33 = arith.mulf %26, %26 : vector<128x512xf32>
    %cst_83 = arith.constant dense<0.000000e+00> : vector<128xf32>
    %34 = vector.multi_reduction <add>, %33, %cst_83 [1] : vector<128x512xf32> to vector<128xf32>
    %35 = vector.shape_cast %34 : vector<128xf32> to vector<128x1xf32>
    %36 = arith.addf %32, %35 : vector<128x1xf32>
    %c0_84 = arith.constant 0 : index
    %c0_85 = arith.constant 0 : index
    %37 = vector.load %arg10[%c0_84, %c0_85] : memref<128x1xf32, #tpu.memory_space<vmem>>, vector<128x1xf32>
    tpu.vector_store %arg10[%c0_84, %c0_85], %36 {strides = array<i32>} : memref<128x1xf32, #tpu.memory_space<vmem>>, vector<128x1xf32>,
    %38 = arith.index_cast %arg0 : i32 to index
    %c0_86 = arith.constant 0 : index
    %c0_87 = arith.constant 0 : index
    %39 = vector.load %arg8[%38, %c0_86, %c0_87] : memref<1x128x512xf32, #tpu.memory_space<vmem>>, vector<1x128x512xf32>
    %40 = vector.shape_cast %39 : vector<1x128x512xf32> to vector<128x512xf32>
    %41 = vector.shape_cast %26 : vector<128x512xf32> to vector<1x128x512xf32>
    tpu.vector_store %arg8[%38, %c0_86, %c0_87], %41 {strides = array<i32>} : memref<1x128x512xf32, #tpu.memory_space<vmem>>, vector<1x128x512xf32>,
    %c0_i32_88 = arith.constant 0 : i32
    %42 = arith.cmpi eq, %arg0, %c0_i32_88 : i32
    %43 = arith.extui %42 : i1 to i32
    %c0_i32_89 = arith.constant 0 : i32
    %44 = arith.cmpi ne, %43, %c0_i32_89 : i32
    scf.if %44 {
      %c0_90 = arith.constant 0 : index
      %c0_91 = arith.constant 0 : index
      %45 = vector.load %arg9[%c0_90, %c0_91] : memref<128x1xf32, #tpu.memory_space<vmem>>, vector<128x1xf32>
      %cst_92 = arith.constant 5.120000e+02 : f32
      %46 = vector.broadcast %cst_92 : f32 to vector<128x1xf32>
      %47 = arith.divf %45, %46 : vector<128x1xf32>
      %c0_93 = arith.constant 0 : index
      %c0_94 = arith.constant 0 : index
      %48 = vector.load %arg10[%c0_93, %c0_94] : memref<128x1xf32, #tpu.memory_space<vmem>>, vector<128x1xf32>
      %cst_95 = arith.constant 5.120000e+02 : f32
      %49 = vector.broadcast %cst_95 : f32 to vector<128x1xf32>
      %50 = arith.divf %48, %49 : vector<128x1xf32>
      %51 = arith.mulf %47, %47 : vector<128x1xf32>
      %52 = arith.subf %50, %51 : vector<128x1xf32>
      %cst_96 = arith.constant 0.000000e+00 : f32
      %53 = vector.broadcast %cst_96 : f32 to vector<128x1xf32>
      %54 = arith.maximumf %52, %53 : vector<128x1xf32>
      %cst_97 = arith.constant 9.99999974E-6 : f32
      %55 = vector.broadcast %cst_97 : f32 to vector<128x1xf32>
      %56 = arith.addf %54, %55 : vector<128x1xf32>
      %57 = math.rsqrt %56 : vector<128x1xf32>
      %c0_98 = arith.constant 0 : index
      %c0_99 = arith.constant 0 : index
      %58 = vector.load %arg3[%c0_98, %c0_99] : memref<128x1xf32, #tpu.memory_space<vmem>>, vector<128x1xf32>
      %59 = arith.mulf %58, %57 : vector<128x1xf32>
      %c0_100 = arith.constant 0 : index
      %c0_101 = arith.constant 0 : index
      %60 = vector.load %arg4[%c0_100, %c0_101] : memref<128x1xf32, #tpu.memory_space<vmem>>, vector<128x1xf32>
      %61 = arith.mulf %47, %59 : vector<128x1xf32>
      %62 = arith.subf %60, %61 : vector<128x1xf32>
      %c0_102 = arith.constant 0 : index
      %c0_103 = arith.constant 0 : index
      %c0_104 = arith.constant 0 : index
      %63 = vector.load %arg8[%c0_102, %c0_103, %c0_104] : memref<1x128x512xf32, #tpu.memory_space<vmem>>, vector<1x128x512xf32>
      %64 = vector.shape_cast %63 : vector<1x128x512xf32> to vector<128x512xf32>
      %65 = vector.broadcast %59 : vector<128x1xf32> to vector<128x512xf32>
      %66 = arith.mulf %64, %65 : vector<128x512xf32>
      %67 = vector.broadcast %62 : vector<128x1xf32> to vector<128x512xf32>
      %68 = arith.addf %66, %67 : vector<128x512xf32>
      %cst_105 = arith.constant 0.000000e+00 : f32
      %69 = vector.broadcast %cst_105 : f32 to vector<128x512xf32>
      %70 = arith.maximumf %68, %69 : vector<128x512xf32>
      %71 = vector.extract_strided_slice %70 {offsets = [0, 0], sizes = [8, 512], strides = [1, 1]} : vector<128x512xf32> to vector<8x512xf32>
      %72 = vector.extract_strided_slice %71 {offsets = [0, 0], sizes = [8, 256], strides = [1, 1]} : vector<8x512xf32> to vector<8x256xf32>
      %c0_106 = arith.constant 0 : index
      %c0_107 = arith.constant 0 : index
      %c0_108 = arith.constant 0 : index
      %73 = vector.load %arg5[%c0_106, %c0_107, %c0_108] : memref<2x8x256xf32, #tpu.memory_space<vmem>>, vector<1x8x256xf32>
      %74 = vector.shape_cast %73 : vector<1x8x256xf32> to vector<8x256xf32>
      %75 = vector.shape_cast %72 : vector<8x256xf32> to vector<1x8x256xf32>
      tpu.vector_store %arg5[%c0_106, %c0_107, %c0_108], %75 {strides = array<i32>} : memref<2x8x256xf32, #tpu.memory_space<vmem>>, vector<1x8x256xf32>,
      %76 = vector.extract_strided_slice %71 {offsets = [0, 256], sizes = [8, 256], strides = [1, 1]} : vector<8x512xf32> to vector<8x256xf32>
      %c1_109 = arith.constant 1 : index
      %c0_110 = arith.constant 0 : index
      %c0_111 = arith.constant 0 : index
      %77 = vector.load %arg5[%c1_109, %c0_110, %c0_111] : memref<2x8x256xf32, #tpu.memory_space<vmem>>, vector<1x8x256xf32>
      %78 = vector.shape_cast %77 : vector<1x8x256xf32> to vector<8x256xf32>
      %79 = vector.shape_cast %76 : vector<8x256xf32> to vector<1x8x256xf32>
      tpu.vector_store %arg5[%c1_109, %c0_110, %c0_111], %79 {strides = array<i32>} : memref<2x8x256xf32, #tpu.memory_space<vmem>>, vector<1x8x256xf32>,
    } else {
    }
    return
  }
  func.func @transform_0(%arg0: i32) -> (i32, i32, i32, i32) {
    %c0_i32 = arith.constant 0 : i32
    %c0_i32_0 = arith.constant 0 : i32
    %c0_i32_1 = arith.constant 0 : i32
    %c0_i32_2 = arith.constant 0 : i32
    return %arg0, %c0_i32, %c0_i32_0, %c0_i32_1 : i32, i32, i32, i32
  }
  func.func @transform_1(%arg0: i32) -> (i32, i32) {
    %c0_i32 = arith.constant 0 : i32
    %c0_i32_0 = arith.constant 0 : i32
    %c0_i32_1 = arith.constant 0 : i32
    return %c0_i32, %c0_i32_0 : i32, i32
  }
  func.func @transform_2(%arg0: i32) -> (i32, i32) {
    %c0_i32 = arith.constant 0 : i32
    %c0_i32_0 = arith.constant 0 : i32
    %c0_i32_1 = arith.constant 0 : i32
    return %c0_i32, %c0_i32_0 : i32, i32
  }
  func.func @transform_3(%arg0: i32) -> (i32, i32) {
    %c0_i32 = arith.constant 0 : i32
    %c0_i32_0 = arith.constant 0 : i32
    %c0_i32_1 = arith.constant 0 : i32
    return %c0_i32, %c0_i32_0 : i32, i32
  }
  func.func @transform_4(%arg0: i32) -> (i32, i32, i32) {
    %c0_i32 = arith.constant 0 : i32
    %c0_i32_0 = arith.constant 0 : i32
    %c0_i32_1 = arith.constant 0 : i32
    %c0_i32_2 = arith.constant 0 : i32
    return %c0_i32, %c0_i32_0, %c0_i32_1 : i32, i32, i32
  }
}

</mosaic_0001>

<llo_original>
// kernel: tpu_custom_call.1
$region0: #{tpu_custom_call.1}
  #allocation0 [shape = 'u32[]', space=smem, size = 0x4, offset = 0x4, fixed_abs, tag = 'smem constant byte address 0x4 - core index']
  #allocation1 [shape = 'u32[144,128]{1,0:T(1,128)}', space=vmem, size = 0x12000, scoped, tag = 'internal scratch']
  #allocation2 [shape = 'f32[2,18,18,4]{3,2,1,0:T(8,128)}', space=vmem, size = 0x6c000, scoped, tag = 'scratch operand']
  #allocation3 [shape = 'f32[2,16,16,36]{3,2,1,0:T(8,128)}', space=vmem, size = 0x40000, scoped, tag = 'scratch operand']
  #allocation4 [shape = 'f32[1,128,512]{2,1,0:T(8,128)}', space=vmem, size = 0x40000, scoped, tag = 'scratch operand']
  #allocation5 [shape = 'f32[128,1]{1,0:T(8,128)}', space=vmem, size = 0x10000, scoped, tag = 'scratch operand']
  #allocation6 [shape = 'f32[128,1]{1,0:T(8,128)}', space=vmem, size = 0x10000, scoped, tag = 'scratch operand']
  %s0 = inlined_call_operand.vmem [shape: f32[2,16,16,4], index: 0, kind: input, shape index: {}]
  %s1 = inlined_call_operand.vmem [shape: f32[128,36], index: 1, kind: input, shape index: {}]
  %s2 = inlined_call_operand.vmem [shape: f32[128,1], index: 2, kind: input, shape index: {}]
  %s3 = inlined_call_operand.vmem [shape: f32[128,1], index: 3, kind: input, shape index: {}]
  %s4 = inlined_call_operand.hbm [shape: f32[2,8,256], index: 4, kind: output, shape index: {}]
  %s5 = sld [smem:[#allocation0]]
  $region34: #{tpu_custom_call.1} parent=0
    _
  %s7 = ssub.s32 1, %s5
  %s8 = scalar_select 0, %s7, %s5
  $region1: #{tpu_custom_call.1} parent=0
    #allocation7 [shape = 'u8[16384]{0}', space=vmem, size = 0x4000, scoped, tag = 'output window, operand 0, single buffered']
    #allocation8 [shape = 's32[1]{0}', space=sflag, size = 0x4, scoped, tag = 'scoped memory for tpu_custom_call.1']
    %9 = vsyncpa [#allocation8], 0
    // Predicated region
    $region2: #{tpu_custom_call.1} parent=1 // pred_check
      _
    $region3: #{tpu_custom_call.1} parent=1 // pred_check_branch
      %11 = sbr.rel (0) target = $region5
    $region4: #{tpu_custom_call.1} parent=1 // pred_region
      _
    $region5: #{tpu_custom_call.1} parent=1 // pred_fallthru
      _
    // Predicated region
    $region6: #{tpu_custom_call.1} parent=1 // pred_check
      _
    $region7: #{tpu_custom_call.1} parent=1 // pred_check_branch
      %13 = sbr.rel (0) target = $region9
    $region8: #{tpu_custom_call.1} parent=1 // pred_region
      _
    $region9: #{tpu_custom_call.1} parent=1 // pred_fallthru
      _
    // Predicated region
    $region10: #{tpu_custom_call.1} parent=1 // pred_check
      _
    $region11: #{tpu_custom_call.1} parent=1 // pred_check_branch
      %15 = sbr.rel (0) target = $region13
    $region12: #{tpu_custom_call.1} parent=1 // pred_region
      _
    $region13: #{tpu_custom_call.1} parent=1 // pred_fallthru
      _
    // Predicated region
    $region14: #{tpu_custom_call.1} parent=1 // pred_check
      _
    $region15: #{tpu_custom_call.1} parent=1 // pred_check_branch
      %17 = sbr.rel (0) target = $region17
    $region16: #{tpu_custom_call.1} parent=1 // pred_region
      _
    $region17: #{tpu_custom_call.1} parent=1 // pred_fallthru
      _
    %p18 = scmp.eq.s32.totalorder 0, 0
    // Predicated region
    $region18: #{tpu_custom_call.1} parent=1 // pred_check
      %p19 = pneg %p18
    $region19: #{tpu_custom_call.1} parent=1 // pred_check_branch
      %21 = sbr.rel (%p19) target = $region21
    $region20: #{tpu_custom_call.1} parent=1 // pred_region
      %vm22 = vcmask 7168
      %23 = vst.msk [vmem:[#allocation5] sm:$0xff] %vm22, 0.0
      %24 = vst.msk [vmem:[#allocation5 + $0x8] sm:$0xff] %vm22, 0.0
      %25 = vst.msk [vmem:[#allocation5 + $0x10] sm:$0xff] %vm22, 0.0
      %26 = vst.msk [vmem:[#allocation5 + $0x18] sm:$0xff] %vm22, 0.0
      %27 = vst.msk [vmem:[#allocation5 + $0x20] sm:$0xff] %vm22, 0.0
      %28 = vst.msk [vmem:[#allocation5 + $0x28] sm:$0xff] %vm22, 0.0
      %29 = vst.msk [vmem:[#allocation5 + $0x30] sm:$0xff] %vm22, 0.0
      %30 = vst.msk [vmem:[#allocation5 + $0x38] sm:$0xff] %vm22, 0.0
      %31 = vst.msk [vmem:[#allocation5 + $0x40] sm:$0xff] %vm22, 0.0
      %32 = vst.msk [vmem:[#allocation5 + $0x48] sm:$0xff] %vm22, 0.0
      %33 = vst.msk [vmem:[#allocation5 + $0x50] sm:$0xff] %vm22, 0.0
      %34 = vst.msk [vmem:[#allocation5 + $0x58] sm:$0xff] %vm22, 0.0
      %35 = vst.msk [vmem:[#allocation5 + $0x60] sm:$0xff] %vm22, 0.0
      %36 = vst.msk [vmem:[#allocation5 + $0x68] sm:$0xff] %vm22, 0.0
      %37 = vst.msk [vmem:[#allocation5 + $0x70] sm:$0xff] %vm22, 0.0
      %38 = vst.msk [vmem:[#allocation5 + $0x78] sm:$0xff] %vm22, 0.0
      %39 = vst.msk [vmem:[#allocation6] sm:$0xff] %vm22, 0.0
      %40 = vst.msk [vmem:[#allocation6 + $0x8] sm:$0xff] %vm22, 0.0
      %41 = vst.msk [vmem:[#allocation6 + $0x10] sm:$0xff] %vm22, 0.0
      %42 = vst.msk [vmem:[#allocation6 + $0x18] sm:$0xff] %vm22, 0.0
      %43 = vst.msk [vmem:[#allocation6 + $0x20] sm:$0xff] %vm22, 0.0
      %44 = vst.msk [vmem:[#allocation6 + $0x28] sm:$0xff] %vm22, 0.0
      %45 = vst.msk [vmem:[#allocation6 + $0x30] sm:$0xff] %vm22, 0.0
      %46 = vst.msk [vmem:[#allocation6 + $0x38] sm:$0xff] %vm22, 0.0
      %47 = vst.msk [vmem:[#allocation6 + $0x40] sm:$0xff] %vm22, 0.0
      %48 = vst.msk [vmem:[#allocation6 + $0x48] sm:$0xff] %vm22, 0.0
      %49 = vst.msk [vmem:[#allocation6 + $0x50] sm:$0xff] %vm22, 0.0
      %50 = vst.msk [vmem:[#allocation6 + $0x58] sm:$0xff] %vm22, 0.0
      %51 = vst.msk [vmem:[#allocation6 + $0x60] sm:$0xff] %vm22, 0.0
      %52 = vst.msk [vmem:[#allocation6 + $0x68] sm:$0xff] %vm22, 0.0
      %53 = vst.msk [vmem:[#allocation6 + $0x70] sm:$0xff] %vm22, 0.0
      %54 = vst.msk [vmem:[#allocation6 + $0x78] sm:$0xff] %vm22, 0.0
      %vm55 = vcmask 31744
      %56 = vst.msk [vmem:[#allocation2] sm:$0xff] %vm55, 0.0
      %57 = vst.msk [vmem:[#allocation2 + $0x8] sm:$0xff] %vm55, 0.0
      %vm58 = vcmask 25600
      %59 = vst.msk [vmem:[#allocation2 + $0x10] sm:$0x3] %vm58, 0.0
      %60 = vst.msk [vmem:[#allocation2 + $0x18] sm:$0xff] %vm55, 0.0
      %61 = vst.msk [vmem:[#allocation2 + $0x20] sm:$0xff] %vm55, 0.0
      %62 = vst.msk [vmem:[#allocation2 + $0x28] sm:$0x3] %vm58, 0.0
      %63 = vst.msk [vmem:[#allocation2 + $0x30] sm:$0xff] %vm55, 0.0
      %64 = vst.msk [vmem:[#allocation2 + $0x38] sm:$0xff] %vm55, 0.0
      %65 = vst.msk [vmem:[#allocation2 + $0x40] sm:$0x3] %vm58, 0.0
      %66 = vst.msk [vmem:[#allocation2 + $0x48] sm:$0xff] %vm55, 0.0
      %67 = vst.msk [vmem:[#allocation2 + $0x50] sm:$0xff] %vm55, 0.0
      %68 = vst.msk [vmem:[#allocation2 + $0x58] sm:$0x3] %vm58, 0.0
      %69 = vst.msk [vmem:[#allocation2 + $0x60] sm:$0xff] %vm55, 0.0
      %70 = vst.msk [vmem:[#allocation2 + $0x68] sm:$0xff] %vm55, 0.0
      %71 = vst.msk [vmem:[#allocation2 + $0x70] sm:$0x3] %vm58, 0.0
      %72 = vst.msk [vmem:[#allocation2 + $0x78] sm:$0xff] %vm55, 0.0
      %73 = vst.msk [vmem:[#allocation2 + $0x80] sm:$0xff] %vm55, 0.0
      %74 = vst.msk [vmem:[#allocation2 + $0x88] sm:$0x3] %vm58, 0.0
      %75 = vst.msk [vmem:[#allocation2 + $0x90] sm:$0xff] %vm55, 0.0
      %76 = vst.msk [vmem:[#allocation2 + $0x98] sm:$0xff] %vm55, 0.0
      %77 = vst.msk [vmem:[#allocation2 + $0xa0] sm:$0x3] %vm58, 0.0
      %78 = vst.msk [vmem:[#allocation2 + $0xa8] sm:$0xff] %vm55, 0.0
      %79 = vst.msk [vmem:[#allocation2 + $0xb0] sm:$0xff] %vm55, 0.0
      %80 = vst.msk [vmem:[#allocation2 + $0xb8] sm:$0x3] %vm58, 0.0
      %81 = vst.msk [vmem:[#allocation2 + $0xc0] sm:$0xff] %vm55, 0.0
      %82 = vst.msk [vmem:[#allocation2 + $0xc8] sm:$0xff] %vm55, 0.0
      %83 = vst.msk [vmem:[#allocation2 + $0xd0] sm:$0x3] %vm58, 0.0
      %84 = vst.msk [vmem:[#allocation2 + $0xd8] sm:$0xff] %vm55, 0.0
      %85 = vst.msk [vmem:[#allocation2 + $0xe0] sm:$0xff] %vm55, 0.0
      %86 = vst.msk [vmem:[#allocation2 + $0xe8] sm:$0x3] %vm58, 0.0
      %87 = vst.msk [vmem:[#allocation2 + $0xf0] sm:$0xff] %vm55, 0.0
      %88 = vst.msk [vmem:[#allocation2 + $0xf8] sm:$0xff] %vm55, 0.0
      %89 = vst.msk [vmem:[#allocation2 + $0x100] sm:$0x3] %vm58, 0.0
      %90 = vst.msk [vmem:[#allocation2 + $0x108] sm:$0xff] %vm55, 0.0
      %91 = vst.msk [vmem:[#allocation2 + $0x110] sm:$0xff] %vm55, 0.0
      %92 = vst.msk [vmem:[#allocation2 + $0x118] sm:$0x3] %vm58, 0.0
      %93 = vst.msk [vmem:[#allocation2 + $0x120] sm:$0xff] %vm55, 0.0
      %94 = vst.msk [vmem:[#allocation2 + $0x128] sm:$0xff] %vm55, 0.0
      %95 = vst.msk [vmem:[#allocation2 + $0x130] sm:$0x3] %vm58, 0.0
      %96 = vst.msk [vmem:[#allocation2 + $0x138] sm:$0xff] %vm55, 0.0
      %97 = vst.msk [vmem:[#allocation2 + $0x140] sm:$0xff] %vm55, 0.0
      %98 = vst.msk [vmem:[#allocation2 + $0x148] sm:$0x3] %vm58, 0.0
      %99 = vst.msk [vmem:[#allocation2 + $0x150] sm:$0xff] %vm55, 0.0
      %100 = vst.msk [vmem:[#allocation2 + $0x158] sm:$0xff] %vm55, 0.0
      %101 = vst.msk [vmem:[#allocation2 + $0x160] sm:$0x3] %vm58, 0.0
      %102 = vst.msk [vmem:[#allocation2 + $0x168] sm:$0xff] %vm55, 0.0
      %103 = vst.msk [vmem:[#allocation2 + $0x170] sm:$0xff] %vm55, 0.0
      %104 = vst.msk [vmem:[#allocation2 + $0x178] sm:$0x3] %vm58, 0.0
      %105 = vst.msk [vmem:[#allocation2 + $0x180] sm:$0xff] %vm55, 0.0
      %106 = vst.msk [vmem:[#allocation2 + $0x188] sm:$0xff] %vm55, 0.0
      %107 = vst.msk [vmem:[#allocation2 + $0x190] sm:$0x3] %vm58, 0.0
      %108 = vst.msk [vmem:[#allocation2 + $0x198] sm:$0xff] %vm55, 0.0
      %109 = vst.msk [vmem:[#allocation2 + $0x1a0] sm:$0xff] %vm55, 0.0
      %110 = vst.msk [vmem:[#allocation2 + $0x1a8] sm:$0x3] %vm58, 0.0
      %111 = vst.msk [vmem:[#allocation2 + $0x1b0] sm:$0xff] %vm55, 0.0
      %112 = vst.msk [vmem:[#allocation2 + $0x1b8] sm:$0xff] %vm55, 0.0
      %113 = vst.msk [vmem:[#allocation2 + $0x1c0] sm:$0x3] %vm58, 0.0
      %114 = vst.msk [vmem:[#allocation2 + $0x1c8] sm:$0xff] %vm55, 0.0
      %115 = vst.msk [vmem:[#allocation2 + $0x1d0] sm:$0xff] %vm55, 0.0
      %116 = vst.msk [vmem:[#allocation2 + $0x1d8] sm:$0x3] %vm58, 0.0
      %117 = vst.msk [vmem:[#allocation2 + $0x1e0] sm:$0xff] %vm55, 0.0
      %118 = vst.msk [vmem:[#allocation2 + $0x1e8] sm:$0xff] %vm55, 0.0
      %119 = vst.msk [vmem:[#allocation2 + $0x1f0] sm:$0x3] %vm58, 0.0
      %120 = vst.msk [vmem:[#allocation2 + $0x1f8] sm:$0xff] %vm55, 0.0
      %121 = vst.msk [vmem:[#allocation2 + $0x200] sm:$0xff] %vm55, 0.0
      %122 = vst.msk [vmem:[#allocation2 + $0x208] sm:$0x3] %vm58, 0.0
      %123 = vst.msk [vmem:[#allocation2 + $0x210] sm:$0xff] %vm55, 0.0
      %124 = vst.msk [vmem:[#allocation2 + $0x218] sm:$0xff] %vm55, 0.0
      %125 = vst.msk [vmem:[#allocation2 + $0x220] sm:$0x3] %vm58, 0.0
      %126 = vst.msk [vmem:[#allocation2 + $0x228] sm:$0xff] %vm55, 0.0
      %127 = vst.msk [vmem:[#allocation2 + $0x230] sm:$0xff] %vm55, 0.0
      %128 = vst.msk [vmem:[#allocation2 + $0x238] sm:$0x3] %vm58, 0.0
      %129 = vst.msk [vmem:[#allocation2 + $0x240] sm:$0xff] %vm55, 0.0
      %130 = vst.msk [vmem:[#allocation2 + $0x248] sm:$0xff] %vm55, 0.0
      %131 = vst.msk [vmem:[#allocation2 + $0x250] sm:$0x3] %vm58, 0.0
      %132 = vst.msk [vmem:[#allocation2 + $0x258] sm:$0xff] %vm55, 0.0
      %133 = vst.msk [vmem:[#allocation2 + $0x260] sm:$0xff] %vm55, 0.0
      %134 = vst.msk [vmem:[#allocation2 + $0x268] sm:$0x3] %vm58, 0.0
      %135 = vst.msk [vmem:[#allocation2 + $0x270] sm:$0xff] %vm55, 0.0
      %136 = vst.msk [vmem:[#allocation2 + $0x278] sm:$0xff] %vm55, 0.0
      %137 = vst.msk [vmem:[#allocation2 + $0x280] sm:$0x3] %vm58, 0.0
      %138 = vst.msk [vmem:[#allocation2 + $0x288] sm:$0xff] %vm55, 0.0
      %139 = vst.msk [vmem:[#allocation2 + $0x290] sm:$0xff] %vm55, 0.0
      %140 = vst.msk [vmem:[#allocation2 + $0x298] sm:$0x3] %vm58, 0.0
      %141 = vst.msk [vmem:[#allocation2 + $0x2a0] sm:$0xff] %vm55, 0.0
      %142 = vst.msk [vmem:[#allocation2 + $0x2a8] sm:$0xff] %vm55, 0.0
      %143 = vst.msk [vmem:[#allocation2 + $0x2b0] sm:$0x3] %vm58, 0.0
      %144 = vst.msk [vmem:[#allocation2 + $0x2b8] sm:$0xff] %vm55, 0.0
      %145 = vst.msk [vmem:[#allocation2 + $0x2c0] sm:$0xff] %vm55, 0.0
      %146 = vst.msk [vmem:[#allocation2 + $0x2c8] sm:$0x3] %vm58, 0.0
      %147 = vst.msk [vmem:[#allocation2 + $0x2d0] sm:$0xff] %vm55, 0.0
      %148 = vst.msk [vmem:[#allocation2 + $0x2d8] sm:$0xff] %vm55, 0.0
      %149 = vst.msk [vmem:[#allocation2 + $0x2e0] sm:$0x3] %vm58, 0.0
      %150 = vst.msk [vmem:[#allocation2 + $0x2e8] sm:$0xff] %vm55, 0.0
      %151 = vst.msk [vmem:[#allocation2 + $0x2f0] sm:$0xff] %vm55, 0.0
      %152 = vst.msk [vmem:[#allocation2 + $0x2f8] sm:$0x3] %vm58, 0.0
      %153 = vst.msk [vmem:[#allocation2 + $0x300] sm:$0xff] %vm55, 0.0
      %154 = vst.msk [vmem:[#allocation2 + $0x308] sm:$0xff] %vm55, 0.0
      %155 = vst.msk [vmem:[#allocation2 + $0x310] sm:$0x3] %vm58, 0.0
      %156 = vst.msk [vmem:[#allocation2 + $0x318] sm:$0xff] %vm55, 0.0
      %157 = vst.msk [vmem:[#allocation2 + $0x320] sm:$0xff] %vm55, 0.0
      %158 = vst.msk [vmem:[#allocation2 + $0x328] sm:$0x3] %vm58, 0.0
      %159 = vst.msk [vmem:[#allocation2 + $0x330] sm:$0xff] %vm55, 0.0
      %160 = vst.msk [vmem:[#allocation2 + $0x338] sm:$0xff] %vm55, 0.0
      %161 = vst.msk [vmem:[#allocation2 + $0x340] sm:$0x3] %vm58, 0.0
      %162 = vst.msk [vmem:[#allocation2 + $0x348] sm:$0xff] %vm55, 0.0
      %163 = vst.msk [vmem:[#allocation2 + $0x350] sm:$0xff] %vm55, 0.0
      %164 = vst.msk [vmem:[#allocation2 + $0x358] sm:$0x3] %vm58, 0.0
    $region21: #{tpu_custom_call.1} parent=1 // pred_fallthru
      _
    %v165 = vld [vmem:[%s0] sm:$0xff]
    %v166 = vld [vmem:[%s0 + $0x8] sm:$0xff]
    %v167 = vld [vmem:[%s0 + $0x10] sm:$0xff]
    %v168 = vld [vmem:[%s0 + $0x18] sm:$0xff]
    %v169 = vld [vmem:[%s0 + $0x20] sm:$0xff]
    %v170 = vld [vmem:[%s0 + $0x28] sm:$0xff]
    %v171 = vld [vmem:[%s0 + $0x30] sm:$0xff]
    %v172 = vld [vmem:[%s0 + $0x38] sm:$0xff]
    %v173 = vld [vmem:[%s0 + $0x40] sm:$0xff]
    %v174 = vld [vmem:[%s0 + $0x48] sm:$0xff]
    %v175 = vld [vmem:[%s0 + $0x50] sm:$0xff]
    %v176 = vld [vmem:[%s0 + $0x58] sm:$0xff]
    %v177 = vld [vmem:[%s0 + $0x60] sm:$0xff]
    %v178 = vld [vmem:[%s0 + $0x68] sm:$0xff]
    %v179 = vld [vmem:[%s0 + $0x70] sm:$0xff]
    %v180 = vld [vmem:[%s0 + $0x78] sm:$0xff]
    %v181 = vld [vmem:[%s0 + $0x80] sm:$0xff]
    %v182 = vld [vmem:[%s0 + $0x88] sm:$0xff]
    %v183 = vld [vmem:[%s0 + $0x90] sm:$0xff]
    %v184 = vld [vmem:[%s0 + $0x98] sm:$0xff]
    %v185 = vld [vmem:[%s0 + $0xa0] sm:$0xff]
    %v186 = vld [vmem:[%s0 + $0xa8] sm:$0xff]
    %v187 = vld [vmem:[%s0 + $0xb0] sm:$0xff]
    %v188 = vld [vmem:[%s0 + $0xb8] sm:$0xff]
    %v189 = vld [vmem:[%s0 + $0xc0] sm:$0xff]
    %v190 = vld [vmem:[%s0 + $0xc8] sm:$0xff]
    %v191 = vld [vmem:[%s0 + $0xd0] sm:$0xff]
    %v192 = vld [vmem:[%s0 + $0xd8] sm:$0xff]
    %v193 = vld [vmem:[%s0 + $0xe0] sm:$0xff]
    %v194 = vld [vmem:[%s0 + $0xe8] sm:$0xff]
    %v195 = vld [vmem:[%s0 + $0xf0] sm:$0xff]
    %v196 = vld [vmem:[%s0 + $0xf8] sm:$0xff]
    %v197 = vld [vmem:[%s0 + $0x100] sm:$0xff]
    %v198 = vld [vmem:[%s0 + $0x108] sm:$0xff]
    %v199 = vld [vmem:[%s0 + $0x110] sm:$0xff]
    %v200 = vld [vmem:[%s0 + $0x118] sm:$0xff]
    %v201 = vld [vmem:[%s0 + $0x120] sm:$0xff]
    %v202 = vld [vmem:[%s0 + $0x128] sm:$0xff]
    %v203 = vld [vmem:[%s0 + $0x130] sm:$0xff]
    %v204 = vld [vmem:[%s0 + $0x138] sm:$0xff]
    %v205 = vld [vmem:[%s0 + $0x140] sm:$0xff]
    %v206 = vld [vmem:[%s0 + $0x148] sm:$0xff]
    %v207 = vld [vmem:[%s0 + $0x150] sm:$0xff]
    %v208 = vld [vmem:[%s0 + $0x158] sm:$0xff]
    %v209 = vld [vmem:[%s0 + $0x160] sm:$0xff]
    %v210 = vld [vmem:[%s0 + $0x168] sm:$0xff]
    %v211 = vld [vmem:[%s0 + $0x170] sm:$0xff]
    %v212 = vld [vmem:[%s0 + $0x178] sm:$0xff]
    %v213 = vld [vmem:[%s0 + $0x180] sm:$0xff]
    %v214 = vld [vmem:[%s0 + $0x188] sm:$0xff]
    %v215 = vld [vmem:[%s0 + $0x190] sm:$0xff]
    %v216 = vld [vmem:[%s0 + $0x198] sm:$0xff]
    %v217 = vld [vmem:[%s0 + $0x1a0] sm:$0xff]
    %v218 = vld [vmem:[%s0 + $0x1a8] sm:$0xff]
    %v219 = vld [vmem:[%s0 + $0x1b0] sm:$0xff]
    %v220 = vld [vmem:[%s0 + $0x1b8] sm:$0xff]
    %v221 = vld [vmem:[%s0 + $0x1c0] sm:$0xff]
    %v222 = vld [vmem:[%s0 + $0x1c8] sm:$0xff]
    %v223 = vld [vmem:[%s0 + $0x1d0] sm:$0xff]
    %v224 = vld [vmem:[%s0 + $0x1d8] sm:$0xff]
    %v225 = vld [vmem:[%s0 + $0x1e0] sm:$0xff]
    %v226 = vld [vmem:[%s0 + $0x1e8] sm:$0xff]
    %v227 = vld [vmem:[%s0 + $0x1f0] sm:$0xff]
    %v228 = vld [vmem:[%s0 + $0x1f8] sm:$0xff]
    %s229 = scalar_lea.vmem [#allocation2], 24
    %vm230 = vcmask 31744
    %231 = vst.msk [vmem:[%s229 + $0x1] sm:$0xff] %vm230, %v165
    %232 = vst.msk [vmem:[%s229 + $0x9] sm:$0xff] %vm230, %v166
    %233 = vst.msk [vmem:[%s229 + $0x19] sm:$0xff] %vm230, %v167
    %234 = vst.msk [vmem:[%s229 + $0x21] sm:$0xff] %vm230, %v168
    %235 = vst.msk [vmem:[%s229 + $0x31] sm:$0xff] %vm230, %v169
    %236 = vst.msk [vmem:[%s229 + $0x39] sm:$0xff] %vm230, %v170
    %237 = vst.msk [vmem:[%s229 + $0x49] sm:$0xff] %vm230, %v171
    %238 = vst.msk [vmem:[%s229 + $0x51] sm:$0xff] %vm230, %v172
    %239 = vst.msk [vmem:[%s229 + $0x61] sm:$0xff] %vm230, %v173
    %240 = vst.msk [vmem:[%s229 + $0x69] sm:$0xff] %vm230, %v174
    %241 = vst.msk [vmem:[%s229 + $0x79] sm:$0xff] %vm230, %v175
    %242 = vst.msk [vmem:[%s229 + $0x81] sm:$0xff] %vm230, %v176
    %243 = vst.msk [vmem:[%s229 + $0x91] sm:$0xff] %vm230, %v177
    %244 = vst.msk [vmem:[%s229 + $0x99] sm:$0xff] %vm230, %v178
    %245 = vst.msk [vmem:[%s229 + $0xa9] sm:$0xff] %vm230, %v179
    %246 = vst.msk [vmem:[%s229 + $0xb1] sm:$0xff] %vm230, %v180
    %247 = vst.msk [vmem:[%s229 + $0xc1] sm:$0xff] %vm230, %v181
    %248 = vst.msk [vmem:[%s229 + $0xc9] sm:$0xff] %vm230, %v182
    %249 = vst.msk [vmem:[%s229 + $0xd9] sm:$0xff] %vm230, %v183
    %250 = vst.msk [vmem:[%s229 + $0xe1] sm:$0xff] %vm230, %v184
    %251 = vst.msk [vmem:[%s229 + $0xf1] sm:$0xff] %vm230, %v185
    %252 = vst.msk [vmem:[%s229 + $0xf9] sm:$0xff] %vm230, %v186
    %253 = vst.msk [vmem:[%s229 + $0x109] sm:$0xff] %vm230, %v187
    %254 = vst.msk [vmem:[%s229 + $0x111] sm:$0xff] %vm230, %v188
    %255 = vst.msk [vmem:[%s229 + $0x121] sm:$0xff] %vm230, %v189
    %256 = vst.msk [vmem:[%s229 + $0x129] sm:$0xff] %vm230, %v190
    %257 = vst.msk [vmem:[%s229 + $0x139] sm:$0xff] %vm230, %v191
    %258 = vst.msk [vmem:[%s229 + $0x141] sm:$0xff] %vm230, %v192
    %259 = vst.msk [vmem:[%s229 + $0x151] sm:$0xff] %vm230, %v193
    %260 = vst.msk [vmem:[%s229 + $0x159] sm:$0xff] %vm230, %v194
    %261 = vst.msk [vmem:[%s229 + $0x169] sm:$0xff] %vm230, %v195
    %262 = vst.msk [vmem:[%s229 + $0x171] sm:$0xff] %vm230, %v196
    %263 = vst.msk [vmem:[%s229 + $0x1b1] sm:$0xff] %vm230, %v197
    %264 = vst.msk [vmem:[%s229 + $0x1b9] sm:$0xff] %vm230, %v198
    %265 = vst.msk [vmem:[%s229 + $0x1c9] sm:$0xff] %vm230, %v199
    %266 = vst.msk [vmem:[%s229 + $0x1d1] sm:$0xff] %vm230, %v200
    %267 = vst.msk [vmem:[%s229 + $0x1e1] sm:$0xff] %vm230, %v201
    %268 = vst.msk [vmem:[%s229 + $0x1e9] sm:$0xff] %vm230, %v202
    %269 = vst.msk [vmem:[%s229 + $0x1f9] sm:$0xff] %vm230, %v203
    %270 = vst.msk [vmem:[%s229 + $0x201] sm:$0xff] %vm230, %v204
    %271 = vst.msk [vmem:[%s229 + $0x211] sm:$0xff] %vm230, %v205
    %272 = vst.msk [vmem:[%s229 + $0x219] sm:$0xff] %vm230, %v206
    %273 = vst.msk [vmem:[%s229 + $0x229] sm:$0xff] %vm230, %v207
    %274 = vst.msk [vmem:[%s229 + $0x231] sm:$0xff] %vm230, %v208
    %275 = vst.msk [vmem:[%s229 + $0x241] sm:$0xff] %vm230, %v209
    %276 = vst.msk [vmem:[%s229 + $0x249] sm:$0xff] %vm230, %v210
    %277 = vst.msk [vmem:[%s229 + $0x259] sm:$0xff] %vm230, %v211
    %278 = vst.msk [vmem:[%s229 + $0x261] sm:$0xff] %vm230, %v212
    %279 = vst.msk [vmem:[%s229 + $0x271] sm:$0xff] %vm230, %v213
    %280 = vst.msk [vmem:[%s229 + $0x279] sm:$0xff] %vm230, %v214
    %281 = vst.msk [vmem:[%s229 + $0x289] sm:$0xff] %vm230, %v215
    %282 = vst.msk [vmem:[%s229 + $0x291] sm:$0xff] %vm230, %v216
    %283 = vst.msk [vmem:[%s229 + $0x2a1] sm:$0xff] %vm230, %v217
    %284 = vst.msk [vmem:[%s229 + $0x2a9] sm:$0xff] %vm230, %v218
    %285 = vst.msk [vmem:[%s229 + $0x2b9] sm:$0xff] %vm230, %v219
    %286 = vst.msk [vmem:[%s229 + $0x2c1] sm:$0xff] %vm230, %v220
    %287 = vst.msk [vmem:[%s229 + $0x2d1] sm:$0xff] %vm230, %v221
    %288 = vst.msk [vmem:[%s229 + $0x2d9] sm:$0xff] %vm230, %v222
    %289 = vst.msk [vmem:[%s229 + $0x2e9] sm:$0xff] %vm230, %v223
    %290 = vst.msk [vmem:[%s229 + $0x2f1] sm:$0xff] %vm230, %v224
    %291 = vst.msk [vmem:[%s229 + $0x301] sm:$0xff] %vm230, %v225
    %292 = vst.msk [vmem:[%s229 + $0x309] sm:$0xff] %vm230, %v226
    %293 = vst.msk [vmem:[%s229 + $0x319] sm:$0xff] %vm230, %v227
    %294 = vst.msk [vmem:[%s229 + $0x321] sm:$0xff] %vm230, %v228
    %v295 = vld [vmem:[#allocation2] sm:$0xff]
    %v296 = vld [vmem:[#allocation2 + $0x8] sm:$0xff]
    %v297 = vld [vmem:[#allocation2 + $0x18] sm:$0xff]
    %v298 = vld [vmem:[#allocation2 + $0x20] sm:$0xff]
    %v299 = vld [vmem:[#allocation2 + $0x30] sm:$0xff]
    %v300 = vld [vmem:[#allocation2 + $0x38] sm:$0xff]
    %v301 = vld [vmem:[#allocation2 + $0x48] sm:$0xff]
    %v302 = vld [vmem:[#allocation2 + $0x50] sm:$0xff]
    %v303 = vld [vmem:[#allocation2 + $0x60] sm:$0xff]
    %v304 = vld [vmem:[#allocation2 + $0x68] sm:$0xff]
    %v305 = vld [vmem:[#allocation2 + $0x78] sm:$0xff]
    %v306 = vld [vmem:[#allocation2 + $0x80] sm:$0xff]
    %v307 = vld [vmem:[#allocation2 + $0x90] sm:$0xff]
    %v308 = vld [vmem:[#allocation2 + $0x98] sm:$0xff]
    %v309 = vld [vmem:[#allocation2 + $0xa8] sm:$0xff]
    %v310 = vld [vmem:[#allocation2 + $0xb0] sm:$0xff]
    %v311 = vld [vmem:[#allocation2 + $0xc0] sm:$0xff]
    %v312 = vld [vmem:[#allocation2 + $0xc8] sm:$0xff]
    %v313 = vld [vmem:[#allocation2 + $0xd8] sm:$0xff]
    %v314 = vld [vmem:[#allocation2 + $0xe0] sm:$0xff]
    %v315 = vld [vmem:[#allocation2 + $0xf0] sm:$0xff]
    %v316 = vld [vmem:[#allocation2 + $0xf8] sm:$0xff]
    %v317 = vld [vmem:[#allocation2 + $0x108] sm:$0xff]
    %v318 = vld [vmem:[#allocation2 + $0x110] sm:$0xff]
    %v319 = vld [vmem:[#allocation2 + $0x120] sm:$0xff]
    %v320 = vld [vmem:[#allocation2 + $0x128] sm:$0xff]
    %v321 = vld [vmem:[#allocation2 + $0x138] sm:$0xff]
    %v322 = vld [vmem:[#allocation2 + $0x140] sm:$0xff]
    %v323 = vld [vmem:[#allocation2 + $0x150] sm:$0xff]
    %v324 = vld [vmem:[#allocation2 + $0x158] sm:$0xff]
    %v325 = vld [vmem:[#allocation2 + $0x168] sm:$0xff]
    %v326 = vld [vmem:[#allocation2 + $0x170] sm:$0xff]
    %v327 = vld [vmem:[#allocation2 + $0x1b0] sm:$0xff]
    %v328 = vld [vmem:[#allocation2 + $0x1b8] sm:$0xff]
    %v329 = vld [vmem:[#allocation2 + $0x1c8] sm:$0xff]
    %v330 = vld [vmem:[#allocation2 + $0x1d0] sm:$0xff]
    %v331 = vld [vmem:[#allocation2 + $0x1e0] sm:$0xff]
    %v332 = vld [vmem:[#allocation2 + $0x1e8] sm:$0xff]
    %v333 = vld [vmem:[#allocation2 + $0x1f8] sm:$0xff]
    %v334 = vld [vmem:[#allocation2 + $0x200] sm:$0xff]
    %v335 = vld [vmem:[#allocation2 + $0x210] sm:$0xff]
    %v336 = vld [vmem:[#allocation2 + $0x218] sm:$0xff]
    %v337 = vld [vmem:[#allocation2 + $0x228] sm:$0xff]
    %v338 = vld [vmem:[#allocation2 + $0x230] sm:$0xff]
    %v339 = vld [vmem:[#allocation2 + $0x240] sm:$0xff]
    %v340 = vld [vmem:[#allocation2 + $0x248] sm:$0xff]
    %v341 = vld [vmem:[#allocation2 + $0x258] sm:$0xff]
    %v342 = vld [vmem:[#allocation2 + $0x260] sm:$0xff]
    %v343 = vld [vmem:[#allocation2 + $0x270] sm:$0xff]
    %v344 = vld [vmem:[#allocation2 + $0x278] sm:$0xff]
    %v345 = vld [vmem:[#allocation2 + $0x288] sm:$0xff]
    %v346 = vld [vmem:[#allocation2 + $0x290] sm:$0xff]
    %v347 = vld [vmem:[#allocation2 + $0x2a0] sm:$0xff]
    %v348 = vld [vmem:[#allocation2 + $0x2a8] sm:$0xff]
    %v349 = vld [vmem:[#allocation2 + $0x2b8] sm:$0xff]
    %v350 = vld [vmem:[#allocation2 + $0x2c0] sm:$0xff]
    %v351 = vld [vmem:[#allocation2 + $0x2d0] sm:$0xff]
    %v352 = vld [vmem:[#allocation2 + $0x2d8] sm:$0xff]
    %v353 = vld [vmem:[#allocation2 + $0x2e8] sm:$0xff]
    %v354 = vld [vmem:[#allocation2 + $0x2f0] sm:$0xff]
    %v355 = vld [vmem:[#allocation2 + $0x300] sm:$0xff]
    %v356 = vld [vmem:[#allocation2 + $0x308] sm:$0xff]
    %v357 = vld [vmem:[#allocation2 + $0x318] sm:$0xff]
    %v358 = vld [vmem:[#allocation2 + $0x320] sm:$0xff]
    %359 = vst.msk [vmem:[#allocation3] sm:$0xff] %vm230, %v295
    %360 = vst.msk [vmem:[#allocation3 + $0x8] sm:$0xff] %vm230, %v296
    %361 = vst.msk [vmem:[#allocation3 + $0x10] sm:$0xff] %vm230, %v297
    %362 = vst.msk [vmem:[#allocation3 + $0x18] sm:$0xff] %vm230, %v298
    %363 = vst.msk [vmem:[#allocation3 + $0x20] sm:$0xff] %vm230, %v299
    %364 = vst.msk [vmem:[#allocation3 + $0x28] sm:$0xff] %vm230, %v300
    %365 = vst.msk [vmem:[#allocation3 + $0x30] sm:$0xff] %vm230, %v301
    %366 = vst.msk [vmem:[#allocation3 + $0x38] sm:$0xff] %vm230, %v302
    %367 = vst.msk [vmem:[#allocation3 + $0x40] sm:$0xff] %vm230, %v303
    %368 = vst.msk [vmem:[#allocation3 + $0x48] sm:$0xff] %vm230, %v304
    %369 = vst.msk [vmem:[#allocation3 + $0x50] sm:$0xff] %vm230, %v305
    %370 = vst.msk [vmem:[#allocation3 + $0x58] sm:$0xff] %vm230, %v306
    %371 = vst.msk [vmem:[#allocation3 + $0x60] sm:$0xff] %vm230, %v307
    %372 = vst.msk [vmem:[#allocation3 + $0x68] sm:$0xff] %vm230, %v308
    %373 = vst.msk [vmem:[#allocation3 + $0x70] sm:$0xff] %vm230, %v309
    %374 = vst.msk [vmem:[#allocation3 + $0x78] sm:$0xff] %vm230, %v310
    %375 = vst.msk [vmem:[#allocation3 + $0x80] sm:$0xff] %vm230, %v311
    %376 = vst.msk [vmem:[#allocation3 + $0x88] sm:$0xff] %vm230, %v312
    %377 = vst.msk [vmem:[#allocation3 + $0x90] sm:$0xff] %vm230, %v313
    %378 = vst.msk [vmem:[#allocation3 + $0x98] sm:$0xff] %vm230, %v314
    %379 = vst.msk [vmem:[#allocation3 + $0xa0] sm:$0xff] %vm230, %v315
    %380 = vst.msk [vmem:[#allocation3 + $0xa8] sm:$0xff] %vm230, %v316
    %381 = vst.msk [vmem:[#allocation3 + $0xb0] sm:$0xff] %vm230, %v317
    %382 = vst.msk [vmem:[#allocation3 + $0xb8] sm:$0xff] %vm230, %v318
    %383 = vst.msk [vmem:[#allocation3 + $0xc0] sm:$0xff] %vm230, %v319
    %384 = vst.msk [vmem:[#allocation3 + $0xc8] sm:$0xff] %vm230, %v320
    %385 = vst.msk [vmem:[#allocation3 + $0xd0] sm:$0xff] %vm230, %v321
    %386 = vst.msk [vmem:[#allocation3 + $0xd8] sm:$0xff] %vm230, %v322
    %387 = vst.msk [vmem:[#allocation3 + $0xe0] sm:$0xff] %vm230, %v323
    %388 = vst.msk [vmem:[#allocation3 + $0xe8] sm:$0xff] %vm230, %v324
    %389 = vst.msk [vmem:[#allocation3 + $0xf0] sm:$0xff] %vm230, %v325
    %390 = vst.msk [vmem:[#allocation3 + $0xf8] sm:$0xff] %vm230, %v326
    %391 = vst.msk [vmem:[#allocation3 + $0x100] sm:$0xff] %vm230, %v327
    %392 = vst.msk [vmem:[#allocation3 + $0x108] sm:$0xff] %vm230, %v328
    %393 = vst.msk [vmem:[#allocation3 + $0x110] sm:$0xff] %vm230, %v329
    %394 = vst.msk [vmem:[#allocation3 + $0x118] sm:$0xff] %vm230, %v330
    %395 = vst.msk [vmem:[#allocation3 + $0x120] sm:$0xff] %vm230, %v331
    %396 = vst.msk [vmem:[#allocation3 + $0x128] sm:$0xff] %vm230, %v332
    %397 = vst.msk [vmem:[#allocation3 + $0x130] sm:$0xff] %vm230, %v333
    %398 = vst.msk [vmem:[#allocation3 + $0x138] sm:$0xff] %vm230, %v334
    %399 = vst.msk [vmem:[#allocation3 + $0x140] sm:$0xff] %vm230, %v335
    %400 = vst.msk [vmem:[#allocation3 + $0x148] sm:$0xff] %vm230, %v336
    %401 = vst.msk [vmem:[#allocation3 + $0x150] sm:$0xff] %vm230, %v337
    %402 = vst.msk [vmem:[#allocation3 + $0x158] sm:$0xff] %vm230, %v338
    %403 = vst.msk [vmem:[#allocation3 + $0x160] sm:$0xff] %vm230, %v339
    %404 = vst.msk [vmem:[#allocation3 + $0x168] sm:$0xff] %vm230, %v340
    %405 = vst.msk [vmem:[#allocation3 + $0x170] sm:$0xff] %vm230, %v341
    %406 = vst.msk [vmem:[#allocation3 + $0x178] sm:$0xff] %vm230, %v342
    %407 = vst.msk [vmem:[#allocation3 + $0x180] sm:$0xff] %vm230, %v343
    %408 = vst.msk [vmem:[#allocation3 + $0x188] sm:$0xff] %vm230, %v344
    %409 = vst.msk [vmem:[#allocation3 + $0x190] sm:$0xff] %vm230, %v345
    %410 = vst.msk [vmem:[#allocation3 + $0x198] sm:$0xff] %vm230, %v346
    %411 = vst.msk [vmem:[#allocation3 + $0x1a0] sm:$0xff] %vm230, %v347
    %412 = vst.msk [vmem:[#allocation3 + $0x1a8] sm:$0xff] %vm230, %v348
    %413 = vst.msk [vmem:[#allocation3 + $0x1b0] sm:$0xff] %vm230, %v349
    %414 = vst.msk [vmem:[#allocation3 + $0x1b8] sm:$0xff] %vm230, %v350
    %415 = vst.msk [vmem:[#allocation3 + $0x1c0] sm:$0xff] %vm230, %v351
    %416 = vst.msk [vmem:[#allocation3 + $0x1c8] sm:$0xff] %vm230, %v352
    %417 = vst.msk [vmem:[#allocation3 + $0x1d0] sm:$0xff] %vm230, %v353
    %418 = vst.msk [vmem:[#allocation3 + $0x1d8] sm:$0xff] %vm230, %v354
    %419 = vst.msk [vmem:[#allocation3 + $0x1e0] sm:$0xff] %vm230, %v355
    %420 = vst.msk [vmem:[#allocation3 + $0x1e8] sm:$0xff] %vm230, %v356
    %421 = vst.msk [vmem:[#allocation3 + $0x1f0] sm:$0xff] %vm230, %v357
    %422 = vst.msk [vmem:[#allocation3 + $0x1f8] sm:$0xff] %vm230, %v358
    %v423 = vld [vmem:[#allocation2 + $0x1] sm:$0xff]
    %v424 = vld [vmem:[#allocation2 + $0x9] sm:$0xff]
    %v425 = vld [vmem:[#allocation2 + $0x19] sm:$0xff]
    %v426 = vld [vmem:[#allocation2 + $0x21] sm:$0xff]
    %v427 = vld [vmem:[#allocation2 + $0x31] sm:$0xff]
    %v428 = vld [vmem:[#allocation2 + $0x39] sm:$0xff]
    %v429 = vld [vmem:[#allocation2 + $0x49] sm:$0xff]
    %v430 = vld [vmem:[#allocation2 + $0x51] sm:$0xff]
    %v431 = vld [vmem:[#allocation2 + $0x61] sm:$0xff]
    %v432 = vld [vmem:[#allocation2 + $0x69] sm:$0xff]
    %v433 = vld [vmem:[#allocation2 + $0x79] sm:$0xff]
    %v434 = vld [vmem:[#allocation2 + $0x81] sm:$0xff]
    %v435 = vld [vmem:[#allocation2 + $0x91] sm:$0xff]
    %v436 = vld [vmem:[#allocation2 + $0x99] sm:$0xff]
    %v437 = vld [vmem:[#allocation2 + $0xa9] sm:$0xff]
    %v438 = vld [vmem:[#allocation2 + $0xb1] sm:$0xff]
    %v439 = vld [vmem:[#allocation2 + $0xc1] sm:$0xff]
    %v440 = vld [vmem:[#allocation2 + $0xc9] sm:$0xff]
    %v441 = vld [vmem:[#allocation2 + $0xd9] sm:$0xff]
    %v442 = vld [vmem:[#allocation2 + $0xe1] sm:$0xff]
    %v443 = vld [vmem:[#allocation2 + $0xf1] sm:$0xff]
    %v444 = vld [vmem:[#allocation2 + $0xf9] sm:$0xff]
    %v445 = vld [vmem:[#allocation2 + $0x109] sm:$0xff]
    %v446 = vld [vmem:[#allocation2 + $0x111] sm:$0xff]
    %v447 = vld [vmem:[#allocation2 + $0x121] sm:$0xff]
    %v448 = vld [vmem:[#allocation2 + $0x129] sm:$0xff]
    %v449 = vld [vmem:[#allocation2 + $0x139] sm:$0xff]
    %v450 = vld [vmem:[#allocation2 + $0x141] sm:$0xff]
    %v451 = vld [vmem:[#allocation2 + $0x151] sm:$0xff]
    %v452 = vld [vmem:[#allocation2 + $0x159] sm:$0xff]
    %v453 = vld [vmem:[#allocation2 + $0x169] sm:$0xff]
    %v454 = vld [vmem:[#allocation2 + $0x171] sm:$0xff]
    %v455 = vld [vmem:[#allocation2 + $0x1b1] sm:$0xff]
    %v456 = vld [vmem:[#allocation2 + $0x1b9] sm:$0xff]
    %v457 = vld [vmem:[#allocation2 + $0x1c9] sm:$0xff]
    %v458 = vld [vmem:[#allocation2 + $0x1d1] sm:$0xff]
    %v459 = vld [vmem:[#allocation2 + $0x1e1] sm:$0xff]
    %v460 = vld [vmem:[#allocation2 + $0x1e9] sm:$0xff]
    %v461 = vld [vmem:[#allocation2 + $0x1f9] sm:$0xff]
    %v462 = vld [vmem:[#allocation2 + $0x201] sm:$0xff]
    %v463 = vld [vmem:[#allocation2 + $0x211] sm:$0xff]
    %v464 = vld [vmem:[#allocation2 + $0x219] sm:$0xff]
    %v465 = vld [vmem:[#allocation2 + $0x229] sm:$0xff]
    %v466 = vld [vmem:[#allocation2 + $0x231] sm:$0xff]
    %v467 = vld [vmem:[#allocation2 + $0x241] sm:$0xff]
    %v468 = vld [vmem:[#allocation2 + $0x249] sm:$0xff]
    %v469 = vld [vmem:[#allocation2 + $0x259] sm:$0xff]
    %v470 = vld [vmem:[#allocation2 + $0x261] sm:$0xff]
    %v471 = vld [vmem:[#allocation2 + $0x271] sm:$0xff]
    %v472 = vld [vmem:[#allocation2 + $0x279] sm:$0xff]
    %v473 = vld [vmem:[#allocation2 + $0x289] sm:$0xff]
    %v474 = vld [vmem:[#allocation2 + $0x291] sm:$0xff]
    %v475 = vld [vmem:[#allocation2 + $0x2a1] sm:$0xff]
    %v476 = vld [vmem:[#allocation2 + $0x2a9] sm:$0xff]
    %v477 = vld [vmem:[#allocation2 + $0x2b9] sm:$0xff]
    %v478 = vld [vmem:[#allocation2 + $0x2c1] sm:$0xff]
    %v479 = vld [vmem:[#allocation2 + $0x2d1] sm:$0xff]
    %v480 = vld [vmem:[#allocation2 + $0x2d9] sm:$0xff]
    %v481 = vld [vmem:[#allocation2 + $0x2e9] sm:$0xff]
    %v482 = vld [vmem:[#allocation2 + $0x2f1] sm:$0xff]
    %v483 = vld [vmem:[#allocation2 + $0x301] sm:$0xff]
    %v484 = vld [vmem:[#allocation2 + $0x309] sm:$0xff]
    %v485 = vld [vmem:[#allocation2 + $0x319] sm:$0xff]
    %v486 = vld [vmem:[#allocation2 + $0x321] sm:$0xff]
    %551 = vrot.lane.b32.xlu0 %v423, 4
    %v552 = vpop.permute.xlu0 %551
    %553 = vrot.lane.b32.xlu0 %v424, 4
    %v554 = vpop.permute.xlu0 %553
    %555 = vrot.lane.b32.xlu0 %v425, 4
    %v556 = vpop.permute.xlu0 %555
    %557 = vrot.lane.b32.xlu0 %v426, 4
    %v558 = vpop.permute.xlu0 %557
    %559 = vrot.lane.b32.xlu0 %v427, 4
    %v560 = vpop.permute.xlu0 %559
    %561 = vrot.lane.b32.xlu0 %v428, 4
    %v562 = vpop.permute.xlu0 %561
    %563 = vrot.lane.b32.xlu0 %v429, 4
    %v564 = vpop.permute.xlu0 %563
    %565 = vrot.lane.b32.xlu0 %v430, 4
    %v566 = vpop.permute.xlu0 %565
    %567 = vrot.lane.b32.xlu0 %v431, 4
    %v568 = vpop.permute.xlu0 %567
    %569 = vrot.lane.b32.xlu0 %v432, 4
    %v570 = vpop.permute.xlu0 %569
    %571 = vrot.lane.b32.xlu0 %v433, 4
    %v572 = vpop.permute.xlu0 %571
    %573 = vrot.lane.b32.xlu0 %v434, 4
    %v574 = vpop.permute.xlu0 %573
    %575 = vrot.lane.b32.xlu0 %v435, 4
    %v576 = vpop.permute.xlu0 %575
    %577 = vrot.lane.b32.xlu0 %v436, 4
    %v578 = vpop.permute.xlu0 %577
    %579 = vrot.lane.b32.xlu0 %v437, 4
    %v580 = vpop.permute.xlu0 %579
    %581 = vrot.lane.b32.xlu0 %v438, 4
    %v582 = vpop.permute.xlu0 %581
    %583 = vrot.lane.b32.xlu0 %v439, 4
    %v584 = vpop.permute.xlu0 %583
    %585 = vrot.lane.b32.xlu0 %v440, 4
    %v586 = vpop.permute.xlu0 %585
    %587 = vrot.lane.b32.xlu0 %v441, 4
    %v588 = vpop.permute.xlu0 %587
    %589 = vrot.lane.b32.xlu0 %v442, 4
    %v590 = vpop.permute.xlu0 %589
    %591 = vrot.lane.b32.xlu0 %v443, 4
    %v592 = vpop.permute.xlu0 %591
    %593 = vrot.lane.b32.xlu0 %v444, 4
    %v594 = vpop.permute.xlu0 %593
    %595 = vrot.lane.b32.xlu0 %v445, 4
    %v596 = vpop.permute.xlu0 %595
    %597 = vrot.lane.b32.xlu0 %v446, 4
    %v598 = vpop.permute.xlu0 %597
    %599 = vrot.lane.b32.xlu0 %v447, 4
    %v600 = vpop.permute.xlu0 %599
    %601 = vrot.lane.b32.xlu0 %v448, 4
    %v602 = vpop.permute.xlu0 %601
    %603 = vrot.lane.b32.xlu0 %v449, 4
    %v604 = vpop.permute.xlu0 %603
    %605 = vrot.lane.b32.xlu0 %v450, 4
    %v606 = vpop.permute.xlu0 %605
    %607 = vrot.lane.b32.xlu0 %v451, 4
    %v608 = vpop.permute.xlu0 %607
    %609 = vrot.lane.b32.xlu0 %v452, 4
    %v610 = vpop.permute.xlu0 %609
    %611 = vrot.lane.b32.xlu0 %v453, 4
    %v612 = vpop.permute.xlu0 %611
    %613 = vrot.lane.b32.xlu0 %v454, 4
    %v614 = vpop.permute.xlu0 %613
    %615 = vrot.lane.b32.xlu0 %v455, 4
    %v616 = vpop.permute.xlu0 %615
    %617 = vrot.lane.b32.xlu0 %v456, 4
    %v618 = vpop.permute.xlu0 %617
    %619 = vrot.lane.b32.xlu0 %v457, 4
    %v620 = vpop.permute.xlu0 %619
    %621 = vrot.lane.b32.xlu0 %v458, 4
    %v622 = vpop.permute.xlu0 %621
    %623 = vrot.lane.b32.xlu0 %v459, 4
    %v624 = vpop.permute.xlu0 %623
    %625 = vrot.lane.b32.xlu0 %v460, 4
    %v626 = vpop.permute.xlu0 %625
    %627 = vrot.lane.b32.xlu0 %v461, 4
    %v628 = vpop.permute.xlu0 %627
    %629 = vrot.lane.b32.xlu0 %v462, 4
    %v630 = vpop.permute.xlu0 %629
    %631 = vrot.lane.b32.xlu0 %v463, 4
    %v632 = vpop.permute.xlu0 %631
    %633 = vrot.lane.b32.xlu0 %v464, 4
    %v634 = vpop.permute.xlu0 %633
    %635 = vrot.lane.b32.xlu0 %v465, 4
    %v636 = vpop.permute.xlu0 %635
    %637 = vrot.lane.b32.xlu0 %v466, 4
    %v638 = vpop.permute.xlu0 %637
    %639 = vrot.lane.b32.xlu0 %v467, 4
    %v640 = vpop.permute.xlu0 %639
    %641 = vrot.lane.b32.xlu0 %v468, 4
    %v642 = vpop.permute.xlu0 %641
    %643 = vrot.lane.b32.xlu0 %v469, 4
    %v644 = vpop.permute.xlu0 %643
    %645 = vrot.lane.b32.xlu0 %v470, 4
    %v646 = vpop.permute.xlu0 %645
    %647 = vrot.lane.b32.xlu0 %v471, 4
    %v648 = vpop.permute.xlu0 %647
    %649 = vrot.lane.b32.xlu0 %v472, 4
    %v650 = vpop.permute.xlu0 %649
    %651 = vrot.lane.b32.xlu0 %v473, 4
    %v652 = vpop.permute.xlu0 %651
    %653 = vrot.lane.b32.xlu0 %v474, 4
    %v654 = vpop.permute.xlu0 %653
    %655 = vrot.lane.b32.xlu0 %v475, 4
    %v656 = vpop.permute.xlu0 %655
    %657 = vrot.lane.b32.xlu0 %v476, 4
    %v658 = vpop.permute.xlu0 %657
    %659 = vrot.lane.b32.xlu0 %v477, 4
    %v660 = vpop.permute.xlu0 %659
    %661 = vrot.lane.b32.xlu0 %v478, 4
    %v662 = vpop.permute.xlu0 %661
    %663 = vrot.lane.b32.xlu0 %v479, 4
    %v664 = vpop.permute.xlu0 %663
    %665 = vrot.lane.b32.xlu0 %v480, 4
    %v666 = vpop.permute.xlu0 %665
    %667 = vrot.lane.b32.xlu0 %v481, 4
    %v668 = vpop.permute.xlu0 %667
    %669 = vrot.lane.b32.xlu0 %v482, 4
    %v670 = vpop.permute.xlu0 %669
    %671 = vrot.lane.b32.xlu0 %v483, 4
    %v672 = vpop.permute.xlu0 %671
    %673 = vrot.lane.b32.xlu0 %v484, 4
    %v674 = vpop.permute.xlu0 %673
    %675 = vrot.lane.b32.xlu0 %v485, 4
    %v676 = vpop.permute.xlu0 %675
    %677 = vrot.lane.b32.xlu0 %v486, 4
    %v678 = vpop.permute.xlu0 %677
    %vm743 = vcmask 64544
    %744 = vst.msk [vmem:[#allocation3] sm:$0xff] %vm743, %v552
    %745 = vst.msk [vmem:[#allocation3 + $0x8] sm:$0xff] %vm743, %v554
    %746 = vst.msk [vmem:[#allocation3 + $0x10] sm:$0xff] %vm743, %v556
    %747 = vst.msk [vmem:[#allocation3 + $0x18] sm:$0xff] %vm743, %v558
    %748 = vst.msk [vmem:[#allocation3 + $0x20] sm:$0xff] %vm743, %v560
    %749 = vst.msk [vmem:[#allocation3 + $0x28] sm:$0xff] %vm743, %v562
    %750 = vst.msk [vmem:[#allocation3 + $0x30] sm:$0xff] %vm743, %v564
    %751 = vst.msk [vmem:[#allocation3 + $0x38] sm:$0xff] %vm743, %v566
    %752 = vst.msk [vmem:[#allocation3 + $0x40] sm:$0xff] %vm743, %v568
    %753 = vst.msk [vmem:[#allocation3 + $0x48] sm:$0xff] %vm743, %v570
    %754 = vst.msk [vmem:[#allocation3 + $0x50] sm:$0xff] %vm743, %v572
    %755 = vst.msk [vmem:[#allocation3 + $0x58] sm:$0xff] %vm743, %v574
    %756 = vst.msk [vmem:[#allocation3 + $0x60] sm:$0xff] %vm743, %v576
    %757 = vst.msk [vmem:[#allocation3 + $0x68] sm:$0xff] %vm743, %v578
    %758 = vst.msk [vmem:[#allocation3 + $0x70] sm:$0xff] %vm743, %v580
    %759 = vst.msk [vmem:[#allocation3 + $0x78] sm:$0xff] %vm743, %v582
    %760 = vst.msk [vmem:[#allocation3 + $0x80] sm:$0xff] %vm743, %v584
    %761 = vst.msk [vmem:[#allocation3 + $0x88] sm:$0xff] %vm743, %v586
    %762 = vst.msk [vmem:[#allocation3 + $0x90] sm:$0xff] %vm743, %v588
    %763 = vst.msk [vmem:[#allocation3 + $0x98] sm:$0xff] %vm743, %v590
    %764 = vst.msk [vmem:[#allocation3 + $0xa0] sm:$0xff] %vm743, %v592
    %765 = vst.msk [vmem:[#allocation3 + $0xa8] sm:$0xff] %vm743, %v594
    %766 = vst.msk [vmem:[#allocation3 + $0xb0] sm:$0xff] %vm743, %v596
    %767 = vst.msk [vmem:[#allocation3 + $0xb8] sm:$0xff] %vm743, %v598
    %768 = vst.msk [vmem:[#allocation3 + $0xc0] sm:$0xff] %vm743, %v600
    %769 = vst.msk [vmem:[#allocation3 + $0xc8] sm:$0xff] %vm743, %v602
    %770 = vst.msk [vmem:[#allocation3 + $0xd0] sm:$0xff] %vm743, %v604
    %771 = vst.msk [vmem:[#allocation3 + $0xd8] sm:$0xff] %vm743, %v606
    %772 = vst.msk [vmem:[#allocation3 + $0xe0] sm:$0xff] %vm743, %v608
    %773 = vst.msk [vmem:[#allocation3 + $0xe8] sm:$0xff] %vm743, %v610
    %774 = vst.msk [vmem:[#allocation3 + $0xf0] sm:$0xff] %vm743, %v612
    %775 = vst.msk [vmem:[#allocation3 + $0xf8] sm:$0xff] %vm743, %v614
    %776 = vst.msk [vmem:[#allocation3 + $0x100] sm:$0xff] %vm743, %v616
    %777 = vst.msk [vmem:[#allocation3 + $0x108] sm:$0xff] %vm743, %v618
    %778 = vst.msk [vmem:[#allocation3 + $0x110] sm:$0xff] %vm743, %v620
    %779 = vst.msk [vmem:[#allocation3 + $0x118] sm:$0xff] %vm743, %v622
    %780 = vst.msk [vmem:[#allocation3 + $0x120] sm:$0xff] %vm743, %v624
    %781 = vst.msk [vmem:[#allocation3 + $0x128] sm:$0xff] %vm743, %v626
    %782 = vst.msk [vmem:[#allocation3 + $0x130] sm:$0xff] %vm743, %v628
    %783 = vst.msk [vmem:[#allocation3 + $0x138] sm:$0xff] %vm743, %v630
    %784 = vst.msk [vmem:[#allocation3 + $0x140] sm:$0xff] %vm743, %v632
    %785 = vst.msk [vmem:[#allocation3 + $0x148] sm:$0xff] %vm743, %v634
    %786 = vst.msk [vmem:[#allocation3 + $0x150] sm:$0xff] %vm743, %v636
    %787 = vst.msk [vmem:[#allocation3 + $0x158] sm:$0xff] %vm743, %v638
    %788 = vst.msk [vmem:[#allocation3 + $0x160] sm:$0xff] %vm743, %v640
    %789 = vst.msk [vmem:[#allocation3 + $0x168] sm:$0xff] %vm743, %v642
    %790 = vst.msk [vmem:[#allocation3 + $0x170] sm:$0xff] %vm743, %v644
    %791 = vst.msk [vmem:[#allocation3 + $0x178] sm:$0xff] %vm743, %v646
    %792 = vst.msk [vmem:[#allocation3 + $0x180] sm:$0xff] %vm743, %v648
    %793 = vst.msk [vmem:[#allocation3 + $0x188] sm:$0xff] %vm743, %v650
    %794 = vst.msk [vmem:[#allocation3 + $0x190] sm:$0xff] %vm743, %v652
    %795 = vst.msk [vmem:[#allocation3 + $0x198] sm:$0xff] %vm743, %v654
    %796 = vst.msk [vmem:[#allocation3 + $0x1a0] sm:$0xff] %vm743, %v656
    %797 = vst.msk [vmem:[#allocation3 + $0x1a8] sm:$0xff] %vm743, %v658
    %798 = vst.msk [vmem:[#allocation3 + $0x1b0] sm:$0xff] %vm743, %v660
    %799 = vst.msk [vmem:[#allocation3 + $0x1b8] sm:$0xff] %vm743, %v662
    %800 = vst.msk [vmem:[#allocation3 + $0x1c0] sm:$0xff] %vm743, %v664
    %801 = vst.msk [vmem:[#allocation3 + $0x1c8] sm:$0xff] %vm743, %v666
    %802 = vst.msk [vmem:[#allocation3 + $0x1d0] sm:$0xff] %vm743, %v668
    %803 = vst.msk [vmem:[#allocation3 + $0x1d8] sm:$0xff] %vm743, %v670
    %804 = vst.msk [vmem:[#allocation3 + $0x1e0] sm:$0xff] %vm743, %v672
    %805 = vst.msk [vmem:[#allocation3 + $0x1e8] sm:$0xff] %vm743, %v674
    %806 = vst.msk [vmem:[#allocation3 + $0x1f0] sm:$0xff] %vm743, %v676
    %807 = vst.msk [vmem:[#allocation3 + $0x1f8] sm:$0xff] %vm743, %v678
    %v808 = vld [vmem:[#allocation2 + $0x2] sm:$0xff]
    %v809 = vld [vmem:[#allocation2 + $0xa] sm:$0xff]
    %v810 = vld [vmem:[#allocation2 + $0x1a] sm:$0xff]
    %v811 = vld [vmem:[#allocation2 + $0x22] sm:$0xff]
    %v812 = vld [vmem:[#allocation2 + $0x32] sm:$0xff]
    %v813 = vld [vmem:[#allocation2 + $0x3a] sm:$0xff]
    %v814 = vld [vmem:[#allocation2 + $0x4a] sm:$0xff]
    %v815 = vld [vmem:[#allocation2 + $0x52] sm:$0xff]
    %v816 = vld [vmem:[#allocation2 + $0x62] sm:$0xff]
    %v817 = vld [vmem:[#allocation2 + $0x6a] sm:$0xff]
    %v818 = vld [vmem:[#allocation2 + $0x7a] sm:$0xff]
    %v819 = vld [vmem:[#allocation2 + $0x82] sm:$0xff]
    %v820 = vld [vmem:[#allocation2 + $0x92] sm:$0xff]
    %v821 = vld [vmem:[#allocation2 + $0x9a] sm:$0xff]
    %v822 = vld [vmem:[#allocation2 + $0xaa] sm:$0xff]
    %v823 = vld [vmem:[#allocation2 + $0xb2] sm:$0xff]
    %v824 = vld [vmem:[#allocation2 + $0xc2] sm:$0xff]
    %v825 = vld [vmem:[#allocation2 + $0xca] sm:$0xff]
    %v826 = vld [vmem:[#allocation2 + $0xda] sm:$0xff]
    %v827 = vld [vmem:[#allocation2 + $0xe2] sm:$0xff]
    %v828 = vld [vmem:[#allocation2 + $0xf2] sm:$0xff]
    %v829 = vld [vmem:[#allocation2 + $0xfa] sm:$0xff]
    %v830 = vld [vmem:[#allocation2 + $0x10a] sm:$0xff]
    %v831 = vld [vmem:[#allocation2 + $0x112] sm:$0xff]
    %v832 = vld [vmem:[#allocation2 + $0x122] sm:$0xff]
    %v833 = vld [vmem:[#allocation2 + $0x12a] sm:$0xff]
    %v834 = vld [vmem:[#allocation2 + $0x13a] sm:$0xff]
    %v835 = vld [vmem:[#allocation2 + $0x142] sm:$0xff]
    %v836 = vld [vmem:[#allocation2 + $0x152] sm:$0xff]
    %v837 = vld [vmem:[#allocation2 + $0x15a] sm:$0xff]
    %v838 = vld [vmem:[#allocation2 + $0x16a] sm:$0xff]
    %v839 = vld [vmem:[#allocation2 + $0x172] sm:$0xff]
    %v840 = vld [vmem:[#allocation2 + $0x1b2] sm:$0xff]
    %v841 = vld [vmem:[#allocation2 + $0x1ba] sm:$0xff]
    %v842 = vld [vmem:[#allocation2 + $0x1ca] sm:$0xff]
    %v843 = vld [vmem:[#allocation2 + $0x1d2] sm:$0xff]
    %v844 = vld [vmem:[#allocation2 + $0x1e2] sm:$0xff]
    %v845 = vld [vmem:[#allocation2 + $0x1ea] sm:$0xff]
    %v846 = vld [vmem:[#allocation2 + $0x1fa] sm:$0xff]
    %v847 = vld [vmem:[#allocation2 + $0x202] sm:$0xff]
    %v848 = vld [vmem:[#allocation2 + $0x212] sm:$0xff]
    %v849 = vld [vmem:[#allocation2 + $0x21a] sm:$0xff]
    %v850 = vld [vmem:[#allocation2 + $0x22a] sm:$0xff]
    %v851 = vld [vmem:[#allocation2 + $0x232] sm:$0xff]
    %v852 = vld [vmem:[#allocation2 + $0x242] sm:$0xff]
    %v853 = vld [vmem:[#allocation2 + $0x24a] sm:$0xff]
    %v854 = vld [vmem:[#allocation2 + $0x25a] sm:$0xff]
    %v855 = vld [vmem:[#allocation2 + $0x262] sm:$0xff]
    %v856 = vld [vmem:[#allocation2 + $0x272] sm:$0xff]
    %v857 = vld [vmem:[#allocation2 + $0x27a] sm:$0xff]
    %v858 = vld [vmem:[#allocation2 + $0x28a] sm:$0xff]
    %v859 = vld [vmem:[#allocation2 + $0x292] sm:$0xff]
    %v860 = vld [vmem:[#allocation2 + $0x2a2] sm:$0xff]
    %v861 = vld [vmem:[#allocation2 + $0x2aa] sm:$0xff]
    %v862 = vld [vmem:[#allocation2 + $0x2ba] sm:$0xff]
    %v863 = vld [vmem:[#allocation2 + $0x2c2] sm:$0xff]
    %v864 = vld [vmem:[#allocation2 + $0x2d2] sm:$0xff]
    %v865 = vld [vmem:[#allocation2 + $0x2da] sm:$0xff]
    %v866 = vld [vmem:[#allocation2 + $0x2ea] sm:$0xff]
    %v867 = vld [vmem:[#allocation2 + $0x2f2] sm:$0xff]
    %v868 = vld [vmem:[#allocation2 + $0x302] sm:$0xff]
    %v869 = vld [vmem:[#allocation2 + $0x30a] sm:$0xff]
    %v870 = vld [vmem:[#allocation2 + $0x31a] sm:$0xff]
    %v871 = vld [vmem:[#allocation2 + $0x322] sm:$0xff]
    %936 = vrot.lane.b32.xlu0 %v808, 8
    %v937 = vpop.permute.xlu0 %936
    %938 = vrot.lane.b32.xlu0 %v809, 8
    %v939 = vpop.permute.xlu0 %938
    %940 = vrot.lane.b32.xlu0 %v810, 8
    %v941 = vpop.permute.xlu0 %940
    %942 = vrot.lane.b32.xlu0 %v811, 8
    %v943 = vpop.permute.xlu0 %942
    %944 = vrot.lane.b32.xlu0 %v812, 8
    %v945 = vpop.permute.xlu0 %944
    %946 = vrot.lane.b32.xlu0 %v813, 8
    %v947 = vpop.permute.xlu0 %946
    %948 = vrot.lane.b32.xlu0 %v814, 8
    %v949 = vpop.permute.xlu0 %948
    %950 = vrot.lane.b32.xlu0 %v815, 8
    %v951 = vpop.permute.xlu0 %950
    %952 = vrot.lane.b32.xlu0 %v816, 8
    %v953 = vpop.permute.xlu0 %952
    %954 = vrot.lane.b32.xlu0 %v817, 8
    %v955 = vpop.permute.xlu0 %954
    %956 = vrot.lane.b32.xlu0 %v818, 8
    %v957 = vpop.permute.xlu0 %956
    %958 = vrot.lane.b32.xlu0 %v819, 8
    %v959 = vpop.permute.xlu0 %958
    %960 = vrot.lane.b32.xlu0 %v820, 8
    %v961 = vpop.permute.xlu0 %960
    %962 = vrot.lane.b32.xlu0 %v821, 8
    %v963 = vpop.permute.xlu0 %962
    %964 = vrot.lane.b32.xlu0 %v822, 8
    %v965 = vpop.permute.xlu0 %964
    %966 = vrot.lane.b32.xlu0 %v823, 8
    %v967 = vpop.permute.xlu0 %966
    %968 = vrot.lane.b32.xlu0 %v824, 8
    %v969 = vpop.permute.xlu0 %968
    %970 = vrot.lane.b32.xlu0 %v825, 8
    %v971 = vpop.permute.xlu0 %970
    %972 = vrot.lane.b32.xlu0 %v826, 8
    %v973 = vpop.permute.xlu0 %972
    %974 = vrot.lane.b32.xlu0 %v827, 8
    %v975 = vpop.permute.xlu0 %974
    %976 = vrot.lane.b32.xlu0 %v828, 8
    %v977 = vpop.permute.xlu0 %976
    %978 = vrot.lane.b32.xlu0 %v829, 8
    %v979 = vpop.permute.xlu0 %978
    %980 = vrot.lane.b32.xlu0 %v830, 8
    %v981 = vpop.permute.xlu0 %980
    %982 = vrot.lane.b32.xlu0 %v831, 8
    %v983 = vpop.permute.xlu0 %982
    %984 = vrot.lane.b32.xlu0 %v832, 8
    %v985 = vpop.permute.xlu0 %984
    %986 = vrot.lane.b32.xlu0 %v833, 8
    %v987 = vpop.permute.xlu0 %986
    %988 = vrot.lane.b32.xlu0 %v834, 8
    %v989 = vpop.permute.xlu0 %988
    %990 = vrot.lane.b32.xlu0 %v835, 8
    %v991 = vpop.permute.xlu0 %990
    %992 = vrot.lane.b32.xlu0 %v836, 8
    %v993 = vpop.permute.xlu0 %992
    %994 = vrot.lane.b32.xlu0 %v837, 8
    %v995 = vpop.permute.xlu0 %994
    %996 = vrot.lane.b32.xlu0 %v838, 8
    %v997 = vpop.permute.xlu0 %996
    %998 = vrot.lane.b32.xlu0 %v839, 8
    %v999 = vpop.permute.xlu0 %998
    %1000 = vrot.lane.b32.xlu0 %v840, 8
    %v1001 = vpop.permute.xlu0 %1000
    %1002 = vrot.lane.b32.xlu0 %v841, 8
    %v1003 = vpop.permute.xlu0 %1002
    %1004 = vrot.lane.b32.xlu0 %v842, 8
    %v1005 = vpop.permute.xlu0 %1004
    %1006 = vrot.lane.b32.xlu0 %v843, 8
    %v1007 = vpop.permute.xlu0 %1006
    %1008 = vrot.lane.b32.xlu0 %v844, 8
    %v1009 = vpop.permute.xlu0 %1008
    %1010 = vrot.lane.b32.xlu0 %v845, 8
    %v1011 = vpop.permute.xlu0 %1010
    %1012 = vrot.lane.b32.xlu0 %v846, 8
    %v1013 = vpop.permute.xlu0 %1012
    %1014 = vrot.lane.b32.xlu0 %v847, 8
    %v1015 = vpop.permute.xlu0 %1014
    %1016 = vrot.lane.b32.xlu0 %v848, 8
    %v1017 = vpop.permute.xlu0 %1016
    %1018 = vrot.lane.b32.xlu0 %v849, 8
    %v1019 = vpop.permute.xlu0 %1018
    %1020 = vrot.lane.b32.xlu0 %v850, 8
    %v1021 = vpop.permute.xlu0 %1020
    %1022 = vrot.lane.b32.xlu0 %v851, 8
    %v1023 = vpop.permute.xlu0 %1022
    %1024 = vrot.lane.b32.xlu0 %v852, 8
    %v1025 = vpop.permute.xlu0 %1024
    %1026 = vrot.lane.b32.xlu0 %v853, 8
    %v1027 = vpop.permute.xlu0 %1026
    %1028 = vrot.lane.b32.xlu0 %v854, 8
    %v1029 = vpop.permute.xlu0 %1028
    %1030 = vrot.lane.b32.xlu0 %v855, 8
    %v1031 = vpop.permute.xlu0 %1030
    %1032 = vrot.lane.b32.xlu0 %v856, 8
    %v1033 = vpop.permute.xlu0 %1032
    %1034 = vrot.lane.b32.xlu0 %v857, 8
    %v1035 = vpop.permute.xlu0 %1034
    %1036 = vrot.lane.b32.xlu0 %v858, 8
    %v1037 = vpop.permute.xlu0 %1036
    %1038 = vrot.lane.b32.xlu0 %v859, 8
    %v1039 = vpop.permute.xlu0 %1038
    %1040 = vrot.lane.b32.xlu0 %v860, 8
    %v1041 = vpop.permute.xlu0 %1040
    %1042 = vrot.lane.b32.xlu0 %v861, 8
    %v1043 = vpop.permute.xlu0 %1042
    %1044 = vrot.lane.b32.xlu0 %v862, 8
    %v1045 = vpop.permute.xlu0 %1044
    %1046 = vrot.lane.b32.xlu0 %v863, 8
    %v1047 = vpop.permute.xlu0 %1046
    %1048 = vrot.lane.b32.xlu0 %v864, 8
    %v1049 = vpop.permute.xlu0 %1048
    %1050 = vrot.lane.b32.xlu0 %v865, 8
    %v1051 = vpop.permute.xlu0 %1050
    %1052 = vrot.lane.b32.xlu0 %v866, 8
    %v1053 = vpop.permute.xlu0 %1052
    %1054 = vrot.lane.b32.xlu0 %v867, 8
    %v1055 = vpop.permute.xlu0 %1054
    %1056 = vrot.lane.b32.xlu0 %v868, 8
    %v1057 = vpop.permute.xlu0 %1056
    %1058 = vrot.lane.b32.xlu0 %v869, 8
    %v1059 = vpop.permute.xlu0 %1058
    %1060 = vrot.lane.b32.xlu0 %v870, 8
    %v1061 = vpop.permute.xlu0 %1060
    %1062 = vrot.lane.b32.xlu0 %v871, 8
    %v1063 = vpop.permute.xlu0 %1062
    %vm1128 = vcmask 97344
    %1129 = vst.msk [vmem:[#allocation3] sm:$0xff] %vm1128, %v937
    %1130 = vst.msk [vmem:[#allocation3 + $0x8] sm:$0xff] %vm1128, %v939
    %1131 = vst.msk [vmem:[#allocation3 + $0x10] sm:$0xff] %vm1128, %v941
    %1132 = vst.msk [vmem:[#allocation3 + $0x18] sm:$0xff] %vm1128, %v943
    %1133 = vst.msk [vmem:[#allocation3 + $0x20] sm:$0xff] %vm1128, %v945
    %1134 = vst.msk [vmem:[#allocation3 + $0x28] sm:$0xff] %vm1128, %v947
    %1135 = vst.msk [vmem:[#allocation3 + $0x30] sm:$0xff] %vm1128, %v949
    %1136 = vst.msk [vmem:[#allocation3 + $0x38] sm:$0xff] %vm1128, %v951
    %1137 = vst.msk [vmem:[#allocation3 + $0x40] sm:$0xff] %vm1128, %v953
    %1138 = vst.msk [vmem:[#allocation3 + $0x48] sm:$0xff] %vm1128, %v955
    %1139 = vst.msk [vmem:[#allocation3 + $0x50] sm:$0xff] %vm1128, %v957
    %1140 = vst.msk [vmem:[#allocation3 + $0x58] sm:$0xff] %vm1128, %v959
    %1141 = vst.msk [vmem:[#allocation3 + $0x60] sm:$0xff] %vm1128, %v961
    %1142 = vst.msk [vmem:[#allocation3 + $0x68] sm:$0xff] %vm1128, %v963
    %1143 = vst.msk [vmem:[#allocation3 + $0x70] sm:$0xff] %vm1128, %v965
    %1144 = vst.msk [vmem:[#allocation3 + $0x78] sm:$0xff] %vm1128, %v967
    %1145 = vst.msk [vmem:[#allocation3 + $0x80] sm:$0xff] %vm1128, %v969
    %1146 = vst.msk [vmem:[#allocation3 + $0x88] sm:$0xff] %vm1128, %v971
    %1147 = vst.msk [vmem:[#allocation3 + $0x90] sm:$0xff] %vm1128, %v973
    %1148 = vst.msk [vmem:[#allocation3 + $0x98] sm:$0xff] %vm1128, %v975
    %1149 = vst.msk [vmem:[#allocation3 + $0xa0] sm:$0xff] %vm1128, %v977
    %1150 = vst.msk [vmem:[#allocation3 + $0xa8] sm:$0xff] %vm1128, %v979
    %1151 = vst.msk [vmem:[#allocation3 + $0xb0] sm:$0xff] %vm1128, %v981
    %1152 = vst.msk [vmem:[#allocation3 + $0xb8] sm:$0xff] %vm1128, %v983
    %1153 = vst.msk [vmem:[#allocation3 + $0xc0] sm:$0xff] %vm1128, %v985
    %1154 = vst.msk [vmem:[#allocation3 + $0xc8] sm:$0xff] %vm1128, %v987
    %1155 = vst.msk [vmem:[#allocation3 + $0xd0] sm:$0xff] %vm1128, %v989
    %1156 = vst.msk [vmem:[#allocation3 + $0xd8] sm:$0xff] %vm1128, %v991
    %1157 = vst.msk [vmem:[#allocation3 + $0xe0] sm:$0xff] %vm1128, %v993
    %1158 = vst.msk [vmem:[#allocation3 + $0xe8] sm:$0xff] %vm1128, %v995
    %1159 = vst.msk [vmem:[#allocation3 + $0xf0] sm:$0xff] %vm1128, %v997
    %1160 = vst.msk [vmem:[#allocation3 + $0xf8] sm:$0xff] %vm1128, %v999
    %1161 = vst.msk [vmem:[#allocation3 + $0x100] sm:$0xff] %vm1128, %v1001
    %1162 = vst.msk [vmem:[#allocation3 + $0x108] sm:$0xff] %vm1128, %v1003
    %1163 = vst.msk [vmem:[#allocation3 + $0x110] sm:$0xff] %vm1128, %v1005
    %1164 = vst.msk [vmem:[#allocation3 + $0x118] sm:$0xff] %vm1128, %v1007
    %1165 = vst.msk [vmem:[#allocation3 + $0x120] sm:$0xff] %vm1128, %v1009
    %1166 = vst.msk [vmem:[#allocation3 + $0x128] sm:$0xff] %vm1128, %v1011
    %1167 = vst.msk [vmem:[#allocation3 + $0x130] sm:$0xff] %vm1128, %v1013
    %1168 = vst.msk [vmem:[#allocation3 + $0x138] sm:$0xff] %vm1128, %v1015
    %1169 = vst.msk [vmem:[#allocation3 + $0x140] sm:$0xff] %vm1128, %v1017
    %1170 = vst.msk [vmem:[#allocation3 + $0x148] sm:$0xff] %vm1128, %v1019
    %1171 = vst.msk [vmem:[#allocation3 + $0x150] sm:$0xff] %vm1128, %v1021
    %1172 = vst.msk [vmem:[#allocation3 + $0x158] sm:$0xff] %vm1128, %v1023
    %1173 = vst.msk [vmem:[#allocation3 + $0x160] sm:$0xff] %vm1128, %v1025
    %1174 = vst.msk [vmem:[#allocation3 + $0x168] sm:$0xff] %vm1128, %v1027
    %1175 = vst.msk [vmem:[#allocation3 + $0x170] sm:$0xff] %vm1128, %v1029
    %1176 = vst.msk [vmem:[#allocation3 + $0x178] sm:$0xff] %vm1128, %v1031
    %1177 = vst.msk [vmem:[#allocation3 + $0x180] sm:$0xff] %vm1128, %v1033
    %1178 = vst.msk [vmem:[#allocation3 + $0x188] sm:$0xff] %vm1128, %v1035
    %1179 = vst.msk [vmem:[#allocation3 + $0x190] sm:$0xff] %vm1128, %v1037
    %1180 = vst.msk [vmem:[#allocation3 + $0x198] sm:$0xff] %vm1128, %v1039
    %1181 = vst.msk [vmem:[#allocation3 + $0x1a0] sm:$0xff] %vm1128, %v1041
    %1182 = vst.msk [vmem:[#allocation3 + $0x1a8] sm:$0xff] %vm1128, %v1043
    %1183 = vst.msk [vmem:[#allocation3 + $0x1b0] sm:$0xff] %vm1128, %v1045
    %1184 = vst.msk [vmem:[#allocation3 + $0x1b8] sm:$0xff] %vm1128, %v1047
    %1185 = vst.msk [vmem:[#allocation3 + $0x1c0] sm:$0xff] %vm1128, %v1049
    %1186 = vst.msk [vmem:[#allocation3 + $0x1c8] sm:$0xff] %vm1128, %v1051
    %1187 = vst.msk [vmem:[#allocation3 + $0x1d0] sm:$0xff] %vm1128, %v1053
    %1188 = vst.msk [vmem:[#allocation3 + $0x1d8] sm:$0xff] %vm1128, %v1055
    %1189 = vst.msk [vmem:[#allocation3 + $0x1e0] sm:$0xff] %vm1128, %v1057
    %1190 = vst.msk [vmem:[#allocation3 + $0x1e8] sm:$0xff] %vm1128, %v1059
    %1191 = vst.msk [vmem:[#allocation3 + $0x1f0] sm:$0xff] %vm1128, %v1061
    %1192 = vst.msk [vmem:[#allocation3 + $0x1f8] sm:$0xff] %vm1128, %v1063
    %v1193 = vld [vmem:[%s229] sm:$0xff]
    %v1194 = vld [vmem:[%s229 + $0x8] sm:$0xff]
    %v1195 = vld [vmem:[%s229 + $0x18] sm:$0xff]
    %v1196 = vld [vmem:[%s229 + $0x20] sm:$0xff]
    %v1197 = vld [vmem:[%s229 + $0x30] sm:$0xff]
    %v1198 = vld [vmem:[%s229 + $0x38] sm:$0xff]
    %v1199 = vld [vmem:[%s229 + $0x48] sm:$0xff]
    %v1200 = vld [vmem:[%s229 + $0x50] sm:$0xff]
    %v1201 = vld [vmem:[%s229 + $0x60] sm:$0xff]
    %v1202 = vld [vmem:[%s229 + $0x68] sm:$0xff]
    %v1203 = vld [vmem:[%s229 + $0x78] sm:$0xff]
    %v1204 = vld [vmem:[%s229 + $0x80] sm:$0xff]
    %v1205 = vld [vmem:[%s229 + $0x90] sm:$0xff]
    %v1206 = vld [vmem:[%s229 + $0x98] sm:$0xff]
    %v1207 = vld [vmem:[%s229 + $0xa8] sm:$0xff]
    %v1208 = vld [vmem:[%s229 + $0xb0] sm:$0xff]
    %v1209 = vld [vmem:[%s229 + $0xc0] sm:$0xff]
    %v1210 = vld [vmem:[%s229 + $0xc8] sm:$0xff]
    %v1211 = vld [vmem:[%s229 + $0xd8] sm:$0xff]
    %v1212 = vld [vmem:[%s229 + $0xe0] sm:$0xff]
    %v1213 = vld [vmem:[%s229 + $0xf0] sm:$0xff]
    %v1214 = vld [vmem:[%s229 + $0xf8] sm:$0xff]
    %v1215 = vld [vmem:[%s229 + $0x108] sm:$0xff]
    %v1216 = vld [vmem:[%s229 + $0x110] sm:$0xff]
    %v1217 = vld [vmem:[%s229 + $0x120] sm:$0xff]
    %v1218 = vld [vmem:[%s229 + $0x128] sm:$0xff]
    %v1219 = vld [vmem:[%s229 + $0x138] sm:$0xff]
    %v1220 = vld [vmem:[%s229 + $0x140] sm:$0xff]
    %v1221 = vld [vmem:[%s229 + $0x150] sm:$0xff]
    %v1222 = vld [vmem:[%s229 + $0x158] sm:$0xff]
    %v1223 = vld [vmem:[%s229 + $0x168] sm:$0xff]
    %v1224 = vld [vmem:[%s229 + $0x170] sm:$0xff]
    %v1225 = vld [vmem:[%s229 + $0x1b0] sm:$0xff]
    %v1226 = vld [vmem:[%s229 + $0x1b8] sm:$0xff]
    %v1227 = vld [vmem:[%s229 + $0x1c8] sm:$0xff]
    %v1228 = vld [vmem:[%s229 + $0x1d0] sm:$0xff]
    %v1229 = vld [vmem:[%s229 + $0x1e0] sm:$0xff]
    %v1230 = vld [vmem:[%s229 + $0x1e8] sm:$0xff]
    %v1231 = vld [vmem:[%s229 + $0x1f8] sm:$0xff]
    %v1232 = vld [vmem:[%s229 + $0x200] sm:$0xff]
    %v1233 = vld [vmem:[%s229 + $0x210] sm:$0xff]
    %v1234 = vld [vmem:[%s229 + $0x218] sm:$0xff]
    %v1235 = vld [vmem:[%s229 + $0x228] sm:$0xff]
    %v1236 = vld [vmem:[%s229 + $0x230] sm:$0xff]
    %v1237 = vld [vmem:[%s229 + $0x240] sm:$0xff]
    %v1238 = vld [vmem:[%s229 + $0x248] sm:$0xff]
    %v1239 = vld [vmem:[%s229 + $0x258] sm:$0xff]
    %v1240 = vld [vmem:[%s229 + $0x260] sm:$0xff]
    %v1241 = vld [vmem:[%s229 + $0x270] sm:$0xff]
    %v1242 = vld [vmem:[%s229 + $0x278] sm:$0xff]
    %v1243 = vld [vmem:[%s229 + $0x288] sm:$0xff]
    %v1244 = vld [vmem:[%s229 + $0x290] sm:$0xff]
    %v1245 = vld [vmem:[%s229 + $0x2a0] sm:$0xff]
    %v1246 = vld [vmem:[%s229 + $0x2a8] sm:$0xff]
    %v1247 = vld [vmem:[%s229 + $0x2b8] sm:$0xff]
    %v1248 = vld [vmem:[%s229 + $0x2c0] sm:$0xff]
    %v1249 = vld [vmem:[%s229 + $0x2d0] sm:$0xff]
    %v1250 = vld [vmem:[%s229 + $0x2d8] sm:$0xff]
    %v1251 = vld [vmem:[%s229 + $0x2e8] sm:$0xff]
    %v1252 = vld [vmem:[%s229 + $0x2f0] sm:$0xff]
    %v1253 = vld [vmem:[%s229 + $0x300] sm:$0xff]
    %v1254 = vld [vmem:[%s229 + $0x308] sm:$0xff]
    %v1255 = vld [vmem:[%s229 + $0x318] sm:$0xff]
    %v1256 = vld [vmem:[%s229 + $0x320] sm:$0xff]
    %1321 = vrot.lane.b32.xlu0 %v1193, 12
    %v1322 = vpop.permute.xlu0 %1321
    %1323 = vrot.lane.b32.xlu0 %v1194, 12
    %v1324 = vpop.permute.xlu0 %1323
    %1325 = vrot.lane.b32.xlu0 %v1195, 12
    %v1326 = vpop.permute.xlu0 %1325
    %1327 = vrot.lane.b32.xlu0 %v1196, 12
    %v1328 = vpop.permute.xlu0 %1327
    %1329 = vrot.lane.b32.xlu0 %v1197, 12
    %v1330 = vpop.permute.xlu0 %1329
    %1331 = vrot.lane.b32.xlu0 %v1198, 12
    %v1332 = vpop.permute.xlu0 %1331
    %1333 = vrot.lane.b32.xlu0 %v1199, 12
    %v1334 = vpop.permute.xlu0 %1333
    %1335 = vrot.lane.b32.xlu0 %v1200, 12
    %v1336 = vpop.permute.xlu0 %1335
    %1337 = vrot.lane.b32.xlu0 %v1201, 12
    %v1338 = vpop.permute.xlu0 %1337
    %1339 = vrot.lane.b32.xlu0 %v1202, 12
    %v1340 = vpop.permute.xlu0 %1339
    %1341 = vrot.lane.b32.xlu0 %v1203, 12
    %v1342 = vpop.permute.xlu0 %1341
    %1343 = vrot.lane.b32.xlu0 %v1204, 12
    %v1344 = vpop.permute.xlu0 %1343
    %1345 = vrot.lane.b32.xlu0 %v1205, 12
    %v1346 = vpop.permute.xlu0 %1345
    %1347 = vrot.lane.b32.xlu0 %v1206, 12
    %v1348 = vpop.permute.xlu0 %1347
    %1349 = vrot.lane.b32.xlu0 %v1207, 12
    %v1350 = vpop.permute.xlu0 %1349
    %1351 = vrot.lane.b32.xlu0 %v1208, 12
    %v1352 = vpop.permute.xlu0 %1351
    %1353 = vrot.lane.b32.xlu0 %v1209, 12
    %v1354 = vpop.permute.xlu0 %1353
    %1355 = vrot.lane.b32.xlu0 %v1210, 12
    %v1356 = vpop.permute.xlu0 %1355
    %1357 = vrot.lane.b32.xlu0 %v1211, 12
    %v1358 = vpop.permute.xlu0 %1357
    %1359 = vrot.lane.b32.xlu0 %v1212, 12
    %v1360 = vpop.permute.xlu0 %1359
    %1361 = vrot.lane.b32.xlu0 %v1213, 12
    %v1362 = vpop.permute.xlu0 %1361
    %1363 = vrot.lane.b32.xlu0 %v1214, 12
    %v1364 = vpop.permute.xlu0 %1363
    %1365 = vrot.lane.b32.xlu0 %v1215, 12
    %v1366 = vpop.permute.xlu0 %1365
    %1367 = vrot.lane.b32.xlu0 %v1216, 12
    %v1368 = vpop.permute.xlu0 %1367
    %1369 = vrot.lane.b32.xlu0 %v1217, 12
    %v1370 = vpop.permute.xlu0 %1369
    %1371 = vrot.lane.b32.xlu0 %v1218, 12
    %v1372 = vpop.permute.xlu0 %1371
    %1373 = vrot.lane.b32.xlu0 %v1219, 12
    %v1374 = vpop.permute.xlu0 %1373
    %1375 = vrot.lane.b32.xlu0 %v1220, 12
    %v1376 = vpop.permute.xlu0 %1375
    %1377 = vrot.lane.b32.xlu0 %v1221, 12
    %v1378 = vpop.permute.xlu0 %1377
    %1379 = vrot.lane.b32.xlu0 %v1222, 12
    %v1380 = vpop.permute.xlu0 %1379
    %1381 = vrot.lane.b32.xlu0 %v1223, 12
    %v1382 = vpop.permute.xlu0 %1381
    %1383 = vrot.lane.b32.xlu0 %v1224, 12
    %v1384 = vpop.permute.xlu0 %1383
    %1385 = vrot.lane.b32.xlu0 %v1225, 12
    %v1386 = vpop.permute.xlu0 %1385
    %1387 = vrot.lane.b32.xlu0 %v1226, 12
    %v1388 = vpop.permute.xlu0 %1387
    %1389 = vrot.lane.b32.xlu0 %v1227, 12
    %v1390 = vpop.permute.xlu0 %1389
    %1391 = vrot.lane.b32.xlu0 %v1228, 12
    %v1392 = vpop.permute.xlu0 %1391
    %1393 = vrot.lane.b32.xlu0 %v1229, 12
    %v1394 = vpop.permute.xlu0 %1393
    %1395 = vrot.lane.b32.xlu0 %v1230, 12
    %v1396 = vpop.permute.xlu0 %1395
    %1397 = vrot.lane.b32.xlu0 %v1231, 12
    %v1398 = vpop.permute.xlu0 %1397
    %1399 = vrot.lane.b32.xlu0 %v1232, 12
    %v1400 = vpop.permute.xlu0 %1399
    %1401 = vrot.lane.b32.xlu0 %v1233, 12
    %v1402 = vpop.permute.xlu0 %1401
    %1403 = vrot.lane.b32.xlu0 %v1234, 12
    %v1404 = vpop.permute.xlu0 %1403
    %1405 = vrot.lane.b32.xlu0 %v1235, 12
    %v1406 = vpop.permute.xlu0 %1405
    %1407 = vrot.lane.b32.xlu0 %v1236, 12
    %v1408 = vpop.permute.xlu0 %1407
    %1409 = vrot.lane.b32.xlu0 %v1237, 12
    %v1410 = vpop.permute.xlu0 %1409
    %1411 = vrot.lane.b32.xlu0 %v1238, 12
    %v1412 = vpop.permute.xlu0 %1411
    %1413 = vrot.lane.b32.xlu0 %v1239, 12
    %v1414 = vpop.permute.xlu0 %1413
    %1415 = vrot.lane.b32.xlu0 %v1240, 12
    %v1416 = vpop.permute.xlu0 %1415
    %1417 = vrot.lane.b32.xlu0 %v1241, 12
    %v1418 = vpop.permute.xlu0 %1417
    %1419 = vrot.lane.b32.xlu0 %v1242, 12
    %v1420 = vpop.permute.xlu0 %1419
    %1421 = vrot.lane.b32.xlu0 %v1243, 12
    %v1422 = vpop.permute.xlu0 %1421
    %1423 = vrot.lane.b32.xlu0 %v1244, 12
    %v1424 = vpop.permute.xlu0 %1423
    %1425 = vrot.lane.b32.xlu0 %v1245, 12
    %v1426 = vpop.permute.xlu0 %1425
    %1427 = vrot.lane.b32.xlu0 %v1246, 12
    %v1428 = vpop.permute.xlu0 %1427
    %1429 = vrot.lane.b32.xlu0 %v1247, 12
    %v1430 = vpop.permute.xlu0 %1429
    %1431 = vrot.lane.b32.xlu0 %v1248, 12
    %v1432 = vpop.permute.xlu0 %1431
    %1433 = vrot.lane.b32.xlu0 %v1249, 12
    %v1434 = vpop.permute.xlu0 %1433
    %1435 = vrot.lane.b32.xlu0 %v1250, 12
    %v1436 = vpop.permute.xlu0 %1435
    %1437 = vrot.lane.b32.xlu0 %v1251, 12
    %v1438 = vpop.permute.xlu0 %1437
    %1439 = vrot.lane.b32.xlu0 %v1252, 12
    %v1440 = vpop.permute.xlu0 %1439
    %1441 = vrot.lane.b32.xlu0 %v1253, 12
    %v1442 = vpop.permute.xlu0 %1441
    %1443 = vrot.lane.b32.xlu0 %v1254, 12
    %v1444 = vpop.permute.xlu0 %1443
    %1445 = vrot.lane.b32.xlu0 %v1255, 12
    %v1446 = vpop.permute.xlu0 %1445
    %1447 = vrot.lane.b32.xlu0 %v1256, 12
    %v1448 = vpop.permute.xlu0 %1447
    %vm1513 = vcmask 130144
    %1514 = vst.msk [vmem:[#allocation3] sm:$0xff] %vm1513, %v1322
    %1515 = vst.msk [vmem:[#allocation3 + $0x8] sm:$0xff] %vm1513, %v1324
    %1516 = vst.msk [vmem:[#allocation3 + $0x10] sm:$0xff] %vm1513, %v1326
    %1517 = vst.msk [vmem:[#allocation3 + $0x18] sm:$0xff] %vm1513, %v1328
    %1518 = vst.msk [vmem:[#allocation3 + $0x20] sm:$0xff] %vm1513, %v1330
    %1519 = vst.msk [vmem:[#allocation3 + $0x28] sm:$0xff] %vm1513, %v1332
    %1520 = vst.msk [vmem:[#allocation3 + $0x30] sm:$0xff] %vm1513, %v1334
    %1521 = vst.msk [vmem:[#allocation3 + $0x38] sm:$0xff] %vm1513, %v1336
    %1522 = vst.msk [vmem:[#allocation3 + $0x40] sm:$0xff] %vm1513, %v1338
    %1523 = vst.msk [vmem:[#allocation3 + $0x48] sm:$0xff] %vm1513, %v1340
    %1524 = vst.msk [vmem:[#allocation3 + $0x50] sm:$0xff] %vm1513, %v1342
    %1525 = vst.msk [vmem:[#allocation3 + $0x58] sm:$0xff] %vm1513, %v1344
    %1526 = vst.msk [vmem:[#allocation3 + $0x60] sm:$0xff] %vm1513, %v1346
    %1527 = vst.msk [vmem:[#allocation3 + $0x68] sm:$0xff] %vm1513, %v1348
    %1528 = vst.msk [vmem:[#allocation3 + $0x70] sm:$0xff] %vm1513, %v1350
    %1529 = vst.msk [vmem:[#allocation3 + $0x78] sm:$0xff] %vm1513, %v1352
    %1530 = vst.msk [vmem:[#allocation3 + $0x80] sm:$0xff] %vm1513, %v1354
    %1531 = vst.msk [vmem:[#allocation3 + $0x88] sm:$0xff] %vm1513, %v1356
    %1532 = vst.msk [vmem:[#allocation3 + $0x90] sm:$0xff] %vm1513, %v1358
    %1533 = vst.msk [vmem:[#allocation3 + $0x98] sm:$0xff] %vm1513, %v1360
    %1534 = vst.msk [vmem:[#allocation3 + $0xa0] sm:$0xff] %vm1513, %v1362
    %1535 = vst.msk [vmem:[#allocation3 + $0xa8] sm:$0xff] %vm1513, %v1364
    %1536 = vst.msk [vmem:[#allocation3 + $0xb0] sm:$0xff] %vm1513, %v1366
    %1537 = vst.msk [vmem:[#allocation3 + $0xb8] sm:$0xff] %vm1513, %v1368
    %1538 = vst.msk [vmem:[#allocation3 + $0xc0] sm:$0xff] %vm1513, %v1370
    %1539 = vst.msk [vmem:[#allocation3 + $0xc8] sm:$0xff] %vm1513, %v1372
    %1540 = vst.msk [vmem:[#allocation3 + $0xd0] sm:$0xff] %vm1513, %v1374
    %1541 = vst.msk [vmem:[#allocation3 + $0xd8] sm:$0xff] %vm1513, %v1376
    %1542 = vst.msk [vmem:[#allocation3 + $0xe0] sm:$0xff] %vm1513, %v1378
    %1543 = vst.msk [vmem:[#allocation3 + $0xe8] sm:$0xff] %vm1513, %v1380
    %1544 = vst.msk [vmem:[#allocation3 + $0xf0] sm:$0xff] %vm1513, %v1382
    %1545 = vst.msk [vmem:[#allocation3 + $0xf8] sm:$0xff] %vm1513, %v1384
    %1546 = vst.msk [vmem:[#allocation3 + $0x100] sm:$0xff] %vm1513, %v1386
    %1547 = vst.msk [vmem:[#allocation3 + $0x108] sm:$0xff] %vm1513, %v1388
    %1548 = vst.msk [vmem:[#allocation3 + $0x110] sm:$0xff] %vm1513, %v1390
    %1549 = vst.msk [vmem:[#allocation3 + $0x118] sm:$0xff] %vm1513, %v1392
    %1550 = vst.msk [vmem:[#allocation3 + $0x120] sm:$0xff] %vm1513, %v1394
    %1551 = vst.msk [vmem:[#allocation3 + $0x128] sm:$0xff] %vm1513, %v1396
    %1552 = vst.msk [vmem:[#allocation3 + $0x130] sm:$0xff] %vm1513, %v1398
    %1553 = vst.msk [vmem:[#allocation3 + $0x138] sm:$0xff] %vm1513, %v1400
    %1554 = vst.msk [vmem:[#allocation3 + $0x140] sm:$0xff] %vm1513, %v1402
    %1555 = vst.msk [vmem:[#allocation3 + $0x148] sm:$0xff] %vm1513, %v1404
    %1556 = vst.msk [vmem:[#allocation3 + $0x150] sm:$0xff] %vm1513, %v1406
    %1557 = vst.msk [vmem:[#allocation3 + $0x158] sm:$0xff] %vm1513, %v1408
    %1558 = vst.msk [vmem:[#allocation3 + $0x160] sm:$0xff] %vm1513, %v1410
    %1559 = vst.msk [vmem:[#allocation3 + $0x168] sm:$0xff] %vm1513, %v1412
    %1560 = vst.msk [vmem:[#allocation3 + $0x170] sm:$0xff] %vm1513, %v1414
    %1561 = vst.msk [vmem:[#allocation3 + $0x178] sm:$0xff] %vm1513, %v1416
    %1562 = vst.msk [vmem:[#allocation3 + $0x180] sm:$0xff] %vm1513, %v1418
    %1563 = vst.msk [vmem:[#allocation3 + $0x188] sm:$0xff] %vm1513, %v1420
    %1564 = vst.msk [vmem:[#allocation3 + $0x190] sm:$0xff] %vm1513, %v1422
    %1565 = vst.msk [vmem:[#allocation3 + $0x198] sm:$0xff] %vm1513, %v1424
    %1566 = vst.msk [vmem:[#allocation3 + $0x1a0] sm:$0xff] %vm1513, %v1426
    %1567 = vst.msk [vmem:[#allocation3 + $0x1a8] sm:$0xff] %vm1513, %v1428
    %1568 = vst.msk [vmem:[#allocation3 + $0x1b0] sm:$0xff] %vm1513, %v1430
    %1569 = vst.msk [vmem:[#allocation3 + $0x1b8] sm:$0xff] %vm1513, %v1432
    %1570 = vst.msk [vmem:[#allocation3 + $0x1c0] sm:$0xff] %vm1513, %v1434
    %1571 = vst.msk [vmem:[#allocation3 + $0x1c8] sm:$0xff] %vm1513, %v1436
    %1572 = vst.msk [vmem:[#allocation3 + $0x1d0] sm:$0xff] %vm1513, %v1438
    %1573 = vst.msk [vmem:[#allocation3 + $0x1d8] sm:$0xff] %vm1513, %v1440
    %1574 = vst.msk [vmem:[#allocation3 + $0x1e0] sm:$0xff] %vm1513, %v1442
    %1575 = vst.msk [vmem:[#allocation3 + $0x1e8] sm:$0xff] %vm1513, %v1444
    %1576 = vst.msk [vmem:[#allocation3 + $0x1f0] sm:$0xff] %vm1513, %v1446
    %1577 = vst.msk [vmem:[#allocation3 + $0x1f8] sm:$0xff] %vm1513, %v1448
    %v1578 = vld [vmem:[%s229 + $0x1] sm:$0xff]
    %v1579 = vld [vmem:[%s229 + $0x9] sm:$0xff]
    %v1580 = vld [vmem:[%s229 + $0x19] sm:$0xff]
    %v1581 = vld [vmem:[%s229 + $0x21] sm:$0xff]
    %v1582 = vld [vmem:[%s229 + $0x31] sm:$0xff]
    %v1583 = vld [vmem:[%s229 + $0x39] sm:$0xff]
    %v1584 = vld [vmem:[%s229 + $0x49] sm:$0xff]
    %v1585 = vld [vmem:[%s229 + $0x51] sm:$0xff]
    %v1586 = vld [vmem:[%s229 + $0x61] sm:$0xff]
    %v1587 = vld [vmem:[%s229 + $0x69] sm:$0xff]
    %v1588 = vld [vmem:[%s229 + $0x79] sm:$0xff]
    %v1589 = vld [vmem:[%s229 + $0x81] sm:$0xff]
    %v1590 = vld [vmem:[%s229 + $0x91] sm:$0xff]
    %v1591 = vld [vmem:[%s229 + $0x99] sm:$0xff]
    %v1592 = vld [vmem:[%s229 + $0xa9] sm:$0xff]
    %v1593 = vld [vmem:[%s229 + $0xb1] sm:$0xff]
    %v1594 = vld [vmem:[%s229 + $0xc1] sm:$0xff]
    %v1595 = vld [vmem:[%s229 + $0xc9] sm:$0xff]
    %v1596 = vld [vmem:[%s229 + $0xd9] sm:$0xff]
    %v1597 = vld [vmem:[%s229 + $0xe1] sm:$0xff]
    %v1598 = vld [vmem:[%s229 + $0xf1] sm:$0xff]
    %v1599 = vld [vmem:[%s229 + $0xf9] sm:$0xff]
    %v1600 = vld [vmem:[%s229 + $0x109] sm:$0xff]
    %v1601 = vld [vmem:[%s229 + $0x111] sm:$0xff]
    %v1602 = vld [vmem:[%s229 + $0x121] sm:$0xff]
    %v1603 = vld [vmem:[%s229 + $0x129] sm:$0xff]
    %v1604 = vld [vmem:[%s229 + $0x139] sm:$0xff]
    %v1605 = vld [vmem:[%s229 + $0x141] sm:$0xff]
    %v1606 = vld [vmem:[%s229 + $0x151] sm:$0xff]
    %v1607 = vld [vmem:[%s229 + $0x159] sm:$0xff]
    %v1608 = vld [vmem:[%s229 + $0x169] sm:$0xff]
    %v1609 = vld [vmem:[%s229 + $0x171] sm:$0xff]
    %v1610 = vld [vmem:[%s229 + $0x1b1] sm:$0xff]
    %v1611 = vld [vmem:[%s229 + $0x1b9] sm:$0xff]
    %v1612 = vld [vmem:[%s229 + $0x1c9] sm:$0xff]
    %v1613 = vld [vmem:[%s229 + $0x1d1] sm:$0xff]
    %v1614 = vld [vmem:[%s229 + $0x1e1] sm:$0xff]
    %v1615 = vld [vmem:[%s229 + $0x1e9] sm:$0xff]
    %v1616 = vld [vmem:[%s229 + $0x1f9] sm:$0xff]
    %v1617 = vld [vmem:[%s229 + $0x201] sm:$0xff]
    %v1618 = vld [vmem:[%s229 + $0x211] sm:$0xff]
    %v1619 = vld [vmem:[%s229 + $0x219] sm:$0xff]
    %v1620 = vld [vmem:[%s229 + $0x229] sm:$0xff]
    %v1621 = vld [vmem:[%s229 + $0x231] sm:$0xff]
    %v1622 = vld [vmem:[%s229 + $0x241] sm:$0xff]
    %v1623 = vld [vmem:[%s229 + $0x249] sm:$0xff]
    %v1624 = vld [vmem:[%s229 + $0x259] sm:$0xff]
    %v1625 = vld [vmem:[%s229 + $0x261] sm:$0xff]
    %v1626 = vld [vmem:[%s229 + $0x271] sm:$0xff]
    %v1627 = vld [vmem:[%s229 + $0x279] sm:$0xff]
    %v1628 = vld [vmem:[%s229 + $0x289] sm:$0xff]
    %v1629 = vld [vmem:[%s229 + $0x291] sm:$0xff]
    %v1630 = vld [vmem:[%s229 + $0x2a1] sm:$0xff]
    %v1631 = vld [vmem:[%s229 + $0x2a9] sm:$0xff]
    %v1632 = vld [vmem:[%s229 + $0x2b9] sm:$0xff]
    %v1633 = vld [vmem:[%s229 + $0x2c1] sm:$0xff]
    %v1634 = vld [vmem:[%s229 + $0x2d1] sm:$0xff]
    %v1635 = vld [vmem:[%s229 + $0x2d9] sm:$0xff]
    %v1636 = vld [vmem:[%s229 + $0x2e9] sm:$0xff]
    %v1637 = vld [vmem:[%s229 + $0x2f1] sm:$0xff]
    %v1638 = vld [vmem:[%s229 + $0x301] sm:$0xff]
    %v1639 = vld [vmem:[%s229 + $0x309] sm:$0xff]
    %v1640 = vld [vmem:[%s229 + $0x319] sm:$0xff]
    %v1641 = vld [vmem:[%s229 + $0x321] sm:$0xff]
    %1706 = vrot.lane.b32.xlu0 %v1578, 16
    %v1707 = vpop.permute.xlu0 %1706
    %1708 = vrot.lane.b32.xlu0 %v1579, 16
    %v1709 = vpop.permute.xlu0 %1708
    %1710 = vrot.lane.b32.xlu0 %v1580, 16
    %v1711 = vpop.permute.xlu0 %1710
    %1712 = vrot.lane.b32.xlu0 %v1581, 16
    %v1713 = vpop.permute.xlu0 %1712
    %1714 = vrot.lane.b32.xlu0 %v1582, 16
    %v1715 = vpop.permute.xlu0 %1714
    %1716 = vrot.lane.b32.xlu0 %v1583, 16
    %v1717 = vpop.permute.xlu0 %1716
    %1718 = vrot.lane.b32.xlu0 %v1584, 16
    %v1719 = vpop.permute.xlu0 %1718
    %1720 = vrot.lane.b32.xlu0 %v1585, 16
    %v1721 = vpop.permute.xlu0 %1720
    %1722 = vrot.lane.b32.xlu0 %v1586, 16
    %v1723 = vpop.permute.xlu0 %1722
    %1724 = vrot.lane.b32.xlu0 %v1587, 16
    %v1725 = vpop.permute.xlu0 %1724
    %1726 = vrot.lane.b32.xlu0 %v1588, 16
    %v1727 = vpop.permute.xlu0 %1726
    %1728 = vrot.lane.b32.xlu0 %v1589, 16
    %v1729 = vpop.permute.xlu0 %1728
    %1730 = vrot.lane.b32.xlu0 %v1590, 16
    %v1731 = vpop.permute.xlu0 %1730
    %1732 = vrot.lane.b32.xlu0 %v1591, 16
    %v1733 = vpop.permute.xlu0 %1732
    %1734 = vrot.lane.b32.xlu0 %v1592, 16
    %v1735 = vpop.permute.xlu0 %1734
    %1736 = vrot.lane.b32.xlu0 %v1593, 16
    %v1737 = vpop.permute.xlu0 %1736
    %1738 = vrot.lane.b32.xlu0 %v1594, 16
    %v1739 = vpop.permute.xlu0 %1738
    %1740 = vrot.lane.b32.xlu0 %v1595, 16
    %v1741 = vpop.permute.xlu0 %1740
    %1742 = vrot.lane.b32.xlu0 %v1596, 16
    %v1743 = vpop.permute.xlu0 %1742
    %1744 = vrot.lane.b32.xlu0 %v1597, 16
    %v1745 = vpop.permute.xlu0 %1744
    %1746 = vrot.lane.b32.xlu0 %v1598, 16
    %v1747 = vpop.permute.xlu0 %1746
    %1748 = vrot.lane.b32.xlu0 %v1599, 16
    %v1749 = vpop.permute.xlu0 %1748
    %1750 = vrot.lane.b32.xlu0 %v1600, 16
    %v1751 = vpop.permute.xlu0 %1750
    %1752 = vrot.lane.b32.xlu0 %v1601, 16
    %v1753 = vpop.permute.xlu0 %1752
    %1754 = vrot.lane.b32.xlu0 %v1602, 16
    %v1755 = vpop.permute.xlu0 %1754
    %1756 = vrot.lane.b32.xlu0 %v1603, 16
    %v1757 = vpop.permute.xlu0 %1756
    %1758 = vrot.lane.b32.xlu0 %v1604, 16
    %v1759 = vpop.permute.xlu0 %1758
    %1760 = vrot.lane.b32.xlu0 %v1605, 16
    %v1761 = vpop.permute.xlu0 %1760
    %1762 = vrot.lane.b32.xlu0 %v1606, 16
    %v1763 = vpop.permute.xlu0 %1762
    %1764 = vrot.lane.b32.xlu0 %v1607, 16
    %v1765 = vpop.permute.xlu0 %1764
    %1766 = vrot.lane.b32.xlu0 %v1608, 16
    %v1767 = vpop.permute.xlu0 %1766
    %1768 = vrot.lane.b32.xlu0 %v1609, 16
    %v1769 = vpop.permute.xlu0 %1768
    %1770 = vrot.lane.b32.xlu0 %v1610, 16
    %v1771 = vpop.permute.xlu0 %1770
    %1772 = vrot.lane.b32.xlu0 %v1611, 16
    %v1773 = vpop.permute.xlu0 %1772
    %1774 = vrot.lane.b32.xlu0 %v1612, 16
    %v1775 = vpop.permute.xlu0 %1774
    %1776 = vrot.lane.b32.xlu0 %v1613, 16
    %v1777 = vpop.permute.xlu0 %1776
    %1778 = vrot.lane.b32.xlu0 %v1614, 16
    %v1779 = vpop.permute.xlu0 %1778
    %1780 = vrot.lane.b32.xlu0 %v1615, 16
    %v1781 = vpop.permute.xlu0 %1780
    %1782 = vrot.lane.b32.xlu0 %v1616, 16
    %v1783 = vpop.permute.xlu0 %1782
    %1784 = vrot.lane.b32.xlu0 %v1617, 16
    %v1785 = vpop.permute.xlu0 %1784
    %1786 = vrot.lane.b32.xlu0 %v1618, 16
    %v1787 = vpop.permute.xlu0 %1786
    %1788 = vrot.lane.b32.xlu0 %v1619, 16
    %v1789 = vpop.permute.xlu0 %1788
    %1790 = vrot.lane.b32.xlu0 %v1620, 16
    %v1791 = vpop.permute.xlu0 %1790
    %1792 = vrot.lane.b32.xlu0 %v1621, 16
    %v1793 = vpop.permute.xlu0 %1792
    %1794 = vrot.lane.b32.xlu0 %v1622, 16
    %v1795 = vpop.permute.xlu0 %1794
    %1796 = vrot.lane.b32.xlu0 %v1623, 16
    %v1797 = vpop.permute.xlu0 %1796
    %1798 = vrot.lane.b32.xlu0 %v1624, 16
    %v1799 = vpop.permute.xlu0 %1798
    %1800 = vrot.lane.b32.xlu0 %v1625, 16
    %v1801 = vpop.permute.xlu0 %1800
    %1802 = vrot.lane.b32.xlu0 %v1626, 16
    %v1803 = vpop.permute.xlu0 %1802
    %1804 = vrot.lane.b32.xlu0 %v1627, 16
    %v1805 = vpop.permute.xlu0 %1804
    %1806 = vrot.lane.b32.xlu0 %v1628, 16
    %v1807 = vpop.permute.xlu0 %1806
    %1808 = vrot.lane.b32.xlu0 %v1629, 16
    %v1809 = vpop.permute.xlu0 %1808
    %1810 = vrot.lane.b32.xlu0 %v1630, 16
    %v1811 = vpop.permute.xlu0 %1810
    %1812 = vrot.lane.b32.xlu0 %v1631, 16
    %v1813 = vpop.permute.xlu0 %1812
    %1814 = vrot.lane.b32.xlu0 %v1632, 16
    %v1815 = vpop.permute.xlu0 %1814
    %1816 = vrot.lane.b32.xlu0 %v1633, 16
    %v1817 = vpop.permute.xlu0 %1816
    %1818 = vrot.lane.b32.xlu0 %v1634, 16
    %v1819 = vpop.permute.xlu0 %1818
    %1820 = vrot.lane.b32.xlu0 %v1635, 16
    %v1821 = vpop.permute.xlu0 %1820
    %1822 = vrot.lane.b32.xlu0 %v1636, 16
    %v1823 = vpop.permute.xlu0 %1822
    %1824 = vrot.lane.b32.xlu0 %v1637, 16
    %v1825 = vpop.permute.xlu0 %1824
    %1826 = vrot.lane.b32.xlu0 %v1638, 16
    %v1827 = vpop.permute.xlu0 %1826
    %1828 = vrot.lane.b32.xlu0 %v1639, 16
    %v1829 = vpop.permute.xlu0 %1828
    %1830 = vrot.lane.b32.xlu0 %v1640, 16
    %v1831 = vpop.permute.xlu0 %1830
    %1832 = vrot.lane.b32.xlu0 %v1641, 16
    %v1833 = vpop.permute.xlu0 %1832
    %vm1898 = vcmask 162944
    %1899 = vst.msk [vmem:[#allocation3] sm:$0xff] %vm1898, %v1707
    %1900 = vst.msk [vmem:[#allocation3 + $0x8] sm:$0xff] %vm1898, %v1709
    %1901 = vst.msk [vmem:[#allocation3 + $0x10] sm:$0xff] %vm1898, %v1711
    %1902 = vst.msk [vmem:[#allocation3 + $0x18] sm:$0xff] %vm1898, %v1713
    %1903 = vst.msk [vmem:[#allocation3 + $0x20] sm:$0xff] %vm1898, %v1715
    %1904 = vst.msk [vmem:[#allocation3 + $0x28] sm:$0xff] %vm1898, %v1717
    %1905 = vst.msk [vmem:[#allocation3 + $0x30] sm:$0xff] %vm1898, %v1719
    %1906 = vst.msk [vmem:[#allocation3 + $0x38] sm:$0xff] %vm1898, %v1721
    %1907 = vst.msk [vmem:[#allocation3 + $0x40] sm:$0xff] %vm1898, %v1723
    %1908 = vst.msk [vmem:[#allocation3 + $0x48] sm:$0xff] %vm1898, %v1725
    %1909 = vst.msk [vmem:[#allocation3 + $0x50] sm:$0xff] %vm1898, %v1727
    %1910 = vst.msk [vmem:[#allocation3 + $0x58] sm:$0xff] %vm1898, %v1729
    %1911 = vst.msk [vmem:[#allocation3 + $0x60] sm:$0xff] %vm1898, %v1731
    %1912 = vst.msk [vmem:[#allocation3 + $0x68] sm:$0xff] %vm1898, %v1733
    %1913 = vst.msk [vmem:[#allocation3 + $0x70] sm:$0xff] %vm1898, %v1735
    %1914 = vst.msk [vmem:[#allocation3 + $0x78] sm:$0xff] %vm1898, %v1737
    %1915 = vst.msk [vmem:[#allocation3 + $0x80] sm:$0xff] %vm1898, %v1739
    %1916 = vst.msk [vmem:[#allocation3 + $0x88] sm:$0xff] %vm1898, %v1741
    %1917 = vst.msk [vmem:[#allocation3 + $0x90] sm:$0xff] %vm1898, %v1743
    %1918 = vst.msk [vmem:[#allocation3 + $0x98] sm:$0xff] %vm1898, %v1745
    %1919 = vst.msk [vmem:[#allocation3 + $0xa0] sm:$0xff] %vm1898, %v1747
    %1920 = vst.msk [vmem:[#allocation3 + $0xa8] sm:$0xff] %vm1898, %v1749
    %1921 = vst.msk [vmem:[#allocation3 + $0xb0] sm:$0xff] %vm1898, %v1751
    %1922 = vst.msk [vmem:[#allocation3 + $0xb8] sm:$0xff] %vm1898, %v1753
    %1923 = vst.msk [vmem:[#allocation3 + $0xc0] sm:$0xff] %vm1898, %v1755
    %1924 = vst.msk [vmem:[#allocation3 + $0xc8] sm:$0xff] %vm1898, %v1757
    %1925 = vst.msk [vmem:[#allocation3 + $0xd0] sm:$0xff] %vm1898, %v1759
    %1926 = vst.msk [vmem:[#allocation3 + $0xd8] sm:$0xff] %vm1898, %v1761
    %1927 = vst.msk [vmem:[#allocation3 + $0xe0] sm:$0xff] %vm1898, %v1763
    %1928 = vst.msk [vmem:[#allocation3 + $0xe8] sm:$0xff] %vm1898, %v1765
    %1929 = vst.msk [vmem:[#allocation3 + $0xf0] sm:$0xff] %vm1898, %v1767
    %1930 = vst.msk [vmem:[#allocation3 + $0xf8] sm:$0xff] %vm1898, %v1769
    %1931 = vst.msk [vmem:[#allocation3 + $0x100] sm:$0xff] %vm1898, %v1771
    %1932 = vst.msk [vmem:[#allocation3 + $0x108] sm:$0xff] %vm1898, %v1773
    %1933 = vst.msk [vmem:[#allocation3 + $0x110] sm:$0xff] %vm1898, %v1775
    %1934 = vst.msk [vmem:[#allocation3 + $0x118] sm:$0xff] %vm1898, %v1777
    %1935 = vst.msk [vmem:[#allocation3 + $0x120] sm:$0xff] %vm1898, %v1779
    %1936 = vst.msk [vmem:[#allocation3 + $0x128] sm:$0xff] %vm1898, %v1781
    %1937 = vst.msk [vmem:[#allocation3 + $0x130] sm:$0xff] %vm1898, %v1783
    %1938 = vst.msk [vmem:[#allocation3 + $0x138] sm:$0xff] %vm1898, %v1785
    %1939 = vst.msk [vmem:[#allocation3 + $0x140] sm:$0xff] %vm1898, %v1787
    %1940 = vst.msk [vmem:[#allocation3 + $0x148] sm:$0xff] %vm1898, %v1789
    %1941 = vst.msk [vmem:[#allocation3 + $0x150] sm:$0xff] %vm1898, %v1791
    %1942 = vst.msk [vmem:[#allocation3 + $0x158] sm:$0xff] %vm1898, %v1793
    %1943 = vst.msk [vmem:[#allocation3 + $0x160] sm:$0xff] %vm1898, %v1795
    %1944 = vst.msk [vmem:[#allocation3 + $0x168] sm:$0xff] %vm1898, %v1797
    %1945 = vst.msk [vmem:[#allocation3 + $0x170] sm:$0xff] %vm1898, %v1799
    %1946 = vst.msk [vmem:[#allocation3 + $0x178] sm:$0xff] %vm1898, %v1801
    %1947 = vst.msk [vmem:[#allocation3 + $0x180] sm:$0xff] %vm1898, %v1803
    %1948 = vst.msk [vmem:[#allocation3 + $0x188] sm:$0xff] %vm1898, %v1805
    %1949 = vst.msk [vmem:[#allocation3 + $0x190] sm:$0xff] %vm1898, %v1807
    %1950 = vst.msk [vmem:[#allocation3 + $0x198] sm:$0xff] %vm1898, %v1809
    %1951 = vst.msk [vmem:[#allocation3 + $0x1a0] sm:$0xff] %vm1898, %v1811
    %1952 = vst.msk [vmem:[#allocation3 + $0x1a8] sm:$0xff] %vm1898, %v1813
    %1953 = vst.msk [vmem:[#allocation3 + $0x1b0] sm:$0xff] %vm1898, %v1815
    %1954 = vst.msk [vmem:[#allocation3 + $0x1b8] sm:$0xff] %vm1898, %v1817
    %1955 = vst.msk [vmem:[#allocation3 + $0x1c0] sm:$0xff] %vm1898, %v1819
    %1956 = vst.msk [vmem:[#allocation3 + $0x1c8] sm:$0xff] %vm1898, %v1821
    %1957 = vst.msk [vmem:[#allocation3 + $0x1d0] sm:$0xff] %vm1898, %v1823
    %1958 = vst.msk [vmem:[#allocation3 + $0x1d8] sm:$0xff] %vm1898, %v1825
    %1959 = vst.msk [vmem:[#allocation3 + $0x1e0] sm:$0xff] %vm1898, %v1827
    %1960 = vst.msk [vmem:[#allocation3 + $0x1e8] sm:$0xff] %vm1898, %v1829
    %1961 = vst.msk [vmem:[#allocation3 + $0x1f0] sm:$0xff] %vm1898, %v1831
    %1962 = vst.msk [vmem:[#allocation3 + $0x1f8] sm:$0xff] %vm1898, %v1833
    %v1963 = vld [vmem:[%s229 + $0x2] sm:$0xff]
    %v1964 = vld [vmem:[%s229 + $0xa] sm:$0xff]
    %v1965 = vld [vmem:[%s229 + $0x1a] sm:$0xff]
    %v1966 = vld [vmem:[%s229 + $0x22] sm:$0xff]
    %v1967 = vld [vmem:[%s229 + $0x32] sm:$0xff]
    %v1968 = vld [vmem:[%s229 + $0x3a] sm:$0xff]
    %v1969 = vld [vmem:[%s229 + $0x4a] sm:$0xff]
    %v1970 = vld [vmem:[%s229 + $0x52] sm:$0xff]
    %v1971 = vld [vmem:[%s229 + $0x62] sm:$0xff]
    %v1972 = vld [vmem:[%s229 + $0x6a] sm:$0xff]
    %v1973 = vld [vmem:[%s229 + $0x7a] sm:$0xff]
    %v1974 = vld [vmem:[%s229 + $0x82] sm:$0xff]
    %v1975 = vld [vmem:[%s229 + $0x92] sm:$0xff]
    %v1976 = vld [vmem:[%s229 + $0x9a] sm:$0xff]
    %v1977 = vld [vmem:[%s229 + $0xaa] sm:$0xff]
    %v1978 = vld [vmem:[%s229 + $0xb2] sm:$0xff]
    %v1979 = vld [vmem:[%s229 + $0xc2] sm:$0xff]
    %v1980 = vld [vmem:[%s229 + $0xca] sm:$0xff]
    %v1981 = vld [vmem:[%s229 + $0xda] sm:$0xff]
    %v1982 = vld [vmem:[%s229 + $0xe2] sm:$0xff]
    %v1983 = vld [vmem:[%s229 + $0xf2] sm:$0xff]
    %v1984 = vld [vmem:[%s229 + $0xfa] sm:$0xff]
    %v1985 = vld [vmem:[%s229 + $0x10a] sm:$0xff]
    %v1986 = vld [vmem:[%s229 + $0x112] sm:$0xff]
    %v1987 = vld [vmem:[%s229 + $0x122] sm:$0xff]
    %v1988 = vld [vmem:[%s229 + $0x12a] sm:$0xff]
    %v1989 = vld [vmem:[%s229 + $0x13a] sm:$0xff]
    %v1990 = vld [vmem:[%s229 + $0x142] sm:$0xff]
    %v1991 = vld [vmem:[%s229 + $0x152] sm:$0xff]
    %v1992 = vld [vmem:[%s229 + $0x15a] sm:$0xff]
    %v1993 = vld [vmem:[%s229 + $0x16a] sm:$0xff]
    %v1994 = vld [vmem:[%s229 + $0x172] sm:$0xff]
    %v1995 = vld [vmem:[%s229 + $0x1b2] sm:$0xff]
    %v1996 = vld [vmem:[%s229 + $0x1ba] sm:$0xff]
    %v1997 = vld [vmem:[%s229 + $0x1ca] sm:$0xff]
    %v1998 = vld [vmem:[%s229 + $0x1d2] sm:$0xff]
    %v1999 = vld [vmem:[%s229 + $0x1e2] sm:$0xff]
    %v2000 = vld [vmem:[%s229 + $0x1ea] sm:$0xff]
    %v2001 = vld [vmem:[%s229 + $0x1fa] sm:$0xff]
    %v2002 = vld [vmem:[%s229 + $0x202] sm:$0xff]
    %v2003 = vld [vmem:[%s229 + $0x212] sm:$0xff]
    %v2004 = vld [vmem:[%s229 + $0x21a] sm:$0xff]
    %v2005 = vld [vmem:[%s229 + $0x22a] sm:$0xff]
    %v2006 = vld [vmem:[%s229 + $0x232] sm:$0xff]
    %v2007 = vld [vmem:[%s229 + $0x242] sm:$0xff]
    %v2008 = vld [vmem:[%s229 + $0x24a] sm:$0xff]
    %v2009 = vld [vmem:[%s229 + $0x25a] sm:$0xff]
    %v2010 = vld [vmem:[%s229 + $0x262] sm:$0xff]
    %v2011 = vld [vmem:[%s229 + $0x272] sm:$0xff]
    %v2012 = vld [vmem:[%s229 + $0x27a] sm:$0xff]
    %v2013 = vld [vmem:[%s229 + $0x28a] sm:$0xff]
    %v2014 = vld [vmem:[%s229 + $0x292] sm:$0xff]
    %v2015 = vld [vmem:[%s229 + $0x2a2] sm:$0xff]
    %v2016 = vld [vmem:[%s229 + $0x2aa] sm:$0xff]
    %v2017 = vld [vmem:[%s229 + $0x2ba] sm:$0xff]
    %v2018 = vld [vmem:[%s229 + $0x2c2] sm:$0xff]
    %v2019 = vld [vmem:[%s229 + $0x2d2] sm:$0xff]
    %v2020 = vld [vmem:[%s229 + $0x2da] sm:$0xff]
    %v2021 = vld [vmem:[%s229 + $0x2ea] sm:$0xff]
    %v2022 = vld [vmem:[%s229 + $0x2f2] sm:$0xff]
    %v2023 = vld [vmem:[%s229 + $0x302] sm:$0xff]
    %v2024 = vld [vmem:[%s229 + $0x30a] sm:$0xff]
    %v2025 = vld [vmem:[%s229 + $0x31a] sm:$0xff]
    %v2026 = vld [vmem:[%s229 + $0x322] sm:$0xff]
    %2091 = vrot.lane.b32.xlu0 %v1963, 20
    %v2092 = vpop.permute.xlu0 %2091
    %2093 = vrot.lane.b32.xlu0 %v1964, 20
    %v2094 = vpop.permute.xlu0 %2093
    %2095 = vrot.lane.b32.xlu0 %v1965, 20
    %v2096 = vpop.permute.xlu0 %2095
    %2097 = vrot.lane.b32.xlu0 %v1966, 20
    %v2098 = vpop.permute.xlu0 %2097
    %2099 = vrot.lane.b32.xlu0 %v1967, 20
    %v2100 = vpop.permute.xlu0 %2099
    %2101 = vrot.lane.b32.xlu0 %v1968, 20
    %v2102 = vpop.permute.xlu0 %2101
    %2103 = vrot.lane.b32.xlu0 %v1969, 20
    %v2104 = vpop.permute.xlu0 %2103
    %2105 = vrot.lane.b32.xlu0 %v1970, 20
    %v2106 = vpop.permute.xlu0 %2105
    %2107 = vrot.lane.b32.xlu0 %v1971, 20
    %v2108 = vpop.permute.xlu0 %2107
    %2109 = vrot.lane.b32.xlu0 %v1972, 20
    %v2110 = vpop.permute.xlu0 %2109
    %2111 = vrot.lane.b32.xlu0 %v1973, 20
    %v2112 = vpop.permute.xlu0 %2111
    %2113 = vrot.lane.b32.xlu0 %v1974, 20
    %v2114 = vpop.permute.xlu0 %2113
    %2115 = vrot.lane.b32.xlu0 %v1975, 20
    %v2116 = vpop.permute.xlu0 %2115
    %2117 = vrot.lane.b32.xlu0 %v1976, 20
    %v2118 = vpop.permute.xlu0 %2117
    %2119 = vrot.lane.b32.xlu0 %v1977, 20
    %v2120 = vpop.permute.xlu0 %2119
    %2121 = vrot.lane.b32.xlu0 %v1978, 20
    %v2122 = vpop.permute.xlu0 %2121
    %2123 = vrot.lane.b32.xlu0 %v1979, 20
    %v2124 = vpop.permute.xlu0 %2123
    %2125 = vrot.lane.b32.xlu0 %v1980, 20
    %v2126 = vpop.permute.xlu0 %2125
    %2127 = vrot.lane.b32.xlu0 %v1981, 20
    %v2128 = vpop.permute.xlu0 %2127
    %2129 = vrot.lane.b32.xlu0 %v1982, 20
    %v2130 = vpop.permute.xlu0 %2129
    %2131 = vrot.lane.b32.xlu0 %v1983, 20
    %v2132 = vpop.permute.xlu0 %2131
    %2133 = vrot.lane.b32.xlu0 %v1984, 20
    %v2134 = vpop.permute.xlu0 %2133
    %2135 = vrot.lane.b32.xlu0 %v1985, 20
    %v2136 = vpop.permute.xlu0 %2135
    %2137 = vrot.lane.b32.xlu0 %v1986, 20
    %v2138 = vpop.permute.xlu0 %2137
    %2139 = vrot.lane.b32.xlu0 %v1987, 20
    %v2140 = vpop.permute.xlu0 %2139
    %2141 = vrot.lane.b32.xlu0 %v1988, 20
    %v2142 = vpop.permute.xlu0 %2141
    %2143 = vrot.lane.b32.xlu0 %v1989, 20
    %v2144 = vpop.permute.xlu0 %2143
    %2145 = vrot.lane.b32.xlu0 %v1990, 20
    %v2146 = vpop.permute.xlu0 %2145
    %2147 = vrot.lane.b32.xlu0 %v1991, 20
    %v2148 = vpop.permute.xlu0 %2147
    %2149 = vrot.lane.b32.xlu0 %v1992, 20
    %v2150 = vpop.permute.xlu0 %2149
    %2151 = vrot.lane.b32.xlu0 %v1993, 20
    %v2152 = vpop.permute.xlu0 %2151
    %2153 = vrot.lane.b32.xlu0 %v1994, 20
    %v2154 = vpop.permute.xlu0 %2153
    %2155 = vrot.lane.b32.xlu0 %v1995, 20
    %v2156 = vpop.permute.xlu0 %2155
    %2157 = vrot.lane.b32.xlu0 %v1996, 20
    %v2158 = vpop.permute.xlu0 %2157
    %2159 = vrot.lane.b32.xlu0 %v1997, 20
    %v2160 = vpop.permute.xlu0 %2159
    %2161 = vrot.lane.b32.xlu0 %v1998, 20
    %v2162 = vpop.permute.xlu0 %2161
    %2163 = vrot.lane.b32.xlu0 %v1999, 20
    %v2164 = vpop.permute.xlu0 %2163
    %2165 = vrot.lane.b32.xlu0 %v2000, 20
    %v2166 = vpop.permute.xlu0 %2165
    %2167 = vrot.lane.b32.xlu0 %v2001, 20
    %v2168 = vpop.permute.xlu0 %2167
    %2169 = vrot.lane.b32.xlu0 %v2002, 20
    %v2170 = vpop.permute.xlu0 %2169
    %2171 = vrot.lane.b32.xlu0 %v2003, 20
    %v2172 = vpop.permute.xlu0 %2171
    %2173 = vrot.lane.b32.xlu0 %v2004, 20
    %v2174 = vpop.permute.xlu0 %2173
    %2175 = vrot.lane.b32.xlu0 %v2005, 20
    %v2176 = vpop.permute.xlu0 %2175
    %2177 = vrot.lane.b32.xlu0 %v2006, 20
    %v2178 = vpop.permute.xlu0 %2177
    %2179 = vrot.lane.b32.xlu0 %v2007, 20
    %v2180 = vpop.permute.xlu0 %2179
    %2181 = vrot.lane.b32.xlu0 %v2008, 20
    %v2182 = vpop.permute.xlu0 %2181
    %2183 = vrot.lane.b32.xlu0 %v2009, 20
    %v2184 = vpop.permute.xlu0 %2183
    %2185 = vrot.lane.b32.xlu0 %v2010, 20
    %v2186 = vpop.permute.xlu0 %2185
    %2187 = vrot.lane.b32.xlu0 %v2011, 20
    %v2188 = vpop.permute.xlu0 %2187
    %2189 = vrot.lane.b32.xlu0 %v2012, 20
    %v2190 = vpop.permute.xlu0 %2189
    %2191 = vrot.lane.b32.xlu0 %v2013, 20
    %v2192 = vpop.permute.xlu0 %2191
    %2193 = vrot.lane.b32.xlu0 %v2014, 20
    %v2194 = vpop.permute.xlu0 %2193
    %2195 = vrot.lane.b32.xlu0 %v2015, 20
    %v2196 = vpop.permute.xlu0 %2195
    %2197 = vrot.lane.b32.xlu0 %v2016, 20
    %v2198 = vpop.permute.xlu0 %2197
    %2199 = vrot.lane.b32.xlu0 %v2017, 20
    %v2200 = vpop.permute.xlu0 %2199
    %2201 = vrot.lane.b32.xlu0 %v2018, 20
    %v2202 = vpop.permute.xlu0 %2201
    %2203 = vrot.lane.b32.xlu0 %v2019, 20
    %v2204 = vpop.permute.xlu0 %2203
    %2205 = vrot.lane.b32.xlu0 %v2020, 20
    %v2206 = vpop.permute.xlu0 %2205
    %2207 = vrot.lane.b32.xlu0 %v2021, 20
    %v2208 = vpop.permute.xlu0 %2207
    %2209 = vrot.lane.b32.xlu0 %v2022, 20
    %v2210 = vpop.permute.xlu0 %2209
    %2211 = vrot.lane.b32.xlu0 %v2023, 20
    %v2212 = vpop.permute.xlu0 %2211
    %2213 = vrot.lane.b32.xlu0 %v2024, 20
    %v2214 = vpop.permute.xlu0 %2213
    %2215 = vrot.lane.b32.xlu0 %v2025, 20
    %v2216 = vpop.permute.xlu0 %2215
    %2217 = vrot.lane.b32.xlu0 %v2026, 20
    %v2218 = vpop.permute.xlu0 %2217
    %vm2283 = vcmask 195744
    %2284 = vst.msk [vmem:[#allocation3] sm:$0xff] %vm2283, %v2092
    %2285 = vst.msk [vmem:[#allocation3 + $0x8] sm:$0xff] %vm2283, %v2094
    %2286 = vst.msk [vmem:[#allocation3 + $0x10] sm:$0xff] %vm2283, %v2096
    %2287 = vst.msk [vmem:[#allocation3 + $0x18] sm:$0xff] %vm2283, %v2098
    %2288 = vst.msk [vmem:[#allocation3 + $0x20] sm:$0xff] %vm2283, %v2100
    %2289 = vst.msk [vmem:[#allocation3 + $0x28] sm:$0xff] %vm2283, %v2102
    %2290 = vst.msk [vmem:[#allocation3 + $0x30] sm:$0xff] %vm2283, %v2104
    %2291 = vst.msk [vmem:[#allocation3 + $0x38] sm:$0xff] %vm2283, %v2106
    %2292 = vst.msk [vmem:[#allocation3 + $0x40] sm:$0xff] %vm2283, %v2108
    %2293 = vst.msk [vmem:[#allocation3 + $0x48] sm:$0xff] %vm2283, %v2110
    %2294 = vst.msk [vmem:[#allocation3 + $0x50] sm:$0xff] %vm2283, %v2112
    %2295 = vst.msk [vmem:[#allocation3 + $0x58] sm:$0xff] %vm2283, %v2114
    %2296 = vst.msk [vmem:[#allocation3 + $0x60] sm:$0xff] %vm2283, %v2116
    %2297 = vst.msk [vmem:[#allocation3 + $0x68] sm:$0xff] %vm2283, %v2118
    %2298 = vst.msk [vmem:[#allocation3 + $0x70] sm:$0xff] %vm2283, %v2120
    %2299 = vst.msk [vmem:[#allocation3 + $0x78] sm:$0xff] %vm2283, %v2122
    %2300 = vst.msk [vmem:[#allocation3 + $0x80] sm:$0xff] %vm2283, %v2124
    %2301 = vst.msk [vmem:[#allocation3 + $0x88] sm:$0xff] %vm2283, %v2126
    %2302 = vst.msk [vmem:[#allocation3 + $0x90] sm:$0xff] %vm2283, %v2128
    %2303 = vst.msk [vmem:[#allocation3 + $0x98] sm:$0xff] %vm2283, %v2130
    %2304 = vst.msk [vmem:[#allocation3 + $0xa0] sm:$0xff] %vm2283, %v2132
    %2305 = vst.msk [vmem:[#allocation3 + $0xa8] sm:$0xff] %vm2283, %v2134
    %2306 = vst.msk [vmem:[#allocation3 + $0xb0] sm:$0xff] %vm2283, %v2136
    %2307 = vst.msk [vmem:[#allocation3 + $0xb8] sm:$0xff] %vm2283, %v2138
    %2308 = vst.msk [vmem:[#allocation3 + $0xc0] sm:$0xff] %vm2283, %v2140
    %2309 = vst.msk [vmem:[#allocation3 + $0xc8] sm:$0xff] %vm2283, %v2142
    %2310 = vst.msk [vmem:[#allocation3 + $0xd0] sm:$0xff] %vm2283, %v2144
    %2311 = vst.msk [vmem:[#allocation3 + $0xd8] sm:$0xff] %vm2283, %v2146
    %2312 = vst.msk [vmem:[#allocation3 + $0xe0] sm:$0xff] %vm2283, %v2148
    %2313 = vst.msk [vmem:[#allocation3 + $0xe8] sm:$0xff] %vm2283, %v2150
    %2314 = vst.msk [vmem:[#allocation3 + $0xf0] sm:$0xff] %vm2283, %v2152
    %2315 = vst.msk [vmem:[#allocation3 + $0xf8] sm:$0xff] %vm2283, %v2154
    %2316 = vst.msk [vmem:[#allocation3 + $0x100] sm:$0xff] %vm2283, %v2156
    %2317 = vst.msk [vmem:[#allocation3 + $0x108] sm:$0xff] %vm2283, %v2158
    %2318 = vst.msk [vmem:[#allocation3 + $0x110] sm:$0xff] %vm2283, %v2160
    %2319 = vst.msk [vmem:[#allocation3 + $0x118] sm:$0xff] %vm2283, %v2162
    %2320 = vst.msk [vmem:[#allocation3 + $0x120] sm:$0xff] %vm2283, %v2164
    %2321 = vst.msk [vmem:[#allocation3 + $0x128] sm:$0xff] %vm2283, %v2166
    %2322 = vst.msk [vmem:[#allocation3 + $0x130] sm:$0xff] %vm2283, %v2168
    %2323 = vst.msk [vmem:[#allocation3 + $0x138] sm:$0xff] %vm2283, %v2170
    %2324 = vst.msk [vmem:[#allocation3 + $0x140] sm:$0xff] %vm2283, %v2172
    %2325 = vst.msk [vmem:[#allocation3 + $0x148] sm:$0xff] %vm2283, %v2174
    %2326 = vst.msk [vmem:[#allocation3 + $0x150] sm:$0xff] %vm2283, %v2176
    %2327 = vst.msk [vmem:[#allocation3 + $0x158] sm:$0xff] %vm2283, %v2178
    %2328 = vst.msk [vmem:[#allocation3 + $0x160] sm:$0xff] %vm2283, %v2180
    %2329 = vst.msk [vmem:[#allocation3 + $0x168] sm:$0xff] %vm2283, %v2182
    %2330 = vst.msk [vmem:[#allocation3 + $0x170] sm:$0xff] %vm2283, %v2184
    %2331 = vst.msk [vmem:[#allocation3 + $0x178] sm:$0xff] %vm2283, %v2186
    %2332 = vst.msk [vmem:[#allocation3 + $0x180] sm:$0xff] %vm2283, %v2188
    %2333 = vst.msk [vmem:[#allocation3 + $0x188] sm:$0xff] %vm2283, %v2190
    %2334 = vst.msk [vmem:[#allocation3 + $0x190] sm:$0xff] %vm2283, %v2192
    %2335 = vst.msk [vmem:[#allocation3 + $0x198] sm:$0xff] %vm2283, %v2194
    %2336 = vst.msk [vmem:[#allocation3 + $0x1a0] sm:$0xff] %vm2283, %v2196
    %2337 = vst.msk [vmem:[#allocation3 + $0x1a8] sm:$0xff] %vm2283, %v2198
    %2338 = vst.msk [vmem:[#allocation3 + $0x1b0] sm:$0xff] %vm2283, %v2200
    %2339 = vst.msk [vmem:[#allocation3 + $0x1b8] sm:$0xff] %vm2283, %v2202
    %2340 = vst.msk [vmem:[#allocation3 + $0x1c0] sm:$0xff] %vm2283, %v2204
    %2341 = vst.msk [vmem:[#allocation3 + $0x1c8] sm:$0xff] %vm2283, %v2206
    %2342 = vst.msk [vmem:[#allocation3 + $0x1d0] sm:$0xff] %vm2283, %v2208
    %2343 = vst.msk [vmem:[#allocation3 + $0x1d8] sm:$0xff] %vm2283, %v2210
    %2344 = vst.msk [vmem:[#allocation3 + $0x1e0] sm:$0xff] %vm2283, %v2212
    %2345 = vst.msk [vmem:[#allocation3 + $0x1e8] sm:$0xff] %vm2283, %v2214
    %2346 = vst.msk [vmem:[#allocation3 + $0x1f0] sm:$0xff] %vm2283, %v2216
    %2347 = vst.msk [vmem:[#allocation3 + $0x1f8] sm:$0xff] %vm2283, %v2218
    %s2348 = scalar_lea.vmem [#allocation2], 48
    %v2349 = vld [vmem:[%s2348] sm:$0xff]
    %v2350 = vld [vmem:[%s2348 + $0x8] sm:$0xff]
    %v2351 = vld [vmem:[%s2348 + $0x18] sm:$0xff]
    %v2352 = vld [vmem:[%s2348 + $0x20] sm:$0xff]
    %v2353 = vld [vmem:[%s2348 + $0x30] sm:$0xff]
    %v2354 = vld [vmem:[%s2348 + $0x38] sm:$0xff]
    %v2355 = vld [vmem:[%s2348 + $0x48] sm:$0xff]
    %v2356 = vld [vmem:[%s2348 + $0x50] sm:$0xff]
    %v2357 = vld [vmem:[%s2348 + $0x60] sm:$0xff]
    %v2358 = vld [vmem:[%s2348 + $0x68] sm:$0xff]
    %v2359 = vld [vmem:[%s2348 + $0x78] sm:$0xff]
    %v2360 = vld [vmem:[%s2348 + $0x80] sm:$0xff]
    %v2361 = vld [vmem:[%s2348 + $0x90] sm:$0xff]
    %v2362 = vld [vmem:[%s2348 + $0x98] sm:$0xff]
    %v2363 = vld [vmem:[%s2348 + $0xa8] sm:$0xff]
    %v2364 = vld [vmem:[%s2348 + $0xb0] sm:$0xff]
    %v2365 = vld [vmem:[%s2348 + $0xc0] sm:$0xff]
    %v2366 = vld [vmem:[%s2348 + $0xc8] sm:$0xff]
    %v2367 = vld [vmem:[%s2348 + $0xd8] sm:$0xff]
    %v2368 = vld [vmem:[%s2348 + $0xe0] sm:$0xff]
    %v2369 = vld [vmem:[%s2348 + $0xf0] sm:$0xff]
    %v2370 = vld [vmem:[%s2348 + $0xf8] sm:$0xff]
    %v2371 = vld [vmem:[%s2348 + $0x108] sm:$0xff]
    %v2372 = vld [vmem:[%s2348 + $0x110] sm:$0xff]
    %v2373 = vld [vmem:[%s2348 + $0x120] sm:$0xff]
    %v2374 = vld [vmem:[%s2348 + $0x128] sm:$0xff]
    %v2375 = vld [vmem:[%s2348 + $0x138] sm:$0xff]
    %v2376 = vld [vmem:[%s2348 + $0x140] sm:$0xff]
    %v2377 = vld [vmem:[%s2348 + $0x150] sm:$0xff]
    %v2378 = vld [vmem:[%s2348 + $0x158] sm:$0xff]
    %v2379 = vld [vmem:[%s2348 + $0x168] sm:$0xff]
    %v2380 = vld [vmem:[%s2348 + $0x170] sm:$0xff]
    %v2381 = vld [vmem:[%s2348 + $0x1b0] sm:$0xff]
    %v2382 = vld [vmem:[%s2348 + $0x1b8] sm:$0xff]
    %v2383 = vld [vmem:[%s2348 + $0x1c8] sm:$0xff]
    %v2384 = vld [vmem:[%s2348 + $0x1d0] sm:$0xff]
    %v2385 = vld [vmem:[%s2348 + $0x1e0] sm:$0xff]
    %v2386 = vld [vmem:[%s2348 + $0x1e8] sm:$0xff]
    %v2387 = vld [vmem:[%s2348 + $0x1f8] sm:$0xff]
    %v2388 = vld [vmem:[%s2348 + $0x200] sm:$0xff]
    %v2389 = vld [vmem:[%s2348 + $0x210] sm:$0xff]
    %v2390 = vld [vmem:[%s2348 + $0x218] sm:$0xff]
    %v2391 = vld [vmem:[%s2348 + $0x228] sm:$0xff]
    %v2392 = vld [vmem:[%s2348 + $0x230] sm:$0xff]
    %v2393 = vld [vmem:[%s2348 + $0x240] sm:$0xff]
    %v2394 = vld [vmem:[%s2348 + $0x248] sm:$0xff]
    %v2395 = vld [vmem:[%s2348 + $0x258] sm:$0xff]
    %v2396 = vld [vmem:[%s2348 + $0x260] sm:$0xff]
    %v2397 = vld [vmem:[%s2348 + $0x270] sm:$0xff]
    %v2398 = vld [vmem:[%s2348 + $0x278] sm:$0xff]
    %v2399 = vld [vmem:[%s2348 + $0x288] sm:$0xff]
    %v2400 = vld [vmem:[%s2348 + $0x290] sm:$0xff]
    %v2401 = vld [vmem:[%s2348 + $0x2a0] sm:$0xff]
    %v2402 = vld [vmem:[%s2348 + $0x2a8] sm:$0xff]
    %v2403 = vld [vmem:[%s2348 + $0x2b8] sm:$0xff]
    %v2404 = vld [vmem:[%s2348 + $0x2c0] sm:$0xff]
    %v2405 = vld [vmem:[%s2348 + $0x2d0] sm:$0xff]
    %v2406 = vld [vmem:[%s2348 + $0x2d8] sm:$0xff]
    %v2407 = vld [vmem:[%s2348 + $0x2e8] sm:$0xff]
    %v2408 = vld [vmem:[%s2348 + $0x2f0] sm:$0xff]
    %v2409 = vld [vmem:[%s2348 + $0x300] sm:$0xff]
    %v2410 = vld [vmem:[%s2348 + $0x308] sm:$0xff]
    %v2411 = vld [vmem:[%s2348 + $0x318] sm:$0xff]
    %v2412 = vld [vmem:[%s2348 + $0x320] sm:$0xff]
    %2477 = vrot.lane.b32.xlu0 %v2349, 24
    %v2478 = vpop.permute.xlu0 %2477
    %2479 = vrot.lane.b32.xlu0 %v2350, 24
    %v2480 = vpop.permute.xlu0 %2479
    %2481 = vrot.lane.b32.xlu0 %v2351, 24
    %v2482 = vpop.permute.xlu0 %2481
    %2483 = vrot.lane.b32.xlu0 %v2352, 24
    %v2484 = vpop.permute.xlu0 %2483
    %2485 = vrot.lane.b32.xlu0 %v2353, 24
    %v2486 = vpop.permute.xlu0 %2485
    %2487 = vrot.lane.b32.xlu0 %v2354, 24
    %v2488 = vpop.permute.xlu0 %2487
    %2489 = vrot.lane.b32.xlu0 %v2355, 24
    %v2490 = vpop.permute.xlu0 %2489
    %2491 = vrot.lane.b32.xlu0 %v2356, 24
    %v2492 = vpop.permute.xlu0 %2491
    %2493 = vrot.lane.b32.xlu0 %v2357, 24
    %v2494 = vpop.permute.xlu0 %2493
    %2495 = vrot.lane.b32.xlu0 %v2358, 24
    %v2496 = vpop.permute.xlu0 %2495
    %2497 = vrot.lane.b32.xlu0 %v2359, 24
    %v2498 = vpop.permute.xlu0 %2497
    %2499 = vrot.lane.b32.xlu0 %v2360, 24
    %v2500 = vpop.permute.xlu0 %2499
    %2501 = vrot.lane.b32.xlu0 %v2361, 24
    %v2502 = vpop.permute.xlu0 %2501
    %2503 = vrot.lane.b32.xlu0 %v2362, 24
    %v2504 = vpop.permute.xlu0 %2503
    %2505 = vrot.lane.b32.xlu0 %v2363, 24
    %v2506 = vpop.permute.xlu0 %2505
    %2507 = vrot.lane.b32.xlu0 %v2364, 24
    %v2508 = vpop.permute.xlu0 %2507
    %2509 = vrot.lane.b32.xlu0 %v2365, 24
    %v2510 = vpop.permute.xlu0 %2509
    %2511 = vrot.lane.b32.xlu0 %v2366, 24
    %v2512 = vpop.permute.xlu0 %2511
    %2513 = vrot.lane.b32.xlu0 %v2367, 24
    %v2514 = vpop.permute.xlu0 %2513
    %2515 = vrot.lane.b32.xlu0 %v2368, 24
    %v2516 = vpop.permute.xlu0 %2515
    %2517 = vrot.lane.b32.xlu0 %v2369, 24
    %v2518 = vpop.permute.xlu0 %2517
    %2519 = vrot.lane.b32.xlu0 %v2370, 24
    %v2520 = vpop.permute.xlu0 %2519
    %2521 = vrot.lane.b32.xlu0 %v2371, 24
    %v2522 = vpop.permute.xlu0 %2521
    %2523 = vrot.lane.b32.xlu0 %v2372, 24
    %v2524 = vpop.permute.xlu0 %2523
    %2525 = vrot.lane.b32.xlu0 %v2373, 24
    %v2526 = vpop.permute.xlu0 %2525
    %2527 = vrot.lane.b32.xlu0 %v2374, 24
    %v2528 = vpop.permute.xlu0 %2527
    %2529 = vrot.lane.b32.xlu0 %v2375, 24
    %v2530 = vpop.permute.xlu0 %2529
    %2531 = vrot.lane.b32.xlu0 %v2376, 24
    %v2532 = vpop.permute.xlu0 %2531
    %2533 = vrot.lane.b32.xlu0 %v2377, 24
    %v2534 = vpop.permute.xlu0 %2533
    %2535 = vrot.lane.b32.xlu0 %v2378, 24
    %v2536 = vpop.permute.xlu0 %2535
    %2537 = vrot.lane.b32.xlu0 %v2379, 24
    %v2538 = vpop.permute.xlu0 %2537
    %2539 = vrot.lane.b32.xlu0 %v2380, 24
    %v2540 = vpop.permute.xlu0 %2539
    %2541 = vrot.lane.b32.xlu0 %v2381, 24
    %v2542 = vpop.permute.xlu0 %2541
    %2543 = vrot.lane.b32.xlu0 %v2382, 24
    %v2544 = vpop.permute.xlu0 %2543
    %2545 = vrot.lane.b32.xlu0 %v2383, 24
    %v2546 = vpop.permute.xlu0 %2545
    %2547 = vrot.lane.b32.xlu0 %v2384, 24
    %v2548 = vpop.permute.xlu0 %2547
    %2549 = vrot.lane.b32.xlu0 %v2385, 24
    %v2550 = vpop.permute.xlu0 %2549
    %2551 = vrot.lane.b32.xlu0 %v2386, 24
    %v2552 = vpop.permute.xlu0 %2551
    %2553 = vrot.lane.b32.xlu0 %v2387, 24
    %v2554 = vpop.permute.xlu0 %2553
    %2555 = vrot.lane.b32.xlu0 %v2388, 24
    %v2556 = vpop.permute.xlu0 %2555
    %2557 = vrot.lane.b32.xlu0 %v2389, 24
    %v2558 = vpop.permute.xlu0 %2557
    %2559 = vrot.lane.b32.xlu0 %v2390, 24
    %v2560 = vpop.permute.xlu0 %2559
    %2561 = vrot.lane.b32.xlu0 %v2391, 24
    %v2562 = vpop.permute.xlu0 %2561
    %2563 = vrot.lane.b32.xlu0 %v2392, 24
    %v2564 = vpop.permute.xlu0 %2563
    %2565 = vrot.lane.b32.xlu0 %v2393, 24
    %v2566 = vpop.permute.xlu0 %2565
    %2567 = vrot.lane.b32.xlu0 %v2394, 24
    %v2568 = vpop.permute.xlu0 %2567
    %2569 = vrot.lane.b32.xlu0 %v2395, 24
    %v2570 = vpop.permute.xlu0 %2569
    %2571 = vrot.lane.b32.xlu0 %v2396, 24
    %v2572 = vpop.permute.xlu0 %2571
    %2573 = vrot.lane.b32.xlu0 %v2397, 24
    %v2574 = vpop.permute.xlu0 %2573
    %2575 = vrot.lane.b32.xlu0 %v2398, 24
    %v2576 = vpop.permute.xlu0 %2575
    %2577 = vrot.lane.b32.xlu0 %v2399, 24
    %v2578 = vpop.permute.xlu0 %2577
    %2579 = vrot.lane.b32.xlu0 %v2400, 24
    %v2580 = vpop.permute.xlu0 %2579
    %2581 = vrot.lane.b32.xlu0 %v2401, 24
    %v2582 = vpop.permute.xlu0 %2581
    %2583 = vrot.lane.b32.xlu0 %v2402, 24
    %v2584 = vpop.permute.xlu0 %2583
    %2585 = vrot.lane.b32.xlu0 %v2403, 24
    %v2586 = vpop.permute.xlu0 %2585
    %2587 = vrot.lane.b32.xlu0 %v2404, 24
    %v2588 = vpop.permute.xlu0 %2587
    %2589 = vrot.lane.b32.xlu0 %v2405, 24
    %v2590 = vpop.permute.xlu0 %2589
    %2591 = vrot.lane.b32.xlu0 %v2406, 24
    %v2592 = vpop.permute.xlu0 %2591
    %2593 = vrot.lane.b32.xlu0 %v2407, 24
    %v2594 = vpop.permute.xlu0 %2593
    %2595 = vrot.lane.b32.xlu0 %v2408, 24
    %v2596 = vpop.permute.xlu0 %2595
    %2597 = vrot.lane.b32.xlu0 %v2409, 24
    %v2598 = vpop.permute.xlu0 %2597
    %2599 = vrot.lane.b32.xlu0 %v2410, 24
    %v2600 = vpop.permute.xlu0 %2599
    %2601 = vrot.lane.b32.xlu0 %v2411, 24
    %v2602 = vpop.permute.xlu0 %2601
    %2603 = vrot.lane.b32.xlu0 %v2412, 24
    %v2604 = vpop.permute.xlu0 %2603
    %vm2669 = vcmask 228544
    %2670 = vst.msk [vmem:[#allocation3] sm:$0xff] %vm2669, %v2478
    %2671 = vst.msk [vmem:[#allocation3 + $0x8] sm:$0xff] %vm2669, %v2480
    %2672 = vst.msk [vmem:[#allocation3 + $0x10] sm:$0xff] %vm2669, %v2482
    %2673 = vst.msk [vmem:[#allocation3 + $0x18] sm:$0xff] %vm2669, %v2484
    %2674 = vst.msk [vmem:[#allocation3 + $0x20] sm:$0xff] %vm2669, %v2486
    %2675 = vst.msk [vmem:[#allocation3 + $0x28] sm:$0xff] %vm2669, %v2488
    %2676 = vst.msk [vmem:[#allocation3 + $0x30] sm:$0xff] %vm2669, %v2490
    %2677 = vst.msk [vmem:[#allocation3 + $0x38] sm:$0xff] %vm2669, %v2492
    %2678 = vst.msk [vmem:[#allocation3 + $0x40] sm:$0xff] %vm2669, %v2494
    %2679 = vst.msk [vmem:[#allocation3 + $0x48] sm:$0xff] %vm2669, %v2496
    %2680 = vst.msk [vmem:[#allocation3 + $0x50] sm:$0xff] %vm2669, %v2498
    %2681 = vst.msk [vmem:[#allocation3 + $0x58] sm:$0xff] %vm2669, %v2500
    %2682 = vst.msk [vmem:[#allocation3 + $0x60] sm:$0xff] %vm2669, %v2502
    %2683 = vst.msk [vmem:[#allocation3 + $0x68] sm:$0xff] %vm2669, %v2504
    %2684 = vst.msk [vmem:[#allocation3 + $0x70] sm:$0xff] %vm2669, %v2506
    %2685 = vst.msk [vmem:[#allocation3 + $0x78] sm:$0xff] %vm2669, %v2508
    %2686 = vst.msk [vmem:[#allocation3 + $0x80] sm:$0xff] %vm2669, %v2510
    %2687 = vst.msk [vmem:[#allocation3 + $0x88] sm:$0xff] %vm2669, %v2512
    %2688 = vst.msk [vmem:[#allocation3 + $0x90] sm:$0xff] %vm2669, %v2514
    %2689 = vst.msk [vmem:[#allocation3 + $0x98] sm:$0xff] %vm2669, %v2516
    %2690 = vst.msk [vmem:[#allocation3 + $0xa0] sm:$0xff] %vm2669, %v2518
    %2691 = vst.msk [vmem:[#allocation3 + $0xa8] sm:$0xff] %vm2669, %v2520
    %2692 = vst.msk [vmem:[#allocation3 + $0xb0] sm:$0xff] %vm2669, %v2522
    %2693 = vst.msk [vmem:[#allocation3 + $0xb8] sm:$0xff] %vm2669, %v2524
    %2694 = vst.msk [vmem:[#allocation3 + $0xc0] sm:$0xff] %vm2669, %v2526
    %2695 = vst.msk [vmem:[#allocation3 + $0xc8] sm:$0xff] %vm2669, %v2528
    %2696 = vst.msk [vmem:[#allocation3 + $0xd0] sm:$0xff] %vm2669, %v2530
    %2697 = vst.msk [vmem:[#allocation3 + $0xd8] sm:$0xff] %vm2669, %v2532
    %2698 = vst.msk [vmem:[#allocation3 + $0xe0] sm:$0xff] %vm2669, %v2534
    %2699 = vst.msk [vmem:[#allocation3 + $0xe8] sm:$0xff] %vm2669, %v2536
    %2700 = vst.msk [vmem:[#allocation3 + $0xf0] sm:$0xff] %vm2669, %v2538
    %2701 = vst.msk [vmem:[#allocation3 + $0xf8] sm:$0xff] %vm2669, %v2540
    %2702 = vst.msk [vmem:[#allocation3 + $0x100] sm:$0xff] %vm2669, %v2542
    %2703 = vst.msk [vmem:[#allocation3 + $0x108] sm:$0xff] %vm2669, %v2544
    %2704 = vst.msk [vmem:[#allocation3 + $0x110] sm:$0xff] %vm2669, %v2546
    %2705 = vst.msk [vmem:[#allocation3 + $0x118] sm:$0xff] %vm2669, %v2548
    %2706 = vst.msk [vmem:[#allocation3 + $0x120] sm:$0xff] %vm2669, %v2550
    %2707 = vst.msk [vmem:[#allocation3 + $0x128] sm:$0xff] %vm2669, %v2552
    %2708 = vst.msk [vmem:[#allocation3 + $0x130] sm:$0xff] %vm2669, %v2554
    %2709 = vst.msk [vmem:[#allocation3 + $0x138] sm:$0xff] %vm2669, %v2556
    %2710 = vst.msk [vmem:[#allocation3 + $0x140] sm:$0xff] %vm2669, %v2558
    %2711 = vst.msk [vmem:[#allocation3 + $0x148] sm:$0xff] %vm2669, %v2560
    %2712 = vst.msk [vmem:[#allocation3 + $0x150] sm:$0xff] %vm2669, %v2562
    %2713 = vst.msk [vmem:[#allocation3 + $0x158] sm:$0xff] %vm2669, %v2564
    %2714 = vst.msk [vmem:[#allocation3 + $0x160] sm:$0xff] %vm2669, %v2566
    %2715 = vst.msk [vmem:[#allocation3 + $0x168] sm:$0xff] %vm2669, %v2568
    %2716 = vst.msk [vmem:[#allocation3 + $0x170] sm:$0xff] %vm2669, %v2570
    %2717 = vst.msk [vmem:[#allocation3 + $0x178] sm:$0xff] %vm2669, %v2572
    %2718 = vst.msk [vmem:[#allocation3 + $0x180] sm:$0xff] %vm2669, %v2574
    %2719 = vst.msk [vmem:[#allocation3 + $0x188] sm:$0xff] %vm2669, %v2576
    %2720 = vst.msk [vmem:[#allocation3 + $0x190] sm:$0xff] %vm2669, %v2578
    %2721 = vst.msk [vmem:[#allocation3 + $0x198] sm:$0xff] %vm2669, %v2580
    %2722 = vst.msk [vmem:[#allocation3 + $0x1a0] sm:$0xff] %vm2669, %v2582
    %2723 = vst.msk [vmem:[#allocation3 + $0x1a8] sm:$0xff] %vm2669, %v2584
    %2724 = vst.msk [vmem:[#allocation3 + $0x1b0] sm:$0xff] %vm2669, %v2586
    %2725 = vst.msk [vmem:[#allocation3 + $0x1b8] sm:$0xff] %vm2669, %v2588
    %2726 = vst.msk [vmem:[#allocation3 + $0x1c0] sm:$0xff] %vm2669, %v2590
    %2727 = vst.msk [vmem:[#allocation3 + $0x1c8] sm:$0xff] %vm2669, %v2592
    %2728 = vst.msk [vmem:[#allocation3 + $0x1d0] sm:$0xff] %vm2669, %v2594
    %2729 = vst.msk [vmem:[#allocation3 + $0x1d8] sm:$0xff] %vm2669, %v2596
    %2730 = vst.msk [vmem:[#allocation3 + $0x1e0] sm:$0xff] %vm2669, %v2598
    %2731 = vst.msk [vmem:[#allocation3 + $0x1e8] sm:$0xff] %vm2669, %v2600
    %2732 = vst.msk [vmem:[#allocation3 + $0x1f0] sm:$0xff] %vm2669, %v2602
    %2733 = vst.msk [vmem:[#allocation3 + $0x1f8] sm:$0xff] %vm2669, %v2604
    %v2734 = vld [vmem:[%s2348 + $0x1] sm:$0xff]
    %v2735 = vld [vmem:[%s2348 + $0x9] sm:$0xff]
    %v2736 = vld [vmem:[%s2348 + $0x19] sm:$0xff]
    %v2737 = vld [vmem:[%s2348 + $0x21] sm:$0xff]
    %v2738 = vld [vmem:[%s2348 + $0x31] sm:$0xff]
    %v2739 = vld [vmem:[%s2348 + $0x39] sm:$0xff]
    %v2740 = vld [vmem:[%s2348 + $0x49] sm:$0xff]
    %v2741 = vld [vmem:[%s2348 + $0x51] sm:$0xff]
    %v2742 = vld [vmem:[%s2348 + $0x61] sm:$0xff]
    %v2743 = vld [vmem:[%s2348 + $0x69] sm:$0xff]
    %v2744 = vld [vmem:[%s2348 + $0x79] sm:$0xff]
    %v2745 = vld [vmem:[%s2348 + $0x81] sm:$0xff]
    %v2746 = vld [vmem:[%s2348 + $0x91] sm:$0xff]
    %v2747 = vld [vmem:[%s2348 + $0x99] sm:$0xff]
    %v2748 = vld [vmem:[%s2348 + $0xa9] sm:$0xff]
    %v2749 = vld [vmem:[%s2348 + $0xb1] sm:$0xff]
    %v2750 = vld [vmem:[%s2348 + $0xc1] sm:$0xff]
    %v2751 = vld [vmem:[%s2348 + $0xc9] sm:$0xff]
    %v2752 = vld [vmem:[%s2348 + $0xd9] sm:$0xff]
    %v2753 = vld [vmem:[%s2348 + $0xe1] sm:$0xff]
    %v2754 = vld [vmem:[%s2348 + $0xf1] sm:$0xff]
    %v2755 = vld [vmem:[%s2348 + $0xf9] sm:$0xff]
    %v2756 = vld [vmem:[%s2348 + $0x109] sm:$0xff]
    %v2757 = vld [vmem:[%s2348 + $0x111] sm:$0xff]
    %v2758 = vld [vmem:[%s2348 + $0x121] sm:$0xff]
    %v2759 = vld [vmem:[%s2348 + $0x129] sm:$0xff]
    %v2760 = vld [vmem:[%s2348 + $0x139] sm:$0xff]
    %v2761 = vld [vmem:[%s2348 + $0x141] sm:$0xff]
    %v2762 = vld [vmem:[%s2348 + $0x151] sm:$0xff]
    %v2763 = vld [vmem:[%s2348 + $0x159] sm:$0xff]
    %v2764 = vld [vmem:[%s2348 + $0x169] sm:$0xff]
    %v2765 = vld [vmem:[%s2348 + $0x171] sm:$0xff]
    %v2766 = vld [vmem:[%s2348 + $0x1b1] sm:$0xff]
    %v2767 = vld [vmem:[%s2348 + $0x1b9] sm:$0xff]
    %v2768 = vld [vmem:[%s2348 + $0x1c9] sm:$0xff]
    %v2769 = vld [vmem:[%s2348 + $0x1d1] sm:$0xff]
    %v2770 = vld [vmem:[%s2348 + $0x1e1] sm:$0xff]
    %v2771 = vld [vmem:[%s2348 + $0x1e9] sm:$0xff]
    %v2772 = vld [vmem:[%s2348 + $0x1f9] sm:$0xff]
    %v2773 = vld [vmem:[%s2348 + $0x201] sm:$0xff]
    %v2774 = vld [vmem:[%s2348 + $0x211] sm:$0xff]
    %v2775 = vld [vmem:[%s2348 + $0x219] sm:$0xff]
    %v2776 = vld [vmem:[%s2348 + $0x229] sm:$0xff]
    %v2777 = vld [vmem:[%s2348 + $0x231] sm:$0xff]
    %v2778 = vld [vmem:[%s2348 + $0x241] sm:$0xff]
    %v2779 = vld [vmem:[%s2348 + $0x249] sm:$0xff]
    %v2780 = vld [vmem:[%s2348 + $0x259] sm:$0xff]
    %v2781 = vld [vmem:[%s2348 + $0x261] sm:$0xff]
    %v2782 = vld [vmem:[%s2348 + $0x271] sm:$0xff]
    %v2783 = vld [vmem:[%s2348 + $0x279] sm:$0xff]
    %v2784 = vld [vmem:[%s2348 + $0x289] sm:$0xff]
    %v2785 = vld [vmem:[%s2348 + $0x291] sm:$0xff]
    %v2786 = vld [vmem:[%s2348 + $0x2a1] sm:$0xff]
    %v2787 = vld [vmem:[%s2348 + $0x2a9] sm:$0xff]
    %v2788 = vld [vmem:[%s2348 + $0x2b9] sm:$0xff]
    %v2789 = vld [vmem:[%s2348 + $0x2c1] sm:$0xff]
    %v2790 = vld [vmem:[%s2348 + $0x2d1] sm:$0xff]
    %v2791 = vld [vmem:[%s2348 + $0x2d9] sm:$0xff]
    %v2792 = vld [vmem:[%s2348 + $0x2e9] sm:$0xff]
    %v2793 = vld [vmem:[%s2348 + $0x2f1] sm:$0xff]
    %v2794 = vld [vmem:[%s2348 + $0x301] sm:$0xff]
    %v2795 = vld [vmem:[%s2348 + $0x309] sm:$0xff]
    %v2796 = vld [vmem:[%s2348 + $0x319] sm:$0xff]
    %v2797 = vld [vmem:[%s2348 + $0x321] sm:$0xff]
    %2862 = vrot.lane.b32.xlu0 %v2734, 28
    %v2863 = vpop.permute.xlu0 %2862
    %2864 = vrot.lane.b32.xlu0 %v2735, 28
    %v2865 = vpop.permute.xlu0 %2864
    %2866 = vrot.lane.b32.xlu0 %v2736, 28
    %v2867 = vpop.permute.xlu0 %2866
    %2868 = vrot.lane.b32.xlu0 %v2737, 28
    %v2869 = vpop.permute.xlu0 %2868
    %2870 = vrot.lane.b32.xlu0 %v2738, 28
    %v2871 = vpop.permute.xlu0 %2870
    %2872 = vrot.lane.b32.xlu0 %v2739, 28
    %v2873 = vpop.permute.xlu0 %2872
    %2874 = vrot.lane.b32.xlu0 %v2740, 28
    %v2875 = vpop.permute.xlu0 %2874
    %2876 = vrot.lane.b32.xlu0 %v2741, 28
    %v2877 = vpop.permute.xlu0 %2876
    %2878 = vrot.lane.b32.xlu0 %v2742, 28
    %v2879 = vpop.permute.xlu0 %2878
    %2880 = vrot.lane.b32.xlu0 %v2743, 28
    %v2881 = vpop.permute.xlu0 %2880
    %2882 = vrot.lane.b32.xlu0 %v2744, 28
    %v2883 = vpop.permute.xlu0 %2882
    %2884 = vrot.lane.b32.xlu0 %v2745, 28
    %v2885 = vpop.permute.xlu0 %2884
    %2886 = vrot.lane.b32.xlu0 %v2746, 28
    %v2887 = vpop.permute.xlu0 %2886
    %2888 = vrot.lane.b32.xlu0 %v2747, 28
    %v2889 = vpop.permute.xlu0 %2888
    %2890 = vrot.lane.b32.xlu0 %v2748, 28
    %v2891 = vpop.permute.xlu0 %2890
    %2892 = vrot.lane.b32.xlu0 %v2749, 28
    %v2893 = vpop.permute.xlu0 %2892
    %2894 = vrot.lane.b32.xlu0 %v2750, 28
    %v2895 = vpop.permute.xlu0 %2894
    %2896 = vrot.lane.b32.xlu0 %v2751, 28
    %v2897 = vpop.permute.xlu0 %2896
    %2898 = vrot.lane.b32.xlu0 %v2752, 28
    %v2899 = vpop.permute.xlu0 %2898
    %2900 = vrot.lane.b32.xlu0 %v2753, 28
    %v2901 = vpop.permute.xlu0 %2900
    %2902 = vrot.lane.b32.xlu0 %v2754, 28
    %v2903 = vpop.permute.xlu0 %2902
    %2904 = vrot.lane.b32.xlu0 %v2755, 28
    %v2905 = vpop.permute.xlu0 %2904
    %2906 = vrot.lane.b32.xlu0 %v2756, 28
    %v2907 = vpop.permute.xlu0 %2906
    %2908 = vrot.lane.b32.xlu0 %v2757, 28
    %v2909 = vpop.permute.xlu0 %2908
    %2910 = vrot.lane.b32.xlu0 %v2758, 28
    %v2911 = vpop.permute.xlu0 %2910
    %2912 = vrot.lane.b32.xlu0 %v2759, 28
    %v2913 = vpop.permute.xlu0 %2912
    %2914 = vrot.lane.b32.xlu0 %v2760, 28
    %v2915 = vpop.permute.xlu0 %2914
    %2916 = vrot.lane.b32.xlu0 %v2761, 28
    %v2917 = vpop.permute.xlu0 %2916
    %2918 = vrot.lane.b32.xlu0 %v2762, 28
    %v2919 = vpop.permute.xlu0 %2918
    %2920 = vrot.lane.b32.xlu0 %v2763, 28
    %v2921 = vpop.permute.xlu0 %2920
    %2922 = vrot.lane.b32.xlu0 %v2764, 28
    %v2923 = vpop.permute.xlu0 %2922
    %2924 = vrot.lane.b32.xlu0 %v2765, 28
    %v2925 = vpop.permute.xlu0 %2924
    %2926 = vrot.lane.b32.xlu0 %v2766, 28
    %v2927 = vpop.permute.xlu0 %2926
    %2928 = vrot.lane.b32.xlu0 %v2767, 28
    %v2929 = vpop.permute.xlu0 %2928
    %2930 = vrot.lane.b32.xlu0 %v2768, 28
    %v2931 = vpop.permute.xlu0 %2930
    %2932 = vrot.lane.b32.xlu0 %v2769, 28
    %v2933 = vpop.permute.xlu0 %2932
    %2934 = vrot.lane.b32.xlu0 %v2770, 28
    %v2935 = vpop.permute.xlu0 %2934
    %2936 = vrot.lane.b32.xlu0 %v2771, 28
    %v2937 = vpop.permute.xlu0 %2936
    %2938 = vrot.lane.b32.xlu0 %v2772, 28
    %v2939 = vpop.permute.xlu0 %2938
    %2940 = vrot.lane.b32.xlu0 %v2773, 28
    %v2941 = vpop.permute.xlu0 %2940
    %2942 = vrot.lane.b32.xlu0 %v2774, 28
    %v2943 = vpop.permute.xlu0 %2942
    %2944 = vrot.lane.b32.xlu0 %v2775, 28
    %v2945 = vpop.permute.xlu0 %2944
    %2946 = vrot.lane.b32.xlu0 %v2776, 28
    %v2947 = vpop.permute.xlu0 %2946
    %2948 = vrot.lane.b32.xlu0 %v2777, 28
    %v2949 = vpop.permute.xlu0 %2948
    %2950 = vrot.lane.b32.xlu0 %v2778, 28
    %v2951 = vpop.permute.xlu0 %2950
    %2952 = vrot.lane.b32.xlu0 %v2779, 28
    %v2953 = vpop.permute.xlu0 %2952
    %2954 = vrot.lane.b32.xlu0 %v2780, 28
    %v2955 = vpop.permute.xlu0 %2954
    %2956 = vrot.lane.b32.xlu0 %v2781, 28
    %v2957 = vpop.permute.xlu0 %2956
    %2958 = vrot.lane.b32.xlu0 %v2782, 28
    %v2959 = vpop.permute.xlu0 %2958
    %2960 = vrot.lane.b32.xlu0 %v2783, 28
    %v2961 = vpop.permute.xlu0 %2960
    %2962 = vrot.lane.b32.xlu0 %v2784, 28
    %v2963 = vpop.permute.xlu0 %2962
    %2964 = vrot.lane.b32.xlu0 %v2785, 28
    %v2965 = vpop.permute.xlu0 %2964
    %2966 = vrot.lane.b32.xlu0 %v2786, 28
    %v2967 = vpop.permute.xlu0 %2966
    %2968 = vrot.lane.b32.xlu0 %v2787, 28
    %v2969 = vpop.permute.xlu0 %2968
    %2970 = vrot.lane.b32.xlu0 %v2788, 28
    %v2971 = vpop.permute.xlu0 %2970
    %2972 = vrot.lane.b32.xlu0 %v2789, 28
    %v2973 = vpop.permute.xlu0 %2972
    %2974 = vrot.lane.b32.xlu0 %v2790, 28
    %v2975 = vpop.permute.xlu0 %2974
    %2976 = vrot.lane.b32.xlu0 %v2791, 28
    %v2977 = vpop.permute.xlu0 %2976
    %2978 = vrot.lane.b32.xlu0 %v2792, 28
    %v2979 = vpop.permute.xlu0 %2978
    %2980 = vrot.lane.b32.xlu0 %v2793, 28
    %v2981 = vpop.permute.xlu0 %2980
    %2982 = vrot.lane.b32.xlu0 %v2794, 28
    %v2983 = vpop.permute.xlu0 %2982
    %2984 = vrot.lane.b32.xlu0 %v2795, 28
    %v2985 = vpop.permute.xlu0 %2984
    %2986 = vrot.lane.b32.xlu0 %v2796, 28
    %v2987 = vpop.permute.xlu0 %2986
    %2988 = vrot.lane.b32.xlu0 %v2797, 28
    %v2989 = vpop.permute.xlu0 %2988
    %vm3054 = vcmask 261344
    %3055 = vst.msk [vmem:[#allocation3] sm:$0xff] %vm3054, %v2863
    %3056 = vst.msk [vmem:[#allocation3 + $0x8] sm:$0xff] %vm3054, %v2865
    %3057 = vst.msk [vmem:[#allocation3 + $0x10] sm:$0xff] %vm3054, %v2867
    %3058 = vst.msk [vmem:[#allocation3 + $0x18] sm:$0xff] %vm3054, %v2869
    %3059 = vst.msk [vmem:[#allocation3 + $0x20] sm:$0xff] %vm3054, %v2871
    %3060 = vst.msk [vmem:[#allocation3 + $0x28] sm:$0xff] %vm3054, %v2873
    %3061 = vst.msk [vmem:[#allocation3 + $0x30] sm:$0xff] %vm3054, %v2875
    %3062 = vst.msk [vmem:[#allocation3 + $0x38] sm:$0xff] %vm3054, %v2877
    %3063 = vst.msk [vmem:[#allocation3 + $0x40] sm:$0xff] %vm3054, %v2879
    %3064 = vst.msk [vmem:[#allocation3 + $0x48] sm:$0xff] %vm3054, %v2881
    %3065 = vst.msk [vmem:[#allocation3 + $0x50] sm:$0xff] %vm3054, %v2883
    %3066 = vst.msk [vmem:[#allocation3 + $0x58] sm:$0xff] %vm3054, %v2885
    %3067 = vst.msk [vmem:[#allocation3 + $0x60] sm:$0xff] %vm3054, %v2887
    %3068 = vst.msk [vmem:[#allocation3 + $0x68] sm:$0xff] %vm3054, %v2889
    %3069 = vst.msk [vmem:[#allocation3 + $0x70] sm:$0xff] %vm3054, %v2891
    %3070 = vst.msk [vmem:[#allocation3 + $0x78] sm:$0xff] %vm3054, %v2893
    %3071 = vst.msk [vmem:[#allocation3 + $0x80] sm:$0xff] %vm3054, %v2895
    %3072 = vst.msk [vmem:[#allocation3 + $0x88] sm:$0xff] %vm3054, %v2897
    %3073 = vst.msk [vmem:[#allocation3 + $0x90] sm:$0xff] %vm3054, %v2899
    %3074 = vst.msk [vmem:[#allocation3 + $0x98] sm:$0xff] %vm3054, %v2901
    %3075 = vst.msk [vmem:[#allocation3 + $0xa0] sm:$0xff] %vm3054, %v2903
    %3076 = vst.msk [vmem:[#allocation3 + $0xa8] sm:$0xff] %vm3054, %v2905
    %3077 = vst.msk [vmem:[#allocation3 + $0xb0] sm:$0xff] %vm3054, %v2907
    %3078 = vst.msk [vmem:[#allocation3 + $0xb8] sm:$0xff] %vm3054, %v2909
    %3079 = vst.msk [vmem:[#allocation3 + $0xc0] sm:$0xff] %vm3054, %v2911
    %3080 = vst.msk [vmem:[#allocation3 + $0xc8] sm:$0xff] %vm3054, %v2913
    %3081 = vst.msk [vmem:[#allocation3 + $0xd0] sm:$0xff] %vm3054, %v2915
    %3082 = vst.msk [vmem:[#allocation3 + $0xd8] sm:$0xff] %vm3054, %v2917
    %3083 = vst.msk [vmem:[#allocation3 + $0xe0] sm:$0xff] %vm3054, %v2919
    %3084 = vst.msk [vmem:[#allocation3 + $0xe8] sm:$0xff] %vm3054, %v2921
    %3085 = vst.msk [vmem:[#allocation3 + $0xf0] sm:$0xff] %vm3054, %v2923
    %3086 = vst.msk [vmem:[#allocation3 + $0xf8] sm:$0xff] %vm3054, %v2925
    %3087 = vst.msk [vmem:[#allocation3 + $0x100] sm:$0xff] %vm3054, %v2927
    %3088 = vst.msk [vmem:[#allocation3 + $0x108] sm:$0xff] %vm3054, %v2929
    %3089 = vst.msk [vmem:[#allocation3 + $0x110] sm:$0xff] %vm3054, %v2931
    %3090 = vst.msk [vmem:[#allocation3 + $0x118] sm:$0xff] %vm3054, %v2933
    %3091 = vst.msk [vmem:[#allocation3 + $0x120] sm:$0xff] %vm3054, %v2935
    %3092 = vst.msk [vmem:[#allocation3 + $0x128] sm:$0xff] %vm3054, %v2937
    %3093 = vst.msk [vmem:[#allocation3 + $0x130] sm:$0xff] %vm3054, %v2939
    %3094 = vst.msk [vmem:[#allocation3 + $0x138] sm:$0xff] %vm3054, %v2941
    %3095 = vst.msk [vmem:[#allocation3 + $0x140] sm:$0xff] %vm3054, %v2943
    %3096 = vst.msk [vmem:[#allocation3 + $0x148] sm:$0xff] %vm3054, %v2945
    %3097 = vst.msk [vmem:[#allocation3 + $0x150] sm:$0xff] %vm3054, %v2947
    %3098 = vst.msk [vmem:[#allocation3 + $0x158] sm:$0xff] %vm3054, %v2949
    %3099 = vst.msk [vmem:[#allocation3 + $0x160] sm:$0xff] %vm3054, %v2951
    %3100 = vst.msk [vmem:[#allocation3 + $0x168] sm:$0xff] %vm3054, %v2953
    %3101 = vst.msk [vmem:[#allocation3 + $0x170] sm:$0xff] %vm3054, %v2955
    %3102 = vst.msk [vmem:[#allocation3 + $0x178] sm:$0xff] %vm3054, %v2957
    %3103 = vst.msk [vmem:[#allocation3 + $0x180] sm:$0xff] %vm3054, %v2959
    %3104 = vst.msk [vmem:[#allocation3 + $0x188] sm:$0xff] %vm3054, %v2961
    %3105 = vst.msk [vmem:[#allocation3 + $0x190] sm:$0xff] %vm3054, %v2963
    %3106 = vst.msk [vmem:[#allocation3 + $0x198] sm:$0xff] %vm3054, %v2965
    %3107 = vst.msk [vmem:[#allocation3 + $0x1a0] sm:$0xff] %vm3054, %v2967
    %3108 = vst.msk [vmem:[#allocation3 + $0x1a8] sm:$0xff] %vm3054, %v2969
    %3109 = vst.msk [vmem:[#allocation3 + $0x1b0] sm:$0xff] %vm3054, %v2971
    %3110 = vst.msk [vmem:[#allocation3 + $0x1b8] sm:$0xff] %vm3054, %v2973
    %3111 = vst.msk [vmem:[#allocation3 + $0x1c0] sm:$0xff] %vm3054, %v2975
    %3112 = vst.msk [vmem:[#allocation3 + $0x1c8] sm:$0xff] %vm3054, %v2977
    %3113 = vst.msk [vmem:[#allocation3 + $0x1d0] sm:$0xff] %vm3054, %v2979
    %3114 = vst.msk [vmem:[#allocation3 + $0x1d8] sm:$0xff] %vm3054, %v2981
    %3115 = vst.msk [vmem:[#allocation3 + $0x1e0] sm:$0xff] %vm3054, %v2983
    %3116 = vst.msk [vmem:[#allocation3 + $0x1e8] sm:$0xff] %vm3054, %v2985
    %3117 = vst.msk [vmem:[#allocation3 + $0x1f0] sm:$0xff] %vm3054, %v2987
    %3118 = vst.msk [vmem:[#allocation3 + $0x1f8] sm:$0xff] %vm3054, %v2989
    %v3119 = vld [vmem:[%s2348 + $0x2] sm:$0xff]
    %v3120 = vld [vmem:[%s2348 + $0xa] sm:$0xff]
    %v3121 = vld [vmem:[%s2348 + $0x1a] sm:$0xff]
    %v3122 = vld [vmem:[%s2348 + $0x22] sm:$0xff]
    %v3123 = vld [vmem:[%s2348 + $0x32] sm:$0xff]
    %v3124 = vld [vmem:[%s2348 + $0x3a] sm:$0xff]
    %v3125 = vld [vmem:[%s2348 + $0x4a] sm:$0xff]
    %v3126 = vld [vmem:[%s2348 + $0x52] sm:$0xff]
    %v3127 = vld [vmem:[%s2348 + $0x62] sm:$0xff]
    %v3128 = vld [vmem:[%s2348 + $0x6a] sm:$0xff]
    %v3129 = vld [vmem:[%s2348 + $0x7a] sm:$0xff]
    %v3130 = vld [vmem:[%s2348 + $0x82] sm:$0xff]
    %v3131 = vld [vmem:[%s2348 + $0x92] sm:$0xff]
    %v3132 = vld [vmem:[%s2348 + $0x9a] sm:$0xff]
    %v3133 = vld [vmem:[%s2348 + $0xaa] sm:$0xff]
    %v3134 = vld [vmem:[%s2348 + $0xb2] sm:$0xff]
    %v3135 = vld [vmem:[%s2348 + $0xc2] sm:$0xff]
    %v3136 = vld [vmem:[%s2348 + $0xca] sm:$0xff]
    %v3137 = vld [vmem:[%s2348 + $0xda] sm:$0xff]
    %v3138 = vld [vmem:[%s2348 + $0xe2] sm:$0xff]
    %v3139 = vld [vmem:[%s2348 + $0xf2] sm:$0xff]
    %v3140 = vld [vmem:[%s2348 + $0xfa] sm:$0xff]
    %v3141 = vld [vmem:[%s2348 + $0x10a] sm:$0xff]
    %v3142 = vld [vmem:[%s2348 + $0x112] sm:$0xff]
    %v3143 = vld [vmem:[%s2348 + $0x122] sm:$0xff]
    %v3144 = vld [vmem:[%s2348 + $0x12a] sm:$0xff]
    %v3145 = vld [vmem:[%s2348 + $0x13a] sm:$0xff]
    %v3146 = vld [vmem:[%s2348 + $0x142] sm:$0xff]
    %v3147 = vld [vmem:[%s2348 + $0x152] sm:$0xff]
    %v3148 = vld [vmem:[%s2348 + $0x15a] sm:$0xff]
    %v3149 = vld [vmem:[%s2348 + $0x16a] sm:$0xff]
    %v3150 = vld [vmem:[%s2348 + $0x172] sm:$0xff]
    %v3151 = vld [vmem:[%s2348 + $0x1b2] sm:$0xff]
    %v3152 = vld [vmem:[%s2348 + $0x1ba] sm:$0xff]
    %v3153 = vld [vmem:[%s2348 + $0x1ca] sm:$0xff]
    %v3154 = vld [vmem:[%s2348 + $0x1d2] sm:$0xff]
    %v3155 = vld [vmem:[%s2348 + $0x1e2] sm:$0xff]
    %v3156 = vld [vmem:[%s2348 + $0x1ea] sm:$0xff]
    %v3157 = vld [vmem:[%s2348 + $0x1fa] sm:$0xff]
    %v3158 = vld [vmem:[%s2348 + $0x202] sm:$0xff]
    %v3159 = vld [vmem:[%s2348 + $0x212] sm:$0xff]
    %v3160 = vld [vmem:[%s2348 + $0x21a] sm:$0xff]
    %v3161 = vld [vmem:[%s2348 + $0x22a] sm:$0xff]
    %v3162 = vld [vmem:[%s2348 + $0x232] sm:$0xff]
    %v3163 = vld [vmem:[%s2348 + $0x242] sm:$0xff]
    %v3164 = vld [vmem:[%s2348 + $0x24a] sm:$0xff]
    %v3165 = vld [vmem:[%s2348 + $0x25a] sm:$0xff]
    %v3166 = vld [vmem:[%s2348 + $0x262] sm:$0xff]
    %v3167 = vld [vmem:[%s2348 + $0x272] sm:$0xff]
    %v3168 = vld [vmem:[%s2348 + $0x27a] sm:$0xff]
    %v3169 = vld [vmem:[%s2348 + $0x28a] sm:$0xff]
    %v3170 = vld [vmem:[%s2348 + $0x292] sm:$0xff]
    %v3171 = vld [vmem:[%s2348 + $0x2a2] sm:$0xff]
    %v3172 = vld [vmem:[%s2348 + $0x2aa] sm:$0xff]
    %v3173 = vld [vmem:[%s2348 + $0x2ba] sm:$0xff]
    %v3174 = vld [vmem:[%s2348 + $0x2c2] sm:$0xff]
    %v3175 = vld [vmem:[%s2348 + $0x2d2] sm:$0xff]
    %v3176 = vld [vmem:[%s2348 + $0x2da] sm:$0xff]
    %v3177 = vld [vmem:[%s2348 + $0x2ea] sm:$0xff]
    %v3178 = vld [vmem:[%s2348 + $0x2f2] sm:$0xff]
    %v3179 = vld [vmem:[%s2348 + $0x302] sm:$0xff]
    %v3180 = vld [vmem:[%s2348 + $0x30a] sm:$0xff]
    %v3181 = vld [vmem:[%s2348 + $0x31a] sm:$0xff]
    %v3182 = vld [vmem:[%s2348 + $0x322] sm:$0xff]
    %3247 = vrot.lane.b32.xlu0 %v3119, 32
    %v3248 = vpop.permute.xlu0 %3247
    %3249 = vrot.lane.b32.xlu0 %v3120, 32
    %v3250 = vpop.permute.xlu0 %3249
    %3251 = vrot.lane.b32.xlu0 %v3121, 32
    %v3252 = vpop.permute.xlu0 %3251
    %3253 = vrot.lane.b32.xlu0 %v3122, 32
    %v3254 = vpop.permute.xlu0 %3253
    %3255 = vrot.lane.b32.xlu0 %v3123, 32
    %v3256 = vpop.permute.xlu0 %3255
    %3257 = vrot.lane.b32.xlu0 %v3124, 32
    %v3258 = vpop.permute.xlu0 %3257
    %3259 = vrot.lane.b32.xlu0 %v3125, 32
    %v3260 = vpop.permute.xlu0 %3259
    %3261 = vrot.lane.b32.xlu0 %v3126, 32
    %v3262 = vpop.permute.xlu0 %3261
    %3263 = vrot.lane.b32.xlu0 %v3127, 32
    %v3264 = vpop.permute.xlu0 %3263
    %3265 = vrot.lane.b32.xlu0 %v3128, 32
    %v3266 = vpop.permute.xlu0 %3265
    %3267 = vrot.lane.b32.xlu0 %v3129, 32
    %v3268 = vpop.permute.xlu0 %3267
    %3269 = vrot.lane.b32.xlu0 %v3130, 32
    %v3270 = vpop.permute.xlu0 %3269
    %3271 = vrot.lane.b32.xlu0 %v3131, 32
    %v3272 = vpop.permute.xlu0 %3271
    %3273 = vrot.lane.b32.xlu0 %v3132, 32
    %v3274 = vpop.permute.xlu0 %3273
    %3275 = vrot.lane.b32.xlu0 %v3133, 32
    %v3276 = vpop.permute.xlu0 %3275
    %3277 = vrot.lane.b32.xlu0 %v3134, 32
    %v3278 = vpop.permute.xlu0 %3277
    %3279 = vrot.lane.b32.xlu0 %v3135, 32
    %v3280 = vpop.permute.xlu0 %3279
    %3281 = vrot.lane.b32.xlu0 %v3136, 32
    %v3282 = vpop.permute.xlu0 %3281
    %3283 = vrot.lane.b32.xlu0 %v3137, 32
    %v3284 = vpop.permute.xlu0 %3283
    %3285 = vrot.lane.b32.xlu0 %v3138, 32
    %v3286 = vpop.permute.xlu0 %3285
    %3287 = vrot.lane.b32.xlu0 %v3139, 32
    %v3288 = vpop.permute.xlu0 %3287
    %3289 = vrot.lane.b32.xlu0 %v3140, 32
    %v3290 = vpop.permute.xlu0 %3289
    %3291 = vrot.lane.b32.xlu0 %v3141, 32
    %v3292 = vpop.permute.xlu0 %3291
    %3293 = vrot.lane.b32.xlu0 %v3142, 32
    %v3294 = vpop.permute.xlu0 %3293
    %3295 = vrot.lane.b32.xlu0 %v3143, 32
    %v3296 = vpop.permute.xlu0 %3295
    %3297 = vrot.lane.b32.xlu0 %v3144, 32
    %v3298 = vpop.permute.xlu0 %3297
    %3299 = vrot.lane.b32.xlu0 %v3145, 32
    %v3300 = vpop.permute.xlu0 %3299
    %3301 = vrot.lane.b32.xlu0 %v3146, 32
    %v3302 = vpop.permute.xlu0 %3301
    %3303 = vrot.lane.b32.xlu0 %v3147, 32
    %v3304 = vpop.permute.xlu0 %3303
    %3305 = vrot.lane.b32.xlu0 %v3148, 32
    %v3306 = vpop.permute.xlu0 %3305
    %3307 = vrot.lane.b32.xlu0 %v3149, 32
    %v3308 = vpop.permute.xlu0 %3307
    %3309 = vrot.lane.b32.xlu0 %v3150, 32
    %v3310 = vpop.permute.xlu0 %3309
    %3311 = vrot.lane.b32.xlu0 %v3151, 32
    %v3312 = vpop.permute.xlu0 %3311
    %3313 = vrot.lane.b32.xlu0 %v3152, 32
    %v3314 = vpop.permute.xlu0 %3313
    %3315 = vrot.lane.b32.xlu0 %v3153, 32
    %v3316 = vpop.permute.xlu0 %3315
    %3317 = vrot.lane.b32.xlu0 %v3154, 32
    %v3318 = vpop.permute.xlu0 %3317
    %3319 = vrot.lane.b32.xlu0 %v3155, 32
    %v3320 = vpop.permute.xlu0 %3319
    %3321 = vrot.lane.b32.xlu0 %v3156, 32
    %v3322 = vpop.permute.xlu0 %3321
    %3323 = vrot.lane.b32.xlu0 %v3157, 32
    %v3324 = vpop.permute.xlu0 %3323
    %3325 = vrot.lane.b32.xlu0 %v3158, 32
    %v3326 = vpop.permute.xlu0 %3325
    %3327 = vrot.lane.b32.xlu0 %v3159, 32
    %v3328 = vpop.permute.xlu0 %3327
    %3329 = vrot.lane.b32.xlu0 %v3160, 32
    %v3330 = vpop.permute.xlu0 %3329
    %3331 = vrot.lane.b32.xlu0 %v3161, 32
    %v3332 = vpop.permute.xlu0 %3331
    %3333 = vrot.lane.b32.xlu0 %v3162, 32
    %v3334 = vpop.permute.xlu0 %3333
    %3335 = vrot.lane.b32.xlu0 %v3163, 32
    %v3336 = vpop.permute.xlu0 %3335
    %3337 = vrot.lane.b32.xlu0 %v3164, 32
    %v3338 = vpop.permute.xlu0 %3337
    %3339 = vrot.lane.b32.xlu0 %v3165, 32
    %v3340 = vpop.permute.xlu0 %3339
    %3341 = vrot.lane.b32.xlu0 %v3166, 32
    %v3342 = vpop.permute.xlu0 %3341
    %3343 = vrot.lane.b32.xlu0 %v3167, 32
    %v3344 = vpop.permute.xlu0 %3343
    %3345 = vrot.lane.b32.xlu0 %v3168, 32
    %v3346 = vpop.permute.xlu0 %3345
    %3347 = vrot.lane.b32.xlu0 %v3169, 32
    %v3348 = vpop.permute.xlu0 %3347
    %3349 = vrot.lane.b32.xlu0 %v3170, 32
    %v3350 = vpop.permute.xlu0 %3349
    %3351 = vrot.lane.b32.xlu0 %v3171, 32
    %v3352 = vpop.permute.xlu0 %3351
    %3353 = vrot.lane.b32.xlu0 %v3172, 32
    %v3354 = vpop.permute.xlu0 %3353
    %3355 = vrot.lane.b32.xlu0 %v3173, 32
    %v3356 = vpop.permute.xlu0 %3355
    %3357 = vrot.lane.b32.xlu0 %v3174, 32
    %v3358 = vpop.permute.xlu0 %3357
    %3359 = vrot.lane.b32.xlu0 %v3175, 32
    %v3360 = vpop.permute.xlu0 %3359
    %3361 = vrot.lane.b32.xlu0 %v3176, 32
    %v3362 = vpop.permute.xlu0 %3361
    %3363 = vrot.lane.b32.xlu0 %v3177, 32
    %v3364 = vpop.permute.xlu0 %3363
    %3365 = vrot.lane.b32.xlu0 %v3178, 32
    %v3366 = vpop.permute.xlu0 %3365
    %3367 = vrot.lane.b32.xlu0 %v3179, 32
    %v3368 = vpop.permute.xlu0 %3367
    %3369 = vrot.lane.b32.xlu0 %v3180, 32
    %v3370 = vpop.permute.xlu0 %3369
    %3371 = vrot.lane.b32.xlu0 %v3181, 32
    %v3372 = vpop.permute.xlu0 %3371
    %3373 = vrot.lane.b32.xlu0 %v3182, 32
    %v3374 = vpop.permute.xlu0 %3373
    %vm3439 = vcmask 294144
    %3440 = vst.msk [vmem:[#allocation3] sm:$0xff] %vm3439, %v3248
    %3441 = vst.msk [vmem:[#allocation3 + $0x8] sm:$0xff] %vm3439, %v3250
    %3442 = vst.msk [vmem:[#allocation3 + $0x10] sm:$0xff] %vm3439, %v3252
    %3443 = vst.msk [vmem:[#allocation3 + $0x18] sm:$0xff] %vm3439, %v3254
    %3444 = vst.msk [vmem:[#allocation3 + $0x20] sm:$0xff] %vm3439, %v3256
    %3445 = vst.msk [vmem:[#allocation3 + $0x28] sm:$0xff] %vm3439, %v3258
    %3446 = vst.msk [vmem:[#allocation3 + $0x30] sm:$0xff] %vm3439, %v3260
    %3447 = vst.msk [vmem:[#allocation3 + $0x38] sm:$0xff] %vm3439, %v3262
    %3448 = vst.msk [vmem:[#allocation3 + $0x40] sm:$0xff] %vm3439, %v3264
    %3449 = vst.msk [vmem:[#allocation3 + $0x48] sm:$0xff] %vm3439, %v3266
    %3450 = vst.msk [vmem:[#allocation3 + $0x50] sm:$0xff] %vm3439, %v3268
    %3451 = vst.msk [vmem:[#allocation3 + $0x58] sm:$0xff] %vm3439, %v3270
    %3452 = vst.msk [vmem:[#allocation3 + $0x60] sm:$0xff] %vm3439, %v3272
    %3453 = vst.msk [vmem:[#allocation3 + $0x68] sm:$0xff] %vm3439, %v3274
    %3454 = vst.msk [vmem:[#allocation3 + $0x70] sm:$0xff] %vm3439, %v3276
    %3455 = vst.msk [vmem:[#allocation3 + $0x78] sm:$0xff] %vm3439, %v3278
    %3456 = vst.msk [vmem:[#allocation3 + $0x80] sm:$0xff] %vm3439, %v3280
    %3457 = vst.msk [vmem:[#allocation3 + $0x88] sm:$0xff] %vm3439, %v3282
    %3458 = vst.msk [vmem:[#allocation3 + $0x90] sm:$0xff] %vm3439, %v3284
    %3459 = vst.msk [vmem:[#allocation3 + $0x98] sm:$0xff] %vm3439, %v3286
    %3460 = vst.msk [vmem:[#allocation3 + $0xa0] sm:$0xff] %vm3439, %v3288
    %3461 = vst.msk [vmem:[#allocation3 + $0xa8] sm:$0xff] %vm3439, %v3290
    %3462 = vst.msk [vmem:[#allocation3 + $0xb0] sm:$0xff] %vm3439, %v3292
    %3463 = vst.msk [vmem:[#allocation3 + $0xb8] sm:$0xff] %vm3439, %v3294
    %3464 = vst.msk [vmem:[#allocation3 + $0xc0] sm:$0xff] %vm3439, %v3296
    %3465 = vst.msk [vmem:[#allocation3 + $0xc8] sm:$0xff] %vm3439, %v3298
    %3466 = vst.msk [vmem:[#allocation3 + $0xd0] sm:$0xff] %vm3439, %v3300
    %3467 = vst.msk [vmem:[#allocation3 + $0xd8] sm:$0xff] %vm3439, %v3302
    %3468 = vst.msk [vmem:[#allocation3 + $0xe0] sm:$0xff] %vm3439, %v3304
    %3469 = vst.msk [vmem:[#allocation3 + $0xe8] sm:$0xff] %vm3439, %v3306
    %3470 = vst.msk [vmem:[#allocation3 + $0xf0] sm:$0xff] %vm3439, %v3308
    %3471 = vst.msk [vmem:[#allocation3 + $0xf8] sm:$0xff] %vm3439, %v3310
    %3472 = vst.msk [vmem:[#allocation3 + $0x100] sm:$0xff] %vm3439, %v3312
    %3473 = vst.msk [vmem:[#allocation3 + $0x108] sm:$0xff] %vm3439, %v3314
    %3474 = vst.msk [vmem:[#allocation3 + $0x110] sm:$0xff] %vm3439, %v3316
    %3475 = vst.msk [vmem:[#allocation3 + $0x118] sm:$0xff] %vm3439, %v3318
    %3476 = vst.msk [vmem:[#allocation3 + $0x120] sm:$0xff] %vm3439, %v3320
    %3477 = vst.msk [vmem:[#allocation3 + $0x128] sm:$0xff] %vm3439, %v3322
    %3478 = vst.msk [vmem:[#allocation3 + $0x130] sm:$0xff] %vm3439, %v3324
    %3479 = vst.msk [vmem:[#allocation3 + $0x138] sm:$0xff] %vm3439, %v3326
    %3480 = vst.msk [vmem:[#allocation3 + $0x140] sm:$0xff] %vm3439, %v3328
    %3481 = vst.msk [vmem:[#allocation3 + $0x148] sm:$0xff] %vm3439, %v3330
    %3482 = vst.msk [vmem:[#allocation3 + $0x150] sm:$0xff] %vm3439, %v3332
    %3483 = vst.msk [vmem:[#allocation3 + $0x158] sm:$0xff] %vm3439, %v3334
    %3484 = vst.msk [vmem:[#allocation3 + $0x160] sm:$0xff] %vm3439, %v3336
    %3485 = vst.msk [vmem:[#allocation3 + $0x168] sm:$0xff] %vm3439, %v3338
    %3486 = vst.msk [vmem:[#allocation3 + $0x170] sm:$0xff] %vm3439, %v3340
    %3487 = vst.msk [vmem:[#allocation3 + $0x178] sm:$0xff] %vm3439, %v3342
    %3488 = vst.msk [vmem:[#allocation3 + $0x180] sm:$0xff] %vm3439, %v3344
    %3489 = vst.msk [vmem:[#allocation3 + $0x188] sm:$0xff] %vm3439, %v3346
    %3490 = vst.msk [vmem:[#allocation3 + $0x190] sm:$0xff] %vm3439, %v3348
    %3491 = vst.msk [vmem:[#allocation3 + $0x198] sm:$0xff] %vm3439, %v3350
    %3492 = vst.msk [vmem:[#allocation3 + $0x1a0] sm:$0xff] %vm3439, %v3352
    %3493 = vst.msk [vmem:[#allocation3 + $0x1a8] sm:$0xff] %vm3439, %v3354
    %3494 = vst.msk [vmem:[#allocation3 + $0x1b0] sm:$0xff] %vm3439, %v3356
    %3495 = vst.msk [vmem:[#allocation3 + $0x1b8] sm:$0xff] %vm3439, %v3358
    %3496 = vst.msk [vmem:[#allocation3 + $0x1c0] sm:$0xff] %vm3439, %v3360
    %3497 = vst.msk [vmem:[#allocation3 + $0x1c8] sm:$0xff] %vm3439, %v3362
    %3498 = vst.msk [vmem:[#allocation3 + $0x1d0] sm:$0xff] %vm3439, %v3364
    %3499 = vst.msk [vmem:[#allocation3 + $0x1d8] sm:$0xff] %vm3439, %v3366
    %3500 = vst.msk [vmem:[#allocation3 + $0x1e0] sm:$0xff] %vm3439, %v3368
    %3501 = vst.msk [vmem:[#allocation3 + $0x1e8] sm:$0xff] %vm3439, %v3370
    %3502 = vst.msk [vmem:[#allocation3 + $0x1f0] sm:$0xff] %vm3439, %v3372
    %3503 = vst.msk [vmem:[#allocation3 + $0x1f8] sm:$0xff] %vm3439, %v3374
    %v3504 = vld [vmem:[#allocation3] sm:$0xff]
    %v3505 = vld [vmem:[#allocation3 + $0x8] sm:$0xff]
    %v3506 = vld [vmem:[#allocation3 + $0x10] sm:$0xff]
    %v3507 = vld [vmem:[#allocation3 + $0x18] sm:$0xff]
    %v3508 = vld [vmem:[#allocation3 + $0x20] sm:$0xff]
    %v3509 = vld [vmem:[#allocation3 + $0x28] sm:$0xff]
    %v3510 = vld [vmem:[#allocation3 + $0x30] sm:$0xff]
    %v3511 = vld [vmem:[#allocation3 + $0x38] sm:$0xff]
    %v3512 = vld [vmem:[#allocation3 + $0x40] sm:$0xff]
    %v3513 = vld [vmem:[#allocation3 + $0x48] sm:$0xff]
    %v3514 = vld [vmem:[#allocation3 + $0x50] sm:$0xff]
    %v3515 = vld [vmem:[#allocation3 + $0x58] sm:$0xff]
    %v3516 = vld [vmem:[#allocation3 + $0x60] sm:$0xff]
    %v3517 = vld [vmem:[#allocation3 + $0x68] sm:$0xff]
    %v3518 = vld [vmem:[#allocation3 + $0x70] sm:$0xff]
    %v3519 = vld [vmem:[#allocation3 + $0x78] sm:$0xff]
    %v3520 = vld [vmem:[#allocation3 + $0x80] sm:$0xff]
    %v3521 = vld [vmem:[#allocation3 + $0x88] sm:$0xff]
    %v3522 = vld [vmem:[#allocation3 + $0x90] sm:$0xff]
    %v3523 = vld [vmem:[#allocation3 + $0x98] sm:$0xff]
    %v3524 = vld [vmem:[#allocation3 + $0xa0] sm:$0xff]
    %v3525 = vld [vmem:[#allocation3 + $0xa8] sm:$0xff]
    %v3526 = vld [vmem:[#allocation3 + $0xb0] sm:$0xff]
    %v3527 = vld [vmem:[#allocation3 + $0xb8] sm:$0xff]
    %v3528 = vld [vmem:[#allocation3 + $0xc0] sm:$0xff]
    %v3529 = vld [vmem:[#allocation3 + $0xc8] sm:$0xff]
    %v3530 = vld [vmem:[#allocation3 + $0xd0] sm:$0xff]
    %v3531 = vld [vmem:[#allocation3 + $0xd8] sm:$0xff]
    %v3532 = vld [vmem:[#allocation3 + $0xe0] sm:$0xff]
    %v3533 = vld [vmem:[#allocation3 + $0xe8] sm:$0xff]
    %v3534 = vld [vmem:[#allocation3 + $0xf0] sm:$0xff]
    %v3535 = vld [vmem:[#allocation3 + $0xf8] sm:$0xff]
    %v3536 = vld [vmem:[#allocation3 + $0x100] sm:$0xff]
    %v3537 = vld [vmem:[#allocation3 + $0x108] sm:$0xff]
    %v3538 = vld [vmem:[#allocation3 + $0x110] sm:$0xff]
    %v3539 = vld [vmem:[#allocation3 + $0x118] sm:$0xff]
    %v3540 = vld [vmem:[#allocation3 + $0x120] sm:$0xff]
    %v3541 = vld [vmem:[#allocation3 + $0x128] sm:$0xff]
    %v3542 = vld [vmem:[#allocation3 + $0x130] sm:$0xff]
    %v3543 = vld [vmem:[#allocation3 + $0x138] sm:$0xff]
    %v3544 = vld [vmem:[#allocation3 + $0x140] sm:$0xff]
    %v3545 = vld [vmem:[#allocation3 + $0x148] sm:$0xff]
    %v3546 = vld [vmem:[#allocation3 + $0x150] sm:$0xff]
    %v3547 = vld [vmem:[#allocation3 + $0x158] sm:$0xff]
    %v3548 = vld [vmem:[#allocation3 + $0x160] sm:$0xff]
    %v3549 = vld [vmem:[#allocation3 + $0x168] sm:$0xff]
    %v3550 = vld [vmem:[#allocation3 + $0x170] sm:$0xff]
    %v3551 = vld [vmem:[#allocation3 + $0x178] sm:$0xff]
    %v3552 = vld [vmem:[#allocation3 + $0x180] sm:$0xff]
    %v3553 = vld [vmem:[#allocation3 + $0x188] sm:$0xff]
    %v3554 = vld [vmem:[#allocation3 + $0x190] sm:$0xff]
    %v3555 = vld [vmem:[#allocation3 + $0x198] sm:$0xff]
    %v3556 = vld [vmem:[#allocation3 + $0x1a0] sm:$0xff]
    %v3557 = vld [vmem:[#allocation3 + $0x1a8] sm:$0xff]
    %v3558 = vld [vmem:[#allocation3 + $0x1b0] sm:$0xff]
    %v3559 = vld [vmem:[#allocation3 + $0x1b8] sm:$0xff]
    %v3560 = vld [vmem:[#allocation3 + $0x1c0] sm:$0xff]
    %v3561 = vld [vmem:[#allocation3 + $0x1c8] sm:$0xff]
    %v3562 = vld [vmem:[#allocation3 + $0x1d0] sm:$0xff]
    %v3563 = vld [vmem:[#allocation3 + $0x1d8] sm:$0xff]
    %v3564 = vld [vmem:[#allocation3 + $0x1e0] sm:$0xff]
    %v3565 = vld [vmem:[#allocation3 + $0x1e8] sm:$0xff]
    %v3566 = vld [vmem:[#allocation3 + $0x1f0] sm:$0xff]
    %v3567 = vld [vmem:[#allocation3 + $0x1f8] sm:$0xff]
    %v3568 = vld [vmem:[%s1] sm:$0xff]
    %v3569 = vld [vmem:[%s1 + $0x8] sm:$0xff]
    %v3570 = vld [vmem:[%s1 + $0x10] sm:$0xff]
    %v3571 = vld [vmem:[%s1 + $0x18] sm:$0xff]
    %v3572 = vld [vmem:[%s1 + $0x20] sm:$0xff]
    %v3573 = vld [vmem:[%s1 + $0x28] sm:$0xff]
    %v3574 = vld [vmem:[%s1 + $0x30] sm:$0xff]
    %v3575 = vld [vmem:[%s1 + $0x38] sm:$0xff]
    %v3576 = vld [vmem:[%s1 + $0x40] sm:$0xff]
    %v3577 = vld [vmem:[%s1 + $0x48] sm:$0xff]
    %v3578 = vld [vmem:[%s1 + $0x50] sm:$0xff]
    %v3579 = vld [vmem:[%s1 + $0x58] sm:$0xff]
    %v3580 = vld [vmem:[%s1 + $0x60] sm:$0xff]
    %v3581 = vld [vmem:[%s1 + $0x68] sm:$0xff]
    %v3582 = vld [vmem:[%s1 + $0x70] sm:$0xff]
    %v3583 = vld [vmem:[%s1 + $0x78] sm:$0xff]
    %vm3584 = vcmask 293888
    %v3586 = vsel %vm3584, %v3568, 0
    %v3589 = vsel %vm3584, %v3569, 0
    %v3592 = vsel %vm3584, %v3570, 0
    %v3595 = vsel %vm3584, %v3571, 0
    %v3598 = vsel %vm3584, %v3572, 0
    %v3601 = vsel %vm3584, %v3573, 0
    %v3604 = vsel %vm3584, %v3574, 0
    %v3607 = vsel %vm3584, %v3575, 0
    %v3610 = vsel %vm3584, %v3576, 0
    %v3613 = vsel %vm3584, %v3577, 0
    %v3616 = vsel %vm3584, %v3578, 0
    %v3619 = vsel %vm3584, %v3579, 0
    %v3622 = vsel %vm3584, %v3580, 0
    %v3625 = vsel %vm3584, %v3581, 0
    %v3628 = vsel %vm3584, %v3582, 0
    %v3631 = vsel %vm3584, %v3583, 0
    %v3634 = vsel %vm3584, %v3504, 0
    %v3637 = vsel %vm3584, %v3505, 0
    %v3640 = vsel %vm3584, %v3506, 0
    %v3643 = vsel %vm3584, %v3507, 0
    %v3646 = vsel %vm3584, %v3508, 0
    %v3649 = vsel %vm3584, %v3509, 0
    %v3652 = vsel %vm3584, %v3510, 0
    %v3655 = vsel %vm3584, %v3511, 0
    %v3658 = vsel %vm3584, %v3512, 0
    %v3661 = vsel %vm3584, %v3513, 0
    %v3664 = vsel %vm3584, %v3514, 0
    %v3667 = vsel %vm3584, %v3515, 0
    %v3670 = vsel %vm3584, %v3516, 0
    %v3673 = vsel %vm3584, %v3517, 0
    %v3676 = vsel %vm3584, %v3518, 0
    %v3679 = vsel %vm3584, %v3519, 0
    %v3682 = vsel %vm3584, %v3520, 0
    %v3685 = vsel %vm3584, %v3521, 0
    %v3688 = vsel %vm3584, %v3522, 0
    %v3691 = vsel %vm3584, %v3523, 0
    %v3694 = vsel %vm3584, %v3524, 0
    %v3697 = vsel %vm3584, %v3525, 0
    %v3700 = vsel %vm3584, %v3526, 0
    %v3703 = vsel %vm3584, %v3527, 0
    %v3706 = vsel %vm3584, %v3528, 0
    %v3709 = vsel %vm3584, %v3529, 0
    %v3712 = vsel %vm3584, %v3530, 0
    %v3715 = vsel %vm3584, %v3531, 0
    %v3718 = vsel %vm3584, %v3532, 0
    %v3721 = vsel %vm3584, %v3533, 0
    %v3724 = vsel %vm3584, %v3534, 0
    %v3727 = vsel %vm3584, %v3535, 0
    %v3730 = vsel %vm3584, %v3536, 0
    %v3733 = vsel %vm3584, %v3537, 0
    %v3736 = vsel %vm3584, %v3538, 0
    %v3739 = vsel %vm3584, %v3539, 0
    %v3742 = vsel %vm3584, %v3540, 0
    %v3745 = vsel %vm3584, %v3541, 0
    %v3748 = vsel %vm3584, %v3542, 0
    %v3751 = vsel %vm3584, %v3543, 0
    %v3754 = vsel %vm3584, %v3544, 0
    %v3757 = vsel %vm3584, %v3545, 0
    %v3760 = vsel %vm3584, %v3546, 0
    %v3763 = vsel %vm3584, %v3547, 0
    %v3766 = vsel %vm3584, %v3548, 0
    %v3769 = vsel %vm3584, %v3549, 0
    %v3772 = vsel %vm3584, %v3550, 0
    %v3775 = vsel %vm3584, %v3551, 0
    %v3778 = vsel %vm3584, %v3552, 0
    %v3781 = vsel %vm3584, %v3553, 0
    %v3784 = vsel %vm3584, %v3554, 0
    %v3787 = vsel %vm3584, %v3555, 0
    %v3790 = vsel %vm3584, %v3556, 0
    %v3793 = vsel %vm3584, %v3557, 0
    %v3796 = vsel %vm3584, %v3558, 0
    %v3799 = vsel %vm3584, %v3559, 0
    %v3802 = vsel %vm3584, %v3560, 0
    %v3805 = vsel %vm3584, %v3561, 0
    %v3808 = vsel %vm3584, %v3562, 0
    %v3811 = vsel %vm3584, %v3563, 0
    %v3814 = vsel %vm3584, %v3564, 0
    %v3817 = vsel %vm3584, %v3565, 0
    %v3820 = vsel %vm3584, %v3566, 0
    %v3823 = vsel %vm3584, %v3567, 0
    %3825 = vmatprep.subr.mxu0 0.0
    %v3826 = vand.u32 %v3679, 4294901760
    %3827 = vmatpush1.xpose.msra.mxu0 %v3826
    %3828 = vmatprep.subr.mxu0 0.0
    %v3829 = vand.u32 %v3676, 4294901760
    %3830 = vmatpush1.xpose.msra.mxu0 %v3829
    %3831 = vmatprep.subr.mxu0 0.0
    %v3832 = vand.u32 %v3673, 4294901760
    %3833 = vmatpush1.xpose.msra.mxu0 %v3832
    %3834 = vmatprep.subr.mxu0 0.0
    %v3835 = vand.u32 %v3670, 4294901760
    %3836 = vmatpush1.xpose.msra.mxu0 %v3835
    %3837 = vmatprep.subr.mxu0 0.0
    %v3838 = vand.u32 %v3667, 4294901760
    %3839 = vmatpush1.xpose.msra.mxu0 %v3838
    %3840 = vmatprep.subr.mxu0 0.0
    %v3841 = vand.u32 %v3664, 4294901760
    %3842 = vmatpush1.xpose.msra.mxu0 %v3841
    %3843 = vmatprep.subr.mxu0 0.0
    %v3844 = vand.u32 %v3661, 4294901760
    %3845 = vmatpush1.xpose.msra.mxu0 %v3844
    %3846 = vmatprep.subr.mxu0 0.0
    %v3847 = vand.u32 %v3658, 4294901760
    %3848 = vmatpush1.xpose.msra.mxu0 %v3847
    %3849 = vmatprep.subr.mxu0 0.0
    %v3850 = vand.u32 %v3655, 4294901760
    %3851 = vmatpush1.xpose.msra.mxu0 %v3850
    %3852 = vmatprep.subr.mxu0 0.0
    %v3853 = vand.u32 %v3652, 4294901760
    %3854 = vmatpush1.xpose.msra.mxu0 %v3853
    %3855 = vmatprep.subr.mxu0 0.0
    %v3856 = vand.u32 %v3649, 4294901760
    %3857 = vmatpush1.xpose.msra.mxu0 %v3856
    %3858 = vmatprep.subr.mxu0 0.0
    %v3859 = vand.u32 %v3646, 4294901760
    %3860 = vmatpush1.xpose.msra.mxu0 %v3859
    %3861 = vmatprep.subr.mxu0 0.0
    %v3862 = vand.u32 %v3643, 4294901760
    %3863 = vmatpush1.xpose.msra.mxu0 %v3862
    %3864 = vmatprep.subr.mxu0 0.0
    %v3865 = vand.u32 %v3640, 4294901760
    %3866 = vmatpush1.xpose.msra.mxu0 %v3865
    %3867 = vmatprep.subr.mxu0 0.0
    %v3868 = vand.u32 %v3637, 4294901760
    %3869 = vmatpush1.xpose.msra.mxu0 %v3868
    %3870 = vmatprep.subr.mxu0 0.0
    %v3871 = vand.u32 %v3634, 4294901760
    %3872 = vmatpush1.xpose.msra.mxu0 %v3871
    %3873 = vmatprep.subr.mxu0 0.0
    %v3874 = vand.u32 %v3727, 4294901760
    %3875 = vmatpush2.xpose.msra.mxu0 %v3874
    %3876 = vmatprep.subr.mxu0 0.0
    %v3877 = vand.u32 %v3724, 4294901760
    %3878 = vmatpush2.xpose.msra.mxu0 %v3877
    %3879 = vmatprep.subr.mxu0 0.0
    %v3880 = vand.u32 %v3721, 4294901760
    %3881 = vmatpush2.xpose.msra.mxu0 %v3880
    %3882 = vmatprep.subr.mxu0 0.0
    %v3883 = vand.u32 %v3718, 4294901760
    %3884 = vmatpush2.xpose.msra.mxu0 %v3883
    %3885 = vmatprep.subr.mxu0 0.0
    %v3886 = vand.u32 %v3715, 4294901760
    %3887 = vmatpush2.xpose.msra.mxu0 %v3886
    %3888 = vmatprep.subr.mxu0 0.0
    %v3889 = vand.u32 %v3712, 4294901760
    %3890 = vmatpush2.xpose.msra.mxu0 %v3889
    %3891 = vmatprep.subr.mxu0 0.0
    %v3892 = vand.u32 %v3709, 4294901760
    %3893 = vmatpush2.xpose.msra.mxu0 %v3892
    %3894 = vmatprep.subr.mxu0 0.0
    %v3895 = vand.u32 %v3706, 4294901760
    %3896 = vmatpush2.xpose.msra.mxu0 %v3895
    %3897 = vmatprep.subr.mxu0 0.0
    %v3898 = vand.u32 %v3703, 4294901760
    %3899 = vmatpush2.xpose.msra.mxu0 %v3898
    %3900 = vmatprep.subr.mxu0 0.0
    %v3901 = vand.u32 %v3700, 4294901760
    %3902 = vmatpush2.xpose.msra.mxu0 %v3901
    %3903 = vmatprep.subr.mxu0 0.0
    %v3904 = vand.u32 %v3697, 4294901760
    %3905 = vmatpush2.xpose.msra.mxu0 %v3904
    %3906 = vmatprep.subr.mxu0 0.0
    %v3907 = vand.u32 %v3694, 4294901760
    %3908 = vmatpush2.xpose.msra.mxu0 %v3907
    %3909 = vmatprep.subr.mxu0 0.0
    %v3910 = vand.u32 %v3691, 4294901760
    %3911 = vmatpush2.xpose.msra.mxu0 %v3910
    %3912 = vmatprep.subr.mxu0 0.0
    %v3913 = vand.u32 %v3688, 4294901760
    %3914 = vmatpush2.xpose.msra.mxu0 %v3913
    %3915 = vmatprep.subr.mxu0 0.0
    %v3916 = vand.u32 %v3685, 4294901760
    %3917 = vmatpush2.xpose.msra.mxu0 %v3916
    %3918 = vmatprep.subr.mxu0 0.0
    %v3919 = vand.u32 %v3682, 4294901760
    %3920 = vmatpush2.xpose.msra.mxu0 %v3919
    %3921 = vmatprep.mubr.f32.mxu0 0.0
    %v3922 = vand.u32 %v3586, 4294901760
    %v3923 = vsub.f32 %v3586, %v3922
    %v3924 = vand.u32 %v3923, 4294901760
    %v3925 = vsub.f32 %v3923, %v3924
    %v3926 = vand.u32 %v3925, 4294901760
    %3927 = vmatmul.mubr.f32.gmra.mxu0 %v3926
    %v3928 = vpop.f32.mrf.mxu0
    %v3929 = vadd.f32 0.0, %v3928
    %v3930 = vpop.f32.mrf.mxu0
    %v3931 = vadd.f32 0.0, %v3930
    %3932 = vmatprep.mubr.f32.mxu0 0.0
    %v3933 = vand.u32 %v3589, 4294901760
    %v3934 = vsub.f32 %v3589, %v3933
    %v3935 = vand.u32 %v3934, 4294901760
    %v3936 = vsub.f32 %v3934, %v3935
    %v3937 = vand.u32 %v3936, 4294901760
    %3938 = vmatmul.mubr.f32.gmra.mxu0 %v3937
    %v3939 = vpop.f32.mrf.mxu0
    %v3940 = vadd.f32 0.0, %v3939
    %v3941 = vpop.f32.mrf.mxu0
    %v3942 = vadd.f32 0.0, %v3941
    %3943 = vmatprep.mubr.f32.mxu0 0.0
    %v3944 = vand.u32 %v3592, 4294901760
    %v3945 = vsub.f32 %v3592, %v3944
    %v3946 = vand.u32 %v3945, 4294901760
    %v3947 = vsub.f32 %v3945, %v3946
    %v3948 = vand.u32 %v3947, 4294901760
    %3949 = vmatmul.mubr.f32.gmra.mxu0 %v3948
    %v3950 = vpop.f32.mrf.mxu0
    %v3951 = vadd.f32 0.0, %v3950
    %v3952 = vpop.f32.mrf.mxu0
    %v3953 = vadd.f32 0.0, %v3952
    %3954 = vmatprep.mubr.f32.mxu0 0.0
    %v3955 = vand.u32 %v3595, 4294901760
    %v3956 = vsub.f32 %v3595, %v3955
    %v3957 = vand.u32 %v3956, 4294901760
    %v3958 = vsub.f32 %v3956, %v3957
    %v3959 = vand.u32 %v3958, 4294901760
    %3960 = vmatmul.mubr.f32.gmra.mxu0 %v3959
    %v3961 = vpop.f32.mrf.mxu0
    %v3962 = vadd.f32 0.0, %v3961
    %v3963 = vpop.f32.mrf.mxu0
    %v3964 = vadd.f32 0.0, %v3963
    %3965 = vmatprep.mubr.f32.mxu0 0.0
    %v3966 = vand.u32 %v3598, 4294901760
    %v3967 = vsub.f32 %v3598, %v3966
    %v3968 = vand.u32 %v3967, 4294901760
    %v3969 = vsub.f32 %v3967, %v3968
    %v3970 = vand.u32 %v3969, 4294901760
    %3971 = vmatmul.mubr.f32.gmra.mxu0 %v3970
    %v3972 = vpop.f32.mrf.mxu0
    %v3973 = vadd.f32 0.0, %v3972
    %v3974 = vpop.f32.mrf.mxu0
    %v3975 = vadd.f32 0.0, %v3974
    %3976 = vmatprep.mubr.f32.mxu0 0.0
    %v3977 = vand.u32 %v3601, 4294901760
    %v3978 = vsub.f32 %v3601, %v3977
    %v3979 = vand.u32 %v3978, 4294901760
    %v3980 = vsub.f32 %v3978, %v3979
    %v3981 = vand.u32 %v3980, 4294901760
    %3982 = vmatmul.mubr.f32.gmra.mxu0 %v3981
    %v3983 = vpop.f32.mrf.mxu0
    %v3984 = vadd.f32 0.0, %v3983
    %v3985 = vpop.f32.mrf.mxu0
    %v3986 = vadd.f32 0.0, %v3985
    %3987 = vmatprep.mubr.f32.mxu0 0.0
    %v3988 = vand.u32 %v3604, 4294901760
    %v3989 = vsub.f32 %v3604, %v3988
    %v3990 = vand.u32 %v3989, 4294901760
    %v3991 = vsub.f32 %v3989, %v3990
    %v3992 = vand.u32 %v3991, 4294901760
    %3993 = vmatmul.mubr.f32.gmra.mxu0 %v3992
    %v3994 = vpop.f32.mrf.mxu0
    %v3995 = vadd.f32 0.0, %v3994
    %v3996 = vpop.f32.mrf.mxu0
    %v3997 = vadd.f32 0.0, %v3996
    %3998 = vmatprep.mubr.f32.mxu0 0.0
    %v3999 = vand.u32 %v3607, 4294901760
    %v4000 = vsub.f32 %v3607, %v3999
    %v4001 = vand.u32 %v4000, 4294901760
    %v4002 = vsub.f32 %v4000, %v4001
    %v4003 = vand.u32 %v4002, 4294901760
    %4004 = vmatmul.mubr.f32.gmra.mxu0 %v4003
    %v4005 = vpop.f32.mrf.mxu0
    %v4006 = vadd.f32 0.0, %v4005
    %v4007 = vpop.f32.mrf.mxu0
    %v4008 = vadd.f32 0.0, %v4007
    %4009 = vmatprep.mubr.f32.mxu0 0.0
    %v4010 = vand.u32 %v3610, 4294901760
    %v4011 = vsub.f32 %v3610, %v4010
    %v4012 = vand.u32 %v4011, 4294901760
    %v4013 = vsub.f32 %v4011, %v4012
    %v4014 = vand.u32 %v4013, 4294901760
    %4015 = vmatmul.mubr.f32.gmra.mxu0 %v4014
    %v4016 = vpop.f32.mrf.mxu0
    %v4017 = vadd.f32 0.0, %v4016
    %v4018 = vpop.f32.mrf.mxu0
    %v4019 = vadd.f32 0.0, %v4018
    %4020 = vmatprep.mubr.f32.mxu0 0.0
    %v4021 = vand.u32 %v3613, 4294901760
    %v4022 = vsub.f32 %v3613, %v4021
    %v4023 = vand.u32 %v4022, 4294901760
    %v4024 = vsub.f32 %v4022, %v4023
    %v4025 = vand.u32 %v4024, 4294901760
    %4026 = vmatmul.mubr.f32.gmra.mxu0 %v4025
    %v4027 = vpop.f32.mrf.mxu0
    %v4028 = vadd.f32 0.0, %v4027
    %v4029 = vpop.f32.mrf.mxu0
    %v4030 = vadd.f32 0.0, %v4029
    %4031 = vmatprep.mubr.f32.mxu0 0.0
    %v4032 = vand.u32 %v3616, 4294901760
    %v4033 = vsub.f32 %v3616, %v4032
    %v4034 = vand.u32 %v4033, 4294901760
    %v4035 = vsub.f32 %v4033, %v4034
    %v4036 = vand.u32 %v4035, 4294901760
    %4037 = vmatmul.mubr.f32.gmra.mxu0 %v4036
    %v4038 = vpop.f32.mrf.mxu0
    %v4039 = vadd.f32 0.0, %v4038
    %v4040 = vpop.f32.mrf.mxu0
    %v4041 = vadd.f32 0.0, %v4040
    %4042 = vmatprep.mubr.f32.mxu0 0.0
    %v4043 = vand.u32 %v3619, 4294901760
    %v4044 = vsub.f32 %v3619, %v4043
    %v4045 = vand.u32 %v4044, 4294901760
    %v4046 = vsub.f32 %v4044, %v4045
    %v4047 = vand.u32 %v4046, 4294901760
    %4048 = vmatmul.mubr.f32.gmra.mxu0 %v4047
    %v4049 = vpop.f32.mrf.mxu0
    %v4050 = vadd.f32 0.0, %v4049
    %v4051 = vpop.f32.mrf.mxu0
    %v4052 = vadd.f32 0.0, %v4051
    %4053 = vmatprep.mubr.f32.mxu0 0.0
    %v4054 = vand.u32 %v3622, 4294901760
    %v4055 = vsub.f32 %v3622, %v4054
    %v4056 = vand.u32 %v4055, 4294901760
    %v4057 = vsub.f32 %v4055, %v4056
    %v4058 = vand.u32 %v4057, 4294901760
    %4059 = vmatmul.mubr.f32.gmra.mxu0 %v4058
    %v4060 = vpop.f32.mrf.mxu0
    %v4061 = vadd.f32 0.0, %v4060
    %v4062 = vpop.f32.mrf.mxu0
    %v4063 = vadd.f32 0.0, %v4062
    %4064 = vmatprep.mubr.f32.mxu0 0.0
    %v4065 = vand.u32 %v3625, 4294901760
    %v4066 = vsub.f32 %v3625, %v4065
    %v4067 = vand.u32 %v4066, 4294901760
    %v4068 = vsub.f32 %v4066, %v4067
    %v4069 = vand.u32 %v4068, 4294901760
    %4070 = vmatmul.mubr.f32.gmra.mxu0 %v4069
    %v4071 = vpop.f32.mrf.mxu0
    %v4072 = vadd.f32 0.0, %v4071
    %v4073 = vpop.f32.mrf.mxu0
    %v4074 = vadd.f32 0.0, %v4073
    %4075 = vmatprep.mubr.f32.mxu0 0.0
    %v4076 = vand.u32 %v3628, 4294901760
    %v4077 = vsub.f32 %v3628, %v4076
    %v4078 = vand.u32 %v4077, 4294901760
    %v4079 = vsub.f32 %v4077, %v4078
    %v4080 = vand.u32 %v4079, 4294901760
    %4081 = vmatmul.mubr.f32.gmra.mxu0 %v4080
    %v4082 = vpop.f32.mrf.mxu0
    %v4083 = vadd.f32 0.0, %v4082
    %v4084 = vpop.f32.mrf.mxu0
    %v4085 = vadd.f32 0.0, %v4084
    %4086 = vmatprep.mubr.f32.mxu0 0.0
    %v4087 = vand.u32 %v3631, 4294901760
    %v4088 = vsub.f32 %v3631, %v4087
    %v4089 = vand.u32 %v4088, 4294901760
    %v4090 = vsub.f32 %v4088, %v4089
    %v4091 = vand.u32 %v4090, 4294901760
    %4092 = vmatmul.mubr.f32.gmra.mxu0 %v4091
    %v4093 = vpop.f32.mrf.mxu0
    %v4094 = vadd.f32 0.0, %v4093
    %v4095 = vpop.f32.mrf.mxu0
    %v4096 = vadd.f32 0.0, %v4095
    %4097 = vdwg.mxu0
    %4098 = vmatprep.subr.mxu0 0.0
    %v4099 = vand.u32 %v3679, 4294901760
    %v4100 = vsub.f32 %v3679, %v4099
    %v4101 = vand.u32 %v4100, 4294901760
    %v4102 = vsub.f32 %v4100, %v4101
    %v4103 = vand.u32 %v4102, 4294901760
    %4104 = vmatpush1.xpose.msra.mxu0 %v4103
    %4105 = vmatprep.subr.mxu0 0.0
    %v4106 = vand.u32 %v3676, 4294901760
    %v4107 = vsub.f32 %v3676, %v4106
    %v4108 = vand.u32 %v4107, 4294901760
    %v4109 = vsub.f32 %v4107, %v4108
    %v4110 = vand.u32 %v4109, 4294901760
    %4111 = vmatpush1.xpose.msra.mxu0 %v4110
    %4112 = vmatprep.subr.mxu0 0.0
    %v4113 = vand.u32 %v3673, 4294901760
    %v4114 = vsub.f32 %v3673, %v4113
    %v4115 = vand.u32 %v4114, 4294901760
    %v4116 = vsub.f32 %v4114, %v4115
    %v4117 = vand.u32 %v4116, 4294901760
    %4118 = vmatpush1.xpose.msra.mxu0 %v4117
    %4119 = vmatprep.subr.mxu0 0.0
    %v4120 = vand.u32 %v3670, 4294901760
    %v4121 = vsub.f32 %v3670, %v4120
    %v4122 = vand.u32 %v4121, 4294901760
    %v4123 = vsub.f32 %v4121, %v4122
    %v4124 = vand.u32 %v4123, 4294901760
    %4125 = vmatpush1.xpose.msra.mxu0 %v4124
    %4126 = vmatprep.subr.mxu0 0.0
    %v4127 = vand.u32 %v3667, 4294901760
    %v4128 = vsub.f32 %v3667, %v4127
    %v4129 = vand.u32 %v4128, 4294901760
    %v4130 = vsub.f32 %v4128, %v4129
    %v4131 = vand.u32 %v4130, 4294901760
    %4132 = vmatpush1.xpose.msra.mxu0 %v4131
    %4133 = vmatprep.subr.mxu0 0.0
    %v4134 = vand.u32 %v3664, 4294901760
    %v4135 = vsub.f32 %v3664, %v4134
    %v4136 = vand.u32 %v4135, 4294901760
    %v4137 = vsub.f32 %v4135, %v4136
    %v4138 = vand.u32 %v4137, 4294901760
    %4139 = vmatpush1.xpose.msra.mxu0 %v4138
    %4140 = vmatprep.subr.mxu0 0.0
    %v4141 = vand.u32 %v3661, 4294901760
    %v4142 = vsub.f32 %v3661, %v4141
    %v4143 = vand.u32 %v4142, 4294901760
    %v4144 = vsub.f32 %v4142, %v4143
    %v4145 = vand.u32 %v4144, 4294901760
    %4146 = vmatpush1.xpose.msra.mxu0 %v4145
    %4147 = vmatprep.subr.mxu0 0.0
    %v4148 = vand.u32 %v3658, 4294901760
    %v4149 = vsub.f32 %v3658, %v4148
    %v4150 = vand.u32 %v4149, 4294901760
    %v4151 = vsub.f32 %v4149, %v4150
    %v4152 = vand.u32 %v4151, 4294901760
    %4153 = vmatpush1.xpose.msra.mxu0 %v4152
    %4154 = vmatprep.subr.mxu0 0.0
    %v4155 = vand.u32 %v3655, 4294901760
    %v4156 = vsub.f32 %v3655, %v4155
    %v4157 = vand.u32 %v4156, 4294901760
    %v4158 = vsub.f32 %v4156, %v4157
    %v4159 = vand.u32 %v4158, 4294901760
    %4160 = vmatpush1.xpose.msra.mxu0 %v4159
    %4161 = vmatprep.subr.mxu0 0.0
    %v4162 = vand.u32 %v3652, 4294901760
    %v4163 = vsub.f32 %v3652, %v4162
    %v4164 = vand.u32 %v4163, 4294901760
    %v4165 = vsub.f32 %v4163, %v4164
    %v4166 = vand.u32 %v4165, 4294901760
    %4167 = vmatpush1.xpose.msra.mxu0 %v4166
    %4168 = vmatprep.subr.mxu0 0.0
    %v4169 = vand.u32 %v3649, 4294901760
    %v4170 = vsub.f32 %v3649, %v4169
    %v4171 = vand.u32 %v4170, 4294901760
    %v4172 = vsub.f32 %v4170, %v4171
    %v4173 = vand.u32 %v4172, 4294901760
    %4174 = vmatpush1.xpose.msra.mxu0 %v4173
    %4175 = vmatprep.subr.mxu0 0.0
    %v4176 = vand.u32 %v3646, 4294901760
    %v4177 = vsub.f32 %v3646, %v4176
    %v4178 = vand.u32 %v4177, 4294901760
    %v4179 = vsub.f32 %v4177, %v4178
    %v4180 = vand.u32 %v4179, 4294901760
    %4181 = vmatpush1.xpose.msra.mxu0 %v4180
    %4182 = vmatprep.subr.mxu0 0.0
    %v4183 = vand.u32 %v3643, 4294901760
    %v4184 = vsub.f32 %v3643, %v4183
    %v4185 = vand.u32 %v4184, 4294901760
    %v4186 = vsub.f32 %v4184, %v4185
    %v4187 = vand.u32 %v4186, 4294901760
    %4188 = vmatpush1.xpose.msra.mxu0 %v4187
    %4189 = vmatprep.subr.mxu0 0.0
    %v4190 = vand.u32 %v3640, 4294901760
    %v4191 = vsub.f32 %v3640, %v4190
    %v4192 = vand.u32 %v4191, 4294901760
    %v4193 = vsub.f32 %v4191, %v4192
    %v4194 = vand.u32 %v4193, 4294901760
    %4195 = vmatpush1.xpose.msra.mxu0 %v4194
    %4196 = vmatprep.subr.mxu0 0.0
    %v4197 = vand.u32 %v3637, 4294901760
    %v4198 = vsub.f32 %v3637, %v4197
    %v4199 = vand.u32 %v4198, 4294901760
    %v4200 = vsub.f32 %v4198, %v4199
    %v4201 = vand.u32 %v4200, 4294901760
    %4202 = vmatpush1.xpose.msra.mxu0 %v4201
    %4203 = vmatprep.subr.mxu0 0.0
    %v4204 = vand.u32 %v3634, 4294901760
    %v4205 = vsub.f32 %v3634, %v4204
    %v4206 = vand.u32 %v4205, 4294901760
    %v4207 = vsub.f32 %v4205, %v4206
    %v4208 = vand.u32 %v4207, 4294901760
    %4209 = vmatpush1.xpose.msra.mxu0 %v4208
    %4210 = vmatprep.subr.mxu0 0.0
    %v4211 = vand.u32 %v3727, 4294901760
    %v4212 = vsub.f32 %v3727, %v4211
    %v4213 = vand.u32 %v4212, 4294901760
    %v4214 = vsub.f32 %v4212, %v4213
    %v4215 = vand.u32 %v4214, 4294901760
    %4216 = vmatpush2.xpose.msra.mxu0 %v4215
    %4217 = vmatprep.subr.mxu0 0.0
    %v4218 = vand.u32 %v3724, 4294901760
    %v4219 = vsub.f32 %v3724, %v4218
    %v4220 = vand.u32 %v4219, 4294901760
    %v4221 = vsub.f32 %v4219, %v4220
    %v4222 = vand.u32 %v4221, 4294901760
    %4223 = vmatpush2.xpose.msra.mxu0 %v4222
    %4224 = vmatprep.subr.mxu0 0.0
    %v4225 = vand.u32 %v3721, 4294901760
    %v4226 = vsub.f32 %v3721, %v4225
    %v4227 = vand.u32 %v4226, 4294901760
    %v4228 = vsub.f32 %v4226, %v4227
    %v4229 = vand.u32 %v4228, 4294901760
    %4230 = vmatpush2.xpose.msra.mxu0 %v4229
    %4231 = vmatprep.subr.mxu0 0.0
    %v4232 = vand.u32 %v3718, 4294901760
    %v4233 = vsub.f32 %v3718, %v4232
    %v4234 = vand.u32 %v4233, 4294901760
    %v4235 = vsub.f32 %v4233, %v4234
    %v4236 = vand.u32 %v4235, 4294901760
    %4237 = vmatpush2.xpose.msra.mxu0 %v4236
    %4238 = vmatprep.subr.mxu0 0.0
    %v4239 = vand.u32 %v3715, 4294901760
    %v4240 = vsub.f32 %v3715, %v4239
    %v4241 = vand.u32 %v4240, 4294901760
    %v4242 = vsub.f32 %v4240, %v4241
    %v4243 = vand.u32 %v4242, 4294901760
    %4244 = vmatpush2.xpose.msra.mxu0 %v4243
    %4245 = vmatprep.subr.mxu0 0.0
    %v4246 = vand.u32 %v3712, 4294901760
    %v4247 = vsub.f32 %v3712, %v4246
    %v4248 = vand.u32 %v4247, 4294901760
    %v4249 = vsub.f32 %v4247, %v4248
    %v4250 = vand.u32 %v4249, 4294901760
    %4251 = vmatpush2.xpose.msra.mxu0 %v4250
    %4252 = vmatprep.subr.mxu0 0.0
    %v4253 = vand.u32 %v3709, 4294901760
    %v4254 = vsub.f32 %v3709, %v4253
    %v4255 = vand.u32 %v4254, 4294901760
    %v4256 = vsub.f32 %v4254, %v4255
    %v4257 = vand.u32 %v4256, 4294901760
    %4258 = vmatpush2.xpose.msra.mxu0 %v4257
    %4259 = vmatprep.subr.mxu0 0.0
    %v4260 = vand.u32 %v3706, 4294901760
    %v4261 = vsub.f32 %v3706, %v4260
    %v4262 = vand.u32 %v4261, 4294901760
    %v4263 = vsub.f32 %v4261, %v4262
    %v4264 = vand.u32 %v4263, 4294901760
    %4265 = vmatpush2.xpose.msra.mxu0 %v4264
    %4266 = vmatprep.subr.mxu0 0.0
    %v4267 = vand.u32 %v3703, 4294901760
    %v4268 = vsub.f32 %v3703, %v4267
    %v4269 = vand.u32 %v4268, 4294901760
    %v4270 = vsub.f32 %v4268, %v4269
    %v4271 = vand.u32 %v4270, 4294901760
    %4272 = vmatpush2.xpose.msra.mxu0 %v4271
    %4273 = vmatprep.subr.mxu0 0.0
    %v4274 = vand.u32 %v3700, 4294901760
    %v4275 = vsub.f32 %v3700, %v4274
    %v4276 = vand.u32 %v4275, 4294901760
    %v4277 = vsub.f32 %v4275, %v4276
    %v4278 = vand.u32 %v4277, 4294901760
    %4279 = vmatpush2.xpose.msra.mxu0 %v4278
    %4280 = vmatprep.subr.mxu0 0.0
    %v4281 = vand.u32 %v3697, 4294901760
    %v4282 = vsub.f32 %v3697, %v4281
    %v4283 = vand.u32 %v4282, 4294901760
    %v4284 = vsub.f32 %v4282, %v4283
    %v4285 = vand.u32 %v4284, 4294901760
    %4286 = vmatpush2.xpose.msra.mxu0 %v4285
    %4287 = vmatprep.subr.mxu0 0.0
    %v4288 = vand.u32 %v3694, 4294901760
    %v4289 = vsub.f32 %v3694, %v4288
    %v4290 = vand.u32 %v4289, 4294901760
    %v4291 = vsub.f32 %v4289, %v4290
    %v4292 = vand.u32 %v4291, 4294901760
    %4293 = vmatpush2.xpose.msra.mxu0 %v4292
    %4294 = vmatprep.subr.mxu0 0.0
    %v4295 = vand.u32 %v3691, 4294901760
    %v4296 = vsub.f32 %v3691, %v4295
    %v4297 = vand.u32 %v4296, 4294901760
    %v4298 = vsub.f32 %v4296, %v4297
    %v4299 = vand.u32 %v4298, 4294901760
    %4300 = vmatpush2.xpose.msra.mxu0 %v4299
    %4301 = vmatprep.subr.mxu0 0.0
    %v4302 = vand.u32 %v3688, 4294901760
    %v4303 = vsub.f32 %v3688, %v4302
    %v4304 = vand.u32 %v4303, 4294901760
    %v4305 = vsub.f32 %v4303, %v4304
    %v4306 = vand.u32 %v4305, 4294901760
    %4307 = vmatpush2.xpose.msra.mxu0 %v4306
    %4308 = vmatprep.subr.mxu0 0.0
    %v4309 = vand.u32 %v3685, 4294901760
    %v4310 = vsub.f32 %v3685, %v4309
    %v4311 = vand.u32 %v4310, 4294901760
    %v4312 = vsub.f32 %v4310, %v4311
    %v4313 = vand.u32 %v4312, 4294901760
    %4314 = vmatpush2.xpose.msra.mxu0 %v4313
    %4315 = vmatprep.subr.mxu0 0.0
    %v4316 = vand.u32 %v3682, 4294901760
    %v4317 = vsub.f32 %v3682, %v4316
    %v4318 = vand.u32 %v4317, 4294901760
    %v4319 = vsub.f32 %v4317, %v4318
    %v4320 = vand.u32 %v4319, 4294901760
    %4321 = vmatpush2.xpose.msra.mxu0 %v4320
    %4322 = vmatprep.mubr.f32.mxu0 0.0
    %v4323 = vand.u32 %v3586, 4294901760
    %4324 = vmatmul.mubr.f32.gmra.mxu0 %v4323
    %v4325 = vpop.f32.mrf.mxu0
    %v4326 = vadd.f32 %v3929, %v4325
    %v4327 = vpop.f32.mrf.mxu0
    %v4328 = vadd.f32 %v3931, %v4327
    %4329 = vmatprep.mubr.f32.mxu0 0.0
    %v4330 = vand.u32 %v3589, 4294901760
    %4331 = vmatmul.mubr.f32.gmra.mxu0 %v4330
    %v4332 = vpop.f32.mrf.mxu0
    %v4333 = vadd.f32 %v3940, %v4332
    %v4334 = vpop.f32.mrf.mxu0
    %v4335 = vadd.f32 %v3942, %v4334
    %4336 = vmatprep.mubr.f32.mxu0 0.0
    %v4337 = vand.u32 %v3592, 4294901760
    %4338 = vmatmul.mubr.f32.gmra.mxu0 %v4337
    %v4339 = vpop.f32.mrf.mxu0
    %v4340 = vadd.f32 %v3951, %v4339
    %v4341 = vpop.f32.mrf.mxu0
    %v4342 = vadd.f32 %v3953, %v4341
    %4343 = vmatprep.mubr.f32.mxu0 0.0
    %v4344 = vand.u32 %v3595, 4294901760
    %4345 = vmatmul.mubr.f32.gmra.mxu0 %v4344
    %v4346 = vpop.f32.mrf.mxu0
    %v4347 = vadd.f32 %v3962, %v4346
    %v4348 = vpop.f32.mrf.mxu0
    %v4349 = vadd.f32 %v3964, %v4348
    %4350 = vmatprep.mubr.f32.mxu0 0.0
    %v4351 = vand.u32 %v3598, 4294901760
    %4352 = vmatmul.mubr.f32.gmra.mxu0 %v4351
    %v4353 = vpop.f32.mrf.mxu0
    %v4354 = vadd.f32 %v3973, %v4353
    %v4355 = vpop.f32.mrf.mxu0
    %v4356 = vadd.f32 %v3975, %v4355
    %4357 = vmatprep.mubr.f32.mxu0 0.0
    %v4358 = vand.u32 %v3601, 4294901760
    %4359 = vmatmul.mubr.f32.gmra.mxu0 %v4358
    %v4360 = vpop.f32.mrf.mxu0
    %v4361 = vadd.f32 %v3984, %v4360
    %v4362 = vpop.f32.mrf.mxu0
    %v4363 = vadd.f32 %v3986, %v4362
    %4364 = vmatprep.mubr.f32.mxu0 0.0
    %v4365 = vand.u32 %v3604, 4294901760
    %4366 = vmatmul.mubr.f32.gmra.mxu0 %v4365
    %v4367 = vpop.f32.mrf.mxu0
    %v4368 = vadd.f32 %v3995, %v4367
    %v4369 = vpop.f32.mrf.mxu0
    %v4370 = vadd.f32 %v3997, %v4369
    %4371 = vmatprep.mubr.f32.mxu0 0.0
    %v4372 = vand.u32 %v3607, 4294901760
    %4373 = vmatmul.mubr.f32.gmra.mxu0 %v4372
    %v4374 = vpop.f32.mrf.mxu0
    %v4375 = vadd.f32 %v4006, %v4374
    %v4376 = vpop.f32.mrf.mxu0
    %v4377 = vadd.f32 %v4008, %v4376
    %4378 = vmatprep.mubr.f32.mxu0 0.0
    %v4379 = vand.u32 %v3610, 4294901760
    %4380 = vmatmul.mubr.f32.gmra.mxu0 %v4379
    %v4381 = vpop.f32.mrf.mxu0
    %v4382 = vadd.f32 %v4017, %v4381
    %v4383 = vpop.f32.mrf.mxu0
    %v4384 = vadd.f32 %v4019, %v4383
    %4385 = vmatprep.mubr.f32.mxu0 0.0
    %v4386 = vand.u32 %v3613, 4294901760
    %4387 = vmatmul.mubr.f32.gmra.mxu0 %v4386
    %v4388 = vpop.f32.mrf.mxu0
    %v4389 = vadd.f32 %v4028, %v4388
    %v4390 = vpop.f32.mrf.mxu0
    %v4391 = vadd.f32 %v4030, %v4390
    %4392 = vmatprep.mubr.f32.mxu0 0.0
    %v4393 = vand.u32 %v3616, 4294901760
    %4394 = vmatmul.mubr.f32.gmra.mxu0 %v4393
    %v4395 = vpop.f32.mrf.mxu0
    %v4396 = vadd.f32 %v4039, %v4395
    %v4397 = vpop.f32.mrf.mxu0
    %v4398 = vadd.f32 %v4041, %v4397
    %4399 = vmatprep.mubr.f32.mxu0 0.0
    %v4400 = vand.u32 %v3619, 4294901760
    %4401 = vmatmul.mubr.f32.gmra.mxu0 %v4400
    %v4402 = vpop.f32.mrf.mxu0
    %v4403 = vadd.f32 %v4050, %v4402
    %v4404 = vpop.f32.mrf.mxu0
    %v4405 = vadd.f32 %v4052, %v4404
    %4406 = vmatprep.mubr.f32.mxu0 0.0
    %v4407 = vand.u32 %v3622, 4294901760
    %4408 = vmatmul.mubr.f32.gmra.mxu0 %v4407
    %v4409 = vpop.f32.mrf.mxu0
    %v4410 = vadd.f32 %v4061, %v4409
    %v4411 = vpop.f32.mrf.mxu0
    %v4412 = vadd.f32 %v4063, %v4411
    %4413 = vmatprep.mubr.f32.mxu0 0.0
    %v4414 = vand.u32 %v3625, 4294901760
    %4415 = vmatmul.mubr.f32.gmra.mxu0 %v4414
    %v4416 = vpop.f32.mrf.mxu0
    %v4417 = vadd.f32 %v4072, %v4416
    %v4418 = vpop.f32.mrf.mxu0
    %v4419 = vadd.f32 %v4074, %v4418
    %4420 = vmatprep.mubr.f32.mxu0 0.0
    %v4421 = vand.u32 %v3628, 4294901760
    %4422 = vmatmul.mubr.f32.gmra.mxu0 %v4421
    %v4423 = vpop.f32.mrf.mxu0
    %v4424 = vadd.f32 %v4083, %v4423
    %v4425 = vpop.f32.mrf.mxu0
    %v4426 = vadd.f32 %v4085, %v4425
    %4427 = vmatprep.mubr.f32.mxu0 0.0
    %v4428 = vand.u32 %v3631, 4294901760
    %4429 = vmatmul.mubr.f32.gmra.mxu0 %v4428
    %v4430 = vpop.f32.mrf.mxu0
    %v4431 = vadd.f32 %v4094, %v4430
    %v4432 = vpop.f32.mrf.mxu0
    %v4433 = vadd.f32 %v4096, %v4432
    %4434 = vdwg.mxu0
    %4435 = vmatprep.subr.mxu0 0.0
    %v4436 = vand.u32 %v3679, 4294901760
    %v4437 = vsub.f32 %v3679, %v4436
    %4438 = vmatpush1.xpose.msra.mxu0 %v4437
    %4439 = vmatprep.subr.mxu0 0.0
    %v4440 = vand.u32 %v3676, 4294901760
    %v4441 = vsub.f32 %v3676, %v4440
    %4442 = vmatpush1.xpose.msra.mxu0 %v4441
    %4443 = vmatprep.subr.mxu0 0.0
    %v4444 = vand.u32 %v3673, 4294901760
    %v4445 = vsub.f32 %v3673, %v4444
    %4446 = vmatpush1.xpose.msra.mxu0 %v4445
    %4447 = vmatprep.subr.mxu0 0.0
    %v4448 = vand.u32 %v3670, 4294901760
    %v4449 = vsub.f32 %v3670, %v4448
    %4450 = vmatpush1.xpose.msra.mxu0 %v4449
    %4451 = vmatprep.subr.mxu0 0.0
    %v4452 = vand.u32 %v3667, 4294901760
    %v4453 = vsub.f32 %v3667, %v4452
    %4454 = vmatpush1.xpose.msra.mxu0 %v4453
    %4455 = vmatprep.subr.mxu0 0.0
    %v4456 = vand.u32 %v3664, 4294901760
    %v4457 = vsub.f32 %v3664, %v4456
    %4458 = vmatpush1.xpose.msra.mxu0 %v4457
    %4459 = vmatprep.subr.mxu0 0.0
    %v4460 = vand.u32 %v3661, 4294901760
    %v4461 = vsub.f32 %v3661, %v4460
    %4462 = vmatpush1.xpose.msra.mxu0 %v4461
    %4463 = vmatprep.subr.mxu0 0.0
    %v4464 = vand.u32 %v3658, 4294901760
    %v4465 = vsub.f32 %v3658, %v4464
    %4466 = vmatpush1.xpose.msra.mxu0 %v4465
    %4467 = vmatprep.subr.mxu0 0.0
    %v4468 = vand.u32 %v3655, 4294901760
    %v4469 = vsub.f32 %v3655, %v4468
    %4470 = vmatpush1.xpose.msra.mxu0 %v4469
    %4471 = vmatprep.subr.mxu0 0.0
    %v4472 = vand.u32 %v3652, 4294901760
    %v4473 = vsub.f32 %v3652, %v4472
    %4474 = vmatpush1.xpose.msra.mxu0 %v4473
    %4475 = vmatprep.subr.mxu0 0.0
    %v4476 = vand.u32 %v3649, 4294901760
    %v4477 = vsub.f32 %v3649, %v4476
    %4478 = vmatpush1.xpose.msra.mxu0 %v4477
    %4479 = vmatprep.subr.mxu0 0.0
    %v4480 = vand.u32 %v3646, 4294901760
    %v4481 = vsub.f32 %v3646, %v4480
    %4482 = vmatpush1.xpose.msra.mxu0 %v4481
    %4483 = vmatprep.subr.mxu0 0.0
    %v4484 = vand.u32 %v3643, 4294901760
    %v4485 = vsub.f32 %v3643, %v4484
    %4486 = vmatpush1.xpose.msra.mxu0 %v4485
    %4487 = vmatprep.subr.mxu0 0.0
    %v4488 = vand.u32 %v3640, 4294901760
    %v4489 = vsub.f32 %v3640, %v4488
    %4490 = vmatpush1.xpose.msra.mxu0 %v4489
    %4491 = vmatprep.subr.mxu0 0.0
    %v4492 = vand.u32 %v3637, 4294901760
    %v4493 = vsub.f32 %v3637, %v4492
    %4494 = vmatpush1.xpose.msra.mxu0 %v4493
    %4495 = vmatprep.subr.mxu0 0.0
    %v4496 = vand.u32 %v3634, 4294901760
    %v4497 = vsub.f32 %v3634, %v4496
    %4498 = vmatpush1.xpose.msra.mxu0 %v4497
    %4499 = vmatprep.subr.mxu0 0.0
    %v4500 = vand.u32 %v3727, 4294901760
    %v4501 = vsub.f32 %v3727, %v4500
    %4502 = vmatpush2.xpose.msra.mxu0 %v4501
    %4503 = vmatprep.subr.mxu0 0.0
    %v4504 = vand.u32 %v3724, 4294901760
    %v4505 = vsub.f32 %v3724, %v4504
    %4506 = vmatpush2.xpose.msra.mxu0 %v4505
    %4507 = vmatprep.subr.mxu0 0.0
    %v4508 = vand.u32 %v3721, 4294901760
    %v4509 = vsub.f32 %v3721, %v4508
    %4510 = vmatpush2.xpose.msra.mxu0 %v4509
    %4511 = vmatprep.subr.mxu0 0.0
    %v4512 = vand.u32 %v3718, 4294901760
    %v4513 = vsub.f32 %v3718, %v4512
    %4514 = vmatpush2.xpose.msra.mxu0 %v4513
    %4515 = vmatprep.subr.mxu0 0.0
    %v4516 = vand.u32 %v3715, 4294901760
    %v4517 = vsub.f32 %v3715, %v4516
    %4518 = vmatpush2.xpose.msra.mxu0 %v4517
    %4519 = vmatprep.subr.mxu0 0.0
    %v4520 = vand.u32 %v3712, 4294901760
    %v4521 = vsub.f32 %v3712, %v4520
    %4522 = vmatpush2.xpose.msra.mxu0 %v4521
    %4523 = vmatprep.subr.mxu0 0.0
    %v4524 = vand.u32 %v3709, 4294901760
    %v4525 = vsub.f32 %v3709, %v4524
    %4526 = vmatpush2.xpose.msra.mxu0 %v4525
    %4527 = vmatprep.subr.mxu0 0.0
    %v4528 = vand.u32 %v3706, 4294901760
    %v4529 = vsub.f32 %v3706, %v4528
    %4530 = vmatpush2.xpose.msra.mxu0 %v4529
    %4531 = vmatprep.subr.mxu0 0.0
    %v4532 = vand.u32 %v3703, 4294901760
    %v4533 = vsub.f32 %v3703, %v4532
    %4534 = vmatpush2.xpose.msra.mxu0 %v4533
    %4535 = vmatprep.subr.mxu0 0.0
    %v4536 = vand.u32 %v3700, 4294901760
    %v4537 = vsub.f32 %v3700, %v4536
    %4538 = vmatpush2.xpose.msra.mxu0 %v4537
    %4539 = vmatprep.subr.mxu0 0.0
    %v4540 = vand.u32 %v3697, 4294901760
    %v4541 = vsub.f32 %v3697, %v4540
    %4542 = vmatpush2.xpose.msra.mxu0 %v4541
    %4543 = vmatprep.subr.mxu0 0.0
    %v4544 = vand.u32 %v3694, 4294901760
    %v4545 = vsub.f32 %v3694, %v4544
    %4546 = vmatpush2.xpose.msra.mxu0 %v4545
    %4547 = vmatprep.subr.mxu0 0.0
    %v4548 = vand.u32 %v3691, 4294901760
    %v4549 = vsub.f32 %v3691, %v4548
    %4550 = vmatpush2.xpose.msra.mxu0 %v4549
    %4551 = vmatprep.subr.mxu0 0.0
    %v4552 = vand.u32 %v3688, 4294901760
    %v4553 = vsub.f32 %v3688, %v4552
    %4554 = vmatpush2.xpose.msra.mxu0 %v4553
    %4555 = vmatprep.subr.mxu0 0.0
    %v4556 = vand.u32 %v3685, 4294901760
    %v4557 = vsub.f32 %v3685, %v4556
    %4558 = vmatpush2.xpose.msra.mxu0 %v4557
    %4559 = vmatprep.subr.mxu0 0.0
    %v4560 = vand.u32 %v3682, 4294901760
    %v4561 = vsub.f32 %v3682, %v4560
    %4562 = vmatpush2.xpose.msra.mxu0 %v4561
    %4563 = vmatprep.mubr.f32.mxu0 0.0
    %v4564 = vand.u32 %v3586, 4294901760
    %v4565 = vsub.f32 %v3586, %v4564
    %4566 = vmatmul.mubr.f32.gmra.mxu0 %v4565
    %v4567 = vpop.f32.mrf.mxu0
    %v4568 = vadd.f32 %v4326, %v4567
    %v4569 = vpop.f32.mrf.mxu0
    %v4570 = vadd.f32 %v4328, %v4569
    %4571 = vmatprep.mubr.f32.mxu0 0.0
    %v4572 = vand.u32 %v3589, 4294901760
    %v4573 = vsub.f32 %v3589, %v4572
    %4574 = vmatmul.mubr.f32.gmra.mxu0 %v4573
    %v4575 = vpop.f32.mrf.mxu0
    %v4576 = vadd.f32 %v4333, %v4575
    %v4577 = vpop.f32.mrf.mxu0
    %v4578 = vadd.f32 %v4335, %v4577
    %4579 = vmatprep.mubr.f32.mxu0 0.0
    %v4580 = vand.u32 %v3592, 4294901760
    %v4581 = vsub.f32 %v3592, %v4580
    %4582 = vmatmul.mubr.f32.gmra.mxu0 %v4581
    %v4583 = vpop.f32.mrf.mxu0
    %v4584 = vadd.f32 %v4340, %v4583
    %v4585 = vpop.f32.mrf.mxu0
    %v4586 = vadd.f32 %v4342, %v4585
    %4587 = vmatprep.mubr.f32.mxu0 0.0
    %v4588 = vand.u32 %v3595, 4294901760
    %v4589 = vsub.f32 %v3595, %v4588
    %4590 = vmatmul.mubr.f32.gmra.mxu0 %v4589
    %v4591 = vpop.f32.mrf.mxu0
    %v4592 = vadd.f32 %v4347, %v4591
    %v4593 = vpop.f32.mrf.mxu0
    %v4594 = vadd.f32 %v4349, %v4593
    %4595 = vmatprep.mubr.f32.mxu0 0.0
    %v4596 = vand.u32 %v3598, 4294901760
    %v4597 = vsub.f32 %v3598, %v4596
    %4598 = vmatmul.mubr.f32.gmra.mxu0 %v4597
    %v4599 = vpop.f32.mrf.mxu0
    %v4600 = vadd.f32 %v4354, %v4599
    %v4601 = vpop.f32.mrf.mxu0
    %v4602 = vadd.f32 %v4356, %v4601
    %4603 = vmatprep.mubr.f32.mxu0 0.0
    %v4604 = vand.u32 %v3601, 4294901760
    %v4605 = vsub.f32 %v3601, %v4604
    %4606 = vmatmul.mubr.f32.gmra.mxu0 %v4605
    %v4607 = vpop.f32.mrf.mxu0
    %v4608 = vadd.f32 %v4361, %v4607
    %v4609 = vpop.f32.mrf.mxu0
    %v4610 = vadd.f32 %v4363, %v4609
    %4611 = vmatprep.mubr.f32.mxu0 0.0
    %v4612 = vand.u32 %v3604, 4294901760
    %v4613 = vsub.f32 %v3604, %v4612
    %4614 = vmatmul.mubr.f32.gmra.mxu0 %v4613
    %v4615 = vpop.f32.mrf.mxu0
    %v4616 = vadd.f32 %v4368, %v4615
    %v4617 = vpop.f32.mrf.mxu0
    %v4618 = vadd.f32 %v4370, %v4617
    %4619 = vmatprep.mubr.f32.mxu0 0.0
    %v4620 = vand.u32 %v3607, 4294901760
    %v4621 = vsub.f32 %v3607, %v4620
    %4622 = vmatmul.mubr.f32.gmra.mxu0 %v4621
    %v4623 = vpop.f32.mrf.mxu0
    %v4624 = vadd.f32 %v4375, %v4623
    %v4625 = vpop.f32.mrf.mxu0
    %v4626 = vadd.f32 %v4377, %v4625
    %4627 = vmatprep.mubr.f32.mxu0 0.0
    %v4628 = vand.u32 %v3610, 4294901760
    %v4629 = vsub.f32 %v3610, %v4628
    %4630 = vmatmul.mubr.f32.gmra.mxu0 %v4629
    %v4631 = vpop.f32.mrf.mxu0
    %v4632 = vadd.f32 %v4382, %v4631
    %v4633 = vpop.f32.mrf.mxu0
    %v4634 = vadd.f32 %v4384, %v4633
    %4635 = vmatprep.mubr.f32.mxu0 0.0
    %v4636 = vand.u32 %v3613, 4294901760
    %v4637 = vsub.f32 %v3613, %v4636
    %4638 = vmatmul.mubr.f32.gmra.mxu0 %v4637
    %v4639 = vpop.f32.mrf.mxu0
    %v4640 = vadd.f32 %v4389, %v4639
    %v4641 = vpop.f32.mrf.mxu0
    %v4642 = vadd.f32 %v4391, %v4641
    %4643 = vmatprep.mubr.f32.mxu0 0.0
    %v4644 = vand.u32 %v3616, 4294901760
    %v4645 = vsub.f32 %v3616, %v4644
    %4646 = vmatmul.mubr.f32.gmra.mxu0 %v4645
    %v4647 = vpop.f32.mrf.mxu0
    %v4648 = vadd.f32 %v4396, %v4647
    %v4649 = vpop.f32.mrf.mxu0
    %v4650 = vadd.f32 %v4398, %v4649
    %4651 = vmatprep.mubr.f32.mxu0 0.0
    %v4652 = vand.u32 %v3619, 4294901760
    %v4653 = vsub.f32 %v3619, %v4652
    %4654 = vmatmul.mubr.f32.gmra.mxu0 %v4653
    %v4655 = vpop.f32.mrf.mxu0
    %v4656 = vadd.f32 %v4403, %v4655
    %v4657 = vpop.f32.mrf.mxu0
    %v4658 = vadd.f32 %v4405, %v4657
    %4659 = vmatprep.mubr.f32.mxu0 0.0
    %v4660 = vand.u32 %v3622, 4294901760
    %v4661 = vsub.f32 %v3622, %v4660
    %4662 = vmatmul.mubr.f32.gmra.mxu0 %v4661
    %v4663 = vpop.f32.mrf.mxu0
    %v4664 = vadd.f32 %v4410, %v4663
    %v4665 = vpop.f32.mrf.mxu0
    %v4666 = vadd.f32 %v4412, %v4665
    %4667 = vmatprep.mubr.f32.mxu0 0.0
    %v4668 = vand.u32 %v3625, 4294901760
    %v4669 = vsub.f32 %v3625, %v4668
    %4670 = vmatmul.mubr.f32.gmra.mxu0 %v4669
    %v4671 = vpop.f32.mrf.mxu0
    %v4672 = vadd.f32 %v4417, %v4671
    %v4673 = vpop.f32.mrf.mxu0
    %v4674 = vadd.f32 %v4419, %v4673
    %4675 = vmatprep.mubr.f32.mxu0 0.0
    %v4676 = vand.u32 %v3628, 4294901760
    %v4677 = vsub.f32 %v3628, %v4676
    %4678 = vmatmul.mubr.f32.gmra.mxu0 %v4677
    %v4679 = vpop.f32.mrf.mxu0
    %v4680 = vadd.f32 %v4424, %v4679
    %v4681 = vpop.f32.mrf.mxu0
    %v4682 = vadd.f32 %v4426, %v4681
    %4683 = vmatprep.mubr.f32.mxu0 0.0
    %v4684 = vand.u32 %v3631, 4294901760
    %v4685 = vsub.f32 %v3631, %v4684
    %4686 = vmatmul.mubr.f32.gmra.mxu0 %v4685
    %v4687 = vpop.f32.mrf.mxu0
    %v4688 = vadd.f32 %v4431, %v4687
    %v4689 = vpop.f32.mrf.mxu0
    %v4690 = vadd.f32 %v4433, %v4689
    %4691 = vdwg.mxu0
    %4692 = vmatprep.subr.mxu0 0.0
    %v4693 = vand.u32 %v3679, 4294901760
    %4694 = vmatpush1.xpose.msra.mxu0 %v4693
    %4695 = vmatprep.subr.mxu0 0.0
    %v4696 = vand.u32 %v3676, 4294901760
    %4697 = vmatpush1.xpose.msra.mxu0 %v4696
    %4698 = vmatprep.subr.mxu0 0.0
    %v4699 = vand.u32 %v3673, 4294901760
    %4700 = vmatpush1.xpose.msra.mxu0 %v4699
    %4701 = vmatprep.subr.mxu0 0.0
    %v4702 = vand.u32 %v3670, 4294901760
    %4703 = vmatpush1.xpose.msra.mxu0 %v4702
    %4704 = vmatprep.subr.mxu0 0.0
    %v4705 = vand.u32 %v3667, 4294901760
    %4706 = vmatpush1.xpose.msra.mxu0 %v4705
    %4707 = vmatprep.subr.mxu0 0.0
    %v4708 = vand.u32 %v3664, 4294901760
    %4709 = vmatpush1.xpose.msra.mxu0 %v4708
    %4710 = vmatprep.subr.mxu0 0.0
    %v4711 = vand.u32 %v3661, 4294901760
    %4712 = vmatpush1.xpose.msra.mxu0 %v4711
    %4713 = vmatprep.subr.mxu0 0.0
    %v4714 = vand.u32 %v3658, 4294901760
    %4715 = vmatpush1.xpose.msra.mxu0 %v4714
    %4716 = vmatprep.subr.mxu0 0.0
    %v4717 = vand.u32 %v3655, 4294901760
    %4718 = vmatpush1.xpose.msra.mxu0 %v4717
    %4719 = vmatprep.subr.mxu0 0.0
    %v4720 = vand.u32 %v3652, 4294901760
    %4721 = vmatpush1.xpose.msra.mxu0 %v4720
    %4722 = vmatprep.subr.mxu0 0.0
    %v4723 = vand.u32 %v3649, 4294901760
    %4724 = vmatpush1.xpose.msra.mxu0 %v4723
    %4725 = vmatprep.subr.mxu0 0.0
    %v4726 = vand.u32 %v3646, 4294901760
    %4727 = vmatpush1.xpose.msra.mxu0 %v4726
    %4728 = vmatprep.subr.mxu0 0.0
    %v4729 = vand.u32 %v3643, 4294901760
    %4730 = vmatpush1.xpose.msra.mxu0 %v4729
    %4731 = vmatprep.subr.mxu0 0.0
    %v4732 = vand.u32 %v3640, 4294901760
    %4733 = vmatpush1.xpose.msra.mxu0 %v4732
    %4734 = vmatprep.subr.mxu0 0.0
    %v4735 = vand.u32 %v3637, 4294901760
    %4736 = vmatpush1.xpose.msra.mxu0 %v4735
    %4737 = vmatprep.subr.mxu0 0.0
    %v4738 = vand.u32 %v3634, 4294901760
    %4739 = vmatpush1.xpose.msra.mxu0 %v4738
    %4740 = vmatprep.subr.mxu0 0.0
    %v4741 = vand.u32 %v3727, 4294901760
    %4742 = vmatpush2.xpose.msra.mxu0 %v4741
    %4743 = vmatprep.subr.mxu0 0.0
    %v4744 = vand.u32 %v3724, 4294901760
    %4745 = vmatpush2.xpose.msra.mxu0 %v4744
    %4746 = vmatprep.subr.mxu0 0.0
    %v4747 = vand.u32 %v3721, 4294901760
    %4748 = vmatpush2.xpose.msra.mxu0 %v4747
    %4749 = vmatprep.subr.mxu0 0.0
    %v4750 = vand.u32 %v3718, 4294901760
    %4751 = vmatpush2.xpose.msra.mxu0 %v4750
    %4752 = vmatprep.subr.mxu0 0.0
    %v4753 = vand.u32 %v3715, 4294901760
    %4754 = vmatpush2.xpose.msra.mxu0 %v4753
    %4755 = vmatprep.subr.mxu0 0.0
    %v4756 = vand.u32 %v3712, 4294901760
    %4757 = vmatpush2.xpose.msra.mxu0 %v4756
    %4758 = vmatprep.subr.mxu0 0.0
    %v4759 = vand.u32 %v3709, 4294901760
    %4760 = vmatpush2.xpose.msra.mxu0 %v4759
    %4761 = vmatprep.subr.mxu0 0.0
    %v4762 = vand.u32 %v3706, 4294901760
    %4763 = vmatpush2.xpose.msra.mxu0 %v4762
    %4764 = vmatprep.subr.mxu0 0.0
    %v4765 = vand.u32 %v3703, 4294901760
    %4766 = vmatpush2.xpose.msra.mxu0 %v4765
    %4767 = vmatprep.subr.mxu0 0.0
    %v4768 = vand.u32 %v3700, 4294901760
    %4769 = vmatpush2.xpose.msra.mxu0 %v4768
    %4770 = vmatprep.subr.mxu0 0.0
    %v4771 = vand.u32 %v3697, 4294901760
    %4772 = vmatpush2.xpose.msra.mxu0 %v4771
    %4773 = vmatprep.subr.mxu0 0.0
    %v4774 = vand.u32 %v3694, 4294901760
    %4775 = vmatpush2.xpose.msra.mxu0 %v4774
    %4776 = vmatprep.subr.mxu0 0.0
    %v4777 = vand.u32 %v3691, 4294901760
    %4778 = vmatpush2.xpose.msra.mxu0 %v4777
    %4779 = vmatprep.subr.mxu0 0.0
    %v4780 = vand.u32 %v3688, 4294901760
    %4781 = vmatpush2.xpose.msra.mxu0 %v4780
    %4782 = vmatprep.subr.mxu0 0.0
    %v4783 = vand.u32 %v3685, 4294901760
    %4784 = vmatpush2.xpose.msra.mxu0 %v4783
    %4785 = vmatprep.subr.mxu0 0.0
    %v4786 = vand.u32 %v3682, 4294901760
    %4787 = vmatpush2.xpose.msra.mxu0 %v4786
    %4788 = vmatprep.mubr.f32.mxu0 0.0
    %v4789 = vand.u32 %v3586, 4294901760
    %v4790 = vsub.f32 %v3586, %v4789
    %v4791 = vand.u32 %v4790, 4294901760
    %4792 = vmatmul.mubr.f32.gmra.mxu0 %v4791
    %v4793 = vpop.f32.mrf.mxu0
    %v4794 = vadd.f32 %v4568, %v4793
    %v4795 = vpop.f32.mrf.mxu0
    %v4796 = vadd.f32 %v4570, %v4795
    %4797 = vmatprep.mubr.f32.mxu0 0.0
    %v4798 = vand.u32 %v3589, 4294901760
    %v4799 = vsub.f32 %v3589, %v4798
    %v4800 = vand.u32 %v4799, 4294901760
    %4801 = vmatmul.mubr.f32.gmra.mxu0 %v4800
    %v4802 = vpop.f32.mrf.mxu0
    %v4803 = vadd.f32 %v4576, %v4802
    %v4804 = vpop.f32.mrf.mxu0
    %v4805 = vadd.f32 %v4578, %v4804
    %4806 = vmatprep.mubr.f32.mxu0 0.0
    %v4807 = vand.u32 %v3592, 4294901760
    %v4808 = vsub.f32 %v3592, %v4807
    %v4809 = vand.u32 %v4808, 4294901760
    %4810 = vmatmul.mubr.f32.gmra.mxu0 %v4809
    %v4811 = vpop.f32.mrf.mxu0
    %v4812 = vadd.f32 %v4584, %v4811
    %v4813 = vpop.f32.mrf.mxu0
    %v4814 = vadd.f32 %v4586, %v4813
    %4815 = vmatprep.mubr.f32.mxu0 0.0
    %v4816 = vand.u32 %v3595, 4294901760
    %v4817 = vsub.f32 %v3595, %v4816
    %v4818 = vand.u32 %v4817, 4294901760
    %4819 = vmatmul.mubr.f32.gmra.mxu0 %v4818
    %v4820 = vpop.f32.mrf.mxu0
    %v4821 = vadd.f32 %v4592, %v4820
    %v4822 = vpop.f32.mrf.mxu0
    %v4823 = vadd.f32 %v4594, %v4822
    %4824 = vmatprep.mubr.f32.mxu0 0.0
    %v4825 = vand.u32 %v3598, 4294901760
    %v4826 = vsub.f32 %v3598, %v4825
    %v4827 = vand.u32 %v4826, 4294901760
    %4828 = vmatmul.mubr.f32.gmra.mxu0 %v4827
    %v4829 = vpop.f32.mrf.mxu0
    %v4830 = vadd.f32 %v4600, %v4829
    %v4831 = vpop.f32.mrf.mxu0
    %v4832 = vadd.f32 %v4602, %v4831
    %4833 = vmatprep.mubr.f32.mxu0 0.0
    %v4834 = vand.u32 %v3601, 4294901760
    %v4835 = vsub.f32 %v3601, %v4834
    %v4836 = vand.u32 %v4835, 4294901760
    %4837 = vmatmul.mubr.f32.gmra.mxu0 %v4836
    %v4838 = vpop.f32.mrf.mxu0
    %v4839 = vadd.f32 %v4608, %v4838
    %v4840 = vpop.f32.mrf.mxu0
    %v4841 = vadd.f32 %v4610, %v4840
    %4842 = vmatprep.mubr.f32.mxu0 0.0
    %v4843 = vand.u32 %v3604, 4294901760
    %v4844 = vsub.f32 %v3604, %v4843
    %v4845 = vand.u32 %v4844, 4294901760
    %4846 = vmatmul.mubr.f32.gmra.mxu0 %v4845
    %v4847 = vpop.f32.mrf.mxu0
    %v4848 = vadd.f32 %v4616, %v4847
    %v4849 = vpop.f32.mrf.mxu0
    %v4850 = vadd.f32 %v4618, %v4849
    %4851 = vmatprep.mubr.f32.mxu0 0.0
    %v4852 = vand.u32 %v3607, 4294901760
    %v4853 = vsub.f32 %v3607, %v4852
    %v4854 = vand.u32 %v4853, 4294901760
    %4855 = vmatmul.mubr.f32.gmra.mxu0 %v4854
    %v4856 = vpop.f32.mrf.mxu0
    %v4857 = vadd.f32 %v4624, %v4856
    %v4858 = vpop.f32.mrf.mxu0
    %v4859 = vadd.f32 %v4626, %v4858
    %4860 = vmatprep.mubr.f32.mxu0 0.0
    %v4861 = vand.u32 %v3610, 4294901760
    %v4862 = vsub.f32 %v3610, %v4861
    %v4863 = vand.u32 %v4862, 4294901760
    %4864 = vmatmul.mubr.f32.gmra.mxu0 %v4863
    %v4865 = vpop.f32.mrf.mxu0
    %v4866 = vadd.f32 %v4632, %v4865
    %v4867 = vpop.f32.mrf.mxu0
    %v4868 = vadd.f32 %v4634, %v4867
    %4869 = vmatprep.mubr.f32.mxu0 0.0
    %v4870 = vand.u32 %v3613, 4294901760
    %v4871 = vsub.f32 %v3613, %v4870
    %v4872 = vand.u32 %v4871, 4294901760
    %4873 = vmatmul.mubr.f32.gmra.mxu0 %v4872
    %v4874 = vpop.f32.mrf.mxu0
    %v4875 = vadd.f32 %v4640, %v4874
    %v4876 = vpop.f32.mrf.mxu0
    %v4877 = vadd.f32 %v4642, %v4876
    %4878 = vmatprep.mubr.f32.mxu0 0.0
    %v4879 = vand.u32 %v3616, 4294901760
    %v4880 = vsub.f32 %v3616, %v4879
    %v4881 = vand.u32 %v4880, 4294901760
    %4882 = vmatmul.mubr.f32.gmra.mxu0 %v4881
    %v4883 = vpop.f32.mrf.mxu0
    %v4884 = vadd.f32 %v4648, %v4883
    %v4885 = vpop.f32.mrf.mxu0
    %v4886 = vadd.f32 %v4650, %v4885
    %4887 = vmatprep.mubr.f32.mxu0 0.0
    %v4888 = vand.u32 %v3619, 4294901760
    %v4889 = vsub.f32 %v3619, %v4888
    %v4890 = vand.u32 %v4889, 4294901760
    %4891 = vmatmul.mubr.f32.gmra.mxu0 %v4890
    %v4892 = vpop.f32.mrf.mxu0
    %v4893 = vadd.f32 %v4656, %v4892
    %v4894 = vpop.f32.mrf.mxu0
    %v4895 = vadd.f32 %v4658, %v4894
    %4896 = vmatprep.mubr.f32.mxu0 0.0
    %v4897 = vand.u32 %v3622, 4294901760
    %v4898 = vsub.f32 %v3622, %v4897
    %v4899 = vand.u32 %v4898, 4294901760
    %4900 = vmatmul.mubr.f32.gmra.mxu0 %v4899
    %v4901 = vpop.f32.mrf.mxu0
    %v4902 = vadd.f32 %v4664, %v4901
    %v4903 = vpop.f32.mrf.mxu0
    %v4904 = vadd.f32 %v4666, %v4903
    %4905 = vmatprep.mubr.f32.mxu0 0.0
    %v4906 = vand.u32 %v3625, 4294901760
    %v4907 = vsub.f32 %v3625, %v4906
    %v4908 = vand.u32 %v4907, 4294901760
    %4909 = vmatmul.mubr.f32.gmra.mxu0 %v4908
    %v4910 = vpop.f32.mrf.mxu0
    %v4911 = vadd.f32 %v4672, %v4910
    %v4912 = vpop.f32.mrf.mxu0
    %v4913 = vadd.f32 %v4674, %v4912
    %4914 = vmatprep.mubr.f32.mxu0 0.0
    %v4915 = vand.u32 %v3628, 4294901760
    %v4916 = vsub.f32 %v3628, %v4915
    %v4917 = vand.u32 %v4916, 4294901760
    %4918 = vmatmul.mubr.f32.gmra.mxu0 %v4917
    %v4919 = vpop.f32.mrf.mxu0
    %v4920 = vadd.f32 %v4680, %v4919
    %v4921 = vpop.f32.mrf.mxu0
    %v4922 = vadd.f32 %v4682, %v4921
    %4923 = vmatprep.mubr.f32.mxu0 0.0
    %v4924 = vand.u32 %v3631, 4294901760
    %v4925 = vsub.f32 %v3631, %v4924
    %v4926 = vand.u32 %v4925, 4294901760
    %4927 = vmatmul.mubr.f32.gmra.mxu0 %v4926
    %v4928 = vpop.f32.mrf.mxu0
    %v4929 = vadd.f32 %v4688, %v4928
    %v4930 = vpop.f32.mrf.mxu0
    %v4931 = vadd.f32 %v4690, %v4930
    %4932 = vdwg.mxu0
    %4933 = vmatprep.subr.mxu0 0.0
    %v4934 = vand.u32 %v3679, 4294901760
    %v4935 = vsub.f32 %v3679, %v4934
    %v4936 = vand.u32 %v4935, 4294901760
    %4937 = vmatpush1.xpose.msra.mxu0 %v4936
    %4938 = vmatprep.subr.mxu0 0.0
    %v4939 = vand.u32 %v3676, 4294901760
    %v4940 = vsub.f32 %v3676, %v4939
    %v4941 = vand.u32 %v4940, 4294901760
    %4942 = vmatpush1.xpose.msra.mxu0 %v4941
    %4943 = vmatprep.subr.mxu0 0.0
    %v4944 = vand.u32 %v3673, 4294901760
    %v4945 = vsub.f32 %v3673, %v4944
    %v4946 = vand.u32 %v4945, 4294901760
    %4947 = vmatpush1.xpose.msra.mxu0 %v4946
    %4948 = vmatprep.subr.mxu0 0.0
    %v4949 = vand.u32 %v3670, 4294901760
    %v4950 = vsub.f32 %v3670, %v4949
    %v4951 = vand.u32 %v4950, 4294901760
    %4952 = vmatpush1.xpose.msra.mxu0 %v4951
    %4953 = vmatprep.subr.mxu0 0.0
    %v4954 = vand.u32 %v3667, 4294901760
    %v4955 = vsub.f32 %v3667, %v4954
    %v4956 = vand.u32 %v4955, 4294901760
    %4957 = vmatpush1.xpose.msra.mxu0 %v4956
    %4958 = vmatprep.subr.mxu0 0.0
    %v4959 = vand.u32 %v3664, 4294901760
    %v4960 = vsub.f32 %v3664, %v4959
    %v4961 = vand.u32 %v4960, 4294901760
    %4962 = vmatpush1.xpose.msra.mxu0 %v4961
    %4963 = vmatprep.subr.mxu0 0.0
    %v4964 = vand.u32 %v3661, 4294901760
    %v4965 = vsub.f32 %v3661, %v4964
    %v4966 = vand.u32 %v4965, 4294901760
    %4967 = vmatpush1.xpose.msra.mxu0 %v4966
    %4968 = vmatprep.subr.mxu0 0.0
    %v4969 = vand.u32 %v3658, 4294901760
    %v4970 = vsub.f32 %v3658, %v4969
    %v4971 = vand.u32 %v4970, 4294901760
    %4972 = vmatpush1.xpose.msra.mxu0 %v4971
    %4973 = vmatprep.subr.mxu0 0.0
    %v4974 = vand.u32 %v3655, 4294901760
    %v4975 = vsub.f32 %v3655, %v4974
    %v4976 = vand.u32 %v4975, 4294901760
    %4977 = vmatpush1.xpose.msra.mxu0 %v4976
    %4978 = vmatprep.subr.mxu0 0.0
    %v4979 = vand.u32 %v3652, 4294901760
    %v4980 = vsub.f32 %v3652, %v4979
    %v4981 = vand.u32 %v4980, 4294901760
    %4982 = vmatpush1.xpose.msra.mxu0 %v4981
    %4983 = vmatprep.subr.mxu0 0.0
    %v4984 = vand.u32 %v3649, 4294901760
    %v4985 = vsub.f32 %v3649, %v4984
    %v4986 = vand.u32 %v4985, 4294901760
    %4987 = vmatpush1.xpose.msra.mxu0 %v4986
    %4988 = vmatprep.subr.mxu0 0.0
    %v4989 = vand.u32 %v3646, 4294901760
    %v4990 = vsub.f32 %v3646, %v4989
    %v4991 = vand.u32 %v4990, 4294901760
    %4992 = vmatpush1.xpose.msra.mxu0 %v4991
    %4993 = vmatprep.subr.mxu0 0.0
    %v4994 = vand.u32 %v3643, 4294901760
    %v4995 = vsub.f32 %v3643, %v4994
    %v4996 = vand.u32 %v4995, 4294901760
    %4997 = vmatpush1.xpose.msra.mxu0 %v4996
    %4998 = vmatprep.subr.mxu0 0.0
    %v4999 = vand.u32 %v3640, 4294901760
    %v5000 = vsub.f32 %v3640, %v4999
    %v5001 = vand.u32 %v5000, 4294901760
    %5002 = vmatpush1.xpose.msra.mxu0 %v5001
    %5003 = vmatprep.subr.mxu0 0.0
    %v5004 = vand.u32 %v3637, 4294901760
    %v5005 = vsub.f32 %v3637, %v5004
    %v5006 = vand.u32 %v5005, 4294901760
    %5007 = vmatpush1.xpose.msra.mxu0 %v5006
    %5008 = vmatprep.subr.mxu0 0.0
    %v5009 = vand.u32 %v3634, 4294901760
    %v5010 = vsub.f32 %v3634, %v5009
    %v5011 = vand.u32 %v5010, 4294901760
    %5012 = vmatpush1.xpose.msra.mxu0 %v5011
    %5013 = vmatprep.subr.mxu0 0.0
    %v5014 = vand.u32 %v3727, 4294901760
    %v5015 = vsub.f32 %v3727, %v5014
    %v5016 = vand.u32 %v5015, 4294901760
    %5017 = vmatpush2.xpose.msra.mxu0 %v5016
    %5018 = vmatprep.subr.mxu0 0.0
    %v5019 = vand.u32 %v3724, 4294901760
    %v5020 = vsub.f32 %v3724, %v5019
    %v5021 = vand.u32 %v5020, 4294901760
    %5022 = vmatpush2.xpose.msra.mxu0 %v5021
    %5023 = vmatprep.subr.mxu0 0.0
    %v5024 = vand.u32 %v3721, 4294901760
    %v5025 = vsub.f32 %v3721, %v5024
    %v5026 = vand.u32 %v5025, 4294901760
    %5027 = vmatpush2.xpose.msra.mxu0 %v5026
    %5028 = vmatprep.subr.mxu0 0.0
    %v5029 = vand.u32 %v3718, 4294901760
    %v5030 = vsub.f32 %v3718, %v5029
    %v5031 = vand.u32 %v5030, 4294901760
    %5032 = vmatpush2.xpose.msra.mxu0 %v5031
    %5033 = vmatprep.subr.mxu0 0.0
    %v5034 = vand.u32 %v3715, 4294901760
    %v5035 = vsub.f32 %v3715, %v5034
    %v5036 = vand.u32 %v5035, 4294901760
    %5037 = vmatpush2.xpose.msra.mxu0 %v5036
    %5038 = vmatprep.subr.mxu0 0.0
    %v5039 = vand.u32 %v3712, 4294901760
    %v5040 = vsub.f32 %v3712, %v5039
    %v5041 = vand.u32 %v5040, 4294901760
    %5042 = vmatpush2.xpose.msra.mxu0 %v5041
    %5043 = vmatprep.subr.mxu0 0.0
    %v5044 = vand.u32 %v3709, 4294901760
    %v5045 = vsub.f32 %v3709, %v5044
    %v5046 = vand.u32 %v5045, 4294901760
    %5047 = vmatpush2.xpose.msra.mxu0 %v5046
    %5048 = vmatprep.subr.mxu0 0.0
    %v5049 = vand.u32 %v3706, 4294901760
    %v5050 = vsub.f32 %v3706, %v5049
    %v5051 = vand.u32 %v5050, 4294901760
    %5052 = vmatpush2.xpose.msra.mxu0 %v5051
    %5053 = vmatprep.subr.mxu0 0.0
    %v5054 = vand.u32 %v3703, 4294901760
    %v5055 = vsub.f32 %v3703, %v5054
    %v5056 = vand.u32 %v5055, 4294901760
    %5057 = vmatpush2.xpose.msra.mxu0 %v5056
    %5058 = vmatprep.subr.mxu0 0.0
    %v5059 = vand.u32 %v3700, 4294901760
    %v5060 = vsub.f32 %v3700, %v5059
    %v5061 = vand.u32 %v5060, 4294901760
    %5062 = vmatpush2.xpose.msra.mxu0 %v5061
    %5063 = vmatprep.subr.mxu0 0.0
    %v5064 = vand.u32 %v3697, 4294901760
    %v5065 = vsub.f32 %v3697, %v5064
    %v5066 = vand.u32 %v5065, 4294901760
    %5067 = vmatpush2.xpose.msra.mxu0 %v5066
    %5068 = vmatprep.subr.mxu0 0.0
    %v5069 = vand.u32 %v3694, 4294901760
    %v5070 = vsub.f32 %v3694, %v5069
    %v5071 = vand.u32 %v5070, 4294901760
    %5072 = vmatpush2.xpose.msra.mxu0 %v5071
    %5073 = vmatprep.subr.mxu0 0.0
    %v5074 = vand.u32 %v3691, 4294901760
    %v5075 = vsub.f32 %v3691, %v5074
    %v5076 = vand.u32 %v5075, 4294901760
    %5077 = vmatpush2.xpose.msra.mxu0 %v5076
    %5078 = vmatprep.subr.mxu0 0.0
    %v5079 = vand.u32 %v3688, 4294901760
    %v5080 = vsub.f32 %v3688, %v5079
    %v5081 = vand.u32 %v5080, 4294901760
    %5082 = vmatpush2.xpose.msra.mxu0 %v5081
    %5083 = vmatprep.subr.mxu0 0.0
    %v5084 = vand.u32 %v3685, 4294901760
    %v5085 = vsub.f32 %v3685, %v5084
    %v5086 = vand.u32 %v5085, 4294901760
    %5087 = vmatpush2.xpose.msra.mxu0 %v5086
    %5088 = vmatprep.subr.mxu0 0.0
    %v5089 = vand.u32 %v3682, 4294901760
    %v5090 = vsub.f32 %v3682, %v5089
    %v5091 = vand.u32 %v5090, 4294901760
    %5092 = vmatpush2.xpose.msra.mxu0 %v5091
    %5093 = vmatprep.mubr.f32.mxu0 0.0
    %v5094 = vand.u32 %v3586, 4294901760
    %5095 = vmatmul.mubr.f32.gmra.mxu0 %v5094
    %v5096 = vpop.f32.mrf.mxu0
    %v5097 = vadd.f32 %v4794, %v5096
    %v5098 = vpop.f32.mrf.mxu0
    %v5099 = vadd.f32 %v4796, %v5098
    %5100 = vmatprep.mubr.f32.mxu0 0.0
    %v5101 = vand.u32 %v3589, 4294901760
    %5102 = vmatmul.mubr.f32.gmra.mxu0 %v5101
    %v5103 = vpop.f32.mrf.mxu0
    %v5104 = vadd.f32 %v4803, %v5103
    %v5105 = vpop.f32.mrf.mxu0
    %v5106 = vadd.f32 %v4805, %v5105
    %5107 = vmatprep.mubr.f32.mxu0 0.0
    %v5108 = vand.u32 %v3592, 4294901760
    %5109 = vmatmul.mubr.f32.gmra.mxu0 %v5108
    %v5110 = vpop.f32.mrf.mxu0
    %v5111 = vadd.f32 %v4812, %v5110
    %v5112 = vpop.f32.mrf.mxu0
    %v5113 = vadd.f32 %v4814, %v5112
    %5114 = vmatprep.mubr.f32.mxu0 0.0
    %v5115 = vand.u32 %v3595, 4294901760
    %5116 = vmatmul.mubr.f32.gmra.mxu0 %v5115
    %v5117 = vpop.f32.mrf.mxu0
    %v5118 = vadd.f32 %v4821, %v5117
    %v5119 = vpop.f32.mrf.mxu0
    %v5120 = vadd.f32 %v4823, %v5119
    %5121 = vmatprep.mubr.f32.mxu0 0.0
    %v5122 = vand.u32 %v3598, 4294901760
    %5123 = vmatmul.mubr.f32.gmra.mxu0 %v5122
    %v5124 = vpop.f32.mrf.mxu0
    %v5125 = vadd.f32 %v4830, %v5124
    %v5126 = vpop.f32.mrf.mxu0
    %v5127 = vadd.f32 %v4832, %v5126
    %5128 = vmatprep.mubr.f32.mxu0 0.0
    %v5129 = vand.u32 %v3601, 4294901760
    %5130 = vmatmul.mubr.f32.gmra.mxu0 %v5129
    %v5131 = vpop.f32.mrf.mxu0
    %v5132 = vadd.f32 %v4839, %v5131
    %v5133 = vpop.f32.mrf.mxu0
    %v5134 = vadd.f32 %v4841, %v5133
    %5135 = vmatprep.mubr.f32.mxu0 0.0
    %v5136 = vand.u32 %v3604, 4294901760
    %5137 = vmatmul.mubr.f32.gmra.mxu0 %v5136
    %v5138 = vpop.f32.mrf.mxu0
    %v5139 = vadd.f32 %v4848, %v5138
    %v5140 = vpop.f32.mrf.mxu0
    %v5141 = vadd.f32 %v4850, %v5140
    %5142 = vmatprep.mubr.f32.mxu0 0.0
    %v5143 = vand.u32 %v3607, 4294901760
    %5144 = vmatmul.mubr.f32.gmra.mxu0 %v5143
    %v5145 = vpop.f32.mrf.mxu0
    %v5146 = vadd.f32 %v4857, %v5145
    %v5147 = vpop.f32.mrf.mxu0
    %v5148 = vadd.f32 %v4859, %v5147
    %5149 = vmatprep.mubr.f32.mxu0 0.0
    %v5150 = vand.u32 %v3610, 4294901760
    %5151 = vmatmul.mubr.f32.gmra.mxu0 %v5150
    %v5152 = vpop.f32.mrf.mxu0
    %v5153 = vadd.f32 %v4866, %v5152
    %v5154 = vpop.f32.mrf.mxu0
    %v5155 = vadd.f32 %v4868, %v5154
    %5156 = vmatprep.mubr.f32.mxu0 0.0
    %v5157 = vand.u32 %v3613, 4294901760
    %5158 = vmatmul.mubr.f32.gmra.mxu0 %v5157
    %v5159 = vpop.f32.mrf.mxu0
    %v5160 = vadd.f32 %v4875, %v5159
    %v5161 = vpop.f32.mrf.mxu0
    %v5162 = vadd.f32 %v4877, %v5161
    %5163 = vmatprep.mubr.f32.mxu0 0.0
    %v5164 = vand.u32 %v3616, 4294901760
    %5165 = vmatmul.mubr.f32.gmra.mxu0 %v5164
    %v5166 = vpop.f32.mrf.mxu0
    %v5167 = vadd.f32 %v4884, %v5166
    %v5168 = vpop.f32.mrf.mxu0
    %v5169 = vadd.f32 %v4886, %v5168
    %5170 = vmatprep.mubr.f32.mxu0 0.0
    %v5171 = vand.u32 %v3619, 4294901760
    %5172 = vmatmul.mubr.f32.gmra.mxu0 %v5171
    %v5173 = vpop.f32.mrf.mxu0
    %v5174 = vadd.f32 %v4893, %v5173
    %v5175 = vpop.f32.mrf.mxu0
    %v5176 = vadd.f32 %v4895, %v5175
    %5177 = vmatprep.mubr.f32.mxu0 0.0
    %v5178 = vand.u32 %v3622, 4294901760
    %5179 = vmatmul.mubr.f32.gmra.mxu0 %v5178
    %v5180 = vpop.f32.mrf.mxu0
    %v5181 = vadd.f32 %v4902, %v5180
    %v5182 = vpop.f32.mrf.mxu0
    %v5183 = vadd.f32 %v4904, %v5182
    %5184 = vmatprep.mubr.f32.mxu0 0.0
    %v5185 = vand.u32 %v3625, 4294901760
    %5186 = vmatmul.mubr.f32.gmra.mxu0 %v5185
    %v5187 = vpop.f32.mrf.mxu0
    %v5188 = vadd.f32 %v4911, %v5187
    %v5189 = vpop.f32.mrf.mxu0
    %v5190 = vadd.f32 %v4913, %v5189
    %5191 = vmatprep.mubr.f32.mxu0 0.0
    %v5192 = vand.u32 %v3628, 4294901760
    %5193 = vmatmul.mubr.f32.gmra.mxu0 %v5192
    %v5194 = vpop.f32.mrf.mxu0
    %v5195 = vadd.f32 %v4920, %v5194
    %v5196 = vpop.f32.mrf.mxu0
    %v5197 = vadd.f32 %v4922, %v5196
    %5198 = vmatprep.mubr.f32.mxu0 0.0
    %v5199 = vand.u32 %v3631, 4294901760
    %5200 = vmatmul.mubr.f32.gmra.mxu0 %v5199
    %v5201 = vpop.f32.mrf.mxu0
    %v5202 = vadd.f32 %v4929, %v5201
    %v5203 = vpop.f32.mrf.mxu0
    %v5204 = vadd.f32 %v4931, %v5203
    %5205 = vdwg.mxu0
    %5206 = vmatprep.subr.mxu0 0.0
    %v5207 = vand.u32 %v3679, 4294901760
    %5208 = vmatpush1.xpose.msra.mxu0 %v5207
    %5209 = vmatprep.subr.mxu0 0.0
    %v5210 = vand.u32 %v3676, 4294901760
    %5211 = vmatpush1.xpose.msra.mxu0 %v5210
    %5212 = vmatprep.subr.mxu0 0.0
    %v5213 = vand.u32 %v3673, 4294901760
    %5214 = vmatpush1.xpose.msra.mxu0 %v5213
    %5215 = vmatprep.subr.mxu0 0.0
    %v5216 = vand.u32 %v3670, 4294901760
    %5217 = vmatpush1.xpose.msra.mxu0 %v5216
    %5218 = vmatprep.subr.mxu0 0.0
    %v5219 = vand.u32 %v3667, 4294901760
    %5220 = vmatpush1.xpose.msra.mxu0 %v5219
    %5221 = vmatprep.subr.mxu0 0.0
    %v5222 = vand.u32 %v3664, 4294901760
    %5223 = vmatpush1.xpose.msra.mxu0 %v5222
    %5224 = vmatprep.subr.mxu0 0.0
    %v5225 = vand.u32 %v3661, 4294901760
    %5226 = vmatpush1.xpose.msra.mxu0 %v5225
    %5227 = vmatprep.subr.mxu0 0.0
    %v5228 = vand.u32 %v3658, 4294901760
    %5229 = vmatpush1.xpose.msra.mxu0 %v5228
    %5230 = vmatprep.subr.mxu0 0.0
    %v5231 = vand.u32 %v3655, 4294901760
    %5232 = vmatpush1.xpose.msra.mxu0 %v5231
    %5233 = vmatprep.subr.mxu0 0.0
    %v5234 = vand.u32 %v3652, 4294901760
    %5235 = vmatpush1.xpose.msra.mxu0 %v5234
    %5236 = vmatprep.subr.mxu0 0.0
    %v5237 = vand.u32 %v3649, 4294901760
    %5238 = vmatpush1.xpose.msra.mxu0 %v5237
    %5239 = vmatprep.subr.mxu0 0.0
    %v5240 = vand.u32 %v3646, 4294901760
    %5241 = vmatpush1.xpose.msra.mxu0 %v5240
    %5242 = vmatprep.subr.mxu0 0.0
    %v5243 = vand.u32 %v3643, 4294901760
    %5244 = vmatpush1.xpose.msra.mxu0 %v5243
    %5245 = vmatprep.subr.mxu0 0.0
    %v5246 = vand.u32 %v3640, 4294901760
    %5247 = vmatpush1.xpose.msra.mxu0 %v5246
    %5248 = vmatprep.subr.mxu0 0.0
    %v5249 = vand.u32 %v3637, 4294901760
    %5250 = vmatpush1.xpose.msra.mxu0 %v5249
    %5251 = vmatprep.subr.mxu0 0.0
    %v5252 = vand.u32 %v3634, 4294901760
    %5253 = vmatpush1.xpose.msra.mxu0 %v5252
    %5254 = vmatprep.subr.mxu0 0.0
    %v5255 = vand.u32 %v3727, 4294901760
    %5256 = vmatpush2.xpose.msra.mxu0 %v5255
    %5257 = vmatprep.subr.mxu0 0.0
    %v5258 = vand.u32 %v3724, 4294901760
    %5259 = vmatpush2.xpose.msra.mxu0 %v5258
    %5260 = vmatprep.subr.mxu0 0.0
    %v5261 = vand.u32 %v3721, 4294901760
    %5262 = vmatpush2.xpose.msra.mxu0 %v5261
    %5263 = vmatprep.subr.mxu0 0.0
    %v5264 = vand.u32 %v3718, 4294901760
    %5265 = vmatpush2.xpose.msra.mxu0 %v5264
    %5266 = vmatprep.subr.mxu0 0.0
    %v5267 = vand.u32 %v3715, 4294901760
    %5268 = vmatpush2.xpose.msra.mxu0 %v5267
    %5269 = vmatprep.subr.mxu0 0.0
    %v5270 = vand.u32 %v3712, 4294901760
    %5271 = vmatpush2.xpose.msra.mxu0 %v5270
    %5272 = vmatprep.subr.mxu0 0.0
    %v5273 = vand.u32 %v3709, 4294901760
    %5274 = vmatpush2.xpose.msra.mxu0 %v5273
    %5275 = vmatprep.subr.mxu0 0.0
    %v5276 = vand.u32 %v3706, 4294901760
    %5277 = vmatpush2.xpose.msra.mxu0 %v5276
    %5278 = vmatprep.subr.mxu0 0.0
    %v5279 = vand.u32 %v3703, 4294901760
    %5280 = vmatpush2.xpose.msra.mxu0 %v5279
    %5281 = vmatprep.subr.mxu0 0.0
    %v5282 = vand.u32 %v3700, 4294901760
    %5283 = vmatpush2.xpose.msra.mxu0 %v5282
    %5284 = vmatprep.subr.mxu0 0.0
    %v5285 = vand.u32 %v3697, 4294901760
    %5286 = vmatpush2.xpose.msra.mxu0 %v5285
    %5287 = vmatprep.subr.mxu0 0.0
    %v5288 = vand.u32 %v3694, 4294901760
    %5289 = vmatpush2.xpose.msra.mxu0 %v5288
    %5290 = vmatprep.subr.mxu0 0.0
    %v5291 = vand.u32 %v3691, 4294901760
    %5292 = vmatpush2.xpose.msra.mxu0 %v5291
    %5293 = vmatprep.subr.mxu0 0.0
    %v5294 = vand.u32 %v3688, 4294901760
    %5295 = vmatpush2.xpose.msra.mxu0 %v5294
    %5296 = vmatprep.subr.mxu0 0.0
    %v5297 = vand.u32 %v3685, 4294901760
    %5298 = vmatpush2.xpose.msra.mxu0 %v5297
    %5299 = vmatprep.subr.mxu0 0.0
    %v5300 = vand.u32 %v3682, 4294901760
    %5301 = vmatpush2.xpose.msra.mxu0 %v5300
    %5302 = vmatprep.mubr.f32.mxu0 0.0
    %v5303 = vand.u32 %v3586, 4294901760
    %5304 = vmatmul.mubr.f32.gmra.mxu0 %v5303
    %v5305 = vpop.f32.mrf.mxu0
    %v5306 = vadd.f32 %v5097, %v5305
    %v5307 = vpop.f32.mrf.mxu0
    %v5308 = vadd.f32 %v5099, %v5307
    %5309 = vmatprep.mubr.f32.mxu0 0.0
    %v5310 = vand.u32 %v3589, 4294901760
    %5311 = vmatmul.mubr.f32.gmra.mxu0 %v5310
    %v5312 = vpop.f32.mrf.mxu0
    %v5313 = vadd.f32 %v5104, %v5312
    %v5314 = vpop.f32.mrf.mxu0
    %v5315 = vadd.f32 %v5106, %v5314
    %5316 = vmatprep.mubr.f32.mxu0 0.0
    %v5317 = vand.u32 %v3592, 4294901760
    %5318 = vmatmul.mubr.f32.gmra.mxu0 %v5317
    %v5319 = vpop.f32.mrf.mxu0
    %v5320 = vadd.f32 %v5111, %v5319
    %v5321 = vpop.f32.mrf.mxu0
    %v5322 = vadd.f32 %v5113, %v5321
    %5323 = vmatprep.mubr.f32.mxu0 0.0
    %v5324 = vand.u32 %v3595, 4294901760
    %5325 = vmatmul.mubr.f32.gmra.mxu0 %v5324
    %v5326 = vpop.f32.mrf.mxu0
    %v5327 = vadd.f32 %v5118, %v5326
    %v5328 = vpop.f32.mrf.mxu0
    %v5329 = vadd.f32 %v5120, %v5328
    %5330 = vmatprep.mubr.f32.mxu0 0.0
    %v5331 = vand.u32 %v3598, 4294901760
    %5332 = vmatmul.mubr.f32.gmra.mxu0 %v5331
    %v5333 = vpop.f32.mrf.mxu0
    %v5334 = vadd.f32 %v5125, %v5333
    %v5335 = vpop.f32.mrf.mxu0
    %v5336 = vadd.f32 %v5127, %v5335
    %5337 = vmatprep.mubr.f32.mxu0 0.0
    %v5338 = vand.u32 %v3601, 4294901760
    %5339 = vmatmul.mubr.f32.gmra.mxu0 %v5338
    %v5340 = vpop.f32.mrf.mxu0
    %v5341 = vadd.f32 %v5132, %v5340
    %v5342 = vpop.f32.mrf.mxu0
    %v5343 = vadd.f32 %v5134, %v5342
    %5344 = vmatprep.mubr.f32.mxu0 0.0
    %v5345 = vand.u32 %v3604, 4294901760
    %5346 = vmatmul.mubr.f32.gmra.mxu0 %v5345
    %v5347 = vpop.f32.mrf.mxu0
    %v5348 = vadd.f32 %v5139, %v5347
    %v5349 = vpop.f32.mrf.mxu0
    %v5350 = vadd.f32 %v5141, %v5349
    %5351 = vmatprep.mubr.f32.mxu0 0.0
    %v5352 = vand.u32 %v3607, 4294901760
    %5353 = vmatmul.mubr.f32.gmra.mxu0 %v5352
    %v5354 = vpop.f32.mrf.mxu0
    %v5355 = vadd.f32 %v5146, %v5354
    %v5356 = vpop.f32.mrf.mxu0
    %v5357 = vadd.f32 %v5148, %v5356
    %5358 = vmatprep.mubr.f32.mxu0 0.0
    %v5359 = vand.u32 %v3610, 4294901760
    %5360 = vmatmul.mubr.f32.gmra.mxu0 %v5359
    %v5361 = vpop.f32.mrf.mxu0
    %v5362 = vadd.f32 %v5153, %v5361
    %v5363 = vpop.f32.mrf.mxu0
    %v5364 = vadd.f32 %v5155, %v5363
    %5365 = vmatprep.mubr.f32.mxu0 0.0
    %v5366 = vand.u32 %v3613, 4294901760
    %5367 = vmatmul.mubr.f32.gmra.mxu0 %v5366
    %v5368 = vpop.f32.mrf.mxu0
    %v5369 = vadd.f32 %v5160, %v5368
    %v5370 = vpop.f32.mrf.mxu0
    %v5371 = vadd.f32 %v5162, %v5370
    %5372 = vmatprep.mubr.f32.mxu0 0.0
    %v5373 = vand.u32 %v3616, 4294901760
    %5374 = vmatmul.mubr.f32.gmra.mxu0 %v5373
    %v5375 = vpop.f32.mrf.mxu0
    %v5376 = vadd.f32 %v5167, %v5375
    %v5377 = vpop.f32.mrf.mxu0
    %v5378 = vadd.f32 %v5169, %v5377
    %5379 = vmatprep.mubr.f32.mxu0 0.0
    %v5380 = vand.u32 %v3619, 4294901760
    %5381 = vmatmul.mubr.f32.gmra.mxu0 %v5380
    %v5382 = vpop.f32.mrf.mxu0
    %v5383 = vadd.f32 %v5174, %v5382
    %v5384 = vpop.f32.mrf.mxu0
    %v5385 = vadd.f32 %v5176, %v5384
    %5386 = vmatprep.mubr.f32.mxu0 0.0
    %v5387 = vand.u32 %v3622, 4294901760
    %5388 = vmatmul.mubr.f32.gmra.mxu0 %v5387
    %v5389 = vpop.f32.mrf.mxu0
    %v5390 = vadd.f32 %v5181, %v5389
    %v5391 = vpop.f32.mrf.mxu0
    %v5392 = vadd.f32 %v5183, %v5391
    %5393 = vmatprep.mubr.f32.mxu0 0.0
    %v5394 = vand.u32 %v3625, 4294901760
    %5395 = vmatmul.mubr.f32.gmra.mxu0 %v5394
    %v5396 = vpop.f32.mrf.mxu0
    %v5397 = vadd.f32 %v5188, %v5396
    %v5398 = vpop.f32.mrf.mxu0
    %v5399 = vadd.f32 %v5190, %v5398
    %5400 = vmatprep.mubr.f32.mxu0 0.0
    %v5401 = vand.u32 %v3628, 4294901760
    %5402 = vmatmul.mubr.f32.gmra.mxu0 %v5401
    %v5403 = vpop.f32.mrf.mxu0
    %v5404 = vadd.f32 %v5195, %v5403
    %v5405 = vpop.f32.mrf.mxu0
    %v5406 = vadd.f32 %v5197, %v5405
    %5407 = vmatprep.mubr.f32.mxu0 0.0
    %v5408 = vand.u32 %v3631, 4294901760
    %5409 = vmatmul.mubr.f32.gmra.mxu0 %v5408
    %v5410 = vpop.f32.mrf.mxu0
    %v5411 = vadd.f32 %v5202, %v5410
    %v5412 = vpop.f32.mrf.mxu0
    %v5413 = vadd.f32 %v5204, %v5412
    %5414 = vdwg.mxu0
    %5415 = vmatprep.subr.mxu0 0.0
    %v5416 = vand.u32 %v3775, 4294901760
    %5417 = vmatpush1.xpose.msra.mxu0 %v5416
    %5418 = vmatprep.subr.mxu0 0.0
    %v5419 = vand.u32 %v3772, 4294901760
    %5420 = vmatpush1.xpose.msra.mxu0 %v5419
    %5421 = vmatprep.subr.mxu0 0.0
    %v5422 = vand.u32 %v3769, 4294901760
    %5423 = vmatpush1.xpose.msra.mxu0 %v5422
    %5424 = vmatprep.subr.mxu0 0.0
    %v5425 = vand.u32 %v3766, 4294901760
    %5426 = vmatpush1.xpose.msra.mxu0 %v5425
    %5427 = vmatprep.subr.mxu0 0.0
    %v5428 = vand.u32 %v3763, 4294901760
    %5429 = vmatpush1.xpose.msra.mxu0 %v5428
    %5430 = vmatprep.subr.mxu0 0.0
    %v5431 = vand.u32 %v3760, 4294901760
    %5432 = vmatpush1.xpose.msra.mxu0 %v5431
    %5433 = vmatprep.subr.mxu0 0.0
    %v5434 = vand.u32 %v3757, 4294901760
    %5435 = vmatpush1.xpose.msra.mxu0 %v5434
    %5436 = vmatprep.subr.mxu0 0.0
    %v5437 = vand.u32 %v3754, 4294901760
    %5438 = vmatpush1.xpose.msra.mxu0 %v5437
    %5439 = vmatprep.subr.mxu0 0.0
    %v5440 = vand.u32 %v3751, 4294901760
    %5441 = vmatpush1.xpose.msra.mxu0 %v5440
    %5442 = vmatprep.subr.mxu0 0.0
    %v5443 = vand.u32 %v3748, 4294901760
    %5444 = vmatpush1.xpose.msra.mxu0 %v5443
    %5445 = vmatprep.subr.mxu0 0.0
    %v5446 = vand.u32 %v3745, 4294901760
    %5447 = vmatpush1.xpose.msra.mxu0 %v5446
    %5448 = vmatprep.subr.mxu0 0.0
    %v5449 = vand.u32 %v3742, 4294901760
    %5450 = vmatpush1.xpose.msra.mxu0 %v5449
    %5451 = vmatprep.subr.mxu0 0.0
    %v5452 = vand.u32 %v3739, 4294901760
    %5453 = vmatpush1.xpose.msra.mxu0 %v5452
    %5454 = vmatprep.subr.mxu0 0.0
    %v5455 = vand.u32 %v3736, 4294901760
    %5456 = vmatpush1.xpose.msra.mxu0 %v5455
    %5457 = vmatprep.subr.mxu0 0.0
    %v5458 = vand.u32 %v3733, 4294901760
    %5459 = vmatpush1.xpose.msra.mxu0 %v5458
    %5460 = vmatprep.subr.mxu0 0.0
    %v5461 = vand.u32 %v3730, 4294901760
    %5462 = vmatpush1.xpose.msra.mxu0 %v5461
    %5463 = vmatprep.subr.mxu0 0.0
    %v5464 = vand.u32 %v3823, 4294901760
    %5465 = vmatpush2.xpose.msra.mxu0 %v5464
    %5466 = vmatprep.subr.mxu0 0.0
    %v5467 = vand.u32 %v3820, 4294901760
    %5468 = vmatpush2.xpose.msra.mxu0 %v5467
    %5469 = vmatprep.subr.mxu0 0.0
    %v5470 = vand.u32 %v3817, 4294901760
    %5471 = vmatpush2.xpose.msra.mxu0 %v5470
    %5472 = vmatprep.subr.mxu0 0.0
    %v5473 = vand.u32 %v3814, 4294901760
    %5474 = vmatpush2.xpose.msra.mxu0 %v5473
    %5475 = vmatprep.subr.mxu0 0.0
    %v5476 = vand.u32 %v3811, 4294901760
    %5477 = vmatpush2.xpose.msra.mxu0 %v5476
    %5478 = vmatprep.subr.mxu0 0.0
    %v5479 = vand.u32 %v3808, 4294901760
    %5480 = vmatpush2.xpose.msra.mxu0 %v5479
    %5481 = vmatprep.subr.mxu0 0.0
    %v5482 = vand.u32 %v3805, 4294901760
    %5483 = vmatpush2.xpose.msra.mxu0 %v5482
    %5484 = vmatprep.subr.mxu0 0.0
    %v5485 = vand.u32 %v3802, 4294901760
    %5486 = vmatpush2.xpose.msra.mxu0 %v5485
    %5487 = vmatprep.subr.mxu0 0.0
    %v5488 = vand.u32 %v3799, 4294901760
    %5489 = vmatpush2.xpose.msra.mxu0 %v5488
    %5490 = vmatprep.subr.mxu0 0.0
    %v5491 = vand.u32 %v3796, 4294901760
    %5492 = vmatpush2.xpose.msra.mxu0 %v5491
    %5493 = vmatprep.subr.mxu0 0.0
    %v5494 = vand.u32 %v3793, 4294901760
    %5495 = vmatpush2.xpose.msra.mxu0 %v5494
    %5496 = vmatprep.subr.mxu0 0.0
    %v5497 = vand.u32 %v3790, 4294901760
    %5498 = vmatpush2.xpose.msra.mxu0 %v5497
    %5499 = vmatprep.subr.mxu0 0.0
    %v5500 = vand.u32 %v3787, 4294901760
    %5501 = vmatpush2.xpose.msra.mxu0 %v5500
    %5502 = vmatprep.subr.mxu0 0.0
    %v5503 = vand.u32 %v3784, 4294901760
    %5504 = vmatpush2.xpose.msra.mxu0 %v5503
    %5505 = vmatprep.subr.mxu0 0.0
    %v5506 = vand.u32 %v3781, 4294901760
    %5507 = vmatpush2.xpose.msra.mxu0 %v5506
    %5508 = vmatprep.subr.mxu0 0.0
    %v5509 = vand.u32 %v3778, 4294901760
    %5510 = vmatpush2.xpose.msra.mxu0 %v5509
    %5511 = vmatprep.mubr.f32.mxu0 0.0
    %v5512 = vand.u32 %v3586, 4294901760
    %v5513 = vsub.f32 %v3586, %v5512
    %v5514 = vand.u32 %v5513, 4294901760
    %v5515 = vsub.f32 %v5513, %v5514
    %v5516 = vand.u32 %v5515, 4294901760
    %5517 = vmatmul.mubr.f32.gmra.mxu0 %v5516
    %v5518 = vpop.f32.mrf.mxu0
    %v5519 = vadd.f32 0.0, %v5518
    %v5520 = vpop.f32.mrf.mxu0
    %v5521 = vadd.f32 0.0, %v5520
    %5522 = vmatprep.mubr.f32.mxu0 0.0
    %v5523 = vand.u32 %v3589, 4294901760
    %v5524 = vsub.f32 %v3589, %v5523
    %v5525 = vand.u32 %v5524, 4294901760
    %v5526 = vsub.f32 %v5524, %v5525
    %v5527 = vand.u32 %v5526, 4294901760
    %5528 = vmatmul.mubr.f32.gmra.mxu0 %v5527
    %v5529 = vpop.f32.mrf.mxu0
    %v5530 = vadd.f32 0.0, %v5529
    %v5531 = vpop.f32.mrf.mxu0
    %v5532 = vadd.f32 0.0, %v5531
    %5533 = vmatprep.mubr.f32.mxu0 0.0
    %v5534 = vand.u32 %v3592, 4294901760
    %v5535 = vsub.f32 %v3592, %v5534
    %v5536 = vand.u32 %v5535, 4294901760
    %v5537 = vsub.f32 %v5535, %v5536
    %v5538 = vand.u32 %v5537, 4294901760
    %5539 = vmatmul.mubr.f32.gmra.mxu0 %v5538
    %v5540 = vpop.f32.mrf.mxu0
    %v5541 = vadd.f32 0.0, %v5540
    %v5542 = vpop.f32.mrf.mxu0
    %v5543 = vadd.f32 0.0, %v5542
    %5544 = vmatprep.mubr.f32.mxu0 0.0
    %v5545 = vand.u32 %v3595, 4294901760
    %v5546 = vsub.f32 %v3595, %v5545
    %v5547 = vand.u32 %v5546, 4294901760
    %v5548 = vsub.f32 %v5546, %v5547
    %v5549 = vand.u32 %v5548, 4294901760
    %5550 = vmatmul.mubr.f32.gmra.mxu0 %v5549
    %v5551 = vpop.f32.mrf.mxu0
    %v5552 = vadd.f32 0.0, %v5551
    %v5553 = vpop.f32.mrf.mxu0
    %v5554 = vadd.f32 0.0, %v5553
    %5555 = vmatprep.mubr.f32.mxu0 0.0
    %v5556 = vand.u32 %v3598, 4294901760
    %v5557 = vsub.f32 %v3598, %v5556
    %v5558 = vand.u32 %v5557, 4294901760
    %v5559 = vsub.f32 %v5557, %v5558
    %v5560 = vand.u32 %v5559, 4294901760
    %5561 = vmatmul.mubr.f32.gmra.mxu0 %v5560
    %v5562 = vpop.f32.mrf.mxu0
    %v5563 = vadd.f32 0.0, %v5562
    %v5564 = vpop.f32.mrf.mxu0
    %v5565 = vadd.f32 0.0, %v5564
    %5566 = vmatprep.mubr.f32.mxu0 0.0
    %v5567 = vand.u32 %v3601, 4294901760
    %v5568 = vsub.f32 %v3601, %v5567
    %v5569 = vand.u32 %v5568, 4294901760
    %v5570 = vsub.f32 %v5568, %v5569
    %v5571 = vand.u32 %v5570, 4294901760
    %5572 = vmatmul.mubr.f32.gmra.mxu0 %v5571
    %v5573 = vpop.f32.mrf.mxu0
    %v5574 = vadd.f32 0.0, %v5573
    %v5575 = vpop.f32.mrf.mxu0
    %v5576 = vadd.f32 0.0, %v5575
    %5577 = vmatprep.mubr.f32.mxu0 0.0
    %v5578 = vand.u32 %v3604, 4294901760
    %v5579 = vsub.f32 %v3604, %v5578
    %v5580 = vand.u32 %v5579, 4294901760
    %v5581 = vsub.f32 %v5579, %v5580
    %v5582 = vand.u32 %v5581, 4294901760
    %5583 = vmatmul.mubr.f32.gmra.mxu0 %v5582
    %v5584 = vpop.f32.mrf.mxu0
    %v5585 = vadd.f32 0.0, %v5584
    %v5586 = vpop.f32.mrf.mxu0
    %v5587 = vadd.f32 0.0, %v5586
    %5588 = vmatprep.mubr.f32.mxu0 0.0
    %v5589 = vand.u32 %v3607, 4294901760
    %v5590 = vsub.f32 %v3607, %v5589
    %v5591 = vand.u32 %v5590, 4294901760
    %v5592 = vsub.f32 %v5590, %v5591
    %v5593 = vand.u32 %v5592, 4294901760
    %5594 = vmatmul.mubr.f32.gmra.mxu0 %v5593
    %v5595 = vpop.f32.mrf.mxu0
    %v5596 = vadd.f32 0.0, %v5595
    %v5597 = vpop.f32.mrf.mxu0
    %v5598 = vadd.f32 0.0, %v5597
    %5599 = vmatprep.mubr.f32.mxu0 0.0
    %v5600 = vand.u32 %v3610, 4294901760
    %v5601 = vsub.f32 %v3610, %v5600
    %v5602 = vand.u32 %v5601, 4294901760
    %v5603 = vsub.f32 %v5601, %v5602
    %v5604 = vand.u32 %v5603, 4294901760
    %5605 = vmatmul.mubr.f32.gmra.mxu0 %v5604
    %v5606 = vpop.f32.mrf.mxu0
    %v5607 = vadd.f32 0.0, %v5606
    %v5608 = vpop.f32.mrf.mxu0
    %v5609 = vadd.f32 0.0, %v5608
    %5610 = vmatprep.mubr.f32.mxu0 0.0
    %v5611 = vand.u32 %v3613, 4294901760
    %v5612 = vsub.f32 %v3613, %v5611
    %v5613 = vand.u32 %v5612, 4294901760
    %v5614 = vsub.f32 %v5612, %v5613
    %v5615 = vand.u32 %v5614, 4294901760
    %5616 = vmatmul.mubr.f32.gmra.mxu0 %v5615
    %v5617 = vpop.f32.mrf.mxu0
    %v5618 = vadd.f32 0.0, %v5617
    %v5619 = vpop.f32.mrf.mxu0
    %v5620 = vadd.f32 0.0, %v5619
    %5621 = vmatprep.mubr.f32.mxu0 0.0
    %v5622 = vand.u32 %v3616, 4294901760
    %v5623 = vsub.f32 %v3616, %v5622
    %v5624 = vand.u32 %v5623, 4294901760
    %v5625 = vsub.f32 %v5623, %v5624
    %v5626 = vand.u32 %v5625, 4294901760
    %5627 = vmatmul.mubr.f32.gmra.mxu0 %v5626
    %v5628 = vpop.f32.mrf.mxu0
    %v5629 = vadd.f32 0.0, %v5628
    %v5630 = vpop.f32.mrf.mxu0
    %v5631 = vadd.f32 0.0, %v5630
    %5632 = vmatprep.mubr.f32.mxu0 0.0
    %v5633 = vand.u32 %v3619, 4294901760
    %v5634 = vsub.f32 %v3619, %v5633
    %v5635 = vand.u32 %v5634, 4294901760
    %v5636 = vsub.f32 %v5634, %v5635
    %v5637 = vand.u32 %v5636, 4294901760
    %5638 = vmatmul.mubr.f32.gmra.mxu0 %v5637
    %v5639 = vpop.f32.mrf.mxu0
    %v5640 = vadd.f32 0.0, %v5639
    %v5641 = vpop.f32.mrf.mxu0
    %v5642 = vadd.f32 0.0, %v5641
    %5643 = vmatprep.mubr.f32.mxu0 0.0
    %v5644 = vand.u32 %v3622, 4294901760
    %v5645 = vsub.f32 %v3622, %v5644
    %v5646 = vand.u32 %v5645, 4294901760
    %v5647 = vsub.f32 %v5645, %v5646
    %v5648 = vand.u32 %v5647, 4294901760
    %5649 = vmatmul.mubr.f32.gmra.mxu0 %v5648
    %v5650 = vpop.f32.mrf.mxu0
    %v5651 = vadd.f32 0.0, %v5650
    %v5652 = vpop.f32.mrf.mxu0
    %v5653 = vadd.f32 0.0, %v5652
    %5654 = vmatprep.mubr.f32.mxu0 0.0
    %v5655 = vand.u32 %v3625, 4294901760
    %v5656 = vsub.f32 %v3625, %v5655
    %v5657 = vand.u32 %v5656, 4294901760
    %v5658 = vsub.f32 %v5656, %v5657
    %v5659 = vand.u32 %v5658, 4294901760
    %5660 = vmatmul.mubr.f32.gmra.mxu0 %v5659
    %v5661 = vpop.f32.mrf.mxu0
    %v5662 = vadd.f32 0.0, %v5661
    %v5663 = vpop.f32.mrf.mxu0
    %v5664 = vadd.f32 0.0, %v5663
    %5665 = vmatprep.mubr.f32.mxu0 0.0
    %v5666 = vand.u32 %v3628, 4294901760
    %v5667 = vsub.f32 %v3628, %v5666
    %v5668 = vand.u32 %v5667, 4294901760
    %v5669 = vsub.f32 %v5667, %v5668
    %v5670 = vand.u32 %v5669, 4294901760
    %5671 = vmatmul.mubr.f32.gmra.mxu0 %v5670
    %v5672 = vpop.f32.mrf.mxu0
    %v5673 = vadd.f32 0.0, %v5672
    %v5674 = vpop.f32.mrf.mxu0
    %v5675 = vadd.f32 0.0, %v5674
    %5676 = vmatprep.mubr.f32.mxu0 0.0
    %v5677 = vand.u32 %v3631, 4294901760
    %v5678 = vsub.f32 %v3631, %v5677
    %v5679 = vand.u32 %v5678, 4294901760
    %v5680 = vsub.f32 %v5678, %v5679
    %v5681 = vand.u32 %v5680, 4294901760
    %5682 = vmatmul.mubr.f32.gmra.mxu0 %v5681
    %v5683 = vpop.f32.mrf.mxu0
    %v5684 = vadd.f32 0.0, %v5683
    %v5685 = vpop.f32.mrf.mxu0
    %v5686 = vadd.f32 0.0, %v5685
    %5687 = vdwg.mxu0
    %5688 = vmatprep.subr.mxu0 0.0
    %v5689 = vand.u32 %v3775, 4294901760
    %v5690 = vsub.f32 %v3775, %v5689
    %v5691 = vand.u32 %v5690, 4294901760
    %v5692 = vsub.f32 %v5690, %v5691
    %v5693 = vand.u32 %v5692, 4294901760
    %5694 = vmatpush1.xpose.msra.mxu0 %v5693
    %5695 = vmatprep.subr.mxu0 0.0
    %v5696 = vand.u32 %v3772, 4294901760
    %v5697 = vsub.f32 %v3772, %v5696
    %v5698 = vand.u32 %v5697, 4294901760
    %v5699 = vsub.f32 %v5697, %v5698
    %v5700 = vand.u32 %v5699, 4294901760
    %5701 = vmatpush1.xpose.msra.mxu0 %v5700
    %5702 = vmatprep.subr.mxu0 0.0
    %v5703 = vand.u32 %v3769, 4294901760
    %v5704 = vsub.f32 %v3769, %v5703
    %v5705 = vand.u32 %v5704, 4294901760
    %v5706 = vsub.f32 %v5704, %v5705
    %v5707 = vand.u32 %v5706, 4294901760
    %5708 = vmatpush1.xpose.msra.mxu0 %v5707
    %5709 = vmatprep.subr.mxu0 0.0
    %v5710 = vand.u32 %v3766, 4294901760
    %v5711 = vsub.f32 %v3766, %v5710
    %v5712 = vand.u32 %v5711, 4294901760
    %v5713 = vsub.f32 %v5711, %v5712
    %v5714 = vand.u32 %v5713, 4294901760
    %5715 = vmatpush1.xpose.msra.mxu0 %v5714
    %5716 = vmatprep.subr.mxu0 0.0
    %v5717 = vand.u32 %v3763, 4294901760
    %v5718 = vsub.f32 %v3763, %v5717
    %v5719 = vand.u32 %v5718, 4294901760
    %v5720 = vsub.f32 %v5718, %v5719
    %v5721 = vand.u32 %v5720, 4294901760
    %5722 = vmatpush1.xpose.msra.mxu0 %v5721
    %5723 = vmatprep.subr.mxu0 0.0
    %v5724 = vand.u32 %v3760, 4294901760
    %v5725 = vsub.f32 %v3760, %v5724
    %v5726 = vand.u32 %v5725, 4294901760
    %v5727 = vsub.f32 %v5725, %v5726
    %v5728 = vand.u32 %v5727, 4294901760
    %5729 = vmatpush1.xpose.msra.mxu0 %v5728
    %5730 = vmatprep.subr.mxu0 0.0
    %v5731 = vand.u32 %v3757, 4294901760
    %v5732 = vsub.f32 %v3757, %v5731
    %v5733 = vand.u32 %v5732, 4294901760
    %v5734 = vsub.f32 %v5732, %v5733
    %v5735 = vand.u32 %v5734, 4294901760
    %5736 = vmatpush1.xpose.msra.mxu0 %v5735
    %5737 = vmatprep.subr.mxu0 0.0
    %v5738 = vand.u32 %v3754, 4294901760
    %v5739 = vsub.f32 %v3754, %v5738
    %v5740 = vand.u32 %v5739, 4294901760
    %v5741 = vsub.f32 %v5739, %v5740
    %v5742 = vand.u32 %v5741, 4294901760
    %5743 = vmatpush1.xpose.msra.mxu0 %v5742
    %5744 = vmatprep.subr.mxu0 0.0
    %v5745 = vand.u32 %v3751, 4294901760
    %v5746 = vsub.f32 %v3751, %v5745
    %v5747 = vand.u32 %v5746, 4294901760
    %v5748 = vsub.f32 %v5746, %v5747
    %v5749 = vand.u32 %v5748, 4294901760
    %5750 = vmatpush1.xpose.msra.mxu0 %v5749
    %5751 = vmatprep.subr.mxu0 0.0
    %v5752 = vand.u32 %v3748, 4294901760
    %v5753 = vsub.f32 %v3748, %v5752
    %v5754 = vand.u32 %v5753, 4294901760
    %v5755 = vsub.f32 %v5753, %v5754
    %v5756 = vand.u32 %v5755, 4294901760
    %5757 = vmatpush1.xpose.msra.mxu0 %v5756
    %5758 = vmatprep.subr.mxu0 0.0
    %v5759 = vand.u32 %v3745, 4294901760
    %v5760 = vsub.f32 %v3745, %v5759
    %v5761 = vand.u32 %v5760, 4294901760
    %v5762 = vsub.f32 %v5760, %v5761
    %v5763 = vand.u32 %v5762, 4294901760
    %5764 = vmatpush1.xpose.msra.mxu0 %v5763
    %5765 = vmatprep.subr.mxu0 0.0
    %v5766 = vand.u32 %v3742, 4294901760
    %v5767 = vsub.f32 %v3742, %v5766
    %v5768 = vand.u32 %v5767, 4294901760
    %v5769 = vsub.f32 %v5767, %v5768
    %v5770 = vand.u32 %v5769, 4294901760
    %5771 = vmatpush1.xpose.msra.mxu0 %v5770
    %5772 = vmatprep.subr.mxu0 0.0
    %v5773 = vand.u32 %v3739, 4294901760
    %v5774 = vsub.f32 %v3739, %v5773
    %v5775 = vand.u32 %v5774, 4294901760
    %v5776 = vsub.f32 %v5774, %v5775
    %v5777 = vand.u32 %v5776, 4294901760
    %5778 = vmatpush1.xpose.msra.mxu0 %v5777
    %5779 = vmatprep.subr.mxu0 0.0
    %v5780 = vand.u32 %v3736, 4294901760
    %v5781 = vsub.f32 %v3736, %v5780
    %v5782 = vand.u32 %v5781, 4294901760
    %v5783 = vsub.f32 %v5781, %v5782
    %v5784 = vand.u32 %v5783, 4294901760
    %5785 = vmatpush1.xpose.msra.mxu0 %v5784
    %5786 = vmatprep.subr.mxu0 0.0
    %v5787 = vand.u32 %v3733, 4294901760
    %v5788 = vsub.f32 %v3733, %v5787
    %v5789 = vand.u32 %v5788, 4294901760
    %v5790 = vsub.f32 %v5788, %v5789
    %v5791 = vand.u32 %v5790, 4294901760
    %5792 = vmatpush1.xpose.msra.mxu0 %v5791
    %5793 = vmatprep.subr.mxu0 0.0
    %v5794 = vand.u32 %v3730, 4294901760
    %v5795 = vsub.f32 %v3730, %v5794
    %v5796 = vand.u32 %v5795, 4294901760
    %v5797 = vsub.f32 %v5795, %v5796
    %v5798 = vand.u32 %v5797, 4294901760
    %5799 = vmatpush1.xpose.msra.mxu0 %v5798
    %5800 = vmatprep.subr.mxu0 0.0
    %v5801 = vand.u32 %v3823, 4294901760
    %v5802 = vsub.f32 %v3823, %v5801
    %v5803 = vand.u32 %v5802, 4294901760
    %v5804 = vsub.f32 %v5802, %v5803
    %v5805 = vand.u32 %v5804, 4294901760
    %5806 = vmatpush2.xpose.msra.mxu0 %v5805
    %5807 = vmatprep.subr.mxu0 0.0
    %v5808 = vand.u32 %v3820, 4294901760
    %v5809 = vsub.f32 %v3820, %v5808
    %v5810 = vand.u32 %v5809, 4294901760
    %v5811 = vsub.f32 %v5809, %v5810
    %v5812 = vand.u32 %v5811, 4294901760
    %5813 = vmatpush2.xpose.msra.mxu0 %v5812
    %5814 = vmatprep.subr.mxu0 0.0
    %v5815 = vand.u32 %v3817, 4294901760
    %v5816 = vsub.f32 %v3817, %v5815
    %v5817 = vand.u32 %v5816, 4294901760
    %v5818 = vsub.f32 %v5816, %v5817
    %v5819 = vand.u32 %v5818, 4294901760
    %5820 = vmatpush2.xpose.msra.mxu0 %v5819
    %5821 = vmatprep.subr.mxu0 0.0
    %v5822 = vand.u32 %v3814, 4294901760
    %v5823 = vsub.f32 %v3814, %v5822
    %v5824 = vand.u32 %v5823, 4294901760
    %v5825 = vsub.f32 %v5823, %v5824
    %v5826 = vand.u32 %v5825, 4294901760
    %5827 = vmatpush2.xpose.msra.mxu0 %v5826
    %5828 = vmatprep.subr.mxu0 0.0
    %v5829 = vand.u32 %v3811, 4294901760
    %v5830 = vsub.f32 %v3811, %v5829
    %v5831 = vand.u32 %v5830, 4294901760
    %v5832 = vsub.f32 %v5830, %v5831
    %v5833 = vand.u32 %v5832, 4294901760
    %5834 = vmatpush2.xpose.msra.mxu0 %v5833
    %5835 = vmatprep.subr.mxu0 0.0
    %v5836 = vand.u32 %v3808, 4294901760
    %v5837 = vsub.f32 %v3808, %v5836
    %v5838 = vand.u32 %v5837, 4294901760
    %v5839 = vsub.f32 %v5837, %v5838
    %v5840 = vand.u32 %v5839, 4294901760
    %5841 = vmatpush2.xpose.msra.mxu0 %v5840
    %5842 = vmatprep.subr.mxu0 0.0
    %v5843 = vand.u32 %v3805, 4294901760
    %v5844 = vsub.f32 %v3805, %v5843
    %v5845 = vand.u32 %v5844, 4294901760
    %v5846 = vsub.f32 %v5844, %v5845
    %v5847 = vand.u32 %v5846, 4294901760
    %5848 = vmatpush2.xpose.msra.mxu0 %v5847
    %5849 = vmatprep.subr.mxu0 0.0
    %v5850 = vand.u32 %v3802, 4294901760
    %v5851 = vsub.f32 %v3802, %v5850
    %v5852 = vand.u32 %v5851, 4294901760
    %v5853 = vsub.f32 %v5851, %v5852
    %v5854 = vand.u32 %v5853, 4294901760
    %5855 = vmatpush2.xpose.msra.mxu0 %v5854
    %5856 = vmatprep.subr.mxu0 0.0
    %v5857 = vand.u32 %v3799, 4294901760
    %v5858 = vsub.f32 %v3799, %v5857
    %v5859 = vand.u32 %v5858, 4294901760
    %v5860 = vsub.f32 %v5858, %v5859
    %v5861 = vand.u32 %v5860, 4294901760
    %5862 = vmatpush2.xpose.msra.mxu0 %v5861
    %5863 = vmatprep.subr.mxu0 0.0
    %v5864 = vand.u32 %v3796, 4294901760
    %v5865 = vsub.f32 %v3796, %v5864
    %v5866 = vand.u32 %v5865, 4294901760
    %v5867 = vsub.f32 %v5865, %v5866
    %v5868 = vand.u32 %v5867, 4294901760
    %5869 = vmatpush2.xpose.msra.mxu0 %v5868
    %5870 = vmatprep.subr.mxu0 0.0
    %v5871 = vand.u32 %v3793, 4294901760
    %v5872 = vsub.f32 %v3793, %v5871
    %v5873 = vand.u32 %v5872, 4294901760
    %v5874 = vsub.f32 %v5872, %v5873
    %v5875 = vand.u32 %v5874, 4294901760
    %5876 = vmatpush2.xpose.msra.mxu0 %v5875
    %5877 = vmatprep.subr.mxu0 0.0
    %v5878 = vand.u32 %v3790, 4294901760
    %v5879 = vsub.f32 %v3790, %v5878
    %v5880 = vand.u32 %v5879, 4294901760
    %v5881 = vsub.f32 %v5879, %v5880
    %v5882 = vand.u32 %v5881, 4294901760
    %5883 = vmatpush2.xpose.msra.mxu0 %v5882
    %5884 = vmatprep.subr.mxu0 0.0
    %v5885 = vand.u32 %v3787, 4294901760
    %v5886 = vsub.f32 %v3787, %v5885
    %v5887 = vand.u32 %v5886, 4294901760
    %v5888 = vsub.f32 %v5886, %v5887
    %v5889 = vand.u32 %v5888, 4294901760
    %5890 = vmatpush2.xpose.msra.mxu0 %v5889
    %5891 = vmatprep.subr.mxu0 0.0
    %v5892 = vand.u32 %v3784, 4294901760
    %v5893 = vsub.f32 %v3784, %v5892
    %v5894 = vand.u32 %v5893, 4294901760
    %v5895 = vsub.f32 %v5893, %v5894
    %v5896 = vand.u32 %v5895, 4294901760
    %5897 = vmatpush2.xpose.msra.mxu0 %v5896
    %5898 = vmatprep.subr.mxu0 0.0
    %v5899 = vand.u32 %v3781, 4294901760
    %v5900 = vsub.f32 %v3781, %v5899
    %v5901 = vand.u32 %v5900, 4294901760
    %v5902 = vsub.f32 %v5900, %v5901
    %v5903 = vand.u32 %v5902, 4294901760
    %5904 = vmatpush2.xpose.msra.mxu0 %v5903
    %5905 = vmatprep.subr.mxu0 0.0
    %v5906 = vand.u32 %v3778, 4294901760
    %v5907 = vsub.f32 %v3778, %v5906
    %v5908 = vand.u32 %v5907, 4294901760
    %v5909 = vsub.f32 %v5907, %v5908
    %v5910 = vand.u32 %v5909, 4294901760
    %5911 = vmatpush2.xpose.msra.mxu0 %v5910
    %5912 = vmatprep.mubr.f32.mxu0 0.0
    %v5913 = vand.u32 %v3586, 4294901760
    %5914 = vmatmul.mubr.f32.gmra.mxu0 %v5913
    %v5915 = vpop.f32.mrf.mxu0
    %v5916 = vadd.f32 %v5519, %v5915
    %v5917 = vpop.f32.mrf.mxu0
    %v5918 = vadd.f32 %v5521, %v5917
    %5919 = vmatprep.mubr.f32.mxu0 0.0
    %v5920 = vand.u32 %v3589, 4294901760
    %5921 = vmatmul.mubr.f32.gmra.mxu0 %v5920
    %v5922 = vpop.f32.mrf.mxu0
    %v5923 = vadd.f32 %v5530, %v5922
    %v5924 = vpop.f32.mrf.mxu0
    %v5925 = vadd.f32 %v5532, %v5924
    %5926 = vmatprep.mubr.f32.mxu0 0.0
    %v5927 = vand.u32 %v3592, 4294901760
    %5928 = vmatmul.mubr.f32.gmra.mxu0 %v5927
    %v5929 = vpop.f32.mrf.mxu0
    %v5930 = vadd.f32 %v5541, %v5929
    %v5931 = vpop.f32.mrf.mxu0
    %v5932 = vadd.f32 %v5543, %v5931
    %5933 = vmatprep.mubr.f32.mxu0 0.0
    %v5934 = vand.u32 %v3595, 4294901760
    %5935 = vmatmul.mubr.f32.gmra.mxu0 %v5934
    %v5936 = vpop.f32.mrf.mxu0
    %v5937 = vadd.f32 %v5552, %v5936
    %v5938 = vpop.f32.mrf.mxu0
    %v5939 = vadd.f32 %v5554, %v5938
    %5940 = vmatprep.mubr.f32.mxu0 0.0
    %v5941 = vand.u32 %v3598, 4294901760
    %5942 = vmatmul.mubr.f32.gmra.mxu0 %v5941
    %v5943 = vpop.f32.mrf.mxu0
    %v5944 = vadd.f32 %v5563, %v5943
    %v5945 = vpop.f32.mrf.mxu0
    %v5946 = vadd.f32 %v5565, %v5945
    %5947 = vmatprep.mubr.f32.mxu0 0.0
    %v5948 = vand.u32 %v3601, 4294901760
    %5949 = vmatmul.mubr.f32.gmra.mxu0 %v5948
    %v5950 = vpop.f32.mrf.mxu0
    %v5951 = vadd.f32 %v5574, %v5950
    %v5952 = vpop.f32.mrf.mxu0
    %v5953 = vadd.f32 %v5576, %v5952
    %5954 = vmatprep.mubr.f32.mxu0 0.0
    %v5955 = vand.u32 %v3604, 4294901760
    %5956 = vmatmul.mubr.f32.gmra.mxu0 %v5955
    %v5957 = vpop.f32.mrf.mxu0
    %v5958 = vadd.f32 %v5585, %v5957
    %v5959 = vpop.f32.mrf.mxu0
    %v5960 = vadd.f32 %v5587, %v5959
    %5961 = vmatprep.mubr.f32.mxu0 0.0
    %v5962 = vand.u32 %v3607, 4294901760
    %5963 = vmatmul.mubr.f32.gmra.mxu0 %v5962
    %v5964 = vpop.f32.mrf.mxu0
    %v5965 = vadd.f32 %v5596, %v5964
    %v5966 = vpop.f32.mrf.mxu0
    %v5967 = vadd.f32 %v5598, %v5966
    %5968 = vmatprep.mubr.f32.mxu0 0.0
    %v5969 = vand.u32 %v3610, 4294901760
    %5970 = vmatmul.mubr.f32.gmra.mxu0 %v5969
    %v5971 = vpop.f32.mrf.mxu0
    %v5972 = vadd.f32 %v5607, %v5971
    %v5973 = vpop.f32.mrf.mxu0
    %v5974 = vadd.f32 %v5609, %v5973
    %5975 = vmatprep.mubr.f32.mxu0 0.0
    %v5976 = vand.u32 %v3613, 4294901760
    %5977 = vmatmul.mubr.f32.gmra.mxu0 %v5976
    %v5978 = vpop.f32.mrf.mxu0
    %v5979 = vadd.f32 %v5618, %v5978
    %v5980 = vpop.f32.mrf.mxu0
    %v5981 = vadd.f32 %v5620, %v5980
    %5982 = vmatprep.mubr.f32.mxu0 0.0
    %v5983 = vand.u32 %v3616, 4294901760
    %5984 = vmatmul.mubr.f32.gmra.mxu0 %v5983
    %v5985 = vpop.f32.mrf.mxu0
    %v5986 = vadd.f32 %v5629, %v5985
    %v5987 = vpop.f32.mrf.mxu0
    %v5988 = vadd.f32 %v5631, %v5987
    %5989 = vmatprep.mubr.f32.mxu0 0.0
    %v5990 = vand.u32 %v3619, 4294901760
    %5991 = vmatmul.mubr.f32.gmra.mxu0 %v5990
    %v5992 = vpop.f32.mrf.mxu0
    %v5993 = vadd.f32 %v5640, %v5992
    %v5994 = vpop.f32.mrf.mxu0
    %v5995 = vadd.f32 %v5642, %v5994
    %5996 = vmatprep.mubr.f32.mxu0 0.0
    %v5997 = vand.u32 %v3622, 4294901760
    %5998 = vmatmul.mubr.f32.gmra.mxu0 %v5997
    %v5999 = vpop.f32.mrf.mxu0
    %v6000 = vadd.f32 %v5651, %v5999
    %v6001 = vpop.f32.mrf.mxu0
    %v6002 = vadd.f32 %v5653, %v6001
    %6003 = vmatprep.mubr.f32.mxu0 0.0
    %v6004 = vand.u32 %v3625, 4294901760
    %6005 = vmatmul.mubr.f32.gmra.mxu0 %v6004
    %v6006 = vpop.f32.mrf.mxu0
    %v6007 = vadd.f32 %v5662, %v6006
    %v6008 = vpop.f32.mrf.mxu0
    %v6009 = vadd.f32 %v5664, %v6008
    %6010 = vmatprep.mubr.f32.mxu0 0.0
    %v6011 = vand.u32 %v3628, 4294901760
    %6012 = vmatmul.mubr.f32.gmra.mxu0 %v6011
    %v6013 = vpop.f32.mrf.mxu0
    %v6014 = vadd.f32 %v5673, %v6013
    %v6015 = vpop.f32.mrf.mxu0
    %v6016 = vadd.f32 %v5675, %v6015
    %6017 = vmatprep.mubr.f32.mxu0 0.0
    %v6018 = vand.u32 %v3631, 4294901760
    %6019 = vmatmul.mubr.f32.gmra.mxu0 %v6018
    %v6020 = vpop.f32.mrf.mxu0
    %v6021 = vadd.f32 %v5684, %v6020
    %v6022 = vpop.f32.mrf.mxu0
    %v6023 = vadd.f32 %v5686, %v6022
    %6024 = vdwg.mxu0
    %6025 = vmatprep.subr.mxu0 0.0
    %v6026 = vand.u32 %v3775, 4294901760
    %v6027 = vsub.f32 %v3775, %v6026
    %6028 = vmatpush1.xpose.msra.mxu0 %v6027
    %6029 = vmatprep.subr.mxu0 0.0
    %v6030 = vand.u32 %v3772, 4294901760
    %v6031 = vsub.f32 %v3772, %v6030
    %6032 = vmatpush1.xpose.msra.mxu0 %v6031
    %6033 = vmatprep.subr.mxu0 0.0
    %v6034 = vand.u32 %v3769, 4294901760
    %v6035 = vsub.f32 %v3769, %v6034
    %6036 = vmatpush1.xpose.msra.mxu0 %v6035
    %6037 = vmatprep.subr.mxu0 0.0
    %v6038 = vand.u32 %v3766, 4294901760
    %v6039 = vsub.f32 %v3766, %v6038
    %6040 = vmatpush1.xpose.msra.mxu0 %v6039
    %6041 = vmatprep.subr.mxu0 0.0
    %v6042 = vand.u32 %v3763, 4294901760
    %v6043 = vsub.f32 %v3763, %v6042
    %6044 = vmatpush1.xpose.msra.mxu0 %v6043
    %6045 = vmatprep.subr.mxu0 0.0
    %v6046 = vand.u32 %v3760, 4294901760
    %v6047 = vsub.f32 %v3760, %v6046
    %6048 = vmatpush1.xpose.msra.mxu0 %v6047
    %6049 = vmatprep.subr.mxu0 0.0
    %v6050 = vand.u32 %v3757, 4294901760
    %v6051 = vsub.f32 %v3757, %v6050
    %6052 = vmatpush1.xpose.msra.mxu0 %v6051
    %6053 = vmatprep.subr.mxu0 0.0
    %v6054 = vand.u32 %v3754, 4294901760
    %v6055 = vsub.f32 %v3754, %v6054
    %6056 = vmatpush1.xpose.msra.mxu0 %v6055
    %6057 = vmatprep.subr.mxu0 0.0
    %v6058 = vand.u32 %v3751, 4294901760
    %v6059 = vsub.f32 %v3751, %v6058
    %6060 = vmatpush1.xpose.msra.mxu0 %v6059
    %6061 = vmatprep.subr.mxu0 0.0
    %v6062 = vand.u32 %v3748, 4294901760
    %v6063 = vsub.f32 %v3748, %v6062
    %6064 = vmatpush1.xpose.msra.mxu0 %v6063
    %6065 = vmatprep.subr.mxu0 0.0
    %v6066 = vand.u32 %v3745, 4294901760
    %v6067 = vsub.f32 %v3745, %v6066
    %6068 = vmatpush1.xpose.msra.mxu0 %v6067
    %6069 = vmatprep.subr.mxu0 0.0
    %v6070 = vand.u32 %v3742, 4294901760
    %v6071 = vsub.f32 %v3742, %v6070
    %6072 = vmatpush1.xpose.msra.mxu0 %v6071
    %6073 = vmatprep.subr.mxu0 0.0
    %v6074 = vand.u32 %v3739, 4294901760
    %v6075 = vsub.f32 %v3739, %v6074
    %6076 = vmatpush1.xpose.msra.mxu0 %v6075
    %6077 = vmatprep.subr.mxu0 0.0
    %v6078 = vand.u32 %v3736, 4294901760
    %v6079 = vsub.f32 %v3736, %v6078
    %6080 = vmatpush1.xpose.msra.mxu0 %v6079
    %6081 = vmatprep.subr.mxu0 0.0
    %v6082 = vand.u32 %v3733, 4294901760
    %v6083 = vsub.f32 %v3733, %v6082
    %6084 = vmatpush1.xpose.msra.mxu0 %v6083
    %6085 = vmatprep.subr.mxu0 0.0
    %v6086 = vand.u32 %v3730, 4294901760
    %v6087 = vsub.f32 %v3730, %v6086
    %6088 = vmatpush1.xpose.msra.mxu0 %v6087
    %6089 = vmatprep.subr.mxu0 0.0
    %v6090 = vand.u32 %v3823, 4294901760
    %v6091 = vsub.f32 %v3823, %v6090
    %6092 = vmatpush2.xpose.msra.mxu0 %v6091
    %6093 = vmatprep.subr.mxu0 0.0
    %v6094 = vand.u32 %v3820, 4294901760
    %v6095 = vsub.f32 %v3820, %v6094
    %6096 = vmatpush2.xpose.msra.mxu0 %v6095
    %6097 = vmatprep.subr.mxu0 0.0
    %v6098 = vand.u32 %v3817, 4294901760
    %v6099 = vsub.f32 %v3817, %v6098
    %6100 = vmatpush2.xpose.msra.mxu0 %v6099
    %6101 = vmatprep.subr.mxu0 0.0
    %v6102 = vand.u32 %v3814, 4294901760
    %v6103 = vsub.f32 %v3814, %v6102
    %6104 = vmatpush2.xpose.msra.mxu0 %v6103
    %6105 = vmatprep.subr.mxu0 0.0
    %v6106 = vand.u32 %v3811, 4294901760
    %v6107 = vsub.f32 %v3811, %v6106
    %6108 = vmatpush2.xpose.msra.mxu0 %v6107
    %6109 = vmatprep.subr.mxu0 0.0
    %v6110 = vand.u32 %v3808, 4294901760
    %v6111 = vsub.f32 %v3808, %v6110
    %6112 = vmatpush2.xpose.msra.mxu0 %v6111
    %6113 = vmatprep.subr.mxu0 0.0
    %v6114 = vand.u32 %v3805, 4294901760
    %v6115 = vsub.f32 %v3805, %v6114
    %6116 = vmatpush2.xpose.msra.mxu0 %v6115
    %6117 = vmatprep.subr.mxu0 0.0
    %v6118 = vand.u32 %v3802, 4294901760
    %v6119 = vsub.f32 %v3802, %v6118
    %6120 = vmatpush2.xpose.msra.mxu0 %v6119
    %6121 = vmatprep.subr.mxu0 0.0
    %v6122 = vand.u32 %v3799, 4294901760
    %v6123 = vsub.f32 %v3799, %v6122
    %6124 = vmatpush2.xpose.msra.mxu0 %v6123
    %6125 = vmatprep.subr.mxu0 0.0
    %v6126 = vand.u32 %v3796, 4294901760
    %v6127 = vsub.f32 %v3796, %v6126
    %6128 = vmatpush2.xpose.msra.mxu0 %v6127
    %6129 = vmatprep.subr.mxu0 0.0
    %v6130 = vand.u32 %v3793, 4294901760
    %v6131 = vsub.f32 %v3793, %v6130
    %6132 = vmatpush2.xpose.msra.mxu0 %v6131
    %6133 = vmatprep.subr.mxu0 0.0
    %v6134 = vand.u32 %v3790, 4294901760
    %v6135 = vsub.f32 %v3790, %v6134
    %6136 = vmatpush2.xpose.msra.mxu0 %v6135
    %6137 = vmatprep.subr.mxu0 0.0
    %v6138 = vand.u32 %v3787, 4294901760
    %v6139 = vsub.f32 %v3787, %v6138
    %6140 = vmatpush2.xpose.msra.mxu0 %v6139
    %6141 = vmatprep.subr.mxu0 0.0
    %v6142 = vand.u32 %v3784, 4294901760
    %v6143 = vsub.f32 %v3784, %v6142
    %6144 = vmatpush2.xpose.msra.mxu0 %v6143
    %6145 = vmatprep.subr.mxu0 0.0
    %v6146 = vand.u32 %v3781, 4294901760
    %v6147 = vsub.f32 %v3781, %v6146
    %6148 = vmatpush2.xpose.msra.mxu0 %v6147
    %6149 = vmatprep.subr.mxu0 0.0
    %v6150 = vand.u32 %v3778, 4294901760
    %v6151 = vsub.f32 %v3778, %v6150
    %6152 = vmatpush2.xpose.msra.mxu0 %v6151
    %6153 = vmatprep.mubr.f32.mxu0 0.0
    %v6154 = vand.u32 %v3586, 4294901760
    %v6155 = vsub.f32 %v3586, %v6154
    %6156 = vmatmul.mubr.f32.gmra.mxu0 %v6155
    %v6157 = vpop.f32.mrf.mxu0
    %v6158 = vadd.f32 %v5916, %v6157
    %v6159 = vpop.f32.mrf.mxu0
    %v6160 = vadd.f32 %v5918, %v6159
    %6161 = vmatprep.mubr.f32.mxu0 0.0
    %v6162 = vand.u32 %v3589, 4294901760
    %v6163 = vsub.f32 %v3589, %v6162
    %6164 = vmatmul.mubr.f32.gmra.mxu0 %v6163
    %v6165 = vpop.f32.mrf.mxu0
    %v6166 = vadd.f32 %v5923, %v6165
    %v6167 = vpop.f32.mrf.mxu0
    %v6168 = vadd.f32 %v5925, %v6167
    %6169 = vmatprep.mubr.f32.mxu0 0.0
    %v6170 = vand.u32 %v3592, 4294901760
    %v6171 = vsub.f32 %v3592, %v6170
    %6172 = vmatmul.mubr.f32.gmra.mxu0 %v6171
    %v6173 = vpop.f32.mrf.mxu0
    %v6174 = vadd.f32 %v5930, %v6173
    %v6175 = vpop.f32.mrf.mxu0
    %v6176 = vadd.f32 %v5932, %v6175
    %6177 = vmatprep.mubr.f32.mxu0 0.0
    %v6178 = vand.u32 %v3595, 4294901760
    %v6179 = vsub.f32 %v3595, %v6178
    %6180 = vmatmul.mubr.f32.gmra.mxu0 %v6179
    %v6181 = vpop.f32.mrf.mxu0
    %v6182 = vadd.f32 %v5937, %v6181
    %v6183 = vpop.f32.mrf.mxu0
    %v6184 = vadd.f32 %v5939, %v6183
    %6185 = vmatprep.mubr.f32.mxu0 0.0
    %v6186 = vand.u32 %v3598, 4294901760
    %v6187 = vsub.f32 %v3598, %v6186
    %6188 = vmatmul.mubr.f32.gmra.mxu0 %v6187
    %v6189 = vpop.f32.mrf.mxu0
    %v6190 = vadd.f32 %v5944, %v6189
    %v6191 = vpop.f32.mrf.mxu0
    %v6192 = vadd.f32 %v5946, %v6191
    %6193 = vmatprep.mubr.f32.mxu0 0.0
    %v6194 = vand.u32 %v3601, 4294901760
    %v6195 = vsub.f32 %v3601, %v6194
    %6196 = vmatmul.mubr.f32.gmra.mxu0 %v6195
    %v6197 = vpop.f32.mrf.mxu0
    %v6198 = vadd.f32 %v5951, %v6197
    %v6199 = vpop.f32.mrf.mxu0
    %v6200 = vadd.f32 %v5953, %v6199
    %6201 = vmatprep.mubr.f32.mxu0 0.0
    %v6202 = vand.u32 %v3604, 4294901760
    %v6203 = vsub.f32 %v3604, %v6202
    %6204 = vmatmul.mubr.f32.gmra.mxu0 %v6203
    %v6205 = vpop.f32.mrf.mxu0
    %v6206 = vadd.f32 %v5958, %v6205
    %v6207 = vpop.f32.mrf.mxu0
    %v6208 = vadd.f32 %v5960, %v6207
    %6209 = vmatprep.mubr.f32.mxu0 0.0
    %v6210 = vand.u32 %v3607, 4294901760
    %v6211 = vsub.f32 %v3607, %v6210
    %6212 = vmatmul.mubr.f32.gmra.mxu0 %v6211
    %v6213 = vpop.f32.mrf.mxu0
    %v6214 = vadd.f32 %v5965, %v6213
    %v6215 = vpop.f32.mrf.mxu0
    %v6216 = vadd.f32 %v5967, %v6215
    %6217 = vmatprep.mubr.f32.mxu0 0.0
    %v6218 = vand.u32 %v3610, 4294901760
    %v6219 = vsub.f32 %v3610, %v6218
    %6220 = vmatmul.mubr.f32.gmra.mxu0 %v6219
    %v6221 = vpop.f32.mrf.mxu0
    %v6222 = vadd.f32 %v5972, %v6221
    %v6223 = vpop.f32.mrf.mxu0
    %v6224 = vadd.f32 %v5974, %v6223
    %6225 = vmatprep.mubr.f32.mxu0 0.0
    %v6226 = vand.u32 %v3613, 4294901760
    %v6227 = vsub.f32 %v3613, %v6226
    %6228 = vmatmul.mubr.f32.gmra.mxu0 %v6227
    %v6229 = vpop.f32.mrf.mxu0
    %v6230 = vadd.f32 %v5979, %v6229
    %v6231 = vpop.f32.mrf.mxu0
    %v6232 = vadd.f32 %v5981, %v6231
    %6233 = vmatprep.mubr.f32.mxu0 0.0
    %v6234 = vand.u32 %v3616, 4294901760
    %v6235 = vsub.f32 %v3616, %v6234
    %6236 = vmatmul.mubr.f32.gmra.mxu0 %v6235
    %v6237 = vpop.f32.mrf.mxu0
    %v6238 = vadd.f32 %v5986, %v6237
    %v6239 = vpop.f32.mrf.mxu0
    %v6240 = vadd.f32 %v5988, %v6239
    %6241 = vmatprep.mubr.f32.mxu0 0.0
    %v6242 = vand.u32 %v3619, 4294901760
    %v6243 = vsub.f32 %v3619, %v6242
    %6244 = vmatmul.mubr.f32.gmra.mxu0 %v6243
    %v6245 = vpop.f32.mrf.mxu0
    %v6246 = vadd.f32 %v5993, %v6245
    %v6247 = vpop.f32.mrf.mxu0
    %v6248 = vadd.f32 %v5995, %v6247
    %6249 = vmatprep.mubr.f32.mxu0 0.0
    %v6250 = vand.u32 %v3622, 4294901760
    %v6251 = vsub.f32 %v3622, %v6250
    %6252 = vmatmul.mubr.f32.gmra.mxu0 %v6251
    %v6253 = vpop.f32.mrf.mxu0
    %v6254 = vadd.f32 %v6000, %v6253
    %v6255 = vpop.f32.mrf.mxu0
    %v6256 = vadd.f32 %v6002, %v6255
    %6257 = vmatprep.mubr.f32.mxu0 0.0
    %v6258 = vand.u32 %v3625, 4294901760
    %v6259 = vsub.f32 %v3625, %v6258
    %6260 = vmatmul.mubr.f32.gmra.mxu0 %v6259
    %v6261 = vpop.f32.mrf.mxu0
    %v6262 = vadd.f32 %v6007, %v6261
    %v6263 = vpop.f32.mrf.mxu0
    %v6264 = vadd.f32 %v6009, %v6263
    %6265 = vmatprep.mubr.f32.mxu0 0.0
    %v6266 = vand.u32 %v3628, 4294901760
    %v6267 = vsub.f32 %v3628, %v6266
    %6268 = vmatmul.mubr.f32.gmra.mxu0 %v6267
    %v6269 = vpop.f32.mrf.mxu0
    %v6270 = vadd.f32 %v6014, %v6269
    %v6271 = vpop.f32.mrf.mxu0
    %v6272 = vadd.f32 %v6016, %v6271
    %6273 = vmatprep.mubr.f32.mxu0 0.0
    %v6274 = vand.u32 %v3631, 4294901760
    %v6275 = vsub.f32 %v3631, %v6274
    %6276 = vmatmul.mubr.f32.gmra.mxu0 %v6275
    %v6277 = vpop.f32.mrf.mxu0
    %v6278 = vadd.f32 %v6021, %v6277
    %v6279 = vpop.f32.mrf.mxu0
    %v6280 = vadd.f32 %v6023, %v6279
    %6281 = vdwg.mxu0
    %6282 = vmatprep.subr.mxu0 0.0
    %v6283 = vand.u32 %v3775, 4294901760
    %6284 = vmatpush1.xpose.msra.mxu0 %v6283
    %6285 = vmatprep.subr.mxu0 0.0
    %v6286 = vand.u32 %v3772, 4294901760
    %6287 = vmatpush1.xpose.msra.mxu0 %v6286
    %6288 = vmatprep.subr.mxu0 0.0
    %v6289 = vand.u32 %v3769, 4294901760
    %6290 = vmatpush1.xpose.msra.mxu0 %v6289
    %6291 = vmatprep.subr.mxu0 0.0
    %v6292 = vand.u32 %v3766, 4294901760
    %6293 = vmatpush1.xpose.msra.mxu0 %v6292
    %6294 = vmatprep.subr.mxu0 0.0
    %v6295 = vand.u32 %v3763, 4294901760
    %6296 = vmatpush1.xpose.msra.mxu0 %v6295
    %6297 = vmatprep.subr.mxu0 0.0
    %v6298 = vand.u32 %v3760, 4294901760
    %6299 = vmatpush1.xpose.msra.mxu0 %v6298
    %6300 = vmatprep.subr.mxu0 0.0
    %v6301 = vand.u32 %v3757, 4294901760
    %6302 = vmatpush1.xpose.msra.mxu0 %v6301
    %6303 = vmatprep.subr.mxu0 0.0
    %v6304 = vand.u32 %v3754, 4294901760
    %6305 = vmatpush1.xpose.msra.mxu0 %v6304
    %6306 = vmatprep.subr.mxu0 0.0
    %v6307 = vand.u32 %v3751, 4294901760
    %6308 = vmatpush1.xpose.msra.mxu0 %v6307
    %6309 = vmatprep.subr.mxu0 0.0
    %v6310 = vand.u32 %v3748, 4294901760
    %6311 = vmatpush1.xpose.msra.mxu0 %v6310
    %6312 = vmatprep.subr.mxu0 0.0
    %v6313 = vand.u32 %v3745, 4294901760
    %6314 = vmatpush1.xpose.msra.mxu0 %v6313
    %6315 = vmatprep.subr.mxu0 0.0
    %v6316 = vand.u32 %v3742, 4294901760
    %6317 = vmatpush1.xpose.msra.mxu0 %v6316
    %6318 = vmatprep.subr.mxu0 0.0
    %v6319 = vand.u32 %v3739, 4294901760
    %6320 = vmatpush1.xpose.msra.mxu0 %v6319
    %6321 = vmatprep.subr.mxu0 0.0
    %v6322 = vand.u32 %v3736, 4294901760
    %6323 = vmatpush1.xpose.msra.mxu0 %v6322
    %6324 = vmatprep.subr.mxu0 0.0
    %v6325 = vand.u32 %v3733, 4294901760
    %6326 = vmatpush1.xpose.msra.mxu0 %v6325
    %6327 = vmatprep.subr.mxu0 0.0
    %v6328 = vand.u32 %v3730, 4294901760
    %6329 = vmatpush1.xpose.msra.mxu0 %v6328
    %6330 = vmatprep.subr.mxu0 0.0
    %v6331 = vand.u32 %v3823, 4294901760
    %6332 = vmatpush2.xpose.msra.mxu0 %v6331
    %6333 = vmatprep.subr.mxu0 0.0
    %v6334 = vand.u32 %v3820, 4294901760
    %6335 = vmatpush2.xpose.msra.mxu0 %v6334
    %6336 = vmatprep.subr.mxu0 0.0
    %v6337 = vand.u32 %v3817, 4294901760
    %6338 = vmatpush2.xpose.msra.mxu0 %v6337
    %6339 = vmatprep.subr.mxu0 0.0
    %v6340 = vand.u32 %v3814, 4294901760
    %6341 = vmatpush2.xpose.msra.mxu0 %v6340
    %6342 = vmatprep.subr.mxu0 0.0
    %v6343 = vand.u32 %v3811, 4294901760
    %6344 = vmatpush2.xpose.msra.mxu0 %v6343
    %6345 = vmatprep.subr.mxu0 0.0
    %v6346 = vand.u32 %v3808, 4294901760
    %6347 = vmatpush2.xpose.msra.mxu0 %v6346
    %6348 = vmatprep.subr.mxu0 0.0
    %v6349 = vand.u32 %v3805, 4294901760
    %6350 = vmatpush2.xpose.msra.mxu0 %v6349
    %6351 = vmatprep.subr.mxu0 0.0
    %v6352 = vand.u32 %v3802, 4294901760
    %6353 = vmatpush2.xpose.msra.mxu0 %v6352
    %6354 = vmatprep.subr.mxu0 0.0
    %v6355 = vand.u32 %v3799, 4294901760
    %6356 = vmatpush2.xpose.msra.mxu0 %v6355
    %6357 = vmatprep.subr.mxu0 0.0
    %v6358 = vand.u32 %v3796, 4294901760
    %6359 = vmatpush2.xpose.msra.mxu0 %v6358
    %6360 = vmatprep.subr.mxu0 0.0
    %v6361 = vand.u32 %v3793, 4294901760
    %6362 = vmatpush2.xpose.msra.mxu0 %v6361
    %6363 = vmatprep.subr.mxu0 0.0
    %v6364 = vand.u32 %v3790, 4294901760
    %6365 = vmatpush2.xpose.msra.mxu0 %v6364
    %6366 = vmatprep.subr.mxu0 0.0
    %v6367 = vand.u32 %v3787, 4294901760
    %6368 = vmatpush2.xpose.msra.mxu0 %v6367
    %6369 = vmatprep.subr.mxu0 0.0
    %v6370 = vand.u32 %v3784, 4294901760
    %6371 = vmatpush2.xpose.msra.mxu0 %v6370
    %6372 = vmatprep.subr.mxu0 0.0
    %v6373 = vand.u32 %v3781, 4294901760
    %6374 = vmatpush2.xpose.msra.mxu0 %v6373
    %6375 = vmatprep.subr.mxu0 0.0
    %v6376 = vand.u32 %v3778, 4294901760
    %6377 = vmatpush2.xpose.msra.mxu0 %v6376
    %6378 = vmatprep.mubr.f32.mxu0 0.0
    %v6379 = vand.u32 %v3586, 4294901760
    %v6380 = vsub.f32 %v3586, %v6379
    %v6381 = vand.u32 %v6380, 4294901760
    %6382 = vmatmul.mubr.f32.gmra.mxu0 %v6381
    %v6383 = vpop.f32.mrf.mxu0
    %v6384 = vadd.f32 %v6158, %v6383
    %v6385 = vpop.f32.mrf.mxu0
    %v6386 = vadd.f32 %v6160, %v6385
    %6387 = vmatprep.mubr.f32.mxu0 0.0
    %v6388 = vand.u32 %v3589, 4294901760
    %v6389 = vsub.f32 %v3589, %v6388
    %v6390 = vand.u32 %v6389, 4294901760
    %6391 = vmatmul.mubr.f32.gmra.mxu0 %v6390
    %v6392 = vpop.f32.mrf.mxu0
    %v6393 = vadd.f32 %v6166, %v6392
    %v6394 = vpop.f32.mrf.mxu0
    %v6395 = vadd.f32 %v6168, %v6394
    %6396 = vmatprep.mubr.f32.mxu0 0.0
    %v6397 = vand.u32 %v3592, 4294901760
    %v6398 = vsub.f32 %v3592, %v6397
    %v6399 = vand.u32 %v6398, 4294901760
    %6400 = vmatmul.mubr.f32.gmra.mxu0 %v6399
    %v6401 = vpop.f32.mrf.mxu0
    %v6402 = vadd.f32 %v6174, %v6401
    %v6403 = vpop.f32.mrf.mxu0
    %v6404 = vadd.f32 %v6176, %v6403
    %6405 = vmatprep.mubr.f32.mxu0 0.0
    %v6406 = vand.u32 %v3595, 4294901760
    %v6407 = vsub.f32 %v3595, %v6406
    %v6408 = vand.u32 %v6407, 4294901760
    %6409 = vmatmul.mubr.f32.gmra.mxu0 %v6408
    %v6410 = vpop.f32.mrf.mxu0
    %v6411 = vadd.f32 %v6182, %v6410
    %v6412 = vpop.f32.mrf.mxu0
    %v6413 = vadd.f32 %v6184, %v6412
    %6414 = vmatprep.mubr.f32.mxu0 0.0
    %v6415 = vand.u32 %v3598, 4294901760
    %v6416 = vsub.f32 %v3598, %v6415
    %v6417 = vand.u32 %v6416, 4294901760
    %6418 = vmatmul.mubr.f32.gmra.mxu0 %v6417
    %v6419 = vpop.f32.mrf.mxu0
    %v6420 = vadd.f32 %v6190, %v6419
    %v6421 = vpop.f32.mrf.mxu0
    %v6422 = vadd.f32 %v6192, %v6421
    %6423 = vmatprep.mubr.f32.mxu0 0.0
    %v6424 = vand.u32 %v3601, 4294901760
    %v6425 = vsub.f32 %v3601, %v6424
    %v6426 = vand.u32 %v6425, 4294901760
    %6427 = vmatmul.mubr.f32.gmra.mxu0 %v6426
    %v6428 = vpop.f32.mrf.mxu0
    %v6429 = vadd.f32 %v6198, %v6428
    %v6430 = vpop.f32.mrf.mxu0
    %v6431 = vadd.f32 %v6200, %v6430
    %6432 = vmatprep.mubr.f32.mxu0 0.0
    %v6433 = vand.u32 %v3604, 4294901760
    %v6434 = vsub.f32 %v3604, %v6433
    %v6435 = vand.u32 %v6434, 4294901760
    %6436 = vmatmul.mubr.f32.gmra.mxu0 %v6435
    %v6437 = vpop.f32.mrf.mxu0
    %v6438 = vadd.f32 %v6206, %v6437
    %v6439 = vpop.f32.mrf.mxu0
    %v6440 = vadd.f32 %v6208, %v6439
    %6441 = vmatprep.mubr.f32.mxu0 0.0
    %v6442 = vand.u32 %v3607, 4294901760
    %v6443 = vsub.f32 %v3607, %v6442
    %v6444 = vand.u32 %v6443, 4294901760
    %6445 = vmatmul.mubr.f32.gmra.mxu0 %v6444
    %v6446 = vpop.f32.mrf.mxu0
    %v6447 = vadd.f32 %v6214, %v6446
    %v6448 = vpop.f32.mrf.mxu0
    %v6449 = vadd.f32 %v6216, %v6448
    %6450 = vmatprep.mubr.f32.mxu0 0.0
    %v6451 = vand.u32 %v3610, 4294901760
    %v6452 = vsub.f32 %v3610, %v6451
    %v6453 = vand.u32 %v6452, 4294901760
    %6454 = vmatmul.mubr.f32.gmra.mxu0 %v6453
    %v6455 = vpop.f32.mrf.mxu0
    %v6456 = vadd.f32 %v6222, %v6455
    %v6457 = vpop.f32.mrf.mxu0
    %v6458 = vadd.f32 %v6224, %v6457
    %6459 = vmatprep.mubr.f32.mxu0 0.0
    %v6460 = vand.u32 %v3613, 4294901760
    %v6461 = vsub.f32 %v3613, %v6460
    %v6462 = vand.u32 %v6461, 4294901760
    %6463 = vmatmul.mubr.f32.gmra.mxu0 %v6462
    %v6464 = vpop.f32.mrf.mxu0
    %v6465 = vadd.f32 %v6230, %v6464
    %v6466 = vpop.f32.mrf.mxu0
    %v6467 = vadd.f32 %v6232, %v6466
    %6468 = vmatprep.mubr.f32.mxu0 0.0
    %v6469 = vand.u32 %v3616, 4294901760
    %v6470 = vsub.f32 %v3616, %v6469
    %v6471 = vand.u32 %v6470, 4294901760
    %6472 = vmatmul.mubr.f32.gmra.mxu0 %v6471
    %v6473 = vpop.f32.mrf.mxu0
    %v6474 = vadd.f32 %v6238, %v6473
    %v6475 = vpop.f32.mrf.mxu0
    %v6476 = vadd.f32 %v6240, %v6475
    %6477 = vmatprep.mubr.f32.mxu0 0.0
    %v6478 = vand.u32 %v3619, 4294901760
    %v6479 = vsub.f32 %v3619, %v6478
    %v6480 = vand.u32 %v6479, 4294901760
    %6481 = vmatmul.mubr.f32.gmra.mxu0 %v6480
    %v6482 = vpop.f32.mrf.mxu0
    %v6483 = vadd.f32 %v6246, %v6482
    %v6484 = vpop.f32.mrf.mxu0
    %v6485 = vadd.f32 %v6248, %v6484
    %6486 = vmatprep.mubr.f32.mxu0 0.0
    %v6487 = vand.u32 %v3622, 4294901760
    %v6488 = vsub.f32 %v3622, %v6487
    %v6489 = vand.u32 %v6488, 4294901760
    %6490 = vmatmul.mubr.f32.gmra.mxu0 %v6489
    %v6491 = vpop.f32.mrf.mxu0
    %v6492 = vadd.f32 %v6254, %v6491
    %v6493 = vpop.f32.mrf.mxu0
    %v6494 = vadd.f32 %v6256, %v6493
    %6495 = vmatprep.mubr.f32.mxu0 0.0
    %v6496 = vand.u32 %v3625, 4294901760
    %v6497 = vsub.f32 %v3625, %v6496
    %v6498 = vand.u32 %v6497, 4294901760
    %6499 = vmatmul.mubr.f32.gmra.mxu0 %v6498
    %v6500 = vpop.f32.mrf.mxu0
    %v6501 = vadd.f32 %v6262, %v6500
    %v6502 = vpop.f32.mrf.mxu0
    %v6503 = vadd.f32 %v6264, %v6502
    %6504 = vmatprep.mubr.f32.mxu0 0.0
    %v6505 = vand.u32 %v3628, 4294901760
    %v6506 = vsub.f32 %v3628, %v6505
    %v6507 = vand.u32 %v6506, 4294901760
    %6508 = vmatmul.mubr.f32.gmra.mxu0 %v6507
    %v6509 = vpop.f32.mrf.mxu0
    %v6510 = vadd.f32 %v6270, %v6509
    %v6511 = vpop.f32.mrf.mxu0
    %v6512 = vadd.f32 %v6272, %v6511
    %6513 = vmatprep.mubr.f32.mxu0 0.0
    %v6514 = vand.u32 %v3631, 4294901760
    %v6515 = vsub.f32 %v3631, %v6514
    %v6516 = vand.u32 %v6515, 4294901760
    %6517 = vmatmul.mubr.f32.gmra.mxu0 %v6516
    %v6518 = vpop.f32.mrf.mxu0
    %v6519 = vadd.f32 %v6278, %v6518
    %v6520 = vpop.f32.mrf.mxu0
    %v6521 = vadd.f32 %v6280, %v6520
    %6522 = vdwg.mxu0
    %6523 = vmatprep.subr.mxu0 0.0
    %v6524 = vand.u32 %v3775, 4294901760
    %v6525 = vsub.f32 %v3775, %v6524
    %v6526 = vand.u32 %v6525, 4294901760
    %6527 = vmatpush1.xpose.msra.mxu0 %v6526
    %6528 = vmatprep.subr.mxu0 0.0
    %v6529 = vand.u32 %v3772, 4294901760
    %v6530 = vsub.f32 %v3772, %v6529
    %v6531 = vand.u32 %v6530, 4294901760
    %6532 = vmatpush1.xpose.msra.mxu0 %v6531
    %6533 = vmatprep.subr.mxu0 0.0
    %v6534 = vand.u32 %v3769, 4294901760
    %v6535 = vsub.f32 %v3769, %v6534
    %v6536 = vand.u32 %v6535, 4294901760
    %6537 = vmatpush1.xpose.msra.mxu0 %v6536
    %6538 = vmatprep.subr.mxu0 0.0
    %v6539 = vand.u32 %v3766, 4294901760
    %v6540 = vsub.f32 %v3766, %v6539
    %v6541 = vand.u32 %v6540, 4294901760
    %6542 = vmatpush1.xpose.msra.mxu0 %v6541
    %6543 = vmatprep.subr.mxu0 0.0
    %v6544 = vand.u32 %v3763, 4294901760
    %v6545 = vsub.f32 %v3763, %v6544
    %v6546 = vand.u32 %v6545, 4294901760
    %6547 = vmatpush1.xpose.msra.mxu0 %v6546
    %6548 = vmatprep.subr.mxu0 0.0
    %v6549 = vand.u32 %v3760, 4294901760
    %v6550 = vsub.f32 %v3760, %v6549
    %v6551 = vand.u32 %v6550, 4294901760
    %6552 = vmatpush1.xpose.msra.mxu0 %v6551
    %6553 = vmatprep.subr.mxu0 0.0
    %v6554 = vand.u32 %v3757, 4294901760
    %v6555 = vsub.f32 %v3757, %v6554
    %v6556 = vand.u32 %v6555, 4294901760
    %6557 = vmatpush1.xpose.msra.mxu0 %v6556
    %6558 = vmatprep.subr.mxu0 0.0
    %v6559 = vand.u32 %v3754, 4294901760
    %v6560 = vsub.f32 %v3754, %v6559
    %v6561 = vand.u32 %v6560, 4294901760
    %6562 = vmatpush1.xpose.msra.mxu0 %v6561
    %6563 = vmatprep.subr.mxu0 0.0
    %v6564 = vand.u32 %v3751, 4294901760
    %v6565 = vsub.f32 %v3751, %v6564
    %v6566 = vand.u32 %v6565, 4294901760
    %6567 = vmatpush1.xpose.msra.mxu0 %v6566
    %6568 = vmatprep.subr.mxu0 0.0
    %v6569 = vand.u32 %v3748, 4294901760
    %v6570 = vsub.f32 %v3748, %v6569
    %v6571 = vand.u32 %v6570, 4294901760
    %6572 = vmatpush1.xpose.msra.mxu0 %v6571
    %6573 = vmatprep.subr.mxu0 0.0
    %v6574 = vand.u32 %v3745, 4294901760
    %v6575 = vsub.f32 %v3745, %v6574
    %v6576 = vand.u32 %v6575, 4294901760
    %6577 = vmatpush1.xpose.msra.mxu0 %v6576
    %6578 = vmatprep.subr.mxu0 0.0
    %v6579 = vand.u32 %v3742, 4294901760
    %v6580 = vsub.f32 %v3742, %v6579
    %v6581 = vand.u32 %v6580, 4294901760
    %6582 = vmatpush1.xpose.msra.mxu0 %v6581
    %6583 = vmatprep.subr.mxu0 0.0
    %v6584 = vand.u32 %v3739, 4294901760
    %v6585 = vsub.f32 %v3739, %v6584
    %v6586 = vand.u32 %v6585, 4294901760
    %6587 = vmatpush1.xpose.msra.mxu0 %v6586
    %6588 = vmatprep.subr.mxu0 0.0
    %v6589 = vand.u32 %v3736, 4294901760
    %v6590 = vsub.f32 %v3736, %v6589
    %v6591 = vand.u32 %v6590, 4294901760
    %6592 = vmatpush1.xpose.msra.mxu0 %v6591
    %6593 = vmatprep.subr.mxu0 0.0
    %v6594 = vand.u32 %v3733, 4294901760
    %v6595 = vsub.f32 %v3733, %v6594
    %v6596 = vand.u32 %v6595, 4294901760
    %6597 = vmatpush1.xpose.msra.mxu0 %v6596
    %6598 = vmatprep.subr.mxu0 0.0
    %v6599 = vand.u32 %v3730, 4294901760
    %v6600 = vsub.f32 %v3730, %v6599
    %v6601 = vand.u32 %v6600, 4294901760
    %6602 = vmatpush1.xpose.msra.mxu0 %v6601
    %6603 = vmatprep.subr.mxu0 0.0
    %v6604 = vand.u32 %v3823, 4294901760
    %v6605 = vsub.f32 %v3823, %v6604
    %v6606 = vand.u32 %v6605, 4294901760
    %6607 = vmatpush2.xpose.msra.mxu0 %v6606
    %6608 = vmatprep.subr.mxu0 0.0
    %v6609 = vand.u32 %v3820, 4294901760
    %v6610 = vsub.f32 %v3820, %v6609
    %v6611 = vand.u32 %v6610, 4294901760
    %6612 = vmatpush2.xpose.msra.mxu0 %v6611
    %6613 = vmatprep.subr.mxu0 0.0
    %v6614 = vand.u32 %v3817, 4294901760
    %v6615 = vsub.f32 %v3817, %v6614
    %v6616 = vand.u32 %v6615, 4294901760
    %6617 = vmatpush2.xpose.msra.mxu0 %v6616
    %6618 = vmatprep.subr.mxu0 0.0
    %v6619 = vand.u32 %v3814, 4294901760
    %v6620 = vsub.f32 %v3814, %v6619
    %v6621 = vand.u32 %v6620, 4294901760
    %6622 = vmatpush2.xpose.msra.mxu0 %v6621
    %6623 = vmatprep.subr.mxu0 0.0
    %v6624 = vand.u32 %v3811, 4294901760
    %v6625 = vsub.f32 %v3811, %v6624
    %v6626 = vand.u32 %v6625, 4294901760
    %6627 = vmatpush2.xpose.msra.mxu0 %v6626
    %6628 = vmatprep.subr.mxu0 0.0
    %v6629 = vand.u32 %v3808, 4294901760
    %v6630 = vsub.f32 %v3808, %v6629
    %v6631 = vand.u32 %v6630, 4294901760
    %6632 = vmatpush2.xpose.msra.mxu0 %v6631
    %6633 = vmatprep.subr.mxu0 0.0
    %v6634 = vand.u32 %v3805, 4294901760
    %v6635 = vsub.f32 %v3805, %v6634
    %v6636 = vand.u32 %v6635, 4294901760
    %6637 = vmatpush2.xpose.msra.mxu0 %v6636
    %6638 = vmatprep.subr.mxu0 0.0
    %v6639 = vand.u32 %v3802, 4294901760
    %v6640 = vsub.f32 %v3802, %v6639
    %v6641 = vand.u32 %v6640, 4294901760
    %6642 = vmatpush2.xpose.msra.mxu0 %v6641
    %6643 = vmatprep.subr.mxu0 0.0
    %v6644 = vand.u32 %v3799, 4294901760
    %v6645 = vsub.f32 %v3799, %v6644
    %v6646 = vand.u32 %v6645, 4294901760
    %6647 = vmatpush2.xpose.msra.mxu0 %v6646
    %6648 = vmatprep.subr.mxu0 0.0
    %v6649 = vand.u32 %v3796, 4294901760
    %v6650 = vsub.f32 %v3796, %v6649
    %v6651 = vand.u32 %v6650, 4294901760
    %6652 = vmatpush2.xpose.msra.mxu0 %v6651
    %6653 = vmatprep.subr.mxu0 0.0
    %v6654 = vand.u32 %v3793, 4294901760
    %v6655 = vsub.f32 %v3793, %v6654
    %v6656 = vand.u32 %v6655, 4294901760
    %6657 = vmatpush2.xpose.msra.mxu0 %v6656
    %6658 = vmatprep.subr.mxu0 0.0
    %v6659 = vand.u32 %v3790, 4294901760
    %v6660 = vsub.f32 %v3790, %v6659
    %v6661 = vand.u32 %v6660, 4294901760
    %6662 = vmatpush2.xpose.msra.mxu0 %v6661
    %6663 = vmatprep.subr.mxu0 0.0
    %v6664 = vand.u32 %v3787, 4294901760
    %v6665 = vsub.f32 %v3787, %v6664
    %v6666 = vand.u32 %v6665, 4294901760
    %6667 = vmatpush2.xpose.msra.mxu0 %v6666
    %6668 = vmatprep.subr.mxu0 0.0
    %v6669 = vand.u32 %v3784, 4294901760
    %v6670 = vsub.f32 %v3784, %v6669
    %v6671 = vand.u32 %v6670, 4294901760
    %6672 = vmatpush2.xpose.msra.mxu0 %v6671
    %6673 = vmatprep.subr.mxu0 0.0
    %v6674 = vand.u32 %v3781, 4294901760
    %v6675 = vsub.f32 %v3781, %v6674
    %v6676 = vand.u32 %v6675, 4294901760
    %6677 = vmatpush2.xpose.msra.mxu0 %v6676
    %6678 = vmatprep.subr.mxu0 0.0
    %v6679 = vand.u32 %v3778, 4294901760
    %v6680 = vsub.f32 %v3778, %v6679
    %v6681 = vand.u32 %v6680, 4294901760
    %6682 = vmatpush2.xpose.msra.mxu0 %v6681
    %6683 = vmatprep.mubr.f32.mxu0 0.0
    %v6684 = vand.u32 %v3586, 4294901760
    %6685 = vmatmul.mubr.f32.gmra.mxu0 %v6684
    %v6686 = vpop.f32.mrf.mxu0
    %v6687 = vadd.f32 %v6384, %v6686
    %v6688 = vpop.f32.mrf.mxu0
    %v6689 = vadd.f32 %v6386, %v6688
    %6690 = vmatprep.mubr.f32.mxu0 0.0
    %v6691 = vand.u32 %v3589, 4294901760
    %6692 = vmatmul.mubr.f32.gmra.mxu0 %v6691
    %v6693 = vpop.f32.mrf.mxu0
    %v6694 = vadd.f32 %v6393, %v6693
    %v6695 = vpop.f32.mrf.mxu0
    %v6696 = vadd.f32 %v6395, %v6695
    %6697 = vmatprep.mubr.f32.mxu0 0.0
    %v6698 = vand.u32 %v3592, 4294901760
    %6699 = vmatmul.mubr.f32.gmra.mxu0 %v6698
    %v6700 = vpop.f32.mrf.mxu0
    %v6701 = vadd.f32 %v6402, %v6700
    %v6702 = vpop.f32.mrf.mxu0
    %v6703 = vadd.f32 %v6404, %v6702
    %6704 = vmatprep.mubr.f32.mxu0 0.0
    %v6705 = vand.u32 %v3595, 4294901760
    %6706 = vmatmul.mubr.f32.gmra.mxu0 %v6705
    %v6707 = vpop.f32.mrf.mxu0
    %v6708 = vadd.f32 %v6411, %v6707
    %v6709 = vpop.f32.mrf.mxu0
    %v6710 = vadd.f32 %v6413, %v6709
    %6711 = vmatprep.mubr.f32.mxu0 0.0
    %v6712 = vand.u32 %v3598, 4294901760
    %6713 = vmatmul.mubr.f32.gmra.mxu0 %v6712
    %v6714 = vpop.f32.mrf.mxu0
    %v6715 = vadd.f32 %v6420, %v6714
    %v6716 = vpop.f32.mrf.mxu0
    %v6717 = vadd.f32 %v6422, %v6716
    %6718 = vmatprep.mubr.f32.mxu0 0.0
    %v6719 = vand.u32 %v3601, 4294901760
    %6720 = vmatmul.mubr.f32.gmra.mxu0 %v6719
    %v6721 = vpop.f32.mrf.mxu0
    %v6722 = vadd.f32 %v6429, %v6721
    %v6723 = vpop.f32.mrf.mxu0
    %v6724 = vadd.f32 %v6431, %v6723
    %6725 = vmatprep.mubr.f32.mxu0 0.0
    %v6726 = vand.u32 %v3604, 4294901760
    %6727 = vmatmul.mubr.f32.gmra.mxu0 %v6726
    %v6728 = vpop.f32.mrf.mxu0
    %v6729 = vadd.f32 %v6438, %v6728
    %v6730 = vpop.f32.mrf.mxu0
    %v6731 = vadd.f32 %v6440, %v6730
    %6732 = vmatprep.mubr.f32.mxu0 0.0
    %v6733 = vand.u32 %v3607, 4294901760
    %6734 = vmatmul.mubr.f32.gmra.mxu0 %v6733
    %v6735 = vpop.f32.mrf.mxu0
    %v6736 = vadd.f32 %v6447, %v6735
    %v6737 = vpop.f32.mrf.mxu0
    %v6738 = vadd.f32 %v6449, %v6737
    %6739 = vmatprep.mubr.f32.mxu0 0.0
    %v6740 = vand.u32 %v3610, 4294901760
    %6741 = vmatmul.mubr.f32.gmra.mxu0 %v6740
    %v6742 = vpop.f32.mrf.mxu0
    %v6743 = vadd.f32 %v6456, %v6742
    %v6744 = vpop.f32.mrf.mxu0
    %v6745 = vadd.f32 %v6458, %v6744
    %6746 = vmatprep.mubr.f32.mxu0 0.0
    %v6747 = vand.u32 %v3613, 4294901760
    %6748 = vmatmul.mubr.f32.gmra.mxu0 %v6747
    %v6749 = vpop.f32.mrf.mxu0
    %v6750 = vadd.f32 %v6465, %v6749
    %v6751 = vpop.f32.mrf.mxu0
    %v6752 = vadd.f32 %v6467, %v6751
    %6753 = vmatprep.mubr.f32.mxu0 0.0
    %v6754 = vand.u32 %v3616, 4294901760
    %6755 = vmatmul.mubr.f32.gmra.mxu0 %v6754
    %v6756 = vpop.f32.mrf.mxu0
    %v6757 = vadd.f32 %v6474, %v6756
    %v6758 = vpop.f32.mrf.mxu0
    %v6759 = vadd.f32 %v6476, %v6758
    %6760 = vmatprep.mubr.f32.mxu0 0.0
    %v6761 = vand.u32 %v3619, 4294901760
    %6762 = vmatmul.mubr.f32.gmra.mxu0 %v6761
    %v6763 = vpop.f32.mrf.mxu0
    %v6764 = vadd.f32 %v6483, %v6763
    %v6765 = vpop.f32.mrf.mxu0
    %v6766 = vadd.f32 %v6485, %v6765
    %6767 = vmatprep.mubr.f32.mxu0 0.0
    %v6768 = vand.u32 %v3622, 4294901760
    %6769 = vmatmul.mubr.f32.gmra.mxu0 %v6768
    %v6770 = vpop.f32.mrf.mxu0
    %v6771 = vadd.f32 %v6492, %v6770
    %v6772 = vpop.f32.mrf.mxu0
    %v6773 = vadd.f32 %v6494, %v6772
    %6774 = vmatprep.mubr.f32.mxu0 0.0
    %v6775 = vand.u32 %v3625, 4294901760
    %6776 = vmatmul.mubr.f32.gmra.mxu0 %v6775
    %v6777 = vpop.f32.mrf.mxu0
    %v6778 = vadd.f32 %v6501, %v6777
    %v6779 = vpop.f32.mrf.mxu0
    %v6780 = vadd.f32 %v6503, %v6779
    %6781 = vmatprep.mubr.f32.mxu0 0.0
    %v6782 = vand.u32 %v3628, 4294901760
    %6783 = vmatmul.mubr.f32.gmra.mxu0 %v6782
    %v6784 = vpop.f32.mrf.mxu0
    %v6785 = vadd.f32 %v6510, %v6784
    %v6786 = vpop.f32.mrf.mxu0
    %v6787 = vadd.f32 %v6512, %v6786
    %6788 = vmatprep.mubr.f32.mxu0 0.0
    %v6789 = vand.u32 %v3631, 4294901760
    %6790 = vmatmul.mubr.f32.gmra.mxu0 %v6789
    %v6791 = vpop.f32.mrf.mxu0
    %v6792 = vadd.f32 %v6519, %v6791
    %v6793 = vpop.f32.mrf.mxu0
    %v6794 = vadd.f32 %v6521, %v6793
    %6795 = vdwg.mxu0
    %6796 = vmatprep.subr.mxu0 0.0
    %v6797 = vand.u32 %v3775, 4294901760
    %6798 = vmatpush1.xpose.msra.mxu0 %v6797
    %6799 = vmatprep.subr.mxu0 0.0
    %v6800 = vand.u32 %v3772, 4294901760
    %6801 = vmatpush1.xpose.msra.mxu0 %v6800
    %6802 = vmatprep.subr.mxu0 0.0
    %v6803 = vand.u32 %v3769, 4294901760
    %6804 = vmatpush1.xpose.msra.mxu0 %v6803
    %6805 = vmatprep.subr.mxu0 0.0
    %v6806 = vand.u32 %v3766, 4294901760
    %6807 = vmatpush1.xpose.msra.mxu0 %v6806
    %6808 = vmatprep.subr.mxu0 0.0
    %v6809 = vand.u32 %v3763, 4294901760
    %6810 = vmatpush1.xpose.msra.mxu0 %v6809
    %6811 = vmatprep.subr.mxu0 0.0
    %v6812 = vand.u32 %v3760, 4294901760
    %6813 = vmatpush1.xpose.msra.mxu0 %v6812
    %6814 = vmatprep.subr.mxu0 0.0
    %v6815 = vand.u32 %v3757, 4294901760
    %6816 = vmatpush1.xpose.msra.mxu0 %v6815
    %6817 = vmatprep.subr.mxu0 0.0
    %v6818 = vand.u32 %v3754, 4294901760
    %6819 = vmatpush1.xpose.msra.mxu0 %v6818
    %6820 = vmatprep.subr.mxu0 0.0
    %v6821 = vand.u32 %v3751, 4294901760
    %6822 = vmatpush1.xpose.msra.mxu0 %v6821
    %6823 = vmatprep.subr.mxu0 0.0
    %v6824 = vand.u32 %v3748, 4294901760
    %6825 = vmatpush1.xpose.msra.mxu0 %v6824
    %6826 = vmatprep.subr.mxu0 0.0
    %v6827 = vand.u32 %v3745, 4294901760
    %6828 = vmatpush1.xpose.msra.mxu0 %v6827
    %6829 = vmatprep.subr.mxu0 0.0
    %v6830 = vand.u32 %v3742, 4294901760
    %6831 = vmatpush1.xpose.msra.mxu0 %v6830
    %6832 = vmatprep.subr.mxu0 0.0
    %v6833 = vand.u32 %v3739, 4294901760
    %6834 = vmatpush1.xpose.msra.mxu0 %v6833
    %6835 = vmatprep.subr.mxu0 0.0
    %v6836 = vand.u32 %v3736, 4294901760
    %6837 = vmatpush1.xpose.msra.mxu0 %v6836
    %6838 = vmatprep.subr.mxu0 0.0
    %v6839 = vand.u32 %v3733, 4294901760
    %6840 = vmatpush1.xpose.msra.mxu0 %v6839
    %6841 = vmatprep.subr.mxu0 0.0
    %v6842 = vand.u32 %v3730, 4294901760
    %6843 = vmatpush1.xpose.msra.mxu0 %v6842
    %6844 = vmatprep.subr.mxu0 0.0
    %v6845 = vand.u32 %v3823, 4294901760
    %6846 = vmatpush2.xpose.msra.mxu0 %v6845
    %6847 = vmatprep.subr.mxu0 0.0
    %v6848 = vand.u32 %v3820, 4294901760
    %6849 = vmatpush2.xpose.msra.mxu0 %v6848
    %6850 = vmatprep.subr.mxu0 0.0
    %v6851 = vand.u32 %v3817, 4294901760
    %6852 = vmatpush2.xpose.msra.mxu0 %v6851
    %6853 = vmatprep.subr.mxu0 0.0
    %v6854 = vand.u32 %v3814, 4294901760
    %6855 = vmatpush2.xpose.msra.mxu0 %v6854
    %6856 = vmatprep.subr.mxu0 0.0
    %v6857 = vand.u32 %v3811, 4294901760
    %6858 = vmatpush2.xpose.msra.mxu0 %v6857
    %6859 = vmatprep.subr.mxu0 0.0
    %v6860 = vand.u32 %v3808, 4294901760
    %6861 = vmatpush2.xpose.msra.mxu0 %v6860
    %6862 = vmatprep.subr.mxu0 0.0
    %v6863 = vand.u32 %v3805, 4294901760
    %6864 = vmatpush2.xpose.msra.mxu0 %v6863
    %6865 = vmatprep.subr.mxu0 0.0
    %v6866 = vand.u32 %v3802, 4294901760
    %6867 = vmatpush2.xpose.msra.mxu0 %v6866
    %6868 = vmatprep.subr.mxu0 0.0
    %v6869 = vand.u32 %v3799, 4294901760
    %6870 = vmatpush2.xpose.msra.mxu0 %v6869
    %6871 = vmatprep.subr.mxu0 0.0
    %v6872 = vand.u32 %v3796, 4294901760
    %6873 = vmatpush2.xpose.msra.mxu0 %v6872
    %6874 = vmatprep.subr.mxu0 0.0
    %v6875 = vand.u32 %v3793, 4294901760
    %6876 = vmatpush2.xpose.msra.mxu0 %v6875
    %6877 = vmatprep.subr.mxu0 0.0
    %v6878 = vand.u32 %v3790, 4294901760
    %6879 = vmatpush2.xpose.msra.mxu0 %v6878
    %6880 = vmatprep.subr.mxu0 0.0
    %v6881 = vand.u32 %v3787, 4294901760
    %6882 = vmatpush2.xpose.msra.mxu0 %v6881
    %6883 = vmatprep.subr.mxu0 0.0
    %v6884 = vand.u32 %v3784, 4294901760
    %6885 = vmatpush2.xpose.msra.mxu0 %v6884
    %6886 = vmatprep.subr.mxu0 0.0
    %v6887 = vand.u32 %v3781, 4294901760
    %6888 = vmatpush2.xpose.msra.mxu0 %v6887
    %6889 = vmatprep.subr.mxu0 0.0
    %v6890 = vand.u32 %v3778, 4294901760
    %6891 = vmatpush2.xpose.msra.mxu0 %v6890
    %6892 = vmatprep.mubr.f32.mxu0 0.0
    %v6893 = vand.u32 %v3586, 4294901760
    %6894 = vmatmul.mubr.f32.gmra.mxu0 %v6893
    %v6895 = vpop.f32.mrf.mxu0
    %v6896 = vadd.f32 %v6687, %v6895
    %v6897 = vpop.f32.mrf.mxu0
    %v6898 = vadd.f32 %v6689, %v6897
    %6899 = vmatprep.mubr.f32.mxu0 0.0
    %v6900 = vand.u32 %v3589, 4294901760
    %6901 = vmatmul.mubr.f32.gmra.mxu0 %v6900
    %v6902 = vpop.f32.mrf.mxu0
    %v6903 = vadd.f32 %v6694, %v6902
    %v6904 = vpop.f32.mrf.mxu0
    %v6905 = vadd.f32 %v6696, %v6904
    %6906 = vmatprep.mubr.f32.mxu0 0.0
    %v6907 = vand.u32 %v3592, 4294901760
    %6908 = vmatmul.mubr.f32.gmra.mxu0 %v6907
    %v6909 = vpop.f32.mrf.mxu0
    %v6910 = vadd.f32 %v6701, %v6909
    %v6911 = vpop.f32.mrf.mxu0
    %v6912 = vadd.f32 %v6703, %v6911
    %6913 = vmatprep.mubr.f32.mxu0 0.0
    %v6914 = vand.u32 %v3595, 4294901760
    %6915 = vmatmul.mubr.f32.gmra.mxu0 %v6914
    %v6916 = vpop.f32.mrf.mxu0
    %v6917 = vadd.f32 %v6708, %v6916
    %v6918 = vpop.f32.mrf.mxu0
    %v6919 = vadd.f32 %v6710, %v6918
    %6920 = vmatprep.mubr.f32.mxu0 0.0
    %v6921 = vand.u32 %v3598, 4294901760
    %6922 = vmatmul.mubr.f32.gmra.mxu0 %v6921
    %v6923 = vpop.f32.mrf.mxu0
    %v6924 = vadd.f32 %v6715, %v6923
    %v6925 = vpop.f32.mrf.mxu0
    %v6926 = vadd.f32 %v6717, %v6925
    %6927 = vmatprep.mubr.f32.mxu0 0.0
    %v6928 = vand.u32 %v3601, 4294901760
    %6929 = vmatmul.mubr.f32.gmra.mxu0 %v6928
    %v6930 = vpop.f32.mrf.mxu0
    %v6931 = vadd.f32 %v6722, %v6930
    %v6932 = vpop.f32.mrf.mxu0
    %v6933 = vadd.f32 %v6724, %v6932
    %6934 = vmatprep.mubr.f32.mxu0 0.0
    %v6935 = vand.u32 %v3604, 4294901760
    %6936 = vmatmul.mubr.f32.gmra.mxu0 %v6935
    %v6937 = vpop.f32.mrf.mxu0
    %v6938 = vadd.f32 %v6729, %v6937
    %v6939 = vpop.f32.mrf.mxu0
    %v6940 = vadd.f32 %v6731, %v6939
    %6941 = vmatprep.mubr.f32.mxu0 0.0
    %v6942 = vand.u32 %v3607, 4294901760
    %6943 = vmatmul.mubr.f32.gmra.mxu0 %v6942
    %v6944 = vpop.f32.mrf.mxu0
    %v6945 = vadd.f32 %v6736, %v6944
    %v6946 = vpop.f32.mrf.mxu0
    %v6947 = vadd.f32 %v6738, %v6946
    %6948 = vmatprep.mubr.f32.mxu0 0.0
    %v6949 = vand.u32 %v3610, 4294901760
    %6950 = vmatmul.mubr.f32.gmra.mxu0 %v6949
    %v6951 = vpop.f32.mrf.mxu0
    %v6952 = vadd.f32 %v6743, %v6951
    %v6953 = vpop.f32.mrf.mxu0
    %v6954 = vadd.f32 %v6745, %v6953
    %6955 = vmatprep.mubr.f32.mxu0 0.0
    %v6956 = vand.u32 %v3613, 4294901760
    %6957 = vmatmul.mubr.f32.gmra.mxu0 %v6956
    %v6958 = vpop.f32.mrf.mxu0
    %v6959 = vadd.f32 %v6750, %v6958
    %v6960 = vpop.f32.mrf.mxu0
    %v6961 = vadd.f32 %v6752, %v6960
    %6962 = vmatprep.mubr.f32.mxu0 0.0
    %v6963 = vand.u32 %v3616, 4294901760
    %6964 = vmatmul.mubr.f32.gmra.mxu0 %v6963
    %v6965 = vpop.f32.mrf.mxu0
    %v6966 = vadd.f32 %v6757, %v6965
    %v6967 = vpop.f32.mrf.mxu0
    %v6968 = vadd.f32 %v6759, %v6967
    %6969 = vmatprep.mubr.f32.mxu0 0.0
    %v6970 = vand.u32 %v3619, 4294901760
    %6971 = vmatmul.mubr.f32.gmra.mxu0 %v6970
    %v6972 = vpop.f32.mrf.mxu0
    %v6973 = vadd.f32 %v6764, %v6972
    %v6974 = vpop.f32.mrf.mxu0
    %v6975 = vadd.f32 %v6766, %v6974
    %6976 = vmatprep.mubr.f32.mxu0 0.0
    %v6977 = vand.u32 %v3622, 4294901760
    %6978 = vmatmul.mubr.f32.gmra.mxu0 %v6977
    %v6979 = vpop.f32.mrf.mxu0
    %v6980 = vadd.f32 %v6771, %v6979
    %v6981 = vpop.f32.mrf.mxu0
    %v6982 = vadd.f32 %v6773, %v6981
    %6983 = vmatprep.mubr.f32.mxu0 0.0
    %v6984 = vand.u32 %v3625, 4294901760
    %6985 = vmatmul.mubr.f32.gmra.mxu0 %v6984
    %v6986 = vpop.f32.mrf.mxu0
    %v6987 = vadd.f32 %v6778, %v6986
    %v6988 = vpop.f32.mrf.mxu0
    %v6989 = vadd.f32 %v6780, %v6988
    %6990 = vmatprep.mubr.f32.mxu0 0.0
    %v6991 = vand.u32 %v3628, 4294901760
    %6992 = vmatmul.mubr.f32.gmra.mxu0 %v6991
    %v6993 = vpop.f32.mrf.mxu0
    %v6994 = vadd.f32 %v6785, %v6993
    %v6995 = vpop.f32.mrf.mxu0
    %v6996 = vadd.f32 %v6787, %v6995
    %6997 = vmatprep.mubr.f32.mxu0 0.0
    %v6998 = vand.u32 %v3631, 4294901760
    %6999 = vmatmul.mubr.f32.gmra.mxu0 %v6998
    %v7000 = vpop.f32.mrf.mxu0
    %v7001 = vadd.f32 %v6792, %v7000
    %v7002 = vpop.f32.mrf.mxu0
    %v7003 = vadd.f32 %v6794, %v7002
    %7004 = vdwg.mxu0
    %v7005 = vld [vmem:[#allocation5] sm:$0xff]
    %v7006 = vld [vmem:[#allocation5 + $0x8] sm:$0xff]
    %v7007 = vld [vmem:[#allocation5 + $0x10] sm:$0xff]
    %v7008 = vld [vmem:[#allocation5 + $0x18] sm:$0xff]
    %v7009 = vld [vmem:[#allocation5 + $0x20] sm:$0xff]
    %v7010 = vld [vmem:[#allocation5 + $0x28] sm:$0xff]
    %v7011 = vld [vmem:[#allocation5 + $0x30] sm:$0xff]
    %v7012 = vld [vmem:[#allocation5 + $0x38] sm:$0xff]
    %v7013 = vld [vmem:[#allocation5 + $0x40] sm:$0xff]
    %v7014 = vld [vmem:[#allocation5 + $0x48] sm:$0xff]
    %v7015 = vld [vmem:[#allocation5 + $0x50] sm:$0xff]
    %v7016 = vld [vmem:[#allocation5 + $0x58] sm:$0xff]
    %v7017 = vld [vmem:[#allocation5 + $0x60] sm:$0xff]
    %v7018 = vld [vmem:[#allocation5 + $0x68] sm:$0xff]
    %v7019 = vld [vmem:[#allocation5 + $0x70] sm:$0xff]
    %v7020 = vld [vmem:[#allocation5 + $0x78] sm:$0xff]
    %v7021 = vadd.f32 %v5306, %v5308
    %v7022 = vadd.f32 %v7021, %v6896
    %v7023 = vadd.f32 %v7022, %v6898
    %7024 = vadd.xlane.f32.xlu0 %v7023
    %v7025 = vpop.xlane.xlu0 %7024
    %v7026 = vadd.f32 %v5313, %v5315
    %v7027 = vadd.f32 %v7026, %v6903
    %v7028 = vadd.f32 %v7027, %v6905
    %7029 = vadd.xlane.f32.xlu0 %v7028
    %v7030 = vpop.xlane.xlu0 %7029
    %v7031 = vadd.f32 %v5320, %v5322
    %v7032 = vadd.f32 %v7031, %v6910
    %v7033 = vadd.f32 %v7032, %v6912
    %7034 = vadd.xlane.f32.xlu0 %v7033
    %v7035 = vpop.xlane.xlu0 %7034
    %v7036 = vadd.f32 %v5327, %v5329
    %v7037 = vadd.f32 %v7036, %v6917
    %v7038 = vadd.f32 %v7037, %v6919
    %7039 = vadd.xlane.f32.xlu0 %v7038
    %v7040 = vpop.xlane.xlu0 %7039
    %v7041 = vadd.f32 %v5334, %v5336
    %v7042 = vadd.f32 %v7041, %v6924
    %v7043 = vadd.f32 %v7042, %v6926
    %7044 = vadd.xlane.f32.xlu0 %v7043
    %v7045 = vpop.xlane.xlu0 %7044
    %v7046 = vadd.f32 %v5341, %v5343
    %v7047 = vadd.f32 %v7046, %v6931
    %v7048 = vadd.f32 %v7047, %v6933
    %7049 = vadd.xlane.f32.xlu0 %v7048
    %v7050 = vpop.xlane.xlu0 %7049
    %v7051 = vadd.f32 %v5348, %v5350
    %v7052 = vadd.f32 %v7051, %v6938
    %v7053 = vadd.f32 %v7052, %v6940
    %7054 = vadd.xlane.f32.xlu0 %v7053
    %v7055 = vpop.xlane.xlu0 %7054
    %v7056 = vadd.f32 %v5355, %v5357
    %v7057 = vadd.f32 %v7056, %v6945
    %v7058 = vadd.f32 %v7057, %v6947
    %7059 = vadd.xlane.f32.xlu0 %v7058
    %v7060 = vpop.xlane.xlu0 %7059
    %v7061 = vadd.f32 %v5362, %v5364
    %v7062 = vadd.f32 %v7061, %v6952
    %v7063 = vadd.f32 %v7062, %v6954
    %7064 = vadd.xlane.f32.xlu0 %v7063
    %v7065 = vpop.xlane.xlu0 %7064
    %v7066 = vadd.f32 %v5369, %v5371
    %v7067 = vadd.f32 %v7066, %v6959
    %v7068 = vadd.f32 %v7067, %v6961
    %7069 = vadd.xlane.f32.xlu0 %v7068
    %v7070 = vpop.xlane.xlu0 %7069
    %v7071 = vadd.f32 %v5376, %v5378
    %v7072 = vadd.f32 %v7071, %v6966
    %v7073 = vadd.f32 %v7072, %v6968
    %7074 = vadd.xlane.f32.xlu0 %v7073
    %v7075 = vpop.xlane.xlu0 %7074
    %v7076 = vadd.f32 %v5383, %v5385
    %v7077 = vadd.f32 %v7076, %v6973
    %v7078 = vadd.f32 %v7077, %v6975
    %7079 = vadd.xlane.f32.xlu0 %v7078
    %v7080 = vpop.xlane.xlu0 %7079
    %v7081 = vadd.f32 %v5390, %v5392
    %v7082 = vadd.f32 %v7081, %v6980
    %v7083 = vadd.f32 %v7082, %v6982
    %7084 = vadd.xlane.f32.xlu0 %v7083
    %v7085 = vpop.xlane.xlu0 %7084
    %v7086 = vadd.f32 %v5397, %v5399
    %v7087 = vadd.f32 %v7086, %v6987
    %v7088 = vadd.f32 %v7087, %v6989
    %7089 = vadd.xlane.f32.xlu0 %v7088
    %v7090 = vpop.xlane.xlu0 %7089
    %v7091 = vadd.f32 %v5404, %v5406
    %v7092 = vadd.f32 %v7091, %v6994
    %v7093 = vadd.f32 %v7092, %v6996
    %7094 = vadd.xlane.f32.xlu0 %v7093
    %v7095 = vpop.xlane.xlu0 %7094
    %v7096 = vadd.f32 %v5411, %v5413
    %v7097 = vadd.f32 %v7096, %v7001
    %v7098 = vadd.f32 %v7097, %v7003
    %7099 = vadd.xlane.f32.xlu0 %v7098
    %v7100 = vpop.xlane.xlu0 %7099
    %v7101 = vadd.f32 %v7005, %v7025
    %v7102 = vadd.f32 %v7006, %v7030
    %v7103 = vadd.f32 %v7007, %v7035
    %v7104 = vadd.f32 %v7008, %v7040
    %v7105 = vadd.f32 %v7009, %v7045
    %v7106 = vadd.f32 %v7010, %v7050
    %v7107 = vadd.f32 %v7011, %v7055
    %v7108 = vadd.f32 %v7012, %v7060
    %v7109 = vadd.f32 %v7013, %v7065
    %v7110 = vadd.f32 %v7014, %v7070
    %v7111 = vadd.f32 %v7015, %v7075
    %v7112 = vadd.f32 %v7016, %v7080
    %v7113 = vadd.f32 %v7017, %v7085
    %v7114 = vadd.f32 %v7018, %v7090
    %v7115 = vadd.f32 %v7019, %v7095
    %v7116 = vadd.f32 %v7020, %v7100
    %vm7117 = vcmask 7168
    %7118 = vst.msk [vmem:[#allocation5] sm:$0xff] %vm7117, %v7101
    %7119 = vst.msk [vmem:[#allocation5 + $0x8] sm:$0xff] %vm7117, %v7102
    %7120 = vst.msk [vmem:[#allocation5 + $0x10] sm:$0xff] %vm7117, %v7103
    %7121 = vst.msk [vmem:[#allocation5 + $0x18] sm:$0xff] %vm7117, %v7104
    %7122 = vst.msk [vmem:[#allocation5 + $0x20] sm:$0xff] %vm7117, %v7105
    %7123 = vst.msk [vmem:[#allocation5 + $0x28] sm:$0xff] %vm7117, %v7106
    %7124 = vst.msk [vmem:[#allocation5 + $0x30] sm:$0xff] %vm7117, %v7107
    %7125 = vst.msk [vmem:[#allocation5 + $0x38] sm:$0xff] %vm7117, %v7108
    %7126 = vst.msk [vmem:[#allocation5 + $0x40] sm:$0xff] %vm7117, %v7109
    %7127 = vst.msk [vmem:[#allocation5 + $0x48] sm:$0xff] %vm7117, %v7110
    %7128 = vst.msk [vmem:[#allocation5 + $0x50] sm:$0xff] %vm7117, %v7111
    %7129 = vst.msk [vmem:[#allocation5 + $0x58] sm:$0xff] %vm7117, %v7112
    %7130 = vst.msk [vmem:[#allocation5 + $0x60] sm:$0xff] %vm7117, %v7113
    %7131 = vst.msk [vmem:[#allocation5 + $0x68] sm:$0xff] %vm7117, %v7114
    %7132 = vst.msk [vmem:[#allocation5 + $0x70] sm:$0xff] %vm7117, %v7115
    %7133 = vst.msk [vmem:[#allocation5 + $0x78] sm:$0xff] %vm7117, %v7116
    %v7134 = vld [vmem:[#allocation6] sm:$0xff]
    %v7135 = vld [vmem:[#allocation6 + $0x8] sm:$0xff]
    %v7136 = vld [vmem:[#allocation6 + $0x10] sm:$0xff]
    %v7137 = vld [vmem:[#allocation6 + $0x18] sm:$0xff]
    %v7138 = vld [vmem:[#allocation6 + $0x20] sm:$0xff]
    %v7139 = vld [vmem:[#allocation6 + $0x28] sm:$0xff]
    %v7140 = vld [vmem:[#allocation6 + $0x30] sm:$0xff]
    %v7141 = vld [vmem:[#allocation6 + $0x38] sm:$0xff]
    %v7142 = vld [vmem:[#allocation6 + $0x40] sm:$0xff]
    %v7143 = vld [vmem:[#allocation6 + $0x48] sm:$0xff]
    %v7144 = vld [vmem:[#allocation6 + $0x50] sm:$0xff]
    %v7145 = vld [vmem:[#allocation6 + $0x58] sm:$0xff]
    %v7146 = vld [vmem:[#allocation6 + $0x60] sm:$0xff]
    %v7147 = vld [vmem:[#allocation6 + $0x68] sm:$0xff]
    %v7148 = vld [vmem:[#allocation6 + $0x70] sm:$0xff]
    %v7149 = vld [vmem:[#allocation6 + $0x78] sm:$0xff]
    %v7150 = vmul.f32 %v5306, %v5306
    %v7151 = vmul.f32 %v5308, %v5308
    %v7152 = vmul.f32 %v6896, %v6896
    %v7153 = vmul.f32 %v6898, %v6898
    %v7154 = vmul.f32 %v5313, %v5313
    %v7155 = vmul.f32 %v5315, %v5315
    %v7156 = vmul.f32 %v6903, %v6903
    %v7157 = vmul.f32 %v6905, %v6905
    %v7158 = vmul.f32 %v5320, %v5320
    %v7159 = vmul.f32 %v5322, %v5322
    %v7160 = vmul.f32 %v6910, %v6910
    %v7161 = vmul.f32 %v6912, %v6912
    %v7162 = vmul.f32 %v5327, %v5327
    %v7163 = vmul.f32 %v5329, %v5329
    %v7164 = vmul.f32 %v6917, %v6917
    %v7165 = vmul.f32 %v6919, %v6919
    %v7166 = vmul.f32 %v5334, %v5334
    %v7167 = vmul.f32 %v5336, %v5336
    %v7168 = vmul.f32 %v6924, %v6924
    %v7169 = vmul.f32 %v6926, %v6926
    %v7170 = vmul.f32 %v5341, %v5341
    %v7171 = vmul.f32 %v5343, %v5343
    %v7172 = vmul.f32 %v6931, %v6931
    %v7173 = vmul.f32 %v6933, %v6933
    %v7174 = vmul.f32 %v5348, %v5348
    %v7175 = vmul.f32 %v5350, %v5350
    %v7176 = vmul.f32 %v6938, %v6938
    %v7177 = vmul.f32 %v6940, %v6940
    %v7178 = vmul.f32 %v5355, %v5355
    %v7179 = vmul.f32 %v5357, %v5357
    %v7180 = vmul.f32 %v6945, %v6945
    %v7181 = vmul.f32 %v6947, %v6947
    %v7182 = vmul.f32 %v5362, %v5362
    %v7183 = vmul.f32 %v5364, %v5364
    %v7184 = vmul.f32 %v6952, %v6952
    %v7185 = vmul.f32 %v6954, %v6954
    %v7186 = vmul.f32 %v5369, %v5369
    %v7187 = vmul.f32 %v5371, %v5371
    %v7188 = vmul.f32 %v6959, %v6959
    %v7189 = vmul.f32 %v6961, %v6961
    %v7190 = vmul.f32 %v5376, %v5376
    %v7191 = vmul.f32 %v5378, %v5378
    %v7192 = vmul.f32 %v6966, %v6966
    %v7193 = vmul.f32 %v6968, %v6968
    %v7194 = vmul.f32 %v5383, %v5383
    %v7195 = vmul.f32 %v5385, %v5385
    %v7196 = vmul.f32 %v6973, %v6973
    %v7197 = vmul.f32 %v6975, %v6975
    %v7198 = vmul.f32 %v5390, %v5390
    %v7199 = vmul.f32 %v5392, %v5392
    %v7200 = vmul.f32 %v6980, %v6980
    %v7201 = vmul.f32 %v6982, %v6982
    %v7202 = vmul.f32 %v5397, %v5397
    %v7203 = vmul.f32 %v5399, %v5399
    %v7204 = vmul.f32 %v6987, %v6987
    %v7205 = vmul.f32 %v6989, %v6989
    %v7206 = vmul.f32 %v5404, %v5404
    %v7207 = vmul.f32 %v5406, %v5406
    %v7208 = vmul.f32 %v6994, %v6994
    %v7209 = vmul.f32 %v6996, %v6996
    %v7210 = vmul.f32 %v5411, %v5411
    %v7211 = vmul.f32 %v5413, %v5413
    %v7212 = vmul.f32 %v7001, %v7001
    %v7213 = vmul.f32 %v7003, %v7003
    %v7214 = vadd.f32 %v7150, %v7151
    %v7215 = vadd.f32 %v7214, %v7152
    %v7216 = vadd.f32 %v7215, %v7153
    %7217 = vadd.xlane.f32.xlu0 %v7216
    %v7218 = vpop.xlane.xlu0 %7217
    %v7219 = vadd.f32 %v7154, %v7155
    %v7220 = vadd.f32 %v7219, %v7156
    %v7221 = vadd.f32 %v7220, %v7157
    %7222 = vadd.xlane.f32.xlu0 %v7221
    %v7223 = vpop.xlane.xlu0 %7222
    %v7224 = vadd.f32 %v7158, %v7159
    %v7225 = vadd.f32 %v7224, %v7160
    %v7226 = vadd.f32 %v7225, %v7161
    %7227 = vadd.xlane.f32.xlu0 %v7226
    %v7228 = vpop.xlane.xlu0 %7227
    %v7229 = vadd.f32 %v7162, %v7163
    %v7230 = vadd.f32 %v7229, %v7164
    %v7231 = vadd.f32 %v7230, %v7165
    %7232 = vadd.xlane.f32.xlu0 %v7231
    %v7233 = vpop.xlane.xlu0 %7232
    %v7234 = vadd.f32 %v7166, %v7167
    %v7235 = vadd.f32 %v7234, %v7168
    %v7236 = vadd.f32 %v7235, %v7169
    %7237 = vadd.xlane.f32.xlu0 %v7236
    %v7238 = vpop.xlane.xlu0 %7237
    %v7239 = vadd.f32 %v7170, %v7171
    %v7240 = vadd.f32 %v7239, %v7172
    %v7241 = vadd.f32 %v7240, %v7173
    %7242 = vadd.xlane.f32.xlu0 %v7241
    %v7243 = vpop.xlane.xlu0 %7242
    %v7244 = vadd.f32 %v7174, %v7175
    %v7245 = vadd.f32 %v7244, %v7176
    %v7246 = vadd.f32 %v7245, %v7177
    %7247 = vadd.xlane.f32.xlu0 %v7246
    %v7248 = vpop.xlane.xlu0 %7247
    %v7249 = vadd.f32 %v7178, %v7179
    %v7250 = vadd.f32 %v7249, %v7180
    %v7251 = vadd.f32 %v7250, %v7181
    %7252 = vadd.xlane.f32.xlu0 %v7251
    %v7253 = vpop.xlane.xlu0 %7252
    %v7254 = vadd.f32 %v7182, %v7183
    %v7255 = vadd.f32 %v7254, %v7184
    %v7256 = vadd.f32 %v7255, %v7185
    %7257 = vadd.xlane.f32.xlu0 %v7256
    %v7258 = vpop.xlane.xlu0 %7257
    %v7259 = vadd.f32 %v7186, %v7187
    %v7260 = vadd.f32 %v7259, %v7188
    %v7261 = vadd.f32 %v7260, %v7189
    %7262 = vadd.xlane.f32.xlu0 %v7261
    %v7263 = vpop.xlane.xlu0 %7262
    %v7264 = vadd.f32 %v7190, %v7191
    %v7265 = vadd.f32 %v7264, %v7192
    %v7266 = vadd.f32 %v7265, %v7193
    %7267 = vadd.xlane.f32.xlu0 %v7266
    %v7268 = vpop.xlane.xlu0 %7267
    %v7269 = vadd.f32 %v7194, %v7195
    %v7270 = vadd.f32 %v7269, %v7196
    %v7271 = vadd.f32 %v7270, %v7197
    %7272 = vadd.xlane.f32.xlu0 %v7271
    %v7273 = vpop.xlane.xlu0 %7272
    %v7274 = vadd.f32 %v7198, %v7199
    %v7275 = vadd.f32 %v7274, %v7200
    %v7276 = vadd.f32 %v7275, %v7201
    %7277 = vadd.xlane.f32.xlu0 %v7276
    %v7278 = vpop.xlane.xlu0 %7277
    %v7279 = vadd.f32 %v7202, %v7203
    %v7280 = vadd.f32 %v7279, %v7204
    %v7281 = vadd.f32 %v7280, %v7205
    %7282 = vadd.xlane.f32.xlu0 %v7281
    %v7283 = vpop.xlane.xlu0 %7282
    %v7284 = vadd.f32 %v7206, %v7207
    %v7285 = vadd.f32 %v7284, %v7208
    %v7286 = vadd.f32 %v7285, %v7209
    %7287 = vadd.xlane.f32.xlu0 %v7286
    %v7288 = vpop.xlane.xlu0 %7287
    %v7289 = vadd.f32 %v7210, %v7211
    %v7290 = vadd.f32 %v7289, %v7212
    %v7291 = vadd.f32 %v7290, %v7213
    %7292 = vadd.xlane.f32.xlu0 %v7291
    %v7293 = vpop.xlane.xlu0 %7292
    %v7294 = vadd.f32 %v7134, %v7218
    %v7295 = vadd.f32 %v7135, %v7223
    %v7296 = vadd.f32 %v7136, %v7228
    %v7297 = vadd.f32 %v7137, %v7233
    %v7298 = vadd.f32 %v7138, %v7238
    %v7299 = vadd.f32 %v7139, %v7243
    %v7300 = vadd.f32 %v7140, %v7248
    %v7301 = vadd.f32 %v7141, %v7253
    %v7302 = vadd.f32 %v7142, %v7258
    %v7303 = vadd.f32 %v7143, %v7263
    %v7304 = vadd.f32 %v7144, %v7268
    %v7305 = vadd.f32 %v7145, %v7273
    %v7306 = vadd.f32 %v7146, %v7278
    %v7307 = vadd.f32 %v7147, %v7283
    %v7308 = vadd.f32 %v7148, %v7288
    %v7309 = vadd.f32 %v7149, %v7293
    %7310 = vst.msk [vmem:[#allocation6] sm:$0xff] %vm7117, %v7294
    %7311 = vst.msk [vmem:[#allocation6 + $0x8] sm:$0xff] %vm7117, %v7295
    %7312 = vst.msk [vmem:[#allocation6 + $0x10] sm:$0xff] %vm7117, %v7296
    %7313 = vst.msk [vmem:[#allocation6 + $0x18] sm:$0xff] %vm7117, %v7297
    %7314 = vst.msk [vmem:[#allocation6 + $0x20] sm:$0xff] %vm7117, %v7298
    %7315 = vst.msk [vmem:[#allocation6 + $0x28] sm:$0xff] %vm7117, %v7299
    %7316 = vst.msk [vmem:[#allocation6 + $0x30] sm:$0xff] %vm7117, %v7300
    %7317 = vst.msk [vmem:[#allocation6 + $0x38] sm:$0xff] %vm7117, %v7301
    %7318 = vst.msk [vmem:[#allocation6 + $0x40] sm:$0xff] %vm7117, %v7302
    %7319 = vst.msk [vmem:[#allocation6 + $0x48] sm:$0xff] %vm7117, %v7303
    %7320 = vst.msk [vmem:[#allocation6 + $0x50] sm:$0xff] %vm7117, %v7304
    %7321 = vst.msk [vmem:[#allocation6 + $0x58] sm:$0xff] %vm7117, %v7305
    %7322 = vst.msk [vmem:[#allocation6 + $0x60] sm:$0xff] %vm7117, %v7306
    %7323 = vst.msk [vmem:[#allocation6 + $0x68] sm:$0xff] %vm7117, %v7307
    %7324 = vst.msk [vmem:[#allocation6 + $0x70] sm:$0xff] %vm7117, %v7308
    %7325 = vst.msk [vmem:[#allocation6 + $0x78] sm:$0xff] %vm7117, %v7309
    %s7326 = smul.u32 0, 64
    %s7327 = smul.addr %s7326, 8
    %s7328 = scalar_lea.vmem [#allocation4], %s7327
    %7329 = vst [vmem:[%s7328] sm:$0xff] %v5306
    %7330 = vst [vmem:[%s7328 + $0x8] sm:$0xff] %v5308
    %7331 = vst [vmem:[%s7328 + $0x10] sm:$0xff] %v6896
    %7332 = vst [vmem:[%s7328 + $0x18] sm:$0xff] %v6898
    %7333 = vst [vmem:[%s7328 + $0x20] sm:$0xff] %v5313
    %7334 = vst [vmem:[%s7328 + $0x28] sm:$0xff] %v5315
    %7335 = vst [vmem:[%s7328 + $0x30] sm:$0xff] %v6903
    %7336 = vst [vmem:[%s7328 + $0x38] sm:$0xff] %v6905
    %7337 = vst [vmem:[%s7328 + $0x40] sm:$0xff] %v5320
    %7338 = vst [vmem:[%s7328 + $0x48] sm:$0xff] %v5322
    %7339 = vst [vmem:[%s7328 + $0x50] sm:$0xff] %v6910
    %7340 = vst [vmem:[%s7328 + $0x58] sm:$0xff] %v6912
    %7341 = vst [vmem:[%s7328 + $0x60] sm:$0xff] %v5327
    %7342 = vst [vmem:[%s7328 + $0x68] sm:$0xff] %v5329
    %7343 = vst [vmem:[%s7328 + $0x70] sm:$0xff] %v6917
    %7344 = vst [vmem:[%s7328 + $0x78] sm:$0xff] %v6919
    %7345 = vst [vmem:[%s7328 + $0x80] sm:$0xff] %v5334
    %7346 = vst [vmem:[%s7328 + $0x88] sm:$0xff] %v5336
    %7347 = vst [vmem:[%s7328 + $0x90] sm:$0xff] %v6924
    %7348 = vst [vmem:[%s7328 + $0x98] sm:$0xff] %v6926
    %7349 = vst [vmem:[%s7328 + $0xa0] sm:$0xff] %v5341
    %7350 = vst [vmem:[%s7328 + $0xa8] sm:$0xff] %v5343
    %7351 = vst [vmem:[%s7328 + $0xb0] sm:$0xff] %v6931
    %7352 = vst [vmem:[%s7328 + $0xb8] sm:$0xff] %v6933
    %7353 = vst [vmem:[%s7328 + $0xc0] sm:$0xff] %v5348
    %7354 = vst [vmem:[%s7328 + $0xc8] sm:$0xff] %v5350
    %7355 = vst [vmem:[%s7328 + $0xd0] sm:$0xff] %v6938
    %7356 = vst [vmem:[%s7328 + $0xd8] sm:$0xff] %v6940
    %7357 = vst [vmem:[%s7328 + $0xe0] sm:$0xff] %v5355
    %7358 = vst [vmem:[%s7328 + $0xe8] sm:$0xff] %v5357
    %7359 = vst [vmem:[%s7328 + $0xf0] sm:$0xff] %v6945
    %7360 = vst [vmem:[%s7328 + $0xf8] sm:$0xff] %v6947
    %7361 = vst [vmem:[%s7328 + $0x100] sm:$0xff] %v5362
    %7362 = vst [vmem:[%s7328 + $0x108] sm:$0xff] %v5364
    %7363 = vst [vmem:[%s7328 + $0x110] sm:$0xff] %v6952
    %7364 = vst [vmem:[%s7328 + $0x118] sm:$0xff] %v6954
    %7365 = vst [vmem:[%s7328 + $0x120] sm:$0xff] %v5369
    %7366 = vst [vmem:[%s7328 + $0x128] sm:$0xff] %v5371
    %7367 = vst [vmem:[%s7328 + $0x130] sm:$0xff] %v6959
    %7368 = vst [vmem:[%s7328 + $0x138] sm:$0xff] %v6961
    %7369 = vst [vmem:[%s7328 + $0x140] sm:$0xff] %v5376
    %7370 = vst [vmem:[%s7328 + $0x148] sm:$0xff] %v5378
    %7371 = vst [vmem:[%s7328 + $0x150] sm:$0xff] %v6966
    %7372 = vst [vmem:[%s7328 + $0x158] sm:$0xff] %v6968
    %7373 = vst [vmem:[%s7328 + $0x160] sm:$0xff] %v5383
    %7374 = vst [vmem:[%s7328 + $0x168] sm:$0xff] %v5385
    %7375 = vst [vmem:[%s7328 + $0x170] sm:$0xff] %v6973
    %7376 = vst [vmem:[%s7328 + $0x178] sm:$0xff] %v6975
    %7377 = vst [vmem:[%s7328 + $0x180] sm:$0xff] %v5390
    %7378 = vst [vmem:[%s7328 + $0x188] sm:$0xff] %v5392
    %7379 = vst [vmem:[%s7328 + $0x190] sm:$0xff] %v6980
    %7380 = vst [vmem:[%s7328 + $0x198] sm:$0xff] %v6982
    %7381 = vst [vmem:[%s7328 + $0x1a0] sm:$0xff] %v5397
    %7382 = vst [vmem:[%s7328 + $0x1a8] sm:$0xff] %v5399
    %7383 = vst [vmem:[%s7328 + $0x1b0] sm:$0xff] %v6987
    %7384 = vst [vmem:[%s7328 + $0x1b8] sm:$0xff] %v6989
    %7385 = vst [vmem:[%s7328 + $0x1c0] sm:$0xff] %v5404
    %7386 = vst [vmem:[%s7328 + $0x1c8] sm:$0xff] %v5406
    %7387 = vst [vmem:[%s7328 + $0x1d0] sm:$0xff] %v6994
    %7388 = vst [vmem:[%s7328 + $0x1d8] sm:$0xff] %v6996
    %7389 = vst [vmem:[%s7328 + $0x1e0] sm:$0xff] %v5411
    %7390 = vst [vmem:[%s7328 + $0x1e8] sm:$0xff] %v5413
    %7391 = vst [vmem:[%s7328 + $0x1f0] sm:$0xff] %v7001
    %7392 = vst [vmem:[%s7328 + $0x1f8] sm:$0xff] %v7003
    // Predicated region
    $region22: #{tpu_custom_call.1} parent=1 // pred_check
      %p7393 = pneg %p18
    $region23: #{tpu_custom_call.1} parent=1 // pred_check_branch
      %7395 = sbr.rel (%p7393) target = $region25
    $region24: #{tpu_custom_call.1} parent=1 // pred_region
      %v7396 = vld [vmem:[#allocation5] sm:$0xff]
      %v7397 = vrcp.pop 512.0
      %v7398 = vmul.f32 %v7396, %v7397
      %v7399 = vld [vmem:[#allocation6] sm:$0xff]
      %v7400 = vmul.f32 %v7399, %v7397
      %v7401 = vmul.f32 %v7398, %v7398
      %v7402 = vsub.f32 %v7400, %v7401
      %v7403 = vmax.f32 %v7402, 0.0
      %v7404 = vadd.f32 %v7403, 1e-05
      %v7405 = vrsqrt.pop %v7404
      %v7406 = vld [vmem:[%s2] sm:$0xff]
      %v7407 = vmul.f32 %v7406, %v7405
      %v7408 = vld [vmem:[%s3] sm:$0xff]
      %v7409 = vmul.f32 %v7398, %v7407
      %v7410 = vsub.f32 %v7408, %v7409
      %v7411 = vld [vmem:[#allocation4] sm:$0xff]
      %v7412 = vld [vmem:[#allocation4 + $0x8] sm:$0xff]
      %v7413 = vld [vmem:[#allocation4 + $0x10] sm:$0xff]
      %v7414 = vld [vmem:[#allocation4 + $0x18] sm:$0xff]
      %7416 = vset.pattern.permute.xlu0 0
      %7417 = vperm.xlu0 %7416, %v7407
      %v7418 = vpop.permute.xlu0 %7417
      %v7420 = vmul.f32 %v7411, %v7418
      %v7421 = vmul.f32 %v7412, %v7418
      %v7422 = vmul.f32 %v7413, %v7418
      %v7423 = vmul.f32 %v7414, %v7418
      %7425 = vset.pattern.permute.xlu0 0
      %7426 = vperm.xlu0 %7425, %v7410
      %v7427 = vpop.permute.xlu0 %7426
      %v7429 = vadd.f32 %v7420, %v7427
      %v7430 = vadd.f32 %v7421, %v7427
      %v7431 = vadd.f32 %v7422, %v7427
      %v7432 = vadd.f32 %v7423, %v7427
      %v7433 = vmax.f32 %v7429, 0.0
      %v7434 = vmax.f32 %v7430, 0.0
      %v7435 = vmax.f32 %v7431, 0.0
      %v7436 = vmax.f32 %v7432, 0.0
      %7437 = vst [vmem:[#allocation7] sm:$0xff] %v7433
      %7438 = vst [vmem:[#allocation7 + $0x8] sm:$0xff] %v7434
      %s7439 = scalar_lea.vmem [#allocation7], 16
      %7440 = vst [vmem:[%s7439] sm:$0xff] %v7435
      %7441 = vst [vmem:[%s7439 + $0x8] sm:$0xff] %v7436
    $region25: #{tpu_custom_call.1} parent=1 // pred_fallthru
      _
    // Predicated region
    $region26: #{tpu_custom_call.1} parent=1 // pred_check
      _
    $region27: #{tpu_custom_call.1} parent=1 // pred_check_branch
      %7443 = sbr.rel (0) target = $region29
    $region28: #{tpu_custom_call.1} parent=1 // pred_region
      %s7445 = ssub.s32 512, 512
      %7446 = vsyncadd [#allocation8], %s7445
      %s7447 = sshll.u32 [#allocation7], 4
      %s7448 = int_to_ptr.vmem [resolvable:$true] %s7447
      %7453 = dma.vmem_to_hbm [thread:$0]  %s7448, 512, %s4, [#allocation8], 256, 256, 16
    $region29: #{tpu_custom_call.1} parent=1 // pred_fallthru
      _
    // Predicated region
    $region30: #{tpu_custom_call.1} parent=1 // pred_check
      _
    $region31: #{tpu_custom_call.1} parent=1 // pred_check_branch
      %7455 = sbr.rel (0) target = $region33
    $region32: #{tpu_custom_call.1} parent=1 // pred_region
      %7456 = dma.done [#allocation8], 512
    $region33: #{tpu_custom_call.1} parent=1 // pred_fallthru
      _
    %7457 = vsyncpa [#allocation8], 1

</llo_original>
